<compile_context>
chip_gen: v7x
topology: tpu7x:2x2x1
jax: 0.10.0
libtpu: 0.0.40
codegen_flags: <defaults>
</compile_context>

<pallas_src>
import functools
import numpy as np
import jax
import jax.numpy as jnp
from jax.experimental import pallas as pl
from jax.experimental.pallas import tpu as pltpu

# Static conv hyper-parameters implied by the PyTorch module (all three convs are
# kernel_size=5, stride=2).  Kept as Python constants so nothing shape-like travels
# through the jitted pytree.
KSIZE = 5
STRIDE = 2


def _round_up(x, m):
    return (x + m - 1) // m * m


# ----------------------------- Pallas kernel ------------------------------ #
def _fused_matmul_kernel(x_ref, w_ref, shift_ref, o_ref, *, apply_relu):
    # out = x @ w + shift [+ relu]   (bf16 inputs, f32 accumulate).
    # BN scale is pre-folded into the weight columns, so the epilogue is a single
    # broadcast add (+ ReLU) -- no per-tile vmul and one fewer input DMA.
    acc = jnp.dot(x_ref[...], w_ref[...], preferred_element_type=jnp.float32)
    acc = acc + shift_ref[...]
    if apply_relu:
        acc = jnp.maximum(acc, 0.0)
    o_ref[...] = acc.astype(o_ref.dtype)


def _choose_tm(M):
    # Small M: one full-array block (block dims equal to the array dims are exempt
    # from the (8,128) divisibility rule, so no padding is ever needed).
    if M <= 512:
        return M
    # Otherwise target a ~4-step grid (>= 2 steps per v7x TensorCore so both cores
    # stay busy and the patch-tile DMA is overlapped); tm is a multiple of 16 for
    # bf16 sublane packing and capped so double-buffered tiles stay well under the
    # 16/32 MiB scoped-VMEM defaults (v5e / v6e+v7x).
    return min(_round_up(pl.cdiv(M, 4), 16), 1024)


def fused_matmul(x, w, shift, *, apply_relu, out_dtype):
    """x: (M, K) bf16, w: (K, N) bf16, shift: (1, N) f32 -> (M, N) out_dtype.

    K and N blocks span the full array extents (exempt from the (8,128) lane rule),
    so no K/N padding.  M is not padded either: the grid uses pl.cdiv and Pallas
    masks the ragged tail block (reads of the tail padding are garbage but only feed
    discarded output rows; tail stores are masked).
    """
    M, K = x.shape
    K2, N = w.shape
    assert K == K2
    tm = _choose_tm(M)
    grid_m = pl.cdiv(M, tm)

    return pl.pallas_call(
        functools.partial(_fused_matmul_kernel, apply_relu=apply_relu),
        out_shape=jax.ShapeDtypeStruct((M, N), out_dtype),
        grid_spec=pltpu.PrefetchScalarGridSpec(
            num_scalar_prefetch=0,
            grid=(grid_m,),
            in_specs=[
                pl.BlockSpec((tm, K), lambda i: (i, 0)),   # patch tile (varies over grid)
                pl.BlockSpec((K, N), lambda i: (0, 0)),    # full weight (constant block idx
                pl.BlockSpec((1, N), lambda i: (0, 0)),    #  -> not re-fetched per step)
            ],
            out_specs=pl.BlockSpec((tm, N), lambda i: (i, 0)),
        ),
        compiler_params=pltpu.CompilerParams(
            dimension_semantics=("parallel",)),
    )(x, w, shift)


# ------------------------------- glue (JAX) -------------------------------- #
def _extract_patches(x_nhwc, ksize, stride, precision=None):
    """Single-op im2col: (N, H, W, C) -> (N, OH, OW, C*k*k)."""
    return jax.lax.conv_general_dilated_patches(
        x_nhwc, (ksize, ksize), (stride, stride), "VALID",
        dimension_numbers=("NHWC", "HWIO", "NHWC"), precision=precision)


def _patch_feature_perm(C, ksize, stride):
    """perm[f] = flat (c, kh, kw) index that feeds patch feature f.

    Discovered empirically with one tiny host-side call at prepare time, so the
    forward never depends on conv_general_dilated_patches' channel ordering.
    """
    idx = np.arange(C * ksize * ksize, dtype=np.float32).reshape(C, ksize, ksize)
    x = jnp.asarray(np.transpose(idx, (1, 2, 0))[None])      # (1, k, k, C) NHWC
    f = _extract_patches(x, ksize, stride, precision=jax.lax.Precision.HIGHEST)
    return np.asarray(f).reshape(-1).round().astype(np.int64)


def conv_bn_relu(x_nhwc, layer, *, out_dtype=jnp.bfloat16):
    """x_nhwc: (N, H, W, C) bf16 -> (N, OH, OW, OC) out_dtype."""
    N, H, W, _ = x_nhwc.shape
    OH = (H - KSIZE) // STRIDE + 1
    OW = (W - KSIZE) // STRIDE + 1
    patches = _extract_patches(x_nhwc, KSIZE, STRIDE)             # (N, OH, OW, k*k*C)
    patches = patches.reshape(N * OH * OW, patches.shape[-1])     # free leading-dim merge
    OC = layer["wmat"].shape[1]
    y = fused_matmul(patches, layer["wmat"], layer["shift"],
                     apply_relu=True, out_dtype=out_dtype)
    return y.reshape(N, OH, OW, OC)


def dqn_forward(pp, x_nchw):
    x = jnp.transpose(x_nchw, (0, 2, 3, 1)).astype(jnp.bfloat16)   # NCHW -> NHWC once
    x = conv_bn_relu(x, pp["c1"])
    x = conv_bn_relu(x, pp["c2"])
    x = conv_bn_relu(x, pp["c3"], out_dtype=jnp.float32)           # keep tiny head input f32
    xf = x.reshape(x.shape[0], -1)                                  # HWC-order flatten
    # Tiny head (2x3200 @ 3200x3, ~19 KFLOP): plain dot; weight pre-permuted to HWC order.
    return jnp.dot(xf, pp["wh_hwc"],
                   precision=jax.lax.Precision.HIGHEST) + pp["bh"]


# ----------------------- one-time parameter preparation --------------------- #
def prepare_params(p, eps=1e-5):
    """Runs once, outside the forward path.  Folds BN scale into the conv weights,
    folds conv-bias/BN-shift into one per-channel shift, reorders weight rows to the
    patch-feature order, casts to bf16, and permutes the head weight to HWC flatten
    order.  Only arrays end up in the returned pytree."""
    pp = {}
    for i, name in ((1, "c1"), (2, "c2"), (3, "c3")):
        w = p[f"w{i}"]                                               # (OC, IC, k, k) OIHW
        OC, IC, k, _ = w.shape
        assert k == KSIZE
        scale = p[f"g{i}"] / jnp.sqrt(p[f"v{i}"] + eps)              # (OC,)
        shift = (p[f"b{i}"] - p[f"m{i}"]) * scale + p[f"be{i}"]      # (OC,)
        perm = _patch_feature_perm(IC, k, STRIDE)                    # (k*k*IC,)
        wflat = w.reshape(OC, IC * k * k)                            # cols in (c,kh,kw) order
        wmat = (wflat[:, perm] * scale[:, None]).T                   # (K, OC), scale folded
        pp[name] = dict(wmat=wmat.astype(jnp.bfloat16),
                        shift=shift.reshape(1, OC).astype(jnp.float32))
    # Head: PyTorch flattens (C=32, H, W); our activations flatten (H, W, C).
    OC3 = p["w3"].shape[0]
    HW = p["wh"].shape[1] // OC3
    side = int(round(HW ** 0.5))
    assert side * side == HW, "head permutation assumes a square feature map"
    wh_hwc = jnp.transpose(p["wh"].reshape(3, OC3, side, side),
                           (2, 3, 1, 0)).reshape(OC3 * HW, 3)
    pp["wh_hwc"] = wh_hwc.astype(jnp.float32)
    pp["bh"] = p["bh"].astype(jnp.float32)
    return pp


# --------------------------- deterministic params --------------------------- #
def init_params(key):
    def conv_init(k, oc, ic, ks):
        kw, kb = jax.random.split(k)
        bound = 1.0 / np.sqrt(ic * ks * ks)
        w = jax.random.uniform(kw, (oc, ic, ks, ks), jnp.float32, -bound, bound)
        b = jax.random.uniform(kb, (oc,), jnp.float32, -bound, bound)
        return w, b

    keys = jax.random.split(key, 8)
    p = {}
    p["w1"], p["b1"] = conv_init(keys[0], 32, 1, 5)
    p["w2"], p["b2"] = conv_init(keys[1], 64, 32, 5)
    p["w3"], p["b3"] = conv_init(keys[2], 32, 64, 5)
    # BatchNorm (inference mode: running_mean=0, running_var=1, learned gamma/beta)
    for i, c, kk in [(1, 32, keys[3]), (2, 64, keys[4]), (3, 32, keys[5])]:
        kg, kb2 = jax.random.split(kk)
        p[f"g{i}"] = 1.0 + 0.1 * jax.random.normal(kg, (c,), jnp.float32)
        p[f"be{i}"] = 0.1 * jax.random.normal(kb2, (c,), jnp.float32)
        p[f"m{i}"] = jnp.zeros((c,), jnp.float32)
        p[f"v{i}"] = jnp.ones((c,), jnp.float32)
    bound = 1.0 / np.sqrt(3200)
    khw, khb = jax.random.split(keys[6])
    p["wh"] = jax.random.uniform(khw, (3, 3200), jnp.float32, -bound, bound)
    p["bh"] = jax.random.uniform(khb, (3,), jnp.float32, -bound, bound)
    return p


# ------------------------------ pure-JAX reference -------------------------- #
def reference_forward(p, x, eps=1e-5):
    hp = jax.lax.Precision.HIGHEST

    def conv(x, w, b, s):
        y = jax.lax.conv_general_dilated(
            x, w, (s, s), "VALID",
            dimension_numbers=("NCHW", "OIHW", "NCHW"), precision=hp)
        return y + b[None, :, None, None]

    def bn(x, g, be, m, v):
        return ((x - m[None, :, None, None])
                / jnp.sqrt(v[None, :, None, None] + eps)
                * g[None, :, None, None] + be[None, :, None, None])

    x = jax.nn.relu(bn(conv(x, p["w1"], p["b1"], 2), p["g1"], p["be1"], p["m1"], p["v1"]))
    x = jax.nn.relu(bn(conv(x, p["w2"], p["b2"], 2), p["g2"], p["be2"], p["m2"], p["v2"]))
    x = jax.nn.relu(bn(conv(x, p["w3"], p["b3"], 2), p["g3"], p["be3"], p["m3"], p["v3"]))
    xf = x.reshape(x.shape[0], -1)
    return jnp.dot(xf, p["wh"].T, precision=hp) + p["bh"]


if __name__ == "__main__":
    key = jax.random.PRNGKey(0)
    kp, kx = jax.random.split(key)
    params = init_params(kp)
    prepped = prepare_params(params)     # one-time weight prep (hoisted out of forward)
    # Input implied by Linear(3200,3): (N, 1, 101, 101) -> conv stack -> (N, 32, 10, 10)
    x = jax.random.normal(kx, (2, 1, 101, 101), jnp.float32)

    fwd = jax.jit(dqn_forward)
    y = jax.block_until_ready(fwd(prepped, x))
    assert y.shape == (2, 3)

    y_ref = jax.block_until_ready(reference_forward(params, x))
    np.testing.assert_allclose(np.asarray(y), np.asarray(y_ref), rtol=2e-2, atol=2e-2)

    print("KERNEL_OK")
</pallas_src>

<mosaic_0001>
module attributes {stable_mosaic.version = 11 : i64} {
  func.func @_fused_matmul_kernel(%arg0: i32, %arg1: memref<1024x25xbf16, #tpu.memory_space<vmem>>, %arg2: memref<25x32xbf16, #tpu.memory_space<vmem>>, %arg3: memref<1x32xf32, #tpu.memory_space<vmem>>, %arg4: memref<1024x32xbf16, #tpu.memory_space<vmem>>) attributes {dimension_semantics = [#tpu.dimension_semantics<parallel>], iteration_bounds = array<i64: 5>, scalar_prefetch = 0 : i64, scratch_operands = 0 : i64, tpu.core_type = #tpu.core_type<tc>, window_params = [{transform_indices = @transform_0, window_bounds = array<i64: 1024, 25>}, {pipeline_mode = #tpu.pipeline_mode<synchronous>, transform_indices = @transform_1, window_bounds = array<i64: 25, 32>}, {pipeline_mode = #tpu.pipeline_mode<synchronous>, transform_indices = @transform_2, window_bounds = array<i64: 1, 32>}, {transform_indices = @transform_3, window_bounds = array<i64: 1024, 32>}]} {
    %c0 = arith.constant 0 : index
    %c0_0 = arith.constant 0 : index
    %0 = vector.load %arg1[%c0, %c0_0] : memref<1024x25xbf16, #tpu.memory_space<vmem>>, vector<1024x25xbf16>
    %c0_1 = arith.constant 0 : index
    %c0_2 = arith.constant 0 : index
    %1 = vector.load %arg2[%c0_1, %c0_2] : memref<25x32xbf16, #tpu.memory_space<vmem>>, vector<25x32xbf16>
    %cst = arith.constant dense<0.000000e+00> : vector<1024x32xf32>
    %2 = tpu.matmul %0, %1, %cst {dimension_numbers = #tpu.dot_dimension_numbers<[1], [0], [0], [1], [0, 0, 1, 1], [], []>} : vector<1024x25xbf16>, vector<25x32xbf16>, vector<1024x32xf32> -> vector<1024x32xf32>
    %c0_3 = arith.constant 0 : index
    %c0_4 = arith.constant 0 : index
    %3 = vector.load %arg3[%c0_3, %c0_4] : memref<1x32xf32, #tpu.memory_space<vmem>>, vector<1x32xf32>
    %4 = vector.broadcast %3 : vector<1x32xf32> to vector<1024x32xf32>
    %5 = arith.addf %2, %4 : vector<1024x32xf32>
    %cst_5 = arith.constant 0.000000e+00 : f32
    %6 = vector.broadcast %cst_5 : f32 to vector<1024x32xf32>
    %7 = arith.maximumf %5, %6 : vector<1024x32xf32>
    %8 = arith.truncf %7 : vector<1024x32xf32> to vector<1024x32xbf16>
    %c0_6 = arith.constant 0 : index
    %c0_7 = arith.constant 0 : index
    %9 = vector.load %arg4[%c0_6, %c0_7] : memref<1024x32xbf16, #tpu.memory_space<vmem>>, vector<1024x32xbf16>
    tpu.vector_store %arg4[%c0_6, %c0_7], %8 {strides = array<i32>} : memref<1024x32xbf16, #tpu.memory_space<vmem>>, vector<1024x32xbf16>,
    return
  }
  func.func @transform_0(%arg0: i32) -> (i32, i32) {
    %c0_i32 = arith.constant 0 : i32
    %c0_i32_0 = arith.constant 0 : i32
    return %arg0, %c0_i32 : i32, i32
  }
  func.func @transform_1(%arg0: i32) -> (i32, i32) {
    %c0_i32 = arith.constant 0 : i32
    %c0_i32_0 = arith.constant 0 : i32
    %c0_i32_1 = arith.constant 0 : i32
    return %c0_i32, %c0_i32_0 : i32, i32
  }
  func.func @transform_2(%arg0: i32) -> (i32, i32) {
    %c0_i32 = arith.constant 0 : i32
    %c0_i32_0 = arith.constant 0 : i32
    %c0_i32_1 = arith.constant 0 : i32
    return %c0_i32, %c0_i32_0 : i32, i32
  }
  func.func @transform_3(%arg0: i32) -> (i32, i32) {
    %c0_i32 = arith.constant 0 : i32
    %c0_i32_0 = arith.constant 0 : i32
    return %arg0, %c0_i32 : i32, i32
  }
}

module attributes {stable_mosaic.version = 11 : i64} {
  func.func @_fused_matmul_kernel(%arg0: i32, %arg1: memref<272x800xbf16, #tpu.memory_space<vmem>>, %arg2: memref<800x64xbf16, #tpu.memory_space<vmem>>, %arg3: memref<1x64xf32, #tpu.memory_space<vmem>>, %arg4: memref<272x64xbf16, #tpu.memory_space<vmem>>) attributes {dimension_semantics = [#tpu.dimension_semantics<parallel>], iteration_bounds = array<i64: 4>, scalar_prefetch = 0 : i64, scratch_operands = 0 : i64, tpu.core_type = #tpu.core_type<tc>, window_params = [{transform_indices = @transform_0, window_bounds = array<i64: 272, 800>}, {pipeline_mode = #tpu.pipeline_mode<synchronous>, transform_indices = @transform_1, window_bounds = array<i64: 800, 64>}, {pipeline_mode = #tpu.pipeline_mode<synchronous>, transform_indices = @transform_2, window_bounds = array<i64: 1, 64>}, {transform_indices = @transform_3, window_bounds = array<i64: 272, 64>}]} {
    %c0 = arith.constant 0 : index
    %c0_0 = arith.constant 0 : index
    %0 = vector.load %arg1[%c0, %c0_0] : memref<272x800xbf16, #tpu.memory_space<vmem>>, vector<272x800xbf16>
    %c0_1 = arith.constant 0 : index
    %c0_2 = arith.constant 0 : index
    %1 = vector.load %arg2[%c0_1, %c0_2] : memref<800x64xbf16, #tpu.memory_space<vmem>>, vector<800x64xbf16>
    %cst = arith.constant dense<0.000000e+00> : vector<272x64xf32>
    %2 = tpu.matmul %0, %1, %cst {dimension_numbers = #tpu.dot_dimension_numbers<[1], [0], [0], [1], [0, 0, 1, 1], [], []>} : vector<272x800xbf16>, vector<800x64xbf16>, vector<272x64xf32> -> vector<272x64xf32>
    %c0_3 = arith.constant 0 : index
    %c0_4 = arith.constant 0 : index
    %3 = vector.load %arg3[%c0_3, %c0_4] : memref<1x64xf32, #tpu.memory_space<vmem>>, vector<1x64xf32>
    %4 = vector.broadcast %3 : vector<1x64xf32> to vector<272x64xf32>
    %5 = arith.addf %2, %4 : vector<272x64xf32>
    %cst_5 = arith.constant 0.000000e+00 : f32
    %6 = vector.broadcast %cst_5 : f32 to vector<272x64xf32>
    %7 = arith.maximumf %5, %6 : vector<272x64xf32>
    %8 = arith.truncf %7 : vector<272x64xf32> to vector<272x64xbf16>
    %c0_6 = arith.constant 0 : index
    %c0_7 = arith.constant 0 : index
    %9 = vector.load %arg4[%c0_6, %c0_7] : memref<272x64xbf16, #tpu.memory_space<vmem>>, vector<272x64xbf16>
    tpu.vector_store %arg4[%c0_6, %c0_7], %8 {strides = array<i32>} : memref<272x64xbf16, #tpu.memory_space<vmem>>, vector<272x64xbf16>,
    return
  }
  func.func @transform_0(%arg0: i32) -> (i32, i32) {
    %c0_i32 = arith.constant 0 : i32
    %c0_i32_0 = arith.constant 0 : i32
    return %arg0, %c0_i32 : i32, i32
  }
  func.func @transform_1(%arg0: i32) -> (i32, i32) {
    %c0_i32 = arith.constant 0 : i32
    %c0_i32_0 = arith.constant 0 : i32
    %c0_i32_1 = arith.constant 0 : i32
    return %c0_i32, %c0_i32_0 : i32, i32
  }
  func.func @transform_2(%arg0: i32) -> (i32, i32) {
    %c0_i32 = arith.constant 0 : i32
    %c0_i32_0 = arith.constant 0 : i32
    %c0_i32_1 = arith.constant 0 : i32
    return %c0_i32, %c0_i32_0 : i32, i32
  }
  func.func @transform_3(%arg0: i32) -> (i32, i32) {
    %c0_i32 = arith.constant 0 : i32
    %c0_i32_0 = arith.constant 0 : i32
    return %arg0, %c0_i32 : i32, i32
  }
}

module attributes {stable_mosaic.version = 11 : i64} {
  func.func @_fused_matmul_kernel(%arg0: i32, %arg1: memref<200x1600xbf16, #tpu.memory_space<vmem>>, %arg2: memref<1600x32xbf16, #tpu.memory_space<vmem>>, %arg3: memref<1x32xf32, #tpu.memory_space<vmem>>, %arg4: memref<200x32xf32, #tpu.memory_space<vmem>>) attributes {dimension_semantics = [#tpu.dimension_semantics<parallel>], iteration_bounds = array<i64: 1>, scalar_prefetch = 0 : i64, scratch_operands = 0 : i64, tpu.core_type = #tpu.core_type<tc>, window_params = [{transform_indices = @transform_0, window_bounds = array<i64: 200, 1600>}, {pipeline_mode = #tpu.pipeline_mode<synchronous>, transform_indices = @transform_1, window_bounds = array<i64: 1600, 32>}, {pipeline_mode = #tpu.pipeline_mode<synchronous>, transform_indices = @transform_2, window_bounds = array<i64: 1, 32>}, {transform_indices = @transform_3, window_bounds = array<i64: 200, 32>}]} {
    %c0 = arith.constant 0 : index
    %c0_0 = arith.constant 0 : index
    %0 = vector.load %arg1[%c0, %c0_0] : memref<200x1600xbf16, #tpu.memory_space<vmem>>, vector<200x1600xbf16>
    %c0_1 = arith.constant 0 : index
    %c0_2 = arith.constant 0 : index
    %1 = vector.load %arg2[%c0_1, %c0_2] : memref<1600x32xbf16, #tpu.memory_space<vmem>>, vector<1600x32xbf16>
    %cst = arith.constant dense<0.000000e+00> : vector<200x32xf32>
    %2 = tpu.matmul %0, %1, %cst {dimension_numbers = #tpu.dot_dimension_numbers<[1], [0], [0], [1], [0, 0, 1, 1], [], []>} : vector<200x1600xbf16>, vector<1600x32xbf16>, vector<200x32xf32> -> vector<200x32xf32>
    %c0_3 = arith.constant 0 : index
    %c0_4 = arith.constant 0 : index
    %3 = vector.load %arg3[%c0_3, %c0_4] : memref<1x32xf32, #tpu.memory_space<vmem>>, vector<1x32xf32>
    %4 = vector.broadcast %3 : vector<1x32xf32> to vector<200x32xf32>
    %5 = arith.addf %2, %4 : vector<200x32xf32>
    %cst_5 = arith.constant 0.000000e+00 : f32
    %6 = vector.broadcast %cst_5 : f32 to vector<200x32xf32>
    %7 = arith.maximumf %5, %6 : vector<200x32xf32>
    %c0_6 = arith.constant 0 : index
    %c0_7 = arith.constant 0 : index
    %8 = vector.load %arg4[%c0_6, %c0_7] : memref<200x32xf32, #tpu.memory_space<vmem>>, vector<200x32xf32>
    tpu.vector_store %arg4[%c0_6, %c0_7], %7 {strides = array<i32>} : memref<200x32xf32, #tpu.memory_space<vmem>>, vector<200x32xf32>,
    return
  }
  func.func @transform_0(%arg0: i32) -> (i32, i32) {
    %c0_i32 = arith.constant 0 : i32
    %c0_i32_0 = arith.constant 0 : i32
    return %arg0, %c0_i32 : i32, i32
  }
  func.func @transform_1(%arg0: i32) -> (i32, i32) {
    %c0_i32 = arith.constant 0 : i32
    %c0_i32_0 = arith.constant 0 : i32
    %c0_i32_1 = arith.constant 0 : i32
    return %c0_i32, %c0_i32_0 : i32, i32
  }
  func.func @transform_2(%arg0: i32) -> (i32, i32) {
    %c0_i32 = arith.constant 0 : i32
    %c0_i32_0 = arith.constant 0 : i32
    %c0_i32_1 = arith.constant 0 : i32
    return %c0_i32, %c0_i32_0 : i32, i32
  }
  func.func @transform_3(%arg0: i32) -> (i32, i32) {
    %c0_i32 = arith.constant 0 : i32
    %c0_i32_0 = arith.constant 0 : i32
    return %arg0, %c0_i32 : i32, i32
  }
}

</mosaic_0001>

<llo_original>
// kernel: dqn_forward.3
$region0: #{dqn_forward.3}
  #allocation0 [shape = 'u32[]', space=smem, size = 0x4, offset = 0x4, fixed_abs, tag = 'smem constant byte address 0x4 - core index']
  #allocation1 [shape = 'u32[144,128]{1,0:T(1,128)}', space=vmem, size = 0x12000, scoped, tag = 'internal scratch']
  %s0 = inlined_call_operand.vmem [shape: bf16[4802,25], index: 0, kind: input, shape index: {}]
  %s1 = inlined_call_operand.vmem [shape: bf16[25,32], index: 1, kind: input, shape index: {}]
  %s2 = inlined_call_operand.vmem [shape: f32[1,32], index: 2, kind: input, shape index: {}]
  %s3 = inlined_call_operand.vmem [shape: bf16[4802,32], index: 3, kind: output, shape index: {}]
  %s4 = sld [smem:[#allocation0]]
  $region89: #{dqn_forward.3} parent=0
    _
  %s6 = ssub.s32 1, %s4
  %s7 = scalar_select 0, %s6, %s4
  $region1: #{dqn_forward.3} parent=0
    #allocation2 [shape = 'u8[524288]{0}', space=vmem, size = 0x80000, scoped, tag = 'output window, operand 0']
    loop: start=0, step=1, limit=7
    $region2: #{dqn_forward.3} parent=1 // loop_pre_header
      _
    $region3: #{dqn_forward.3} parent=1 // loop_header
      %s9 = sphi 0, %s13
      %p10 = scmp.ge.s32.totalorder %s9, 7
      %s19 = sphi 0, %s21
      %s22 = sphi 0, %s19
      %s23 = sphi 0, %s22
      %s39 = sphi 0, %s23
      %s43 = sphi 0, %s43
      %s45 = sphi 0, %s43
      %s46 = sphi 0, %s45
      %s60 = sphi 0, %s46
      %s64 = sphi 0, %s64
      %s66 = sphi 0, %s64
      %s67 = sphi 0, %s66
      %s81 = sphi 0, %s67
      %s87 = sphi 0, %s89
      %s90 = sphi 0, %s87
      %s91 = sphi 0, %s90
      %s107 = sphi 0, %s91
    $region4: #{dqn_forward.3} parent=1 // loop_header_branch
      %12 = sbr.rel (%p10) target = $region8
    $region5: #{dqn_forward.3} parent=1 // loop_body
      %s14 = ssub.s32 %s9, 1
      %s15 = ssub.s32 %s9, 2
      %s16 = sadd.s32 %s9, 1
      %s17 = ssub.s32 %s9, %s16
      %p18 = scmp.eq.s32.totalorder %s17, 0
      %s20 = sadd.s32 %s19, 1
      %s21 = scalar_select %p18, %s19, %s20
      %p24 = pneg %p18
      %p25 = scmp.eq.s32.totalorder %s9, 4
      %p26 = por %p24, %p25
      %p27 = scmp.ne.s32.totalorder %s19, %s22
      %p28 = scmp.eq.s32.totalorder %s9, 0
      %p29 = por %p27, %p28
      %p30 = scmp.ne.s32.totalorder %s19, %s22
      %p31 = scmp.eq.s32.totalorder %s14, 4
      %p32 = por %p30, %p31
      %p33 = scmp.ne.s32.totalorder %s22, %s23
      %p34 = scmp.eq.s32.totalorder %s14, 0
      %p35 = por %p33, %p34
      %p36 = scmp.ne.s32.totalorder %s22, %s23
      %p37 = scmp.eq.s32.totalorder %s15, 4
      %p38 = por %p36, %p37
      %p40 = scmp.ne.s32.totalorder %s23, %s39
      %p41 = scmp.eq.s32.totalorder %s15, 0
      %p42 = por %p40, %p41
      %s44 = sadd.s32 %s43, 1
      %p47 = scmp.eq.s32.totalorder %s9, 4
      %p48 = scmp.ne.s32.totalorder %s43, %s45
      %p49 = scmp.eq.s32.totalorder %s9, 0
      %p50 = por %p48, %p49
      %p51 = scmp.ne.s32.totalorder %s43, %s45
      %p52 = scmp.eq.s32.totalorder %s14, 4
      %p53 = por %p51, %p52
      %p54 = scmp.ne.s32.totalorder %s45, %s46
      %p55 = scmp.eq.s32.totalorder %s14, 0
      %p56 = por %p54, %p55
      %p57 = scmp.ne.s32.totalorder %s45, %s46
      %p58 = scmp.eq.s32.totalorder %s15, 4
      %p59 = por %p57, %p58
      %p61 = scmp.ne.s32.totalorder %s46, %s60
      %p62 = scmp.eq.s32.totalorder %s15, 0
      %p63 = por %p61, %p62
      %s65 = sadd.s32 %s64, 1
      %p68 = scmp.eq.s32.totalorder %s9, 4
      %p69 = scmp.ne.s32.totalorder %s64, %s66
      %p70 = scmp.eq.s32.totalorder %s9, 0
      %p71 = por %p69, %p70
      %p72 = scmp.ne.s32.totalorder %s64, %s66
      %p73 = scmp.eq.s32.totalorder %s14, 4
      %p74 = por %p72, %p73
      %p75 = scmp.ne.s32.totalorder %s66, %s67
      %p76 = scmp.eq.s32.totalorder %s14, 0
      %p77 = por %p75, %p76
      %p78 = scmp.ne.s32.totalorder %s66, %s67
      %p79 = scmp.eq.s32.totalorder %s15, 4
      %p80 = por %p78, %p79
      %p82 = scmp.ne.s32.totalorder %s67, %s81
      %p83 = scmp.eq.s32.totalorder %s15, 0
      %p84 = por %p82, %p83
      %s85 = ssub.s32 %s9, %s16
      %p86 = scmp.eq.s32.totalorder %s85, 0
      %s88 = sadd.s32 %s87, 1
      %s89 = scalar_select %p86, %s87, %s88
      %p92 = pneg %p86
      %p93 = scmp.eq.s32.totalorder %s9, 4
      %p94 = por %p92, %p93
      %p95 = scmp.ne.s32.totalorder %s87, %s90
      %p96 = scmp.eq.s32.totalorder %s9, 0
      %p97 = por %p95, %p96
      %p98 = scmp.ne.s32.totalorder %s87, %s90
      %p99 = scmp.eq.s32.totalorder %s14, 4
      %p100 = por %p98, %p99
      %p101 = scmp.ne.s32.totalorder %s90, %s91
      %p102 = scmp.eq.s32.totalorder %s14, 0
      %p103 = por %p101, %p102
      %p104 = scmp.ne.s32.totalorder %s90, %s91
      %p105 = scmp.eq.s32.totalorder %s15, 4
      %p106 = por %p104, %p105
      %p108 = scmp.ne.s32.totalorder %s91, %s107
      %p109 = scmp.eq.s32.totalorder %s15, 0
      %p110 = por %p108, %p109
      %p111 = scmp.le.s32.totalorder 1, %s9
      %p112 = scmp.lt.s32.totalorder %s9, 6
      %p113 = pnand %p111, %p112
      %p114 = pneg %p113
      // Predicated region
      $region9: #{dqn_forward.3} parent=5 // pred_check
        _
      $region10: #{dqn_forward.3} parent=5 // pred_check_branch
        %116 = sbr.rel (%p113) target = $region12
      $region11: #{dqn_forward.3} parent=5 // pred_region
        %s117 = ssub.s32 %s9, 1
        // Predicated region
        $region13: #{dqn_forward.3} parent=11 // pred_check
          %p118 = pneg %p56
        $region14: #{dqn_forward.3} parent=11 // pred_check_branch
          %120 = sbr.rel (%p118) target = $region16
        $region15: #{dqn_forward.3} parent=11 // pred_region
          _
        $region16: #{dqn_forward.3} parent=11 // pred_fallthru
          _
        // Predicated region
        $region17: #{dqn_forward.3} parent=11 // pred_check
          %p121 = pneg %p77
        $region18: #{dqn_forward.3} parent=11 // pred_check_branch
          %123 = sbr.rel (%p121) target = $region20
        $region19: #{dqn_forward.3} parent=11 // pred_region
          _
        $region20: #{dqn_forward.3} parent=11 // pred_fallthru
          _
      $region12: #{dqn_forward.3} parent=5 // pred_fallthru
        _
      %p124 = scmp.lt.s32.totalorder %s9, 5
      // Predicated region
      $region21: #{dqn_forward.3} parent=5 // pred_check
        %p125 = pneg %p124
      $region22: #{dqn_forward.3} parent=5 // pred_check_branch
        %127 = sbr.rel (%p125) target = $region24
      $region23: #{dqn_forward.3} parent=5 // pred_region
        // Predicated region
        $region25: #{dqn_forward.3} parent=23 // pred_check
          %p128 = pneg %p29
        $region26: #{dqn_forward.3} parent=23 // pred_check_branch
          %130 = sbr.rel (%p128) target = $region28
        $region27: #{dqn_forward.3} parent=23 // pred_region
          %s131 = smul.u32 128, %s9
          %s132 = ssub.s32 601, %s131
          %p133 = scmp.lt.s32.totalorder %s132, 128
          %s134 = scalar_select %p133, %s132, 128
          %s135 = smul.u32 64, %s134
          %p136 = scmp.lt.s32.totalorder %s131, 600
          %s137 = scalar_select %p136, %s131, 600
          %s138 = smul.addr %s137, 4
          %s139 = scalar_lea.vmem %s0, %s138
          %s140 = smul.u32 128, %s9
          %s141 = ssub.s32 601, %s140
          %p142 = scmp.lt.s32.totalorder %s141, 128
          %s143 = scalar_select %p142, %s141, 128
          %s144 = smul.u32 64, %s143
        $region28: #{dqn_forward.3} parent=23 // pred_fallthru
          _
      $region24: #{dqn_forward.3} parent=5 // pred_fallthru
        _
      %p145 = scmp.le.s32.totalorder 1, %s9
      %p146 = scmp.lt.s32.totalorder %s9, 6
      %p147 = pnand %p145, %p146
      %p148 = pneg %p147
      // Predicated region
      $region29: #{dqn_forward.3} parent=5 // pred_check
        _
      $region30: #{dqn_forward.3} parent=5 // pred_check_branch
        %150 = sbr.rel (%p147) target = $region32
      $region31: #{dqn_forward.3} parent=5 // pred_region
        %s151 = ssub.s32 %s9, 1
        %s152 = smul.u32 128, %s14
        %s153 = ssub.s32 601, %s152
        %p154 = scmp.lt.s32.totalorder %s153, 128
        %s155 = scalar_select %p154, %s153, 128
        %s156 = smul.u32 64, %s155
        %p157 = scmp.lt.s32.totalorder %s152, 600
        %s158 = scalar_select %p157, %s152, 600
        %s159 = smul.addr %s158, 4
        %s160 = scalar_lea.vmem %s0, %s159
        %p161 = pneg %p35
        %p162 = pneg %p32
        %p163 = pneg %p56
        %p164 = pneg %p53
        %p165 = pneg %p77
        %p166 = pneg %p74
        %p167 = pneg %p103
        %p168 = pneg %p100
        %s169 = sand.u32 %s90, 1
        %s170 = sand.u32 %s90, 1
        %s171 = smul.addr %s170, 512
        %s172 = scalar_lea.vmem [#allocation2], %s171
        %s173 = smul.u32 128, %s14
        %s174 = ssub.s32 601, %s173
        %p175 = scmp.lt.s32.totalorder %s174, 128
        %s176 = scalar_select %p175, %s174, 128
        %s177 = smul.u32 64, %s176
        %p178 = scmp.lt.s32.totalorder %s173, 600
        %s179 = scalar_select %p178, %s173, 600
        %s180 = smul.addr %s179, 4
        %s181 = scalar_lea.vmem %s0, %s180
        %s182 = smul.u32 128, %s14
        %s183 = ssub.s32 601, %s182
        %p184 = scmp.lt.s32.totalorder %s183, 128
        %s185 = scalar_select %p184, %s183, 128
        %s186 = smul.u32 64, %s185
        %s187 = smul.u32 128, %s14
        %s188 = ssub.s32 601, %s187
        %p189 = scmp.lt.s32.totalorder %s188, 128
        %s190 = scalar_select %p189, %s188, 128
        %s191 = smul.u32 64, %s190
        %v193 = vld [vmem:[%s181] sm:$0xf]
        %v194 = vld [vmem:[%s181 + $0x4] sm:$0xf]
        %v195 = vld [vmem:[%s181 + $0x8] sm:$0xf]
        %v196 = vld [vmem:[%s181 + $0xc] sm:$0xf]
        %v197 = vld [vmem:[%s181 + $0x10] sm:$0xf]
        %v198 = vld [vmem:[%s181 + $0x14] sm:$0xf]
        %v199 = vld [vmem:[%s181 + $0x18] sm:$0xf]
        %v200 = vld [vmem:[%s181 + $0x1c] sm:$0xf]
        %v201 = vld [vmem:[%s181 + $0x20] sm:$0xf]
        %v202 = vld [vmem:[%s181 + $0x24] sm:$0xf]
        %v203 = vld [vmem:[%s181 + $0x28] sm:$0xf]
        %v204 = vld [vmem:[%s181 + $0x2c] sm:$0xf]
        %v205 = vld [vmem:[%s181 + $0x30] sm:$0xf]
        %v206 = vld [vmem:[%s181 + $0x34] sm:$0xf]
        %v207 = vld [vmem:[%s181 + $0x38] sm:$0xf]
        %v208 = vld [vmem:[%s181 + $0x3c] sm:$0xf]
        %v209 = vld [vmem:[%s181 + $0x40] sm:$0xf]
        %v210 = vld [vmem:[%s181 + $0x44] sm:$0xf]
        %v211 = vld [vmem:[%s181 + $0x48] sm:$0xf]
        %v212 = vld [vmem:[%s181 + $0x4c] sm:$0xf]
        %v213 = vld [vmem:[%s181 + $0x50] sm:$0xf]
        %v214 = vld [vmem:[%s181 + $0x54] sm:$0xf]
        %v215 = vld [vmem:[%s181 + $0x58] sm:$0xf]
        %v216 = vld [vmem:[%s181 + $0x5c] sm:$0xf]
        %v217 = vld [vmem:[%s181 + $0x60] sm:$0xf]
        %v218 = vld [vmem:[%s181 + $0x64] sm:$0xf]
        %v219 = vld [vmem:[%s181 + $0x68] sm:$0xf]
        %v220 = vld [vmem:[%s181 + $0x6c] sm:$0xf]
        %v221 = vld [vmem:[%s181 + $0x70] sm:$0xf]
        %v222 = vld [vmem:[%s181 + $0x74] sm:$0xf]
        %v223 = vld [vmem:[%s181 + $0x78] sm:$0xf]
        %v224 = vld [vmem:[%s181 + $0x7c] sm:$0xf]
        %v225 = vld [vmem:[%s181 + $0x80] sm:$0xf]
        %v226 = vld [vmem:[%s181 + $0x84] sm:$0xf]
        %v227 = vld [vmem:[%s181 + $0x88] sm:$0xf]
        %v228 = vld [vmem:[%s181 + $0x8c] sm:$0xf]
        %v229 = vld [vmem:[%s181 + $0x90] sm:$0xf]
        %v230 = vld [vmem:[%s181 + $0x94] sm:$0xf]
        %v231 = vld [vmem:[%s181 + $0x98] sm:$0xf]
        %v232 = vld [vmem:[%s181 + $0x9c] sm:$0xf]
        %v233 = vld [vmem:[%s181 + $0xa0] sm:$0xf]
        %v234 = vld [vmem:[%s181 + $0xa4] sm:$0xf]
        %v235 = vld [vmem:[%s181 + $0xa8] sm:$0xf]
        %v236 = vld [vmem:[%s181 + $0xac] sm:$0xf]
        %v237 = vld [vmem:[%s181 + $0xb0] sm:$0xf]
        %v238 = vld [vmem:[%s181 + $0xb4] sm:$0xf]
        %v239 = vld [vmem:[%s181 + $0xb8] sm:$0xf]
        %v240 = vld [vmem:[%s181 + $0xbc] sm:$0xf]
        %v241 = vld [vmem:[%s181 + $0xc0] sm:$0xf]
        %v242 = vld [vmem:[%s181 + $0xc4] sm:$0xf]
        %v243 = vld [vmem:[%s181 + $0xc8] sm:$0xf]
        %v244 = vld [vmem:[%s181 + $0xcc] sm:$0xf]
        %v245 = vld [vmem:[%s181 + $0xd0] sm:$0xf]
        %v246 = vld [vmem:[%s181 + $0xd4] sm:$0xf]
        %v247 = vld [vmem:[%s181 + $0xd8] sm:$0xf]
        %v248 = vld [vmem:[%s181 + $0xdc] sm:$0xf]
        %v249 = vld [vmem:[%s181 + $0xe0] sm:$0xf]
        %v250 = vld [vmem:[%s181 + $0xe4] sm:$0xf]
        %v251 = vld [vmem:[%s181 + $0xe8] sm:$0xf]
        %v252 = vld [vmem:[%s181 + $0xec] sm:$0xf]
        %v253 = vld [vmem:[%s181 + $0xf0] sm:$0xf]
        %v254 = vld [vmem:[%s181 + $0xf4] sm:$0xf]
        %v255 = vld [vmem:[%s181 + $0xf8] sm:$0xf]
        %v256 = vld [vmem:[%s181 + $0xfc] sm:$0xf]
        %v257 = vld [vmem:[%s181 + $0x100] sm:$0xf]
        %v258 = vld [vmem:[%s181 + $0x104] sm:$0xf]
        %v259 = vld [vmem:[%s181 + $0x108] sm:$0xf]
        %v260 = vld [vmem:[%s181 + $0x10c] sm:$0xf]
        %v261 = vld [vmem:[%s181 + $0x110] sm:$0xf]
        %v262 = vld [vmem:[%s181 + $0x114] sm:$0xf]
        %v263 = vld [vmem:[%s181 + $0x118] sm:$0xf]
        %v264 = vld [vmem:[%s181 + $0x11c] sm:$0xf]
        %v265 = vld [vmem:[%s181 + $0x120] sm:$0xf]
        %v266 = vld [vmem:[%s181 + $0x124] sm:$0xf]
        %v267 = vld [vmem:[%s181 + $0x128] sm:$0xf]
        %v268 = vld [vmem:[%s181 + $0x12c] sm:$0xf]
        %v269 = vld [vmem:[%s181 + $0x130] sm:$0xf]
        %v270 = vld [vmem:[%s181 + $0x134] sm:$0xf]
        %v271 = vld [vmem:[%s181 + $0x138] sm:$0xf]
        %v272 = vld [vmem:[%s181 + $0x13c] sm:$0xf]
        %v273 = vld [vmem:[%s181 + $0x140] sm:$0xf]
        %v274 = vld [vmem:[%s181 + $0x144] sm:$0xf]
        %v275 = vld [vmem:[%s181 + $0x148] sm:$0xf]
        %v276 = vld [vmem:[%s181 + $0x14c] sm:$0xf]
        %v277 = vld [vmem:[%s181 + $0x150] sm:$0xf]
        %v278 = vld [vmem:[%s181 + $0x154] sm:$0xf]
        %v279 = vld [vmem:[%s181 + $0x158] sm:$0xf]
        %v280 = vld [vmem:[%s181 + $0x15c] sm:$0xf]
        %v281 = vld [vmem:[%s181 + $0x160] sm:$0xf]
        %v282 = vld [vmem:[%s181 + $0x164] sm:$0xf]
        %v283 = vld [vmem:[%s181 + $0x168] sm:$0xf]
        %v284 = vld [vmem:[%s181 + $0x16c] sm:$0xf]
        %v285 = vld [vmem:[%s181 + $0x170] sm:$0xf]
        %v286 = vld [vmem:[%s181 + $0x174] sm:$0xf]
        %v287 = vld [vmem:[%s181 + $0x178] sm:$0xf]
        %v288 = vld [vmem:[%s181 + $0x17c] sm:$0xf]
        %v289 = vld [vmem:[%s181 + $0x180] sm:$0xf]
        %v290 = vld [vmem:[%s181 + $0x184] sm:$0xf]
        %v291 = vld [vmem:[%s181 + $0x188] sm:$0xf]
        %v292 = vld [vmem:[%s181 + $0x18c] sm:$0xf]
        %v293 = vld [vmem:[%s181 + $0x190] sm:$0xf]
        %v294 = vld [vmem:[%s181 + $0x194] sm:$0xf]
        %v295 = vld [vmem:[%s181 + $0x198] sm:$0xf]
        %v296 = vld [vmem:[%s181 + $0x19c] sm:$0xf]
        %v297 = vld [vmem:[%s181 + $0x1a0] sm:$0xf]
        %v298 = vld [vmem:[%s181 + $0x1a4] sm:$0xf]
        %v299 = vld [vmem:[%s181 + $0x1a8] sm:$0xf]
        %v300 = vld [vmem:[%s181 + $0x1ac] sm:$0xf]
        %v301 = vld [vmem:[%s181 + $0x1b0] sm:$0xf]
        %v302 = vld [vmem:[%s181 + $0x1b4] sm:$0xf]
        %v303 = vld [vmem:[%s181 + $0x1b8] sm:$0xf]
        %v304 = vld [vmem:[%s181 + $0x1bc] sm:$0xf]
        %v305 = vld [vmem:[%s181 + $0x1c0] sm:$0xf]
        %v306 = vld [vmem:[%s181 + $0x1c4] sm:$0xf]
        %v307 = vld [vmem:[%s181 + $0x1c8] sm:$0xf]
        %v308 = vld [vmem:[%s181 + $0x1cc] sm:$0xf]
        %v309 = vld [vmem:[%s181 + $0x1d0] sm:$0xf]
        %v310 = vld [vmem:[%s181 + $0x1d4] sm:$0xf]
        %v311 = vld [vmem:[%s181 + $0x1d8] sm:$0xf]
        %v312 = vld [vmem:[%s181 + $0x1dc] sm:$0xf]
        %v313 = vld [vmem:[%s181 + $0x1e0] sm:$0xf]
        %v314 = vld [vmem:[%s181 + $0x1e4] sm:$0xf]
        %v315 = vld [vmem:[%s181 + $0x1e8] sm:$0xf]
        %v316 = vld [vmem:[%s181 + $0x1ec] sm:$0xf]
        %v317 = vld [vmem:[%s181 + $0x1f0] sm:$0xf]
        %v318 = vld [vmem:[%s181 + $0x1f4] sm:$0xf]
        %v319 = vld [vmem:[%s181 + $0x1f8] sm:$0xf]
        %v320 = vld [vmem:[%s181 + $0x1fc] sm:$0xf]
        %v321 = vld [vmem:[%s1] sm:$0xf]
        %v322 = vld [vmem:[%s1 + $0x4] sm:$0xf]
        %v323 = vld [vmem:[%s1 + $0x8] sm:$0xf]
        %v324 = vld [vmem:[%s1 + $0xc] sm:$0x1]
        %v325 = vld [vmem:[%s2] sm:$0x1]
        %v327 = vlaneseq
        %v328 = vshrl.u32 %v327, 7
        %v329 = vsub.s32 0, %v328
        %v330 = vrot.slane %v325, %v329
        %v460 = vunpack.c.l.b16 %v193
        %v461 = vunpack.c.l.b16 %v194
        %v462 = vunpack.c.l.b16 %v195
        %v463 = vunpack.c.l.b16 %v196
        %v464 = vunpack.c.l.b16 %v197
        %v465 = vunpack.c.l.b16 %v198
        %v466 = vunpack.c.l.b16 %v199
        %v467 = vunpack.c.l.b16 %v200
        %v468 = vunpack.c.l.b16 %v201
        %v469 = vunpack.c.l.b16 %v202
        %v470 = vunpack.c.l.b16 %v203
        %v471 = vunpack.c.l.b16 %v204
        %v472 = vunpack.c.l.b16 %v205
        %v473 = vunpack.c.l.b16 %v206
        %v474 = vunpack.c.l.b16 %v207
        %v475 = vunpack.c.l.b16 %v208
        %v476 = vunpack.c.l.b16 %v209
        %v477 = vunpack.c.l.b16 %v210
        %v478 = vunpack.c.l.b16 %v211
        %v479 = vunpack.c.l.b16 %v212
        %v480 = vunpack.c.l.b16 %v213
        %v481 = vunpack.c.l.b16 %v214
        %v482 = vunpack.c.l.b16 %v215
        %v483 = vunpack.c.l.b16 %v216
        %v484 = vunpack.c.l.b16 %v217
        %v485 = vunpack.c.l.b16 %v218
        %v486 = vunpack.c.l.b16 %v219
        %v487 = vunpack.c.l.b16 %v220
        %v488 = vunpack.c.l.b16 %v221
        %v489 = vunpack.c.l.b16 %v222
        %v490 = vunpack.c.l.b16 %v223
        %v491 = vunpack.c.l.b16 %v224
        %v492 = vunpack.c.l.b16 %v225
        %v493 = vunpack.c.l.b16 %v226
        %v494 = vunpack.c.l.b16 %v227
        %v495 = vunpack.c.l.b16 %v228
        %v496 = vunpack.c.l.b16 %v229
        %v497 = vunpack.c.l.b16 %v230
        %v498 = vunpack.c.l.b16 %v231
        %v499 = vunpack.c.l.b16 %v232
        %v500 = vunpack.c.l.b16 %v233
        %v501 = vunpack.c.l.b16 %v234
        %v502 = vunpack.c.l.b16 %v235
        %v503 = vunpack.c.l.b16 %v236
        %v504 = vunpack.c.l.b16 %v237
        %v505 = vunpack.c.l.b16 %v238
        %v506 = vunpack.c.l.b16 %v239
        %v507 = vunpack.c.l.b16 %v240
        %v508 = vunpack.c.l.b16 %v241
        %v509 = vunpack.c.l.b16 %v242
        %v510 = vunpack.c.l.b16 %v243
        %v511 = vunpack.c.l.b16 %v244
        %v512 = vunpack.c.l.b16 %v245
        %v513 = vunpack.c.l.b16 %v246
        %v514 = vunpack.c.l.b16 %v247
        %v515 = vunpack.c.l.b16 %v248
        %v516 = vunpack.c.l.b16 %v249
        %v517 = vunpack.c.l.b16 %v250
        %v518 = vunpack.c.l.b16 %v251
        %v519 = vunpack.c.l.b16 %v252
        %v520 = vunpack.c.l.b16 %v253
        %v521 = vunpack.c.l.b16 %v254
        %v522 = vunpack.c.l.b16 %v255
        %v523 = vunpack.c.l.b16 %v256
        %v524 = vunpack.c.l.b16 %v257
        %v525 = vunpack.c.l.b16 %v258
        %v526 = vunpack.c.l.b16 %v259
        %v527 = vunpack.c.l.b16 %v260
        %v528 = vunpack.c.l.b16 %v261
        %v529 = vunpack.c.l.b16 %v262
        %v530 = vunpack.c.l.b16 %v263
        %v531 = vunpack.c.l.b16 %v264
        %v532 = vunpack.c.l.b16 %v265
        %v533 = vunpack.c.l.b16 %v266
        %v534 = vunpack.c.l.b16 %v267
        %v535 = vunpack.c.l.b16 %v268
        %v536 = vunpack.c.l.b16 %v269
        %v537 = vunpack.c.l.b16 %v270
        %v538 = vunpack.c.l.b16 %v271
        %v539 = vunpack.c.l.b16 %v272
        %v540 = vunpack.c.l.b16 %v273
        %v541 = vunpack.c.l.b16 %v274
        %v542 = vunpack.c.l.b16 %v275
        %v543 = vunpack.c.l.b16 %v276
        %v544 = vunpack.c.l.b16 %v277
        %v545 = vunpack.c.l.b16 %v278
        %v546 = vunpack.c.l.b16 %v279
        %v547 = vunpack.c.l.b16 %v280
        %v548 = vunpack.c.l.b16 %v281
        %v549 = vunpack.c.l.b16 %v282
        %v550 = vunpack.c.l.b16 %v283
        %v551 = vunpack.c.l.b16 %v284
        %v552 = vunpack.c.l.b16 %v285
        %v553 = vunpack.c.l.b16 %v286
        %v554 = vunpack.c.l.b16 %v287
        %v555 = vunpack.c.l.b16 %v288
        %v556 = vunpack.c.l.b16 %v289
        %v557 = vunpack.c.l.b16 %v290
        %v558 = vunpack.c.l.b16 %v291
        %v559 = vunpack.c.l.b16 %v292
        %v560 = vunpack.c.l.b16 %v293
        %v561 = vunpack.c.l.b16 %v294
        %v562 = vunpack.c.l.b16 %v295
        %v563 = vunpack.c.l.b16 %v296
        %v564 = vunpack.c.l.b16 %v297
        %v565 = vunpack.c.l.b16 %v298
        %v566 = vunpack.c.l.b16 %v299
        %v567 = vunpack.c.l.b16 %v300
        %v568 = vunpack.c.l.b16 %v301
        %v569 = vunpack.c.l.b16 %v302
        %v570 = vunpack.c.l.b16 %v303
        %v571 = vunpack.c.l.b16 %v304
        %v572 = vunpack.c.l.b16 %v305
        %v573 = vunpack.c.l.b16 %v306
        %v574 = vunpack.c.l.b16 %v307
        %v575 = vunpack.c.l.b16 %v308
        %v576 = vunpack.c.l.b16 %v309
        %v577 = vunpack.c.l.b16 %v310
        %v578 = vunpack.c.l.b16 %v311
        %v579 = vunpack.c.l.b16 %v312
        %v580 = vunpack.c.l.b16 %v313
        %v581 = vunpack.c.l.b16 %v314
        %v582 = vunpack.c.l.b16 %v315
        %v583 = vunpack.c.l.b16 %v316
        %v584 = vunpack.c.l.b16 %v317
        %v585 = vunpack.c.l.b16 %v318
        %v586 = vunpack.c.l.b16 %v319
        %v587 = vunpack.c.l.b16 %v320
        %v588 = vpack.c.b16 %v461, %v460
        %v589 = vpack.c.b16 %v463, %v462
        %v590 = vpack.c.b16 %v465, %v464
        %v591 = vpack.c.b16 %v467, %v466
        %v592 = vpack.c.b16 %v469, %v468
        %v593 = vpack.c.b16 %v471, %v470
        %v594 = vpack.c.b16 %v473, %v472
        %v595 = vpack.c.b16 %v475, %v474
        %v596 = vpack.c.b16 %v477, %v476
        %v597 = vpack.c.b16 %v479, %v478
        %v598 = vpack.c.b16 %v481, %v480
        %v599 = vpack.c.b16 %v483, %v482
        %v600 = vpack.c.b16 %v485, %v484
        %v601 = vpack.c.b16 %v487, %v486
        %v602 = vpack.c.b16 %v489, %v488
        %v603 = vpack.c.b16 %v491, %v490
        %v604 = vpack.c.b16 %v493, %v492
        %v605 = vpack.c.b16 %v495, %v494
        %v606 = vpack.c.b16 %v497, %v496
        %v607 = vpack.c.b16 %v499, %v498
        %v608 = vpack.c.b16 %v501, %v500
        %v609 = vpack.c.b16 %v503, %v502
        %v610 = vpack.c.b16 %v505, %v504
        %v611 = vpack.c.b16 %v507, %v506
        %v612 = vpack.c.b16 %v509, %v508
        %v613 = vpack.c.b16 %v511, %v510
        %v614 = vpack.c.b16 %v513, %v512
        %v615 = vpack.c.b16 %v515, %v514
        %v616 = vpack.c.b16 %v517, %v516
        %v617 = vpack.c.b16 %v519, %v518
        %v618 = vpack.c.b16 %v521, %v520
        %v619 = vpack.c.b16 %v523, %v522
        %v620 = vpack.c.b16 %v525, %v524
        %v621 = vpack.c.b16 %v527, %v526
        %v622 = vpack.c.b16 %v529, %v528
        %v623 = vpack.c.b16 %v531, %v530
        %v624 = vpack.c.b16 %v533, %v532
        %v625 = vpack.c.b16 %v535, %v534
        %v626 = vpack.c.b16 %v537, %v536
        %v627 = vpack.c.b16 %v539, %v538
        %v628 = vpack.c.b16 %v541, %v540
        %v629 = vpack.c.b16 %v543, %v542
        %v630 = vpack.c.b16 %v545, %v544
        %v631 = vpack.c.b16 %v547, %v546
        %v632 = vpack.c.b16 %v549, %v548
        %v633 = vpack.c.b16 %v551, %v550
        %v634 = vpack.c.b16 %v553, %v552
        %v635 = vpack.c.b16 %v555, %v554
        %v636 = vpack.c.b16 %v557, %v556
        %v637 = vpack.c.b16 %v559, %v558
        %v638 = vpack.c.b16 %v561, %v560
        %v639 = vpack.c.b16 %v563, %v562
        %v640 = vpack.c.b16 %v565, %v564
        %v641 = vpack.c.b16 %v567, %v566
        %v642 = vpack.c.b16 %v569, %v568
        %v643 = vpack.c.b16 %v571, %v570
        %v644 = vpack.c.b16 %v573, %v572
        %v645 = vpack.c.b16 %v575, %v574
        %v646 = vpack.c.b16 %v577, %v576
        %v647 = vpack.c.b16 %v579, %v578
        %v648 = vpack.c.b16 %v581, %v580
        %v649 = vpack.c.b16 %v583, %v582
        %v650 = vpack.c.b16 %v585, %v584
        %v651 = vpack.c.b16 %v587, %v586
        %v656 = vunpack.c.l.b16 %v321
        %v657 = vunpack.c.l.b16 %v322
        %v658 = vunpack.c.l.b16 %v323
        %v659 = vunpack.c.l.b16 %v324
        %v660 = vpack.c.b16 %v657, %v656
        %v661 = vpack.c.b16 %v659, %v658
        %vm663 = vcmask 203776
        %v665 = vsel %vm663, %v588, 0
        %v668 = vsel %vm663, %v589, 0
        %v671 = vsel %vm663, %v590, 0
        %v674 = vsel %vm663, %v591, 0
        %v677 = vsel %vm663, %v592, 0
        %v680 = vsel %vm663, %v593, 0
        %v683 = vsel %vm663, %v594, 0
        %v686 = vsel %vm663, %v595, 0
        %v689 = vsel %vm663, %v596, 0
        %v692 = vsel %vm663, %v597, 0
        %v695 = vsel %vm663, %v598, 0
        %v698 = vsel %vm663, %v599, 0
        %v701 = vsel %vm663, %v600, 0
        %v704 = vsel %vm663, %v601, 0
        %v707 = vsel %vm663, %v602, 0
        %v710 = vsel %vm663, %v603, 0
        %v713 = vsel %vm663, %v604, 0
        %v716 = vsel %vm663, %v605, 0
        %v719 = vsel %vm663, %v606, 0
        %v722 = vsel %vm663, %v607, 0
        %v725 = vsel %vm663, %v608, 0
        %v728 = vsel %vm663, %v609, 0
        %v731 = vsel %vm663, %v610, 0
        %v734 = vsel %vm663, %v611, 0
        %v737 = vsel %vm663, %v612, 0
        %v740 = vsel %vm663, %v613, 0
        %v743 = vsel %vm663, %v614, 0
        %v746 = vsel %vm663, %v615, 0
        %v749 = vsel %vm663, %v616, 0
        %v752 = vsel %vm663, %v617, 0
        %v755 = vsel %vm663, %v618, 0
        %v758 = vsel %vm663, %v619, 0
        %v761 = vsel %vm663, %v620, 0
        %v764 = vsel %vm663, %v621, 0
        %v767 = vsel %vm663, %v622, 0
        %v770 = vsel %vm663, %v623, 0
        %v773 = vsel %vm663, %v624, 0
        %v776 = vsel %vm663, %v625, 0
        %v779 = vsel %vm663, %v626, 0
        %v782 = vsel %vm663, %v627, 0
        %v785 = vsel %vm663, %v628, 0
        %v788 = vsel %vm663, %v629, 0
        %v791 = vsel %vm663, %v630, 0
        %v794 = vsel %vm663, %v631, 0
        %v797 = vsel %vm663, %v632, 0
        %v800 = vsel %vm663, %v633, 0
        %v803 = vsel %vm663, %v634, 0
        %v806 = vsel %vm663, %v635, 0
        %v809 = vsel %vm663, %v636, 0
        %v812 = vsel %vm663, %v637, 0
        %v815 = vsel %vm663, %v638, 0
        %v818 = vsel %vm663, %v639, 0
        %v821 = vsel %vm663, %v640, 0
        %v824 = vsel %vm663, %v641, 0
        %v827 = vsel %vm663, %v642, 0
        %v830 = vsel %vm663, %v643, 0
        %v833 = vsel %vm663, %v644, 0
        %v836 = vsel %vm663, %v645, 0
        %v839 = vsel %vm663, %v646, 0
        %v842 = vsel %vm663, %v647, 0
        %v845 = vsel %vm663, %v648, 0
        %v848 = vsel %vm663, %v649, 0
        %v851 = vsel %vm663, %v650, 0
        %v854 = vsel %vm663, %v651, 0
        %vm856 = vcmask 1043456
        %vm857 = vcmask 1044480
        %v858 = vsel %vm856, 4294967295, 65535
        %v859 = vsel %vm857, %v858, 0
        %v861 = vand.u32 %v661, %v859
        %863 = vmatprep.subr.bf16.mxu0 0
        %864 = vmatpush1.bf16.msra.mxu0 %v660
        %865 = vmatprep.subr.bf16.mxu0 0
        %866 = vmatpush1.bf16.msra.mxu0 %v861
        %867 = vmatprep.subr.bf16.mxu0 0
        %868 = vmatpush1.bf16.msra.mxu0 0
        %869 = vmatprep.subr.bf16.mxu0 0
        %870 = vmatpush1.bf16.msra.mxu0 0
        %871 = vmatprep.subr.bf16.mxu0 0
        %872 = vmatpush1.bf16.msra.mxu0 0
        %873 = vmatprep.subr.bf16.mxu0 0
        %874 = vmatpush1.bf16.msra.mxu0 0
        %875 = vmatprep.subr.bf16.mxu0 0
        %876 = vmatpush1.bf16.msra.mxu0 0
        %877 = vmatprep.subr.bf16.mxu0 0
        %878 = vmatpush1.bf16.msra.mxu0 0
        %879 = vmatprep.subr.bf16.mxu0 0
        %880 = vmatpush1.bf16.msra.mxu0 0
        %881 = vmatprep.subr.bf16.mxu0 0
        %882 = vmatpush1.bf16.msra.mxu0 0
        %883 = vmatprep.subr.bf16.mxu0 0
        %884 = vmatpush1.bf16.msra.mxu0 0
        %885 = vmatprep.subr.bf16.mxu0 0
        %886 = vmatpush1.bf16.msra.mxu0 0
        %887 = vmatprep.subr.bf16.mxu0 0
        %888 = vmatpush1.bf16.msra.mxu0 0
        %889 = vmatprep.subr.bf16.mxu0 0
        %890 = vmatpush1.bf16.msra.mxu0 0
        %891 = vmatprep.subr.bf16.mxu0 0
        %892 = vmatpush1.bf16.msra.mxu0 0
        %893 = vmatprep.subr.bf16.mxu0 0
        %894 = vmatpush1.bf16.msra.mxu0 0
        %895 = vmatprep.mubr.bf16.mxu0 0
        %896 = vmatmul.mubr.bf16.gmra.mrb[0].mxu0 %v665
        %v897 = vpop.f32.mrb[0].mxu0
        %v898 = vadd.f32 %v330, %v897
        %v899 = vpop.f32.mrb[0].mxu0
        %v900 = vpop.f32.mrb[0].mxu0
        %v901 = vadd.f32 %v330, %v900
        %v902 = vpop.f32.mrb[0].mxu0
        %903 = vmatprep.mubr.bf16.mxu0 0
        %904 = vmatmul.mubr.bf16.gmra.mrb[0].mxu0 %v668
        %v905 = vpop.f32.mrb[0].mxu0
        %v906 = vadd.f32 %v330, %v905
        %v907 = vpop.f32.mrb[0].mxu0
        %v908 = vpop.f32.mrb[0].mxu0
        %v909 = vadd.f32 %v330, %v908
        %v910 = vpop.f32.mrb[0].mxu0
        %911 = vmatprep.mubr.bf16.mxu0 0
        %912 = vmatmul.mubr.bf16.gmra.mrb[0].mxu0 %v671
        %v913 = vpop.f32.mrb[0].mxu0
        %v914 = vadd.f32 %v330, %v913
        %v915 = vpop.f32.mrb[0].mxu0
        %v916 = vpop.f32.mrb[0].mxu0
        %v917 = vadd.f32 %v330, %v916
        %v918 = vpop.f32.mrb[0].mxu0
        %919 = vmatprep.mubr.bf16.mxu0 0
        %920 = vmatmul.mubr.bf16.gmra.mrb[0].mxu0 %v674
        %v921 = vpop.f32.mrb[0].mxu0
        %v922 = vadd.f32 %v330, %v921
        %v923 = vpop.f32.mrb[0].mxu0
        %v924 = vpop.f32.mrb[0].mxu0
        %v925 = vadd.f32 %v330, %v924
        %v926 = vpop.f32.mrb[0].mxu0
        %927 = vmatprep.mubr.bf16.mxu0 0
        %928 = vmatmul.mubr.bf16.gmra.mrb[0].mxu0 %v677
        %v929 = vpop.f32.mrb[0].mxu0
        %v930 = vadd.f32 %v330, %v929
        %v931 = vpop.f32.mrb[0].mxu0
        %v932 = vpop.f32.mrb[0].mxu0
        %v933 = vadd.f32 %v330, %v932
        %v934 = vpop.f32.mrb[0].mxu0
        %935 = vmatprep.mubr.bf16.mxu0 0
        %936 = vmatmul.mubr.bf16.gmra.mrb[0].mxu0 %v680
        %v937 = vpop.f32.mrb[0].mxu0
        %v938 = vadd.f32 %v330, %v937
        %v939 = vpop.f32.mrb[0].mxu0
        %v940 = vpop.f32.mrb[0].mxu0
        %v941 = vadd.f32 %v330, %v940
        %v942 = vpop.f32.mrb[0].mxu0
        %943 = vmatprep.mubr.bf16.mxu0 0
        %944 = vmatmul.mubr.bf16.gmra.mrb[0].mxu0 %v683
        %v945 = vpop.f32.mrb[0].mxu0
        %v946 = vadd.f32 %v330, %v945
        %v947 = vpop.f32.mrb[0].mxu0
        %v948 = vpop.f32.mrb[0].mxu0
        %v949 = vadd.f32 %v330, %v948
        %v950 = vpop.f32.mrb[0].mxu0
        %951 = vmatprep.mubr.bf16.mxu0 0
        %952 = vmatmul.mubr.bf16.gmra.mrb[0].mxu0 %v686
        %v953 = vpop.f32.mrb[0].mxu0
        %v954 = vadd.f32 %v330, %v953
        %v955 = vpop.f32.mrb[0].mxu0
        %v956 = vpop.f32.mrb[0].mxu0
        %v957 = vadd.f32 %v330, %v956
        %v958 = vpop.f32.mrb[0].mxu0
        %959 = vmatprep.mubr.bf16.mxu0 0
        %960 = vmatmul.mubr.bf16.gmra.mrb[0].mxu0 %v689
        %v961 = vpop.f32.mrb[0].mxu0
        %v962 = vadd.f32 %v330, %v961
        %v963 = vpop.f32.mrb[0].mxu0
        %v964 = vpop.f32.mrb[0].mxu0
        %v965 = vadd.f32 %v330, %v964
        %v966 = vpop.f32.mrb[0].mxu0
        %967 = vmatprep.mubr.bf16.mxu0 0
        %968 = vmatmul.mubr.bf16.gmra.mrb[0].mxu0 %v692
        %v969 = vpop.f32.mrb[0].mxu0
        %v970 = vadd.f32 %v330, %v969
        %v971 = vpop.f32.mrb[0].mxu0
        %v972 = vpop.f32.mrb[0].mxu0
        %v973 = vadd.f32 %v330, %v972
        %v974 = vpop.f32.mrb[0].mxu0
        %975 = vmatprep.mubr.bf16.mxu0 0
        %976 = vmatmul.mubr.bf16.gmra.mrb[0].mxu0 %v695
        %v977 = vpop.f32.mrb[0].mxu0
        %v978 = vadd.f32 %v330, %v977
        %v979 = vpop.f32.mrb[0].mxu0
        %v980 = vpop.f32.mrb[0].mxu0
        %v981 = vadd.f32 %v330, %v980
        %v982 = vpop.f32.mrb[0].mxu0
        %983 = vmatprep.mubr.bf16.mxu0 0
        %984 = vmatmul.mubr.bf16.gmra.mrb[0].mxu0 %v698
        %v985 = vpop.f32.mrb[0].mxu0
        %v986 = vadd.f32 %v330, %v985
        %v987 = vpop.f32.mrb[0].mxu0
        %v988 = vpop.f32.mrb[0].mxu0
        %v989 = vadd.f32 %v330, %v988
        %v990 = vpop.f32.mrb[0].mxu0
        %991 = vmatprep.mubr.bf16.mxu0 0
        %992 = vmatmul.mubr.bf16.gmra.mrb[0].mxu0 %v701
        %v993 = vpop.f32.mrb[0].mxu0
        %v994 = vadd.f32 %v330, %v993
        %v995 = vpop.f32.mrb[0].mxu0
        %v996 = vpop.f32.mrb[0].mxu0
        %v997 = vadd.f32 %v330, %v996
        %v998 = vpop.f32.mrb[0].mxu0
        %999 = vmatprep.mubr.bf16.mxu0 0
        %1000 = vmatmul.mubr.bf16.gmra.mrb[0].mxu0 %v704
        %v1001 = vpop.f32.mrb[0].mxu0
        %v1002 = vadd.f32 %v330, %v1001
        %v1003 = vpop.f32.mrb[0].mxu0
        %v1004 = vpop.f32.mrb[0].mxu0
        %v1005 = vadd.f32 %v330, %v1004
        %v1006 = vpop.f32.mrb[0].mxu0
        %1007 = vmatprep.mubr.bf16.mxu0 0
        %1008 = vmatmul.mubr.bf16.gmra.mrb[0].mxu0 %v707
        %v1009 = vpop.f32.mrb[0].mxu0
        %v1010 = vadd.f32 %v330, %v1009
        %v1011 = vpop.f32.mrb[0].mxu0
        %v1012 = vpop.f32.mrb[0].mxu0
        %v1013 = vadd.f32 %v330, %v1012
        %v1014 = vpop.f32.mrb[0].mxu0
        %1015 = vmatprep.mubr.bf16.mxu0 0
        %1016 = vmatmul.mubr.bf16.gmra.mrb[0].mxu0 %v710
        %v1017 = vpop.f32.mrb[0].mxu0
        %v1018 = vadd.f32 %v330, %v1017
        %v1019 = vpop.f32.mrb[0].mxu0
        %v1020 = vpop.f32.mrb[0].mxu0
        %v1021 = vadd.f32 %v330, %v1020
        %v1022 = vpop.f32.mrb[0].mxu0
        %1023 = vmatprep.mubr.bf16.mxu0 0
        %1024 = vmatmul.mubr.bf16.gmra.mrb[0].mxu0 %v713
        %v1025 = vpop.f32.mrb[0].mxu0
        %v1026 = vadd.f32 %v330, %v1025
        %v1027 = vpop.f32.mrb[0].mxu0
        %v1028 = vpop.f32.mrb[0].mxu0
        %v1029 = vadd.f32 %v330, %v1028
        %v1030 = vpop.f32.mrb[0].mxu0
        %1031 = vmatprep.mubr.bf16.mxu0 0
        %1032 = vmatmul.mubr.bf16.gmra.mrb[0].mxu0 %v716
        %v1033 = vpop.f32.mrb[0].mxu0
        %v1034 = vadd.f32 %v330, %v1033
        %v1035 = vpop.f32.mrb[0].mxu0
        %v1036 = vpop.f32.mrb[0].mxu0
        %v1037 = vadd.f32 %v330, %v1036
        %v1038 = vpop.f32.mrb[0].mxu0
        %1039 = vmatprep.mubr.bf16.mxu0 0
        %1040 = vmatmul.mubr.bf16.gmra.mrb[0].mxu0 %v719
        %v1041 = vpop.f32.mrb[0].mxu0
        %v1042 = vadd.f32 %v330, %v1041
        %v1043 = vpop.f32.mrb[0].mxu0
        %v1044 = vpop.f32.mrb[0].mxu0
        %v1045 = vadd.f32 %v330, %v1044
        %v1046 = vpop.f32.mrb[0].mxu0
        %1047 = vmatprep.mubr.bf16.mxu0 0
        %1048 = vmatmul.mubr.bf16.gmra.mrb[0].mxu0 %v722
        %v1049 = vpop.f32.mrb[0].mxu0
        %v1050 = vadd.f32 %v330, %v1049
        %v1051 = vpop.f32.mrb[0].mxu0
        %v1052 = vpop.f32.mrb[0].mxu0
        %v1053 = vadd.f32 %v330, %v1052
        %v1054 = vpop.f32.mrb[0].mxu0
        %1055 = vmatprep.mubr.bf16.mxu0 0
        %1056 = vmatmul.mubr.bf16.gmra.mrb[0].mxu0 %v725
        %v1057 = vpop.f32.mrb[0].mxu0
        %v1058 = vadd.f32 %v330, %v1057
        %v1059 = vpop.f32.mrb[0].mxu0
        %v1060 = vpop.f32.mrb[0].mxu0
        %v1061 = vadd.f32 %v330, %v1060
        %v1062 = vpop.f32.mrb[0].mxu0
        %1063 = vmatprep.mubr.bf16.mxu0 0
        %1064 = vmatmul.mubr.bf16.gmra.mrb[0].mxu0 %v728
        %v1065 = vpop.f32.mrb[0].mxu0
        %v1066 = vadd.f32 %v330, %v1065
        %v1067 = vpop.f32.mrb[0].mxu0
        %v1068 = vpop.f32.mrb[0].mxu0
        %v1069 = vadd.f32 %v330, %v1068
        %v1070 = vpop.f32.mrb[0].mxu0
        %1071 = vmatprep.mubr.bf16.mxu0 0
        %1072 = vmatmul.mubr.bf16.gmra.mrb[0].mxu0 %v731
        %v1073 = vpop.f32.mrb[0].mxu0
        %v1074 = vadd.f32 %v330, %v1073
        %v1075 = vpop.f32.mrb[0].mxu0
        %v1076 = vpop.f32.mrb[0].mxu0
        %v1077 = vadd.f32 %v330, %v1076
        %v1078 = vpop.f32.mrb[0].mxu0
        %1079 = vmatprep.mubr.bf16.mxu0 0
        %1080 = vmatmul.mubr.bf16.gmra.mrb[0].mxu0 %v734
        %v1081 = vpop.f32.mrb[0].mxu0
        %v1082 = vadd.f32 %v330, %v1081
        %v1083 = vpop.f32.mrb[0].mxu0
        %v1084 = vpop.f32.mrb[0].mxu0
        %v1085 = vadd.f32 %v330, %v1084
        %v1086 = vpop.f32.mrb[0].mxu0
        %1087 = vmatprep.mubr.bf16.mxu0 0
        %1088 = vmatmul.mubr.bf16.gmra.mrb[0].mxu0 %v737
        %v1089 = vpop.f32.mrb[0].mxu0
        %v1090 = vadd.f32 %v330, %v1089
        %v1091 = vpop.f32.mrb[0].mxu0
        %v1092 = vpop.f32.mrb[0].mxu0
        %v1093 = vadd.f32 %v330, %v1092
        %v1094 = vpop.f32.mrb[0].mxu0
        %1095 = vmatprep.mubr.bf16.mxu0 0
        %1096 = vmatmul.mubr.bf16.gmra.mrb[0].mxu0 %v740
        %v1097 = vpop.f32.mrb[0].mxu0
        %v1098 = vadd.f32 %v330, %v1097
        %v1099 = vpop.f32.mrb[0].mxu0
        %v1100 = vpop.f32.mrb[0].mxu0
        %v1101 = vadd.f32 %v330, %v1100
        %v1102 = vpop.f32.mrb[0].mxu0
        %1103 = vmatprep.mubr.bf16.mxu0 0
        %1104 = vmatmul.mubr.bf16.gmra.mrb[0].mxu0 %v743
        %v1105 = vpop.f32.mrb[0].mxu0
        %v1106 = vadd.f32 %v330, %v1105
        %v1107 = vpop.f32.mrb[0].mxu0
        %v1108 = vpop.f32.mrb[0].mxu0
        %v1109 = vadd.f32 %v330, %v1108
        %v1110 = vpop.f32.mrb[0].mxu0
        %1111 = vmatprep.mubr.bf16.mxu0 0
        %1112 = vmatmul.mubr.bf16.gmra.mrb[0].mxu0 %v746
        %v1113 = vpop.f32.mrb[0].mxu0
        %v1114 = vadd.f32 %v330, %v1113
        %v1115 = vpop.f32.mrb[0].mxu0
        %v1116 = vpop.f32.mrb[0].mxu0
        %v1117 = vadd.f32 %v330, %v1116
        %v1118 = vpop.f32.mrb[0].mxu0
        %1119 = vmatprep.mubr.bf16.mxu0 0
        %1120 = vmatmul.mubr.bf16.gmra.mrb[0].mxu0 %v749
        %v1121 = vpop.f32.mrb[0].mxu0
        %v1122 = vadd.f32 %v330, %v1121
        %v1123 = vpop.f32.mrb[0].mxu0
        %v1124 = vpop.f32.mrb[0].mxu0
        %v1125 = vadd.f32 %v330, %v1124
        %v1126 = vpop.f32.mrb[0].mxu0
        %1127 = vmatprep.mubr.bf16.mxu0 0
        %1128 = vmatmul.mubr.bf16.gmra.mrb[0].mxu0 %v752
        %v1129 = vpop.f32.mrb[0].mxu0
        %v1130 = vadd.f32 %v330, %v1129
        %v1131 = vpop.f32.mrb[0].mxu0
        %v1132 = vpop.f32.mrb[0].mxu0
        %v1133 = vadd.f32 %v330, %v1132
        %v1134 = vpop.f32.mrb[0].mxu0
        %1135 = vmatprep.mubr.bf16.mxu0 0
        %1136 = vmatmul.mubr.bf16.gmra.mrb[0].mxu0 %v755
        %v1137 = vpop.f32.mrb[0].mxu0
        %v1138 = vadd.f32 %v330, %v1137
        %v1139 = vpop.f32.mrb[0].mxu0
        %v1140 = vpop.f32.mrb[0].mxu0
        %v1141 = vadd.f32 %v330, %v1140
        %v1142 = vpop.f32.mrb[0].mxu0
        %1143 = vmatprep.mubr.bf16.mxu0 0
        %1144 = vmatmul.mubr.bf16.gmra.mrb[0].mxu0 %v758
        %v1145 = vpop.f32.mrb[0].mxu0
        %v1146 = vadd.f32 %v330, %v1145
        %v1147 = vpop.f32.mrb[0].mxu0
        %v1148 = vpop.f32.mrb[0].mxu0
        %v1149 = vadd.f32 %v330, %v1148
        %v1150 = vpop.f32.mrb[0].mxu0
        %1151 = vmatprep.mubr.bf16.mxu0 0
        %1152 = vmatmul.mubr.bf16.gmra.mrb[0].mxu0 %v761
        %v1153 = vpop.f32.mrb[0].mxu0
        %v1154 = vadd.f32 %v330, %v1153
        %v1155 = vpop.f32.mrb[0].mxu0
        %v1156 = vpop.f32.mrb[0].mxu0
        %v1157 = vadd.f32 %v330, %v1156
        %v1158 = vpop.f32.mrb[0].mxu0
        %1159 = vmatprep.mubr.bf16.mxu0 0
        %1160 = vmatmul.mubr.bf16.gmra.mrb[0].mxu0 %v764
        %v1161 = vpop.f32.mrb[0].mxu0
        %v1162 = vadd.f32 %v330, %v1161
        %v1163 = vpop.f32.mrb[0].mxu0
        %v1164 = vpop.f32.mrb[0].mxu0
        %v1165 = vadd.f32 %v330, %v1164
        %v1166 = vpop.f32.mrb[0].mxu0
        %1167 = vmatprep.mubr.bf16.mxu0 0
        %1168 = vmatmul.mubr.bf16.gmra.mrb[0].mxu0 %v767
        %v1169 = vpop.f32.mrb[0].mxu0
        %v1170 = vadd.f32 %v330, %v1169
        %v1171 = vpop.f32.mrb[0].mxu0
        %v1172 = vpop.f32.mrb[0].mxu0
        %v1173 = vadd.f32 %v330, %v1172
        %v1174 = vpop.f32.mrb[0].mxu0
        %1175 = vmatprep.mubr.bf16.mxu0 0
        %1176 = vmatmul.mubr.bf16.gmra.mrb[0].mxu0 %v770
        %v1177 = vpop.f32.mrb[0].mxu0
        %v1178 = vadd.f32 %v330, %v1177
        %v1179 = vpop.f32.mrb[0].mxu0
        %v1180 = vpop.f32.mrb[0].mxu0
        %v1181 = vadd.f32 %v330, %v1180
        %v1182 = vpop.f32.mrb[0].mxu0
        %1183 = vmatprep.mubr.bf16.mxu0 0
        %1184 = vmatmul.mubr.bf16.gmra.mrb[0].mxu0 %v773
        %v1185 = vpop.f32.mrb[0].mxu0
        %v1186 = vadd.f32 %v330, %v1185
        %v1187 = vpop.f32.mrb[0].mxu0
        %v1188 = vpop.f32.mrb[0].mxu0
        %v1189 = vadd.f32 %v330, %v1188
        %v1190 = vpop.f32.mrb[0].mxu0
        %1191 = vmatprep.mubr.bf16.mxu0 0
        %1192 = vmatmul.mubr.bf16.gmra.mrb[0].mxu0 %v776
        %v1193 = vpop.f32.mrb[0].mxu0
        %v1194 = vadd.f32 %v330, %v1193
        %v1195 = vpop.f32.mrb[0].mxu0
        %v1196 = vpop.f32.mrb[0].mxu0
        %v1197 = vadd.f32 %v330, %v1196
        %v1198 = vpop.f32.mrb[0].mxu0
        %1199 = vmatprep.mubr.bf16.mxu0 0
        %1200 = vmatmul.mubr.bf16.gmra.mrb[0].mxu0 %v779
        %v1201 = vpop.f32.mrb[0].mxu0
        %v1202 = vadd.f32 %v330, %v1201
        %v1203 = vpop.f32.mrb[0].mxu0
        %v1204 = vpop.f32.mrb[0].mxu0
        %v1205 = vadd.f32 %v330, %v1204
        %v1206 = vpop.f32.mrb[0].mxu0
        %1207 = vmatprep.mubr.bf16.mxu0 0
        %1208 = vmatmul.mubr.bf16.gmra.mrb[0].mxu0 %v782
        %v1209 = vpop.f32.mrb[0].mxu0
        %v1210 = vadd.f32 %v330, %v1209
        %v1211 = vpop.f32.mrb[0].mxu0
        %v1212 = vpop.f32.mrb[0].mxu0
        %v1213 = vadd.f32 %v330, %v1212
        %v1214 = vpop.f32.mrb[0].mxu0
        %1215 = vmatprep.mubr.bf16.mxu0 0
        %1216 = vmatmul.mubr.bf16.gmra.mrb[0].mxu0 %v785
        %v1217 = vpop.f32.mrb[0].mxu0
        %v1218 = vadd.f32 %v330, %v1217
        %v1219 = vpop.f32.mrb[0].mxu0
        %v1220 = vpop.f32.mrb[0].mxu0
        %v1221 = vadd.f32 %v330, %v1220
        %v1222 = vpop.f32.mrb[0].mxu0
        %1223 = vmatprep.mubr.bf16.mxu0 0
        %1224 = vmatmul.mubr.bf16.gmra.mrb[0].mxu0 %v788
        %v1225 = vpop.f32.mrb[0].mxu0
        %v1226 = vadd.f32 %v330, %v1225
        %v1227 = vpop.f32.mrb[0].mxu0
        %v1228 = vpop.f32.mrb[0].mxu0
        %v1229 = vadd.f32 %v330, %v1228
        %v1230 = vpop.f32.mrb[0].mxu0
        %1231 = vmatprep.mubr.bf16.mxu0 0
        %1232 = vmatmul.mubr.bf16.gmra.mrb[0].mxu0 %v791
        %v1233 = vpop.f32.mrb[0].mxu0
        %v1234 = vadd.f32 %v330, %v1233
        %v1235 = vpop.f32.mrb[0].mxu0
        %v1236 = vpop.f32.mrb[0].mxu0
        %v1237 = vadd.f32 %v330, %v1236
        %v1238 = vpop.f32.mrb[0].mxu0
        %1239 = vmatprep.mubr.bf16.mxu0 0
        %1240 = vmatmul.mubr.bf16.gmra.mrb[0].mxu0 %v794
        %v1241 = vpop.f32.mrb[0].mxu0
        %v1242 = vadd.f32 %v330, %v1241
        %v1243 = vpop.f32.mrb[0].mxu0
        %v1244 = vpop.f32.mrb[0].mxu0
        %v1245 = vadd.f32 %v330, %v1244
        %v1246 = vpop.f32.mrb[0].mxu0
        %1247 = vmatprep.mubr.bf16.mxu0 0
        %1248 = vmatmul.mubr.bf16.gmra.mrb[0].mxu0 %v797
        %v1249 = vpop.f32.mrb[0].mxu0
        %v1250 = vadd.f32 %v330, %v1249
        %v1251 = vpop.f32.mrb[0].mxu0
        %v1252 = vpop.f32.mrb[0].mxu0
        %v1253 = vadd.f32 %v330, %v1252
        %v1254 = vpop.f32.mrb[0].mxu0
        %1255 = vmatprep.mubr.bf16.mxu0 0
        %1256 = vmatmul.mubr.bf16.gmra.mrb[0].mxu0 %v800
        %v1257 = vpop.f32.mrb[0].mxu0
        %v1258 = vadd.f32 %v330, %v1257
        %v1259 = vpop.f32.mrb[0].mxu0
        %v1260 = vpop.f32.mrb[0].mxu0
        %v1261 = vadd.f32 %v330, %v1260
        %v1262 = vpop.f32.mrb[0].mxu0
        %1263 = vmatprep.mubr.bf16.mxu0 0
        %1264 = vmatmul.mubr.bf16.gmra.mrb[0].mxu0 %v803
        %v1265 = vpop.f32.mrb[0].mxu0
        %v1266 = vadd.f32 %v330, %v1265
        %v1267 = vpop.f32.mrb[0].mxu0
        %v1268 = vpop.f32.mrb[0].mxu0
        %v1269 = vadd.f32 %v330, %v1268
        %v1270 = vpop.f32.mrb[0].mxu0
        %1271 = vmatprep.mubr.bf16.mxu0 0
        %1272 = vmatmul.mubr.bf16.gmra.mrb[0].mxu0 %v806
        %v1273 = vpop.f32.mrb[0].mxu0
        %v1274 = vadd.f32 %v330, %v1273
        %v1275 = vpop.f32.mrb[0].mxu0
        %v1276 = vpop.f32.mrb[0].mxu0
        %v1277 = vadd.f32 %v330, %v1276
        %v1278 = vpop.f32.mrb[0].mxu0
        %1279 = vmatprep.mubr.bf16.mxu0 0
        %1280 = vmatmul.mubr.bf16.gmra.mrb[0].mxu0 %v809
        %v1281 = vpop.f32.mrb[0].mxu0
        %v1282 = vadd.f32 %v330, %v1281
        %v1283 = vpop.f32.mrb[0].mxu0
        %v1284 = vpop.f32.mrb[0].mxu0
        %v1285 = vadd.f32 %v330, %v1284
        %v1286 = vpop.f32.mrb[0].mxu0
        %1287 = vmatprep.mubr.bf16.mxu0 0
        %1288 = vmatmul.mubr.bf16.gmra.mrb[0].mxu0 %v812
        %v1289 = vpop.f32.mrb[0].mxu0
        %v1290 = vadd.f32 %v330, %v1289
        %v1291 = vpop.f32.mrb[0].mxu0
        %v1292 = vpop.f32.mrb[0].mxu0
        %v1293 = vadd.f32 %v330, %v1292
        %v1294 = vpop.f32.mrb[0].mxu0
        %1295 = vmatprep.mubr.bf16.mxu0 0
        %1296 = vmatmul.mubr.bf16.gmra.mrb[0].mxu0 %v815
        %v1297 = vpop.f32.mrb[0].mxu0
        %v1298 = vadd.f32 %v330, %v1297
        %v1299 = vpop.f32.mrb[0].mxu0
        %v1300 = vpop.f32.mrb[0].mxu0
        %v1301 = vadd.f32 %v330, %v1300
        %v1302 = vpop.f32.mrb[0].mxu0
        %1303 = vmatprep.mubr.bf16.mxu0 0
        %1304 = vmatmul.mubr.bf16.gmra.mrb[0].mxu0 %v818
        %v1305 = vpop.f32.mrb[0].mxu0
        %v1306 = vadd.f32 %v330, %v1305
        %v1307 = vpop.f32.mrb[0].mxu0
        %v1308 = vpop.f32.mrb[0].mxu0
        %v1309 = vadd.f32 %v330, %v1308
        %v1310 = vpop.f32.mrb[0].mxu0
        %1311 = vmatprep.mubr.bf16.mxu0 0
        %1312 = vmatmul.mubr.bf16.gmra.mrb[0].mxu0 %v821
        %v1313 = vpop.f32.mrb[0].mxu0
        %v1314 = vadd.f32 %v330, %v1313
        %v1315 = vpop.f32.mrb[0].mxu0
        %v1316 = vpop.f32.mrb[0].mxu0
        %v1317 = vadd.f32 %v330, %v1316
        %v1318 = vpop.f32.mrb[0].mxu0
        %1319 = vmatprep.mubr.bf16.mxu0 0
        %1320 = vmatmul.mubr.bf16.gmra.mrb[0].mxu0 %v824
        %v1321 = vpop.f32.mrb[0].mxu0
        %v1322 = vadd.f32 %v330, %v1321
        %v1323 = vpop.f32.mrb[0].mxu0
        %v1324 = vpop.f32.mrb[0].mxu0
        %v1325 = vadd.f32 %v330, %v1324
        %v1326 = vpop.f32.mrb[0].mxu0
        %1327 = vmatprep.mubr.bf16.mxu0 0
        %1328 = vmatmul.mubr.bf16.gmra.mrb[0].mxu0 %v827
        %v1329 = vpop.f32.mrb[0].mxu0
        %v1330 = vadd.f32 %v330, %v1329
        %v1331 = vpop.f32.mrb[0].mxu0
        %v1332 = vpop.f32.mrb[0].mxu0
        %v1333 = vadd.f32 %v330, %v1332
        %v1334 = vpop.f32.mrb[0].mxu0
        %1335 = vmatprep.mubr.bf16.mxu0 0
        %1336 = vmatmul.mubr.bf16.gmra.mrb[0].mxu0 %v830
        %v1337 = vpop.f32.mrb[0].mxu0
        %v1338 = vadd.f32 %v330, %v1337
        %v1339 = vpop.f32.mrb[0].mxu0
        %v1340 = vpop.f32.mrb[0].mxu0
        %v1341 = vadd.f32 %v330, %v1340
        %v1342 = vpop.f32.mrb[0].mxu0
        %1343 = vmatprep.mubr.bf16.mxu0 0
        %1344 = vmatmul.mubr.bf16.gmra.mrb[0].mxu0 %v833
        %v1345 = vpop.f32.mrb[0].mxu0
        %v1346 = vadd.f32 %v330, %v1345
        %v1347 = vpop.f32.mrb[0].mxu0
        %v1348 = vpop.f32.mrb[0].mxu0
        %v1349 = vadd.f32 %v330, %v1348
        %v1350 = vpop.f32.mrb[0].mxu0
        %1351 = vmatprep.mubr.bf16.mxu0 0
        %1352 = vmatmul.mubr.bf16.gmra.mrb[0].mxu0 %v836
        %v1353 = vpop.f32.mrb[0].mxu0
        %v1354 = vadd.f32 %v330, %v1353
        %v1355 = vpop.f32.mrb[0].mxu0
        %v1356 = vpop.f32.mrb[0].mxu0
        %v1357 = vadd.f32 %v330, %v1356
        %v1358 = vpop.f32.mrb[0].mxu0
        %1359 = vmatprep.mubr.bf16.mxu0 0
        %1360 = vmatmul.mubr.bf16.gmra.mrb[0].mxu0 %v839
        %v1361 = vpop.f32.mrb[0].mxu0
        %v1362 = vadd.f32 %v330, %v1361
        %v1363 = vpop.f32.mrb[0].mxu0
        %v1364 = vpop.f32.mrb[0].mxu0
        %v1365 = vadd.f32 %v330, %v1364
        %v1366 = vpop.f32.mrb[0].mxu0
        %1367 = vmatprep.mubr.bf16.mxu0 0
        %1368 = vmatmul.mubr.bf16.gmra.mrb[0].mxu0 %v842
        %v1369 = vpop.f32.mrb[0].mxu0
        %v1370 = vadd.f32 %v330, %v1369
        %v1371 = vpop.f32.mrb[0].mxu0
        %v1372 = vpop.f32.mrb[0].mxu0
        %v1373 = vadd.f32 %v330, %v1372
        %v1374 = vpop.f32.mrb[0].mxu0
        %1375 = vmatprep.mubr.bf16.mxu0 0
        %1376 = vmatmul.mubr.bf16.gmra.mrb[0].mxu0 %v845
        %v1377 = vpop.f32.mrb[0].mxu0
        %v1378 = vadd.f32 %v330, %v1377
        %v1379 = vpop.f32.mrb[0].mxu0
        %v1380 = vpop.f32.mrb[0].mxu0
        %v1381 = vadd.f32 %v330, %v1380
        %v1382 = vpop.f32.mrb[0].mxu0
        %1383 = vmatprep.mubr.bf16.mxu0 0
        %1384 = vmatmul.mubr.bf16.gmra.mrb[0].mxu0 %v848
        %v1385 = vpop.f32.mrb[0].mxu0
        %v1386 = vadd.f32 %v330, %v1385
        %v1387 = vpop.f32.mrb[0].mxu0
        %v1388 = vpop.f32.mrb[0].mxu0
        %v1389 = vadd.f32 %v330, %v1388
        %v1390 = vpop.f32.mrb[0].mxu0
        %1391 = vmatprep.mubr.bf16.mxu0 0
        %1392 = vmatmul.mubr.bf16.gmra.mrb[0].mxu0 %v851
        %v1393 = vpop.f32.mrb[0].mxu0
        %v1394 = vadd.f32 %v330, %v1393
        %v1395 = vpop.f32.mrb[0].mxu0
        %v1396 = vpop.f32.mrb[0].mxu0
        %v1397 = vadd.f32 %v330, %v1396
        %v1398 = vpop.f32.mrb[0].mxu0
        %1399 = vmatprep.mubr.bf16.mxu0 0
        %1400 = vmatmul.mubr.bf16.gmra.mrb[0].mxu0 %v854
        %v1401 = vpop.f32.mrb[0].mxu0
        %v1402 = vadd.f32 %v330, %v1401
        %v1403 = vpop.f32.mrb[0].mxu0
        %v1404 = vpop.f32.mrb[0].mxu0
        %v1405 = vadd.f32 %v330, %v1404
        %v1406 = vpop.f32.mrb[0].mxu0
        %1407 = vdwg.mxu0
        %v1408 = vmax.f32 %v898, 0.0
        %v1409 = vmax.f32 %v901, 0.0
        %v1410 = vmax.f32 %v906, 0.0
        %v1411 = vmax.f32 %v909, 0.0
        %v1412 = vmax.f32 %v914, 0.0
        %v1413 = vmax.f32 %v917, 0.0
        %v1414 = vmax.f32 %v922, 0.0
        %v1415 = vmax.f32 %v925, 0.0
        %v1416 = vmax.f32 %v930, 0.0
        %v1417 = vmax.f32 %v933, 0.0
        %v1418 = vmax.f32 %v938, 0.0
        %v1419 = vmax.f32 %v941, 0.0
        %v1420 = vmax.f32 %v946, 0.0
        %v1421 = vmax.f32 %v949, 0.0
        %v1422 = vmax.f32 %v954, 0.0
        %v1423 = vmax.f32 %v957, 0.0
        %v1424 = vmax.f32 %v962, 0.0
        %v1425 = vmax.f32 %v965, 0.0
        %v1426 = vmax.f32 %v970, 0.0
        %v1427 = vmax.f32 %v973, 0.0
        %v1428 = vmax.f32 %v978, 0.0
        %v1429 = vmax.f32 %v981, 0.0
        %v1430 = vmax.f32 %v986, 0.0
        %v1431 = vmax.f32 %v989, 0.0
        %v1432 = vmax.f32 %v994, 0.0
        %v1433 = vmax.f32 %v997, 0.0
        %v1434 = vmax.f32 %v1002, 0.0
        %v1435 = vmax.f32 %v1005, 0.0
        %v1436 = vmax.f32 %v1010, 0.0
        %v1437 = vmax.f32 %v1013, 0.0
        %v1438 = vmax.f32 %v1018, 0.0
        %v1439 = vmax.f32 %v1021, 0.0
        %v1440 = vmax.f32 %v1026, 0.0
        %v1441 = vmax.f32 %v1029, 0.0
        %v1442 = vmax.f32 %v1034, 0.0
        %v1443 = vmax.f32 %v1037, 0.0
        %v1444 = vmax.f32 %v1042, 0.0
        %v1445 = vmax.f32 %v1045, 0.0
        %v1446 = vmax.f32 %v1050, 0.0
        %v1447 = vmax.f32 %v1053, 0.0
        %v1448 = vmax.f32 %v1058, 0.0
        %v1449 = vmax.f32 %v1061, 0.0
        %v1450 = vmax.f32 %v1066, 0.0
        %v1451 = vmax.f32 %v1069, 0.0
        %v1452 = vmax.f32 %v1074, 0.0
        %v1453 = vmax.f32 %v1077, 0.0
        %v1454 = vmax.f32 %v1082, 0.0
        %v1455 = vmax.f32 %v1085, 0.0
        %v1456 = vmax.f32 %v1090, 0.0
        %v1457 = vmax.f32 %v1093, 0.0
        %v1458 = vmax.f32 %v1098, 0.0
        %v1459 = vmax.f32 %v1101, 0.0
        %v1460 = vmax.f32 %v1106, 0.0
        %v1461 = vmax.f32 %v1109, 0.0
        %v1462 = vmax.f32 %v1114, 0.0
        %v1463 = vmax.f32 %v1117, 0.0
        %v1464 = vmax.f32 %v1122, 0.0
        %v1465 = vmax.f32 %v1125, 0.0
        %v1466 = vmax.f32 %v1130, 0.0
        %v1467 = vmax.f32 %v1133, 0.0
        %v1468 = vmax.f32 %v1138, 0.0
        %v1469 = vmax.f32 %v1141, 0.0
        %v1470 = vmax.f32 %v1146, 0.0
        %v1471 = vmax.f32 %v1149, 0.0
        %v1472 = vmax.f32 %v1154, 0.0
        %v1473 = vmax.f32 %v1157, 0.0
        %v1474 = vmax.f32 %v1162, 0.0
        %v1475 = vmax.f32 %v1165, 0.0
        %v1476 = vmax.f32 %v1170, 0.0
        %v1477 = vmax.f32 %v1173, 0.0
        %v1478 = vmax.f32 %v1178, 0.0
        %v1479 = vmax.f32 %v1181, 0.0
        %v1480 = vmax.f32 %v1186, 0.0
        %v1481 = vmax.f32 %v1189, 0.0
        %v1482 = vmax.f32 %v1194, 0.0
        %v1483 = vmax.f32 %v1197, 0.0
        %v1484 = vmax.f32 %v1202, 0.0
        %v1485 = vmax.f32 %v1205, 0.0
        %v1486 = vmax.f32 %v1210, 0.0
        %v1487 = vmax.f32 %v1213, 0.0
        %v1488 = vmax.f32 %v1218, 0.0
        %v1489 = vmax.f32 %v1221, 0.0
        %v1490 = vmax.f32 %v1226, 0.0
        %v1491 = vmax.f32 %v1229, 0.0
        %v1492 = vmax.f32 %v1234, 0.0
        %v1493 = vmax.f32 %v1237, 0.0
        %v1494 = vmax.f32 %v1242, 0.0
        %v1495 = vmax.f32 %v1245, 0.0
        %v1496 = vmax.f32 %v1250, 0.0
        %v1497 = vmax.f32 %v1253, 0.0
        %v1498 = vmax.f32 %v1258, 0.0
        %v1499 = vmax.f32 %v1261, 0.0
        %v1500 = vmax.f32 %v1266, 0.0
        %v1501 = vmax.f32 %v1269, 0.0
        %v1502 = vmax.f32 %v1274, 0.0
        %v1503 = vmax.f32 %v1277, 0.0
        %v1504 = vmax.f32 %v1282, 0.0
        %v1505 = vmax.f32 %v1285, 0.0
        %v1506 = vmax.f32 %v1290, 0.0
        %v1507 = vmax.f32 %v1293, 0.0
        %v1508 = vmax.f32 %v1298, 0.0
        %v1509 = vmax.f32 %v1301, 0.0
        %v1510 = vmax.f32 %v1306, 0.0
        %v1511 = vmax.f32 %v1309, 0.0
        %v1512 = vmax.f32 %v1314, 0.0
        %v1513 = vmax.f32 %v1317, 0.0
        %v1514 = vmax.f32 %v1322, 0.0
        %v1515 = vmax.f32 %v1325, 0.0
        %v1516 = vmax.f32 %v1330, 0.0
        %v1517 = vmax.f32 %v1333, 0.0
        %v1518 = vmax.f32 %v1338, 0.0
        %v1519 = vmax.f32 %v1341, 0.0
        %v1520 = vmax.f32 %v1346, 0.0
        %v1521 = vmax.f32 %v1349, 0.0
        %v1522 = vmax.f32 %v1354, 0.0
        %v1523 = vmax.f32 %v1357, 0.0
        %v1524 = vmax.f32 %v1362, 0.0
        %v1525 = vmax.f32 %v1365, 0.0
        %v1526 = vmax.f32 %v1370, 0.0
        %v1527 = vmax.f32 %v1373, 0.0
        %v1528 = vmax.f32 %v1378, 0.0
        %v1529 = vmax.f32 %v1381, 0.0
        %v1530 = vmax.f32 %v1386, 0.0
        %v1531 = vmax.f32 %v1389, 0.0
        %v1532 = vmax.f32 %v1394, 0.0
        %v1533 = vmax.f32 %v1397, 0.0
        %v1534 = vmax.f32 %v1402, 0.0
        %v1535 = vmax.f32 %v1405, 0.0
        %v1536 = vpack.c.bf16 %v1409, %v1408
        %v1537 = vpack.c.bf16 %v1411, %v1410
        %v1538 = vpack.c.bf16 %v1413, %v1412
        %v1539 = vpack.c.bf16 %v1415, %v1414
        %v1540 = vpack.c.bf16 %v1417, %v1416
        %v1541 = vpack.c.bf16 %v1419, %v1418
        %v1542 = vpack.c.bf16 %v1421, %v1420
        %v1543 = vpack.c.bf16 %v1423, %v1422
        %v1544 = vpack.c.bf16 %v1425, %v1424
        %v1545 = vpack.c.bf16 %v1427, %v1426
        %v1546 = vpack.c.bf16 %v1429, %v1428
        %v1547 = vpack.c.bf16 %v1431, %v1430
        %v1548 = vpack.c.bf16 %v1433, %v1432
        %v1549 = vpack.c.bf16 %v1435, %v1434
        %v1550 = vpack.c.bf16 %v1437, %v1436
        %v1551 = vpack.c.bf16 %v1439, %v1438
        %v1552 = vpack.c.bf16 %v1441, %v1440
        %v1553 = vpack.c.bf16 %v1443, %v1442
        %v1554 = vpack.c.bf16 %v1445, %v1444
        %v1555 = vpack.c.bf16 %v1447, %v1446
        %v1556 = vpack.c.bf16 %v1449, %v1448
        %v1557 = vpack.c.bf16 %v1451, %v1450
        %v1558 = vpack.c.bf16 %v1453, %v1452
        %v1559 = vpack.c.bf16 %v1455, %v1454
        %v1560 = vpack.c.bf16 %v1457, %v1456
        %v1561 = vpack.c.bf16 %v1459, %v1458
        %v1562 = vpack.c.bf16 %v1461, %v1460
        %v1563 = vpack.c.bf16 %v1463, %v1462
        %v1564 = vpack.c.bf16 %v1465, %v1464
        %v1565 = vpack.c.bf16 %v1467, %v1466
        %v1566 = vpack.c.bf16 %v1469, %v1468
        %v1567 = vpack.c.bf16 %v1471, %v1470
        %v1568 = vpack.c.bf16 %v1473, %v1472
        %v1569 = vpack.c.bf16 %v1475, %v1474
        %v1570 = vpack.c.bf16 %v1477, %v1476
        %v1571 = vpack.c.bf16 %v1479, %v1478
        %v1572 = vpack.c.bf16 %v1481, %v1480
        %v1573 = vpack.c.bf16 %v1483, %v1482
        %v1574 = vpack.c.bf16 %v1485, %v1484
        %v1575 = vpack.c.bf16 %v1487, %v1486
        %v1576 = vpack.c.bf16 %v1489, %v1488
        %v1577 = vpack.c.bf16 %v1491, %v1490
        %v1578 = vpack.c.bf16 %v1493, %v1492
        %v1579 = vpack.c.bf16 %v1495, %v1494
        %v1580 = vpack.c.bf16 %v1497, %v1496
        %v1581 = vpack.c.bf16 %v1499, %v1498
        %v1582 = vpack.c.bf16 %v1501, %v1500
        %v1583 = vpack.c.bf16 %v1503, %v1502
        %v1584 = vpack.c.bf16 %v1505, %v1504
        %v1585 = vpack.c.bf16 %v1507, %v1506
        %v1586 = vpack.c.bf16 %v1509, %v1508
        %v1587 = vpack.c.bf16 %v1511, %v1510
        %v1588 = vpack.c.bf16 %v1513, %v1512
        %v1589 = vpack.c.bf16 %v1515, %v1514
        %v1590 = vpack.c.bf16 %v1517, %v1516
        %v1591 = vpack.c.bf16 %v1519, %v1518
        %v1592 = vpack.c.bf16 %v1521, %v1520
        %v1593 = vpack.c.bf16 %v1523, %v1522
        %v1594 = vpack.c.bf16 %v1525, %v1524
        %v1595 = vpack.c.bf16 %v1527, %v1526
        %v1596 = vpack.c.bf16 %v1529, %v1528
        %v1597 = vpack.c.bf16 %v1531, %v1530
        %v1598 = vpack.c.bf16 %v1533, %v1532
        %v1599 = vpack.c.bf16 %v1535, %v1534
        %v1664 = vunpack.c.l.b16 %v1536
        %v1665 = vunpack.c.h.b16 %v1536
        %v1666 = vunpack.c.l.b16 %v1537
        %v1667 = vunpack.c.h.b16 %v1537
        %v1668 = vunpack.c.l.b16 %v1538
        %v1669 = vunpack.c.h.b16 %v1538
        %v1670 = vunpack.c.l.b16 %v1539
        %v1671 = vunpack.c.h.b16 %v1539
        %v1672 = vunpack.c.l.b16 %v1540
        %v1673 = vunpack.c.h.b16 %v1540
        %v1674 = vunpack.c.l.b16 %v1541
        %v1675 = vunpack.c.h.b16 %v1541
        %v1676 = vunpack.c.l.b16 %v1542
        %v1677 = vunpack.c.h.b16 %v1542
        %v1678 = vunpack.c.l.b16 %v1543
        %v1679 = vunpack.c.h.b16 %v1543
        %v1680 = vunpack.c.l.b16 %v1544
        %v1681 = vunpack.c.h.b16 %v1544
        %v1682 = vunpack.c.l.b16 %v1545
        %v1683 = vunpack.c.h.b16 %v1545
        %v1684 = vunpack.c.l.b16 %v1546
        %v1685 = vunpack.c.h.b16 %v1546
        %v1686 = vunpack.c.l.b16 %v1547
        %v1687 = vunpack.c.h.b16 %v1547
        %v1688 = vunpack.c.l.b16 %v1548
        %v1689 = vunpack.c.h.b16 %v1548
        %v1690 = vunpack.c.l.b16 %v1549
        %v1691 = vunpack.c.h.b16 %v1549
        %v1692 = vunpack.c.l.b16 %v1550
        %v1693 = vunpack.c.h.b16 %v1550
        %v1694 = vunpack.c.l.b16 %v1551
        %v1695 = vunpack.c.h.b16 %v1551
        %v1696 = vunpack.c.l.b16 %v1552
        %v1697 = vunpack.c.h.b16 %v1552
        %v1698 = vunpack.c.l.b16 %v1553
        %v1699 = vunpack.c.h.b16 %v1553
        %v1700 = vunpack.c.l.b16 %v1554
        %v1701 = vunpack.c.h.b16 %v1554
        %v1702 = vunpack.c.l.b16 %v1555
        %v1703 = vunpack.c.h.b16 %v1555
        %v1704 = vunpack.c.l.b16 %v1556
        %v1705 = vunpack.c.h.b16 %v1556
        %v1706 = vunpack.c.l.b16 %v1557
        %v1707 = vunpack.c.h.b16 %v1557
        %v1708 = vunpack.c.l.b16 %v1558
        %v1709 = vunpack.c.h.b16 %v1558
        %v1710 = vunpack.c.l.b16 %v1559
        %v1711 = vunpack.c.h.b16 %v1559
        %v1712 = vunpack.c.l.b16 %v1560
        %v1713 = vunpack.c.h.b16 %v1560
        %v1714 = vunpack.c.l.b16 %v1561
        %v1715 = vunpack.c.h.b16 %v1561
        %v1716 = vunpack.c.l.b16 %v1562
        %v1717 = vunpack.c.h.b16 %v1562
        %v1718 = vunpack.c.l.b16 %v1563
        %v1719 = vunpack.c.h.b16 %v1563
        %v1720 = vunpack.c.l.b16 %v1564
        %v1721 = vunpack.c.h.b16 %v1564
        %v1722 = vunpack.c.l.b16 %v1565
        %v1723 = vunpack.c.h.b16 %v1565
        %v1724 = vunpack.c.l.b16 %v1566
        %v1725 = vunpack.c.h.b16 %v1566
        %v1726 = vunpack.c.l.b16 %v1567
        %v1727 = vunpack.c.h.b16 %v1567
        %v1728 = vunpack.c.l.b16 %v1568
        %v1729 = vunpack.c.h.b16 %v1568
        %v1730 = vunpack.c.l.b16 %v1569
        %v1731 = vunpack.c.h.b16 %v1569
        %v1732 = vunpack.c.l.b16 %v1570
        %v1733 = vunpack.c.h.b16 %v1570
        %v1734 = vunpack.c.l.b16 %v1571
        %v1735 = vunpack.c.h.b16 %v1571
        %v1736 = vunpack.c.l.b16 %v1572
        %v1737 = vunpack.c.h.b16 %v1572
        %v1738 = vunpack.c.l.b16 %v1573
        %v1739 = vunpack.c.h.b16 %v1573
        %v1740 = vunpack.c.l.b16 %v1574
        %v1741 = vunpack.c.h.b16 %v1574
        %v1742 = vunpack.c.l.b16 %v1575
        %v1743 = vunpack.c.h.b16 %v1575
        %v1744 = vunpack.c.l.b16 %v1576
        %v1745 = vunpack.c.h.b16 %v1576
        %v1746 = vunpack.c.l.b16 %v1577
        %v1747 = vunpack.c.h.b16 %v1577
        %v1748 = vunpack.c.l.b16 %v1578
        %v1749 = vunpack.c.h.b16 %v1578
        %v1750 = vunpack.c.l.b16 %v1579
        %v1751 = vunpack.c.h.b16 %v1579
        %v1752 = vunpack.c.l.b16 %v1580
        %v1753 = vunpack.c.h.b16 %v1580
        %v1754 = vunpack.c.l.b16 %v1581
        %v1755 = vunpack.c.h.b16 %v1581
        %v1756 = vunpack.c.l.b16 %v1582
        %v1757 = vunpack.c.h.b16 %v1582
        %v1758 = vunpack.c.l.b16 %v1583
        %v1759 = vunpack.c.h.b16 %v1583
        %v1760 = vunpack.c.l.b16 %v1584
        %v1761 = vunpack.c.h.b16 %v1584
        %v1762 = vunpack.c.l.b16 %v1585
        %v1763 = vunpack.c.h.b16 %v1585
        %v1764 = vunpack.c.l.b16 %v1586
        %v1765 = vunpack.c.h.b16 %v1586
        %v1766 = vunpack.c.l.b16 %v1587
        %v1767 = vunpack.c.h.b16 %v1587
        %v1768 = vunpack.c.l.b16 %v1588
        %v1769 = vunpack.c.h.b16 %v1588
        %v1770 = vunpack.c.l.b16 %v1589
        %v1771 = vunpack.c.h.b16 %v1589
        %v1772 = vunpack.c.l.b16 %v1590
        %v1773 = vunpack.c.h.b16 %v1590
        %v1774 = vunpack.c.l.b16 %v1591
        %v1775 = vunpack.c.h.b16 %v1591
        %v1776 = vunpack.c.l.b16 %v1592
        %v1777 = vunpack.c.h.b16 %v1592
        %v1778 = vunpack.c.l.b16 %v1593
        %v1779 = vunpack.c.h.b16 %v1593
        %v1780 = vunpack.c.l.b16 %v1594
        %v1781 = vunpack.c.h.b16 %v1594
        %v1782 = vunpack.c.l.b16 %v1595
        %v1783 = vunpack.c.h.b16 %v1595
        %v1784 = vunpack.c.l.b16 %v1596
        %v1785 = vunpack.c.h.b16 %v1596
        %v1786 = vunpack.c.l.b16 %v1597
        %v1787 = vunpack.c.h.b16 %v1597
        %v1788 = vunpack.c.l.b16 %v1598
        %v1789 = vunpack.c.h.b16 %v1598
        %v1790 = vunpack.c.l.b16 %v1599
        %v1791 = vunpack.c.h.b16 %v1599
        %v1792 = vpack.c.b16 %v1664, %v1664
        %v1793 = vpack.c.b16 %v1665, %v1665
        %v1794 = vpack.c.b16 %v1666, %v1666
        %v1795 = vpack.c.b16 %v1667, %v1667
        %v1796 = vpack.c.b16 %v1668, %v1668
        %v1797 = vpack.c.b16 %v1669, %v1669
        %v1798 = vpack.c.b16 %v1670, %v1670
        %v1799 = vpack.c.b16 %v1671, %v1671
        %v1800 = vpack.c.b16 %v1672, %v1672
        %v1801 = vpack.c.b16 %v1673, %v1673
        %v1802 = vpack.c.b16 %v1674, %v1674
        %v1803 = vpack.c.b16 %v1675, %v1675
        %v1804 = vpack.c.b16 %v1676, %v1676
        %v1805 = vpack.c.b16 %v1677, %v1677
        %v1806 = vpack.c.b16 %v1678, %v1678
        %v1807 = vpack.c.b16 %v1679, %v1679
        %v1808 = vpack.c.b16 %v1680, %v1680
        %v1809 = vpack.c.b16 %v1681, %v1681
        %v1810 = vpack.c.b16 %v1682, %v1682
        %v1811 = vpack.c.b16 %v1683, %v1683
        %v1812 = vpack.c.b16 %v1684, %v1684
        %v1813 = vpack.c.b16 %v1685, %v1685
        %v1814 = vpack.c.b16 %v1686, %v1686
        %v1815 = vpack.c.b16 %v1687, %v1687
        %v1816 = vpack.c.b16 %v1688, %v1688
        %v1817 = vpack.c.b16 %v1689, %v1689
        %v1818 = vpack.c.b16 %v1690, %v1690
        %v1819 = vpack.c.b16 %v1691, %v1691
        %v1820 = vpack.c.b16 %v1692, %v1692
        %v1821 = vpack.c.b16 %v1693, %v1693
        %v1822 = vpack.c.b16 %v1694, %v1694
        %v1823 = vpack.c.b16 %v1695, %v1695
        %v1824 = vpack.c.b16 %v1696, %v1696
        %v1825 = vpack.c.b16 %v1697, %v1697
        %v1826 = vpack.c.b16 %v1698, %v1698
        %v1827 = vpack.c.b16 %v1699, %v1699
        %v1828 = vpack.c.b16 %v1700, %v1700
        %v1829 = vpack.c.b16 %v1701, %v1701
        %v1830 = vpack.c.b16 %v1702, %v1702
        %v1831 = vpack.c.b16 %v1703, %v1703
        %v1832 = vpack.c.b16 %v1704, %v1704
        %v1833 = vpack.c.b16 %v1705, %v1705
        %v1834 = vpack.c.b16 %v1706, %v1706
        %v1835 = vpack.c.b16 %v1707, %v1707
        %v1836 = vpack.c.b16 %v1708, %v1708
        %v1837 = vpack.c.b16 %v1709, %v1709
        %v1838 = vpack.c.b16 %v1710, %v1710
        %v1839 = vpack.c.b16 %v1711, %v1711
        %v1840 = vpack.c.b16 %v1712, %v1712
        %v1841 = vpack.c.b16 %v1713, %v1713
        %v1842 = vpack.c.b16 %v1714, %v1714
        %v1843 = vpack.c.b16 %v1715, %v1715
        %v1844 = vpack.c.b16 %v1716, %v1716
        %v1845 = vpack.c.b16 %v1717, %v1717
        %v1846 = vpack.c.b16 %v1718, %v1718
        %v1847 = vpack.c.b16 %v1719, %v1719
        %v1848 = vpack.c.b16 %v1720, %v1720
        %v1849 = vpack.c.b16 %v1721, %v1721
        %v1850 = vpack.c.b16 %v1722, %v1722
        %v1851 = vpack.c.b16 %v1723, %v1723
        %v1852 = vpack.c.b16 %v1724, %v1724
        %v1853 = vpack.c.b16 %v1725, %v1725
        %v1854 = vpack.c.b16 %v1726, %v1726
        %v1855 = vpack.c.b16 %v1727, %v1727
        %v1856 = vpack.c.b16 %v1728, %v1728
        %v1857 = vpack.c.b16 %v1729, %v1729
        %v1858 = vpack.c.b16 %v1730, %v1730
        %v1859 = vpack.c.b16 %v1731, %v1731
        %v1860 = vpack.c.b16 %v1732, %v1732
        %v1861 = vpack.c.b16 %v1733, %v1733
        %v1862 = vpack.c.b16 %v1734, %v1734
        %v1863 = vpack.c.b16 %v1735, %v1735
        %v1864 = vpack.c.b16 %v1736, %v1736
        %v1865 = vpack.c.b16 %v1737, %v1737
        %v1866 = vpack.c.b16 %v1738, %v1738
        %v1867 = vpack.c.b16 %v1739, %v1739
        %v1868 = vpack.c.b16 %v1740, %v1740
        %v1869 = vpack.c.b16 %v1741, %v1741
        %v1870 = vpack.c.b16 %v1742, %v1742
        %v1871 = vpack.c.b16 %v1743, %v1743
        %v1872 = vpack.c.b16 %v1744, %v1744
        %v1873 = vpack.c.b16 %v1745, %v1745
        %v1874 = vpack.c.b16 %v1746, %v1746
        %v1875 = vpack.c.b16 %v1747, %v1747
        %v1876 = vpack.c.b16 %v1748, %v1748
        %v1877 = vpack.c.b16 %v1749, %v1749
        %v1878 = vpack.c.b16 %v1750, %v1750
        %v1879 = vpack.c.b16 %v1751, %v1751
        %v1880 = vpack.c.b16 %v1752, %v1752
        %v1881 = vpack.c.b16 %v1753, %v1753
        %v1882 = vpack.c.b16 %v1754, %v1754
        %v1883 = vpack.c.b16 %v1755, %v1755
        %v1884 = vpack.c.b16 %v1756, %v1756
        %v1885 = vpack.c.b16 %v1757, %v1757
        %v1886 = vpack.c.b16 %v1758, %v1758
        %v1887 = vpack.c.b16 %v1759, %v1759
        %v1888 = vpack.c.b16 %v1760, %v1760
        %v1889 = vpack.c.b16 %v1761, %v1761
        %v1890 = vpack.c.b16 %v1762, %v1762
        %v1891 = vpack.c.b16 %v1763, %v1763
        %v1892 = vpack.c.b16 %v1764, %v1764
        %v1893 = vpack.c.b16 %v1765, %v1765
        %v1894 = vpack.c.b16 %v1766, %v1766
        %v1895 = vpack.c.b16 %v1767, %v1767
        %v1896 = vpack.c.b16 %v1768, %v1768
        %v1897 = vpack.c.b16 %v1769, %v1769
        %v1898 = vpack.c.b16 %v1770, %v1770
        %v1899 = vpack.c.b16 %v1771, %v1771
        %v1900 = vpack.c.b16 %v1772, %v1772
        %v1901 = vpack.c.b16 %v1773, %v1773
        %v1902 = vpack.c.b16 %v1774, %v1774
        %v1903 = vpack.c.b16 %v1775, %v1775
        %v1904 = vpack.c.b16 %v1776, %v1776
        %v1905 = vpack.c.b16 %v1777, %v1777
        %v1906 = vpack.c.b16 %v1778, %v1778
        %v1907 = vpack.c.b16 %v1779, %v1779
        %v1908 = vpack.c.b16 %v1780, %v1780
        %v1909 = vpack.c.b16 %v1781, %v1781
        %v1910 = vpack.c.b16 %v1782, %v1782
        %v1911 = vpack.c.b16 %v1783, %v1783
        %v1912 = vpack.c.b16 %v1784, %v1784
        %v1913 = vpack.c.b16 %v1785, %v1785
        %v1914 = vpack.c.b16 %v1786, %v1786
        %v1915 = vpack.c.b16 %v1787, %v1787
        %v1916 = vpack.c.b16 %v1788, %v1788
        %v1917 = vpack.c.b16 %v1789, %v1789
        %v1918 = vpack.c.b16 %v1790, %v1790
        %v1919 = vpack.c.b16 %v1791, %v1791
        %vm2048 = vcmask 257024
        %2049 = vst.msk [vmem:[%s172] sm:$0xf] %vm2048, %v1792
        %2050 = vst.msk [vmem:[%s172 + $0x4] sm:$0xf] %vm2048, %v1793
        %2051 = vst.msk [vmem:[%s172 + $0x8] sm:$0xf] %vm2048, %v1794
        %2052 = vst.msk [vmem:[%s172 + $0xc] sm:$0xf] %vm2048, %v1795
        %2053 = vst.msk [vmem:[%s172 + $0x10] sm:$0xf] %vm2048, %v1796
        %2054 = vst.msk [vmem:[%s172 + $0x14] sm:$0xf] %vm2048, %v1797
        %2055 = vst.msk [vmem:[%s172 + $0x18] sm:$0xf] %vm2048, %v1798
        %2056 = vst.msk [vmem:[%s172 + $0x1c] sm:$0xf] %vm2048, %v1799
        %2057 = vst.msk [vmem:[%s172 + $0x20] sm:$0xf] %vm2048, %v1800
        %2058 = vst.msk [vmem:[%s172 + $0x24] sm:$0xf] %vm2048, %v1801
        %2059 = vst.msk [vmem:[%s172 + $0x28] sm:$0xf] %vm2048, %v1802
        %2060 = vst.msk [vmem:[%s172 + $0x2c] sm:$0xf] %vm2048, %v1803
        %2061 = vst.msk [vmem:[%s172 + $0x30] sm:$0xf] %vm2048, %v1804
        %2062 = vst.msk [vmem:[%s172 + $0x34] sm:$0xf] %vm2048, %v1805
        %2063 = vst.msk [vmem:[%s172 + $0x38] sm:$0xf] %vm2048, %v1806
        %2064 = vst.msk [vmem:[%s172 + $0x3c] sm:$0xf] %vm2048, %v1807
        %2065 = vst.msk [vmem:[%s172 + $0x40] sm:$0xf] %vm2048, %v1808
        %2066 = vst.msk [vmem:[%s172 + $0x44] sm:$0xf] %vm2048, %v1809
        %2067 = vst.msk [vmem:[%s172 + $0x48] sm:$0xf] %vm2048, %v1810
        %2068 = vst.msk [vmem:[%s172 + $0x4c] sm:$0xf] %vm2048, %v1811
        %2069 = vst.msk [vmem:[%s172 + $0x50] sm:$0xf] %vm2048, %v1812
        %2070 = vst.msk [vmem:[%s172 + $0x54] sm:$0xf] %vm2048, %v1813
        %2071 = vst.msk [vmem:[%s172 + $0x58] sm:$0xf] %vm2048, %v1814
        %2072 = vst.msk [vmem:[%s172 + $0x5c] sm:$0xf] %vm2048, %v1815
        %2073 = vst.msk [vmem:[%s172 + $0x60] sm:$0xf] %vm2048, %v1816
        %2074 = vst.msk [vmem:[%s172 + $0x64] sm:$0xf] %vm2048, %v1817
        %2075 = vst.msk [vmem:[%s172 + $0x68] sm:$0xf] %vm2048, %v1818
        %2076 = vst.msk [vmem:[%s172 + $0x6c] sm:$0xf] %vm2048, %v1819
        %2077 = vst.msk [vmem:[%s172 + $0x70] sm:$0xf] %vm2048, %v1820
        %2078 = vst.msk [vmem:[%s172 + $0x74] sm:$0xf] %vm2048, %v1821
        %2079 = vst.msk [vmem:[%s172 + $0x78] sm:$0xf] %vm2048, %v1822
        %2080 = vst.msk [vmem:[%s172 + $0x7c] sm:$0xf] %vm2048, %v1823
        %2081 = vst.msk [vmem:[%s172 + $0x80] sm:$0xf] %vm2048, %v1824
        %2082 = vst.msk [vmem:[%s172 + $0x84] sm:$0xf] %vm2048, %v1825
        %2083 = vst.msk [vmem:[%s172 + $0x88] sm:$0xf] %vm2048, %v1826
        %2084 = vst.msk [vmem:[%s172 + $0x8c] sm:$0xf] %vm2048, %v1827
        %2085 = vst.msk [vmem:[%s172 + $0x90] sm:$0xf] %vm2048, %v1828
        %2086 = vst.msk [vmem:[%s172 + $0x94] sm:$0xf] %vm2048, %v1829
        %2087 = vst.msk [vmem:[%s172 + $0x98] sm:$0xf] %vm2048, %v1830
        %2088 = vst.msk [vmem:[%s172 + $0x9c] sm:$0xf] %vm2048, %v1831
        %2089 = vst.msk [vmem:[%s172 + $0xa0] sm:$0xf] %vm2048, %v1832
        %2090 = vst.msk [vmem:[%s172 + $0xa4] sm:$0xf] %vm2048, %v1833
        %2091 = vst.msk [vmem:[%s172 + $0xa8] sm:$0xf] %vm2048, %v1834
        %2092 = vst.msk [vmem:[%s172 + $0xac] sm:$0xf] %vm2048, %v1835
        %2093 = vst.msk [vmem:[%s172 + $0xb0] sm:$0xf] %vm2048, %v1836
        %2094 = vst.msk [vmem:[%s172 + $0xb4] sm:$0xf] %vm2048, %v1837
        %2095 = vst.msk [vmem:[%s172 + $0xb8] sm:$0xf] %vm2048, %v1838
        %2096 = vst.msk [vmem:[%s172 + $0xbc] sm:$0xf] %vm2048, %v1839
        %2097 = vst.msk [vmem:[%s172 + $0xc0] sm:$0xf] %vm2048, %v1840
        %2098 = vst.msk [vmem:[%s172 + $0xc4] sm:$0xf] %vm2048, %v1841
        %2099 = vst.msk [vmem:[%s172 + $0xc8] sm:$0xf] %vm2048, %v1842
        %2100 = vst.msk [vmem:[%s172 + $0xcc] sm:$0xf] %vm2048, %v1843
        %2101 = vst.msk [vmem:[%s172 + $0xd0] sm:$0xf] %vm2048, %v1844
        %2102 = vst.msk [vmem:[%s172 + $0xd4] sm:$0xf] %vm2048, %v1845
        %2103 = vst.msk [vmem:[%s172 + $0xd8] sm:$0xf] %vm2048, %v1846
        %2104 = vst.msk [vmem:[%s172 + $0xdc] sm:$0xf] %vm2048, %v1847
        %2105 = vst.msk [vmem:[%s172 + $0xe0] sm:$0xf] %vm2048, %v1848
        %2106 = vst.msk [vmem:[%s172 + $0xe4] sm:$0xf] %vm2048, %v1849
        %2107 = vst.msk [vmem:[%s172 + $0xe8] sm:$0xf] %vm2048, %v1850
        %2108 = vst.msk [vmem:[%s172 + $0xec] sm:$0xf] %vm2048, %v1851
        %2109 = vst.msk [vmem:[%s172 + $0xf0] sm:$0xf] %vm2048, %v1852
        %2110 = vst.msk [vmem:[%s172 + $0xf4] sm:$0xf] %vm2048, %v1853
        %2111 = vst.msk [vmem:[%s172 + $0xf8] sm:$0xf] %vm2048, %v1854
        %2112 = vst.msk [vmem:[%s172 + $0xfc] sm:$0xf] %vm2048, %v1855
        %2113 = vst.msk [vmem:[%s172 + $0x100] sm:$0xf] %vm2048, %v1856
        %2114 = vst.msk [vmem:[%s172 + $0x104] sm:$0xf] %vm2048, %v1857
        %2115 = vst.msk [vmem:[%s172 + $0x108] sm:$0xf] %vm2048, %v1858
        %2116 = vst.msk [vmem:[%s172 + $0x10c] sm:$0xf] %vm2048, %v1859
        %2117 = vst.msk [vmem:[%s172 + $0x110] sm:$0xf] %vm2048, %v1860
        %2118 = vst.msk [vmem:[%s172 + $0x114] sm:$0xf] %vm2048, %v1861
        %2119 = vst.msk [vmem:[%s172 + $0x118] sm:$0xf] %vm2048, %v1862
        %2120 = vst.msk [vmem:[%s172 + $0x11c] sm:$0xf] %vm2048, %v1863
        %2121 = vst.msk [vmem:[%s172 + $0x120] sm:$0xf] %vm2048, %v1864
        %2122 = vst.msk [vmem:[%s172 + $0x124] sm:$0xf] %vm2048, %v1865
        %2123 = vst.msk [vmem:[%s172 + $0x128] sm:$0xf] %vm2048, %v1866
        %2124 = vst.msk [vmem:[%s172 + $0x12c] sm:$0xf] %vm2048, %v1867
        %2125 = vst.msk [vmem:[%s172 + $0x130] sm:$0xf] %vm2048, %v1868
        %2126 = vst.msk [vmem:[%s172 + $0x134] sm:$0xf] %vm2048, %v1869
        %2127 = vst.msk [vmem:[%s172 + $0x138] sm:$0xf] %vm2048, %v1870
        %2128 = vst.msk [vmem:[%s172 + $0x13c] sm:$0xf] %vm2048, %v1871
        %2129 = vst.msk [vmem:[%s172 + $0x140] sm:$0xf] %vm2048, %v1872
        %2130 = vst.msk [vmem:[%s172 + $0x144] sm:$0xf] %vm2048, %v1873
        %2131 = vst.msk [vmem:[%s172 + $0x148] sm:$0xf] %vm2048, %v1874
        %2132 = vst.msk [vmem:[%s172 + $0x14c] sm:$0xf] %vm2048, %v1875
        %2133 = vst.msk [vmem:[%s172 + $0x150] sm:$0xf] %vm2048, %v1876
        %2134 = vst.msk [vmem:[%s172 + $0x154] sm:$0xf] %vm2048, %v1877
        %2135 = vst.msk [vmem:[%s172 + $0x158] sm:$0xf] %vm2048, %v1878
        %2136 = vst.msk [vmem:[%s172 + $0x15c] sm:$0xf] %vm2048, %v1879
        %2137 = vst.msk [vmem:[%s172 + $0x160] sm:$0xf] %vm2048, %v1880
        %2138 = vst.msk [vmem:[%s172 + $0x164] sm:$0xf] %vm2048, %v1881
        %2139 = vst.msk [vmem:[%s172 + $0x168] sm:$0xf] %vm2048, %v1882
        %2140 = vst.msk [vmem:[%s172 + $0x16c] sm:$0xf] %vm2048, %v1883
        %2141 = vst.msk [vmem:[%s172 + $0x170] sm:$0xf] %vm2048, %v1884
        %2142 = vst.msk [vmem:[%s172 + $0x174] sm:$0xf] %vm2048, %v1885
        %2143 = vst.msk [vmem:[%s172 + $0x178] sm:$0xf] %vm2048, %v1886
        %2144 = vst.msk [vmem:[%s172 + $0x17c] sm:$0xf] %vm2048, %v1887
        %2145 = vst.msk [vmem:[%s172 + $0x180] sm:$0xf] %vm2048, %v1888
        %2146 = vst.msk [vmem:[%s172 + $0x184] sm:$0xf] %vm2048, %v1889
        %2147 = vst.msk [vmem:[%s172 + $0x188] sm:$0xf] %vm2048, %v1890
        %2148 = vst.msk [vmem:[%s172 + $0x18c] sm:$0xf] %vm2048, %v1891
        %2149 = vst.msk [vmem:[%s172 + $0x190] sm:$0xf] %vm2048, %v1892
        %2150 = vst.msk [vmem:[%s172 + $0x194] sm:$0xf] %vm2048, %v1893
        %2151 = vst.msk [vmem:[%s172 + $0x198] sm:$0xf] %vm2048, %v1894
        %2152 = vst.msk [vmem:[%s172 + $0x19c] sm:$0xf] %vm2048, %v1895
        %2153 = vst.msk [vmem:[%s172 + $0x1a0] sm:$0xf] %vm2048, %v1896
        %2154 = vst.msk [vmem:[%s172 + $0x1a4] sm:$0xf] %vm2048, %v1897
        %2155 = vst.msk [vmem:[%s172 + $0x1a8] sm:$0xf] %vm2048, %v1898
        %2156 = vst.msk [vmem:[%s172 + $0x1ac] sm:$0xf] %vm2048, %v1899
        %2157 = vst.msk [vmem:[%s172 + $0x1b0] sm:$0xf] %vm2048, %v1900
        %2158 = vst.msk [vmem:[%s172 + $0x1b4] sm:$0xf] %vm2048, %v1901
        %2159 = vst.msk [vmem:[%s172 + $0x1b8] sm:$0xf] %vm2048, %v1902
        %2160 = vst.msk [vmem:[%s172 + $0x1bc] sm:$0xf] %vm2048, %v1903
        %2161 = vst.msk [vmem:[%s172 + $0x1c0] sm:$0xf] %vm2048, %v1904
        %2162 = vst.msk [vmem:[%s172 + $0x1c4] sm:$0xf] %vm2048, %v1905
        %2163 = vst.msk [vmem:[%s172 + $0x1c8] sm:$0xf] %vm2048, %v1906
        %2164 = vst.msk [vmem:[%s172 + $0x1cc] sm:$0xf] %vm2048, %v1907
        %2165 = vst.msk [vmem:[%s172 + $0x1d0] sm:$0xf] %vm2048, %v1908
        %2166 = vst.msk [vmem:[%s172 + $0x1d4] sm:$0xf] %vm2048, %v1909
        %2167 = vst.msk [vmem:[%s172 + $0x1d8] sm:$0xf] %vm2048, %v1910
        %2168 = vst.msk [vmem:[%s172 + $0x1dc] sm:$0xf] %vm2048, %v1911
        %2169 = vst.msk [vmem:[%s172 + $0x1e0] sm:$0xf] %vm2048, %v1912
        %2170 = vst.msk [vmem:[%s172 + $0x1e4] sm:$0xf] %vm2048, %v1913
        %2171 = vst.msk [vmem:[%s172 + $0x1e8] sm:$0xf] %vm2048, %v1914
        %2172 = vst.msk [vmem:[%s172 + $0x1ec] sm:$0xf] %vm2048, %v1915
        %2173 = vst.msk [vmem:[%s172 + $0x1f0] sm:$0xf] %vm2048, %v1916
        %2174 = vst.msk [vmem:[%s172 + $0x1f4] sm:$0xf] %vm2048, %v1917
        %2175 = vst.msk [vmem:[%s172 + $0x1f8] sm:$0xf] %vm2048, %v1918
        %2176 = vst.msk [vmem:[%s172 + $0x1fc] sm:$0xf] %vm2048, %v1919
        %s2177 = sand.u32 %s90, 1
        %s2178 = sand.u32 %s90, 1
        %s2179 = smul.addr %s2178, 512
        %s2180 = scalar_lea.vmem [#allocation2], %s2179
        // Predicated region
        $region33: #{dqn_forward.3} parent=31 // pred_check
          %p2181 = pneg %p100
        $region34: #{dqn_forward.3} parent=31 // pred_check_branch
          %2183 = sbr.rel (%p2181) target = $region36
        $region35: #{dqn_forward.3} parent=31 // pred_region
          %s2184 = smul.u32 128, %s14
          %s2185 = ssub.s32 601, %s2184
          %p2186 = scmp.lt.s32.totalorder %s2185, 128
          %s2187 = scalar_select %p2186, %s2185, 128
          %s2188 = smul.u32 64, %s2187
          %p2189 = scmp.ne.s32.totalorder 0, %s2188
          %s2190 = smul.addr %s2184, 4
          %s2191 = scalar_lea.vmem %s3, %s2190
          // Predicated region
          $region37: #{dqn_forward.3} parent=35 // pred_check
            %p2192 = pneg %p2189
          $region38: #{dqn_forward.3} parent=35 // pred_check_branch
            %2194 = sbr.rel (%p2192) target = $region40
          $region39: #{dqn_forward.3} parent=35 // pred_region
            // Predicated region
            $region41: #{dqn_forward.3} parent=39 // pred_check
              _
            $region42: #{dqn_forward.3} parent=39 // pred_check_branch
              %2196 = sbr.rel target = $region44
            $region43: #{dqn_forward.3} parent=39 // pred_region
              // Predicated region
              $region63: #{dqn_forward.3} parent=43 // pred_check
                _
              $region64: #{dqn_forward.3} parent=43 // pred_check_branch
                %2371 = sbr.rel (0) target = $region66
              $region65: #{dqn_forward.3} parent=43 // pred_region
                %s2373 = sshrl.u32 %s2187, 6
                // While loop
                $region67: #{dqn_forward.3} parent=65 // loop_pre_header
                  _
                $region68: #{dqn_forward.3} parent=65 // loop_header
                  %s2375 = sphi 0, %s2377
                  %p2376 = scmp.ge.s32.totalorder %s2375, %s2373
                  %s2380 = sphi 0, %s2513
                  %s2381 = sphi %s2180, %s2516
                  %s2382 = sphi %s2191, %s2517
                $region69: #{dqn_forward.3} parent=65 // loop_header_branch
                  %2379 = sbr.rel (%p2376) target = $region73
                $region70: #{dqn_forward.3} parent=65 // loop_body
                  %v2383 = vld [vmem:[%s2381] sm:$0xf]
                  %2384 = vst [vmem:[%s2382] sm:$0xf] %v2383
                  %v2385 = vld [vmem:[%s2381 + $0x4] sm:$0xf]
                  %2386 = vst [vmem:[%s2382 + $0x4] sm:$0xf] %v2385
                  %v2387 = vld [vmem:[%s2381 + $0x8] sm:$0xf]
                  %2388 = vst [vmem:[%s2382 + $0x8] sm:$0xf] %v2387
                  %v2389 = vld [vmem:[%s2381 + $0xc] sm:$0xf]
                  %2390 = vst [vmem:[%s2382 + $0xc] sm:$0xf] %v2389
                  %v2391 = vld [vmem:[%s2381 + $0x10] sm:$0xf]
                  %2392 = vst [vmem:[%s2382 + $0x10] sm:$0xf] %v2391
                  %v2393 = vld [vmem:[%s2381 + $0x14] sm:$0xf]
                  %2394 = vst [vmem:[%s2382 + $0x14] sm:$0xf] %v2393
                  %v2395 = vld [vmem:[%s2381 + $0x18] sm:$0xf]
                  %2396 = vst [vmem:[%s2382 + $0x18] sm:$0xf] %v2395
                  %v2397 = vld [vmem:[%s2381 + $0x1c] sm:$0xf]
                  %2398 = vst [vmem:[%s2382 + $0x1c] sm:$0xf] %v2397
                  %v2399 = vld [vmem:[%s2381 + $0x20] sm:$0xf]
                  %2400 = vst [vmem:[%s2382 + $0x20] sm:$0xf] %v2399
                  %v2401 = vld [vmem:[%s2381 + $0x24] sm:$0xf]
                  %2402 = vst [vmem:[%s2382 + $0x24] sm:$0xf] %v2401
                  %v2403 = vld [vmem:[%s2381 + $0x28] sm:$0xf]
                  %2404 = vst [vmem:[%s2382 + $0x28] sm:$0xf] %v2403
                  %v2405 = vld [vmem:[%s2381 + $0x2c] sm:$0xf]
                  %2406 = vst [vmem:[%s2382 + $0x2c] sm:$0xf] %v2405
                  %v2407 = vld [vmem:[%s2381 + $0x30] sm:$0xf]
                  %2408 = vst [vmem:[%s2382 + $0x30] sm:$0xf] %v2407
                  %v2409 = vld [vmem:[%s2381 + $0x34] sm:$0xf]
                  %2410 = vst [vmem:[%s2382 + $0x34] sm:$0xf] %v2409
                  %v2411 = vld [vmem:[%s2381 + $0x38] sm:$0xf]
                  %2412 = vst [vmem:[%s2382 + $0x38] sm:$0xf] %v2411
                  %v2413 = vld [vmem:[%s2381 + $0x3c] sm:$0xf]
                  %2414 = vst [vmem:[%s2382 + $0x3c] sm:$0xf] %v2413
                  %v2415 = vld [vmem:[%s2381 + $0x40] sm:$0xf]
                  %2416 = vst [vmem:[%s2382 + $0x40] sm:$0xf] %v2415
                  %v2417 = vld [vmem:[%s2381 + $0x44] sm:$0xf]
                  %2418 = vst [vmem:[%s2382 + $0x44] sm:$0xf] %v2417
                  %v2419 = vld [vmem:[%s2381 + $0x48] sm:$0xf]
                  %2420 = vst [vmem:[%s2382 + $0x48] sm:$0xf] %v2419
                  %v2421 = vld [vmem:[%s2381 + $0x4c] sm:$0xf]
                  %2422 = vst [vmem:[%s2382 + $0x4c] sm:$0xf] %v2421
                  %v2423 = vld [vmem:[%s2381 + $0x50] sm:$0xf]
                  %2424 = vst [vmem:[%s2382 + $0x50] sm:$0xf] %v2423
                  %v2425 = vld [vmem:[%s2381 + $0x54] sm:$0xf]
                  %2426 = vst [vmem:[%s2382 + $0x54] sm:$0xf] %v2425
                  %v2427 = vld [vmem:[%s2381 + $0x58] sm:$0xf]
                  %2428 = vst [vmem:[%s2382 + $0x58] sm:$0xf] %v2427
                  %v2429 = vld [vmem:[%s2381 + $0x5c] sm:$0xf]
                  %2430 = vst [vmem:[%s2382 + $0x5c] sm:$0xf] %v2429
                  %v2431 = vld [vmem:[%s2381 + $0x60] sm:$0xf]
                  %2432 = vst [vmem:[%s2382 + $0x60] sm:$0xf] %v2431
                  %v2433 = vld [vmem:[%s2381 + $0x64] sm:$0xf]
                  %2434 = vst [vmem:[%s2382 + $0x64] sm:$0xf] %v2433
                  %v2435 = vld [vmem:[%s2381 + $0x68] sm:$0xf]
                  %2436 = vst [vmem:[%s2382 + $0x68] sm:$0xf] %v2435
                  %v2437 = vld [vmem:[%s2381 + $0x6c] sm:$0xf]
                  %2438 = vst [vmem:[%s2382 + $0x6c] sm:$0xf] %v2437
                  %v2439 = vld [vmem:[%s2381 + $0x70] sm:$0xf]
                  %2440 = vst [vmem:[%s2382 + $0x70] sm:$0xf] %v2439
                  %v2441 = vld [vmem:[%s2381 + $0x74] sm:$0xf]
                  %2442 = vst [vmem:[%s2382 + $0x74] sm:$0xf] %v2441
                  %v2443 = vld [vmem:[%s2381 + $0x78] sm:$0xf]
                  %2444 = vst [vmem:[%s2382 + $0x78] sm:$0xf] %v2443
                  %v2445 = vld [vmem:[%s2381 + $0x7c] sm:$0xf]
                  %2446 = vst [vmem:[%s2382 + $0x7c] sm:$0xf] %v2445
                  %v2447 = vld [vmem:[%s2381 + $0x80] sm:$0xf]
                  %2448 = vst [vmem:[%s2382 + $0x80] sm:$0xf] %v2447
                  %v2449 = vld [vmem:[%s2381 + $0x84] sm:$0xf]
                  %2450 = vst [vmem:[%s2382 + $0x84] sm:$0xf] %v2449
                  %v2451 = vld [vmem:[%s2381 + $0x88] sm:$0xf]
                  %2452 = vst [vmem:[%s2382 + $0x88] sm:$0xf] %v2451
                  %v2453 = vld [vmem:[%s2381 + $0x8c] sm:$0xf]
                  %2454 = vst [vmem:[%s2382 + $0x8c] sm:$0xf] %v2453
                  %v2455 = vld [vmem:[%s2381 + $0x90] sm:$0xf]
                  %2456 = vst [vmem:[%s2382 + $0x90] sm:$0xf] %v2455
                  %v2457 = vld [vmem:[%s2381 + $0x94] sm:$0xf]
                  %2458 = vst [vmem:[%s2382 + $0x94] sm:$0xf] %v2457
                  %v2459 = vld [vmem:[%s2381 + $0x98] sm:$0xf]
                  %2460 = vst [vmem:[%s2382 + $0x98] sm:$0xf] %v2459
                  %v2461 = vld [vmem:[%s2381 + $0x9c] sm:$0xf]
                  %2462 = vst [vmem:[%s2382 + $0x9c] sm:$0xf] %v2461
                  %v2463 = vld [vmem:[%s2381 + $0xa0] sm:$0xf]
                  %2464 = vst [vmem:[%s2382 + $0xa0] sm:$0xf] %v2463
                  %v2465 = vld [vmem:[%s2381 + $0xa4] sm:$0xf]
                  %2466 = vst [vmem:[%s2382 + $0xa4] sm:$0xf] %v2465
                  %v2467 = vld [vmem:[%s2381 + $0xa8] sm:$0xf]
                  %2468 = vst [vmem:[%s2382 + $0xa8] sm:$0xf] %v2467
                  %v2469 = vld [vmem:[%s2381 + $0xac] sm:$0xf]
                  %2470 = vst [vmem:[%s2382 + $0xac] sm:$0xf] %v2469
                  %v2471 = vld [vmem:[%s2381 + $0xb0] sm:$0xf]
                  %2472 = vst [vmem:[%s2382 + $0xb0] sm:$0xf] %v2471
                  %v2473 = vld [vmem:[%s2381 + $0xb4] sm:$0xf]
                  %2474 = vst [vmem:[%s2382 + $0xb4] sm:$0xf] %v2473
                  %v2475 = vld [vmem:[%s2381 + $0xb8] sm:$0xf]
                  %2476 = vst [vmem:[%s2382 + $0xb8] sm:$0xf] %v2475
                  %v2477 = vld [vmem:[%s2381 + $0xbc] sm:$0xf]
                  %2478 = vst [vmem:[%s2382 + $0xbc] sm:$0xf] %v2477
                  %v2479 = vld [vmem:[%s2381 + $0xc0] sm:$0xf]
                  %2480 = vst [vmem:[%s2382 + $0xc0] sm:$0xf] %v2479
                  %v2481 = vld [vmem:[%s2381 + $0xc4] sm:$0xf]
                  %2482 = vst [vmem:[%s2382 + $0xc4] sm:$0xf] %v2481
                  %v2483 = vld [vmem:[%s2381 + $0xc8] sm:$0xf]
                  %2484 = vst [vmem:[%s2382 + $0xc8] sm:$0xf] %v2483
                  %v2485 = vld [vmem:[%s2381 + $0xcc] sm:$0xf]
                  %2486 = vst [vmem:[%s2382 + $0xcc] sm:$0xf] %v2485
                  %v2487 = vld [vmem:[%s2381 + $0xd0] sm:$0xf]
                  %2488 = vst [vmem:[%s2382 + $0xd0] sm:$0xf] %v2487
                  %v2489 = vld [vmem:[%s2381 + $0xd4] sm:$0xf]
                  %2490 = vst [vmem:[%s2382 + $0xd4] sm:$0xf] %v2489
                  %v2491 = vld [vmem:[%s2381 + $0xd8] sm:$0xf]
                  %2492 = vst [vmem:[%s2382 + $0xd8] sm:$0xf] %v2491
                  %v2493 = vld [vmem:[%s2381 + $0xdc] sm:$0xf]
                  %2494 = vst [vmem:[%s2382 + $0xdc] sm:$0xf] %v2493
                  %v2495 = vld [vmem:[%s2381 + $0xe0] sm:$0xf]
                  %2496 = vst [vmem:[%s2382 + $0xe0] sm:$0xf] %v2495
                  %v2497 = vld [vmem:[%s2381 + $0xe4] sm:$0xf]
                  %2498 = vst [vmem:[%s2382 + $0xe4] sm:$0xf] %v2497
                  %v2499 = vld [vmem:[%s2381 + $0xe8] sm:$0xf]
                  %2500 = vst [vmem:[%s2382 + $0xe8] sm:$0xf] %v2499
                  %v2501 = vld [vmem:[%s2381 + $0xec] sm:$0xf]
                  %2502 = vst [vmem:[%s2382 + $0xec] sm:$0xf] %v2501
                  %v2503 = vld [vmem:[%s2381 + $0xf0] sm:$0xf]
                  %2504 = vst [vmem:[%s2382 + $0xf0] sm:$0xf] %v2503
                  %v2505 = vld [vmem:[%s2381 + $0xf4] sm:$0xf]
                  %2506 = vst [vmem:[%s2382 + $0xf4] sm:$0xf] %v2505
                  %v2507 = vld [vmem:[%s2381 + $0xf8] sm:$0xf]
                  %2508 = vst [vmem:[%s2382 + $0xf8] sm:$0xf] %v2507
                  %v2509 = vld [vmem:[%s2381 + $0xfc] sm:$0xf]
                  %2510 = vst [vmem:[%s2382 + $0xfc] sm:$0xf] %v2509
                  %s2511 = sadd.s32 1, %s2380
                  %p2512 = scmp.ge.s32.totalorder %s2511, %s2373
                  %s2513 = scalar_select %p2512, 0, %s2511
                  %s2514 = smul.u32 %s2513, 256
                  %s2515 = smul.u32 %s2513, 256
                  %s2516 = scalar_lea.vmem %s2180, %s2514 [#allocation2]
                  %s2517 = scalar_lea.vmem %s2191, %s2515
                $region71: #{dqn_forward.3} parent=65 // loop_footer
                  %s2377 = sadd.s32 %s2375, 1
                $region72: #{dqn_forward.3} parent=65 // loop_footer_branch
                  %2374 = sbr.rel target = $region68
                $region73: #{dqn_forward.3} parent=65 // loop_exit
                  _
                %s2518 = sshrl.u32 %s2187, 6
                %s2519 = sand.u32 %s2187, 63
                %s2520 = smul.u32 %s2518, 64
                %s2521 = smul.u32 4, %s2520
                %s2522 = scalar_lea.vmem %s2180, %s2521 [#allocation2]
                %s2523 = smul.u32 4, %s2520
                %s2524 = scalar_lea.vmem %s2191, %s2523
                // While loop
                $region74: #{dqn_forward.3} parent=65 // loop_pre_header
                  _
                $region75: #{dqn_forward.3} parent=65 // loop_header
                  %s2526 = sphi 0, %s2528
                  %p2527 = scmp.ge.s32.totalorder %s2526, %s2519
                  %s2531 = sphi 0, %s2538
                  %s2532 = sphi %s2522, %s2541
                  %s2533 = sphi %s2524, %s2542
                $region76: #{dqn_forward.3} parent=65 // loop_header_branch
                  %2530 = sbr.rel (%p2527) target = $region80
                $region77: #{dqn_forward.3} parent=65 // loop_body
                  %v2534 = vld [vmem:[%s2532] sm:$0xf]
                  %2535 = vst [vmem:[%s2533] sm:$0xf] %v2534
                  %s2536 = sadd.s32 1, %s2531
                  %p2537 = scmp.ge.s32.totalorder %s2536, %s2519
                  %s2538 = scalar_select %p2537, 0, %s2536
                  %s2539 = smul.u32 %s2538, 4
                  %s2540 = smul.u32 %s2538, 4
                  %s2541 = scalar_lea.vmem %s2522, %s2539 [#allocation2]
                  %s2542 = scalar_lea.vmem %s2524, %s2540
                $region78: #{dqn_forward.3} parent=65 // loop_footer
                  %s2528 = sadd.s32 %s2526, 1
                $region79: #{dqn_forward.3} parent=65 // loop_footer_branch
                  %2525 = sbr.rel target = $region75
                $region80: #{dqn_forward.3} parent=65 // loop_exit
                  _
              $region66: #{dqn_forward.3} parent=43 // pred_fallthru
                _
            $region44: #{dqn_forward.3} parent=39 // pred_fallthru
              _
            // Predicated region
            $region45: #{dqn_forward.3} parent=39 // pred_check
              _
            $region46: #{dqn_forward.3} parent=39 // pred_check_branch
              %2198 = sbr.rel (0) target = $region48
            $region47: #{dqn_forward.3} parent=39 // pred_region
              %s2200 = sshrl.u32 %s2187, 6
              // While loop
              $region49: #{dqn_forward.3} parent=47 // loop_pre_header
                _
              $region50: #{dqn_forward.3} parent=47 // loop_header
                %s2202 = sphi 0, %s2204
                %p2203 = scmp.ge.s32.totalorder %s2202, %s2200
                %s2207 = sphi 0, %s2340
                %s2208 = sphi %s2180, %s2343
                %s2209 = sphi %s2191, %s2344
              $region51: #{dqn_forward.3} parent=47 // loop_header_branch
                %2206 = sbr.rel (%p2203) target = $region55
              $region52: #{dqn_forward.3} parent=47 // loop_body
                %v2210 = vld [vmem:[%s2208] sm:$0xf]
                %2211 = vst [vmem:[%s2209] sm:$0xf] %v2210
                %v2212 = vld [vmem:[%s2208 + $0x4] sm:$0xf]
                %2213 = vst [vmem:[%s2209 + $0x4] sm:$0xf] %v2212
                %v2214 = vld [vmem:[%s2208 + $0x8] sm:$0xf]
                %2215 = vst [vmem:[%s2209 + $0x8] sm:$0xf] %v2214
                %v2216 = vld [vmem:[%s2208 + $0xc] sm:$0xf]
                %2217 = vst [vmem:[%s2209 + $0xc] sm:$0xf] %v2216
                %v2218 = vld [vmem:[%s2208 + $0x10] sm:$0xf]
                %2219 = vst [vmem:[%s2209 + $0x10] sm:$0xf] %v2218
                %v2220 = vld [vmem:[%s2208 + $0x14] sm:$0xf]
                %2221 = vst [vmem:[%s2209 + $0x14] sm:$0xf] %v2220
                %v2222 = vld [vmem:[%s2208 + $0x18] sm:$0xf]
                %2223 = vst [vmem:[%s2209 + $0x18] sm:$0xf] %v2222
                %v2224 = vld [vmem:[%s2208 + $0x1c] sm:$0xf]
                %2225 = vst [vmem:[%s2209 + $0x1c] sm:$0xf] %v2224
                %v2226 = vld [vmem:[%s2208 + $0x20] sm:$0xf]
                %2227 = vst [vmem:[%s2209 + $0x20] sm:$0xf] %v2226
                %v2228 = vld [vmem:[%s2208 + $0x24] sm:$0xf]
                %2229 = vst [vmem:[%s2209 + $0x24] sm:$0xf] %v2228
                %v2230 = vld [vmem:[%s2208 + $0x28] sm:$0xf]
                %2231 = vst [vmem:[%s2209 + $0x28] sm:$0xf] %v2230
                %v2232 = vld [vmem:[%s2208 + $0x2c] sm:$0xf]
                %2233 = vst [vmem:[%s2209 + $0x2c] sm:$0xf] %v2232
                %v2234 = vld [vmem:[%s2208 + $0x30] sm:$0xf]
                %2235 = vst [vmem:[%s2209 + $0x30] sm:$0xf] %v2234
                %v2236 = vld [vmem:[%s2208 + $0x34] sm:$0xf]
                %2237 = vst [vmem:[%s2209 + $0x34] sm:$0xf] %v2236
                %v2238 = vld [vmem:[%s2208 + $0x38] sm:$0xf]
                %2239 = vst [vmem:[%s2209 + $0x38] sm:$0xf] %v2238
                %v2240 = vld [vmem:[%s2208 + $0x3c] sm:$0xf]
                %2241 = vst [vmem:[%s2209 + $0x3c] sm:$0xf] %v2240
                %v2242 = vld [vmem:[%s2208 + $0x40] sm:$0xf]
                %2243 = vst [vmem:[%s2209 + $0x40] sm:$0xf] %v2242
                %v2244 = vld [vmem:[%s2208 + $0x44] sm:$0xf]
                %2245 = vst [vmem:[%s2209 + $0x44] sm:$0xf] %v2244
                %v2246 = vld [vmem:[%s2208 + $0x48] sm:$0xf]
                %2247 = vst [vmem:[%s2209 + $0x48] sm:$0xf] %v2246
                %v2248 = vld [vmem:[%s2208 + $0x4c] sm:$0xf]
                %2249 = vst [vmem:[%s2209 + $0x4c] sm:$0xf] %v2248
                %v2250 = vld [vmem:[%s2208 + $0x50] sm:$0xf]
                %2251 = vst [vmem:[%s2209 + $0x50] sm:$0xf] %v2250
                %v2252 = vld [vmem:[%s2208 + $0x54] sm:$0xf]
                %2253 = vst [vmem:[%s2209 + $0x54] sm:$0xf] %v2252
                %v2254 = vld [vmem:[%s2208 + $0x58] sm:$0xf]
                %2255 = vst [vmem:[%s2209 + $0x58] sm:$0xf] %v2254
                %v2256 = vld [vmem:[%s2208 + $0x5c] sm:$0xf]
                %2257 = vst [vmem:[%s2209 + $0x5c] sm:$0xf] %v2256
                %v2258 = vld [vmem:[%s2208 + $0x60] sm:$0xf]
                %2259 = vst [vmem:[%s2209 + $0x60] sm:$0xf] %v2258
                %v2260 = vld [vmem:[%s2208 + $0x64] sm:$0xf]
                %2261 = vst [vmem:[%s2209 + $0x64] sm:$0xf] %v2260
                %v2262 = vld [vmem:[%s2208 + $0x68] sm:$0xf]
                %2263 = vst [vmem:[%s2209 + $0x68] sm:$0xf] %v2262
                %v2264 = vld [vmem:[%s2208 + $0x6c] sm:$0xf]
                %2265 = vst [vmem:[%s2209 + $0x6c] sm:$0xf] %v2264
                %v2266 = vld [vmem:[%s2208 + $0x70] sm:$0xf]
                %2267 = vst [vmem:[%s2209 + $0x70] sm:$0xf] %v2266
                %v2268 = vld [vmem:[%s2208 + $0x74] sm:$0xf]
                %2269 = vst [vmem:[%s2209 + $0x74] sm:$0xf] %v2268
                %v2270 = vld [vmem:[%s2208 + $0x78] sm:$0xf]
                %2271 = vst [vmem:[%s2209 + $0x78] sm:$0xf] %v2270
                %v2272 = vld [vmem:[%s2208 + $0x7c] sm:$0xf]
                %2273 = vst [vmem:[%s2209 + $0x7c] sm:$0xf] %v2272
                %v2274 = vld [vmem:[%s2208 + $0x80] sm:$0xf]
                %2275 = vst [vmem:[%s2209 + $0x80] sm:$0xf] %v2274
                %v2276 = vld [vmem:[%s2208 + $0x84] sm:$0xf]
                %2277 = vst [vmem:[%s2209 + $0x84] sm:$0xf] %v2276
                %v2278 = vld [vmem:[%s2208 + $0x88] sm:$0xf]
                %2279 = vst [vmem:[%s2209 + $0x88] sm:$0xf] %v2278
                %v2280 = vld [vmem:[%s2208 + $0x8c] sm:$0xf]
                %2281 = vst [vmem:[%s2209 + $0x8c] sm:$0xf] %v2280
                %v2282 = vld [vmem:[%s2208 + $0x90] sm:$0xf]
                %2283 = vst [vmem:[%s2209 + $0x90] sm:$0xf] %v2282
                %v2284 = vld [vmem:[%s2208 + $0x94] sm:$0xf]
                %2285 = vst [vmem:[%s2209 + $0x94] sm:$0xf] %v2284
                %v2286 = vld [vmem:[%s2208 + $0x98] sm:$0xf]
                %2287 = vst [vmem:[%s2209 + $0x98] sm:$0xf] %v2286
                %v2288 = vld [vmem:[%s2208 + $0x9c] sm:$0xf]
                %2289 = vst [vmem:[%s2209 + $0x9c] sm:$0xf] %v2288
                %v2290 = vld [vmem:[%s2208 + $0xa0] sm:$0xf]
                %2291 = vst [vmem:[%s2209 + $0xa0] sm:$0xf] %v2290
                %v2292 = vld [vmem:[%s2208 + $0xa4] sm:$0xf]
                %2293 = vst [vmem:[%s2209 + $0xa4] sm:$0xf] %v2292
                %v2294 = vld [vmem:[%s2208 + $0xa8] sm:$0xf]
                %2295 = vst [vmem:[%s2209 + $0xa8] sm:$0xf] %v2294
                %v2296 = vld [vmem:[%s2208 + $0xac] sm:$0xf]
                %2297 = vst [vmem:[%s2209 + $0xac] sm:$0xf] %v2296
                %v2298 = vld [vmem:[%s2208 + $0xb0] sm:$0xf]
                %2299 = vst [vmem:[%s2209 + $0xb0] sm:$0xf] %v2298
                %v2300 = vld [vmem:[%s2208 + $0xb4] sm:$0xf]
                %2301 = vst [vmem:[%s2209 + $0xb4] sm:$0xf] %v2300
                %v2302 = vld [vmem:[%s2208 + $0xb8] sm:$0xf]
                %2303 = vst [vmem:[%s2209 + $0xb8] sm:$0xf] %v2302
                %v2304 = vld [vmem:[%s2208 + $0xbc] sm:$0xf]
                %2305 = vst [vmem:[%s2209 + $0xbc] sm:$0xf] %v2304
                %v2306 = vld [vmem:[%s2208 + $0xc0] sm:$0xf]
                %2307 = vst [vmem:[%s2209 + $0xc0] sm:$0xf] %v2306
                %v2308 = vld [vmem:[%s2208 + $0xc4] sm:$0xf]
                %2309 = vst [vmem:[%s2209 + $0xc4] sm:$0xf] %v2308
                %v2310 = vld [vmem:[%s2208 + $0xc8] sm:$0xf]
                %2311 = vst [vmem:[%s2209 + $0xc8] sm:$0xf] %v2310
                %v2312 = vld [vmem:[%s2208 + $0xcc] sm:$0xf]
                %2313 = vst [vmem:[%s2209 + $0xcc] sm:$0xf] %v2312
                %v2314 = vld [vmem:[%s2208 + $0xd0] sm:$0xf]
                %2315 = vst [vmem:[%s2209 + $0xd0] sm:$0xf] %v2314
                %v2316 = vld [vmem:[%s2208 + $0xd4] sm:$0xf]
                %2317 = vst [vmem:[%s2209 + $0xd4] sm:$0xf] %v2316
                %v2318 = vld [vmem:[%s2208 + $0xd8] sm:$0xf]
                %2319 = vst [vmem:[%s2209 + $0xd8] sm:$0xf] %v2318
                %v2320 = vld [vmem:[%s2208 + $0xdc] sm:$0xf]
                %2321 = vst [vmem:[%s2209 + $0xdc] sm:$0xf] %v2320
                %v2322 = vld [vmem:[%s2208 + $0xe0] sm:$0xf]
                %2323 = vst [vmem:[%s2209 + $0xe0] sm:$0xf] %v2322
                %v2324 = vld [vmem:[%s2208 + $0xe4] sm:$0xf]
                %2325 = vst [vmem:[%s2209 + $0xe4] sm:$0xf] %v2324
                %v2326 = vld [vmem:[%s2208 + $0xe8] sm:$0xf]
                %2327 = vst [vmem:[%s2209 + $0xe8] sm:$0xf] %v2326
                %v2328 = vld [vmem:[%s2208 + $0xec] sm:$0xf]
                %2329 = vst [vmem:[%s2209 + $0xec] sm:$0xf] %v2328
                %v2330 = vld [vmem:[%s2208 + $0xf0] sm:$0xf]
                %2331 = vst [vmem:[%s2209 + $0xf0] sm:$0xf] %v2330
                %v2332 = vld [vmem:[%s2208 + $0xf4] sm:$0xf]
                %2333 = vst [vmem:[%s2209 + $0xf4] sm:$0xf] %v2332
                %v2334 = vld [vmem:[%s2208 + $0xf8] sm:$0xf]
                %2335 = vst [vmem:[%s2209 + $0xf8] sm:$0xf] %v2334
                %v2336 = vld [vmem:[%s2208 + $0xfc] sm:$0xf]
                %2337 = vst [vmem:[%s2209 + $0xfc] sm:$0xf] %v2336
                %s2338 = sadd.s32 1, %s2207
                %p2339 = scmp.ge.s32.totalorder %s2338, %s2200
                %s2340 = scalar_select %p2339, 0, %s2338
                %s2341 = smul.u32 %s2340, 256
                %s2342 = smul.u32 %s2340, 256
                %s2343 = scalar_lea.vmem %s2180, %s2341 [#allocation2]
                %s2344 = scalar_lea.vmem %s2191, %s2342
              $region53: #{dqn_forward.3} parent=47 // loop_footer
                %s2204 = sadd.s32 %s2202, 1
              $region54: #{dqn_forward.3} parent=47 // loop_footer_branch
                %2201 = sbr.rel target = $region50
              $region55: #{dqn_forward.3} parent=47 // loop_exit
                _
              %s2345 = sshrl.u32 %s2187, 6
              %s2346 = sand.u32 %s2187, 63
              %s2347 = smul.u32 %s2345, 64
              %s2348 = smul.u32 4, %s2347
              %s2349 = scalar_lea.vmem %s2180, %s2348 [#allocation2]
              %s2350 = smul.u32 4, %s2347
              %s2351 = scalar_lea.vmem %s2191, %s2350
              // While loop
              $region56: #{dqn_forward.3} parent=47 // loop_pre_header
                _
              $region57: #{dqn_forward.3} parent=47 // loop_header
                %s2353 = sphi 0, %s2355
                %p2354 = scmp.ge.s32.totalorder %s2353, %s2346
                %s2358 = sphi 0, %s2365
                %s2359 = sphi %s2349, %s2368
                %s2360 = sphi %s2351, %s2369
              $region58: #{dqn_forward.3} parent=47 // loop_header_branch
                %2357 = sbr.rel (%p2354) target = $region62
              $region59: #{dqn_forward.3} parent=47 // loop_body
                %v2361 = vld [vmem:[%s2359] sm:$0xf]
                %2362 = vst [vmem:[%s2360] sm:$0xf] %v2361
                %s2363 = sadd.s32 1, %s2358
                %p2364 = scmp.ge.s32.totalorder %s2363, %s2346
                %s2365 = scalar_select %p2364, 0, %s2363
                %s2366 = smul.u32 %s2365, 4
                %s2367 = smul.u32 %s2365, 4
                %s2368 = scalar_lea.vmem %s2349, %s2366 [#allocation2]
                %s2369 = scalar_lea.vmem %s2351, %s2367
              $region60: #{dqn_forward.3} parent=47 // loop_footer
                %s2355 = sadd.s32 %s2353, 1
              $region61: #{dqn_forward.3} parent=47 // loop_footer_branch
                %2352 = sbr.rel target = $region57
              $region62: #{dqn_forward.3} parent=47 // loop_exit
                _
            $region48: #{dqn_forward.3} parent=39 // pred_fallthru
              _
          $region40: #{dqn_forward.3} parent=35 // pred_fallthru
            _
          %2543 = vnop
        $region36: #{dqn_forward.3} parent=31 // pred_fallthru
          _
      $region32: #{dqn_forward.3} parent=5 // pred_fallthru
        _
      %p2544 = scmp.le.s32.totalorder 2, %s9
      // Predicated region
      $region81: #{dqn_forward.3} parent=5 // pred_check
        %p2545 = pneg %p2544
      $region82: #{dqn_forward.3} parent=5 // pred_check_branch
        %2547 = sbr.rel (%p2545) target = $region84
      $region83: #{dqn_forward.3} parent=5 // pred_region
        %s2548 = ssub.s32 %s9, 2
        // Predicated region
        $region85: #{dqn_forward.3} parent=83 // pred_check
          %p2549 = pneg %p106
        $region86: #{dqn_forward.3} parent=83 // pred_check_branch
          %2551 = sbr.rel (%p2549) target = $region88
        $region87: #{dqn_forward.3} parent=83 // pred_region
          %s2552 = sand.u32 %s91, 1
          %s2553 = sand.u32 %s91, 1
          %s2554 = smul.addr %s2553, 512
          %s2555 = scalar_lea.vmem [#allocation2], %s2554
        $region88: #{dqn_forward.3} parent=83 // pred_fallthru
          _
      $region84: #{dqn_forward.3} parent=5 // pred_fallthru
        _
    $region6: #{dqn_forward.3} parent=1 // loop_footer
      %s13 = sadd.s32 1, %s9
    $region7: #{dqn_forward.3} parent=1 // loop_footer_branch
      %8 = sbr.rel target = $region3
    $region8: #{dqn_forward.3} parent=1 // loop_exit
      _

// kernel: dqn_forward.4
$region0: #{dqn_forward.4}
  #allocation0 [shape = 'u32[]', space=smem, size = 0x4, offset = 0x4, fixed_abs, tag = 'smem constant byte address 0x4 - core index']
  #allocation1 [shape = 'u32[144,128]{1,0:T(1,128)}', space=vmem, size = 0x12000, scoped, tag = 'internal scratch']
  %s0 = inlined_call_operand.vmem [shape: bf16[1058,800], index: 0, kind: input, shape index: {}]
  %s1 = inlined_call_operand.vmem [shape: bf16[800,64], index: 1, kind: input, shape index: {}]
  %s2 = inlined_call_operand.vmem [shape: f32[1,64], index: 2, kind: input, shape index: {}]
  %s3 = inlined_call_operand.vmem [shape: bf16[1058,64], index: 3, kind: output, shape index: {}]
  %s4 = sld [smem:[#allocation0]]
  $region89: #{dqn_forward.4} parent=0
    _
  %s6 = ssub.s32 1, %s4
  %s7 = scalar_select 0, %s6, %s4
  $region1: #{dqn_forward.4} parent=0
    #allocation2 [shape = 'u8[139264]{0}', space=vmem, size = 0x22000, scoped, tag = 'output window, operand 0']
    loop: start=0, step=1, limit=6
    $region2: #{dqn_forward.4} parent=1 // loop_pre_header
      _
    $region3: #{dqn_forward.4} parent=1 // loop_header
      %s9 = sphi 0, %s13
      %p10 = scmp.ge.s32.totalorder %s9, 6
      %s19 = sphi 0, %s21
      %s22 = sphi 0, %s19
      %s23 = sphi 0, %s22
      %s39 = sphi 0, %s23
      %s43 = sphi 0, %s43
      %s45 = sphi 0, %s43
      %s46 = sphi 0, %s45
      %s60 = sphi 0, %s46
      %s64 = sphi 0, %s64
      %s66 = sphi 0, %s64
      %s67 = sphi 0, %s66
      %s81 = sphi 0, %s67
      %s87 = sphi 0, %s89
      %s90 = sphi 0, %s87
      %s91 = sphi 0, %s90
      %s107 = sphi 0, %s91
    $region4: #{dqn_forward.4} parent=1 // loop_header_branch
      %12 = sbr.rel (%p10) target = $region8
    $region5: #{dqn_forward.4} parent=1 // loop_body
      %s14 = ssub.s32 %s9, 1
      %s15 = ssub.s32 %s9, 2
      %s16 = sadd.s32 %s9, 1
      %s17 = ssub.s32 %s9, %s16
      %p18 = scmp.eq.s32.totalorder %s17, 0
      %s20 = sadd.s32 %s19, 1
      %s21 = scalar_select %p18, %s19, %s20
      %p24 = pneg %p18
      %p25 = scmp.eq.s32.totalorder %s9, 3
      %p26 = por %p24, %p25
      %p27 = scmp.ne.s32.totalorder %s19, %s22
      %p28 = scmp.eq.s32.totalorder %s9, 0
      %p29 = por %p27, %p28
      %p30 = scmp.ne.s32.totalorder %s19, %s22
      %p31 = scmp.eq.s32.totalorder %s14, 3
      %p32 = por %p30, %p31
      %p33 = scmp.ne.s32.totalorder %s22, %s23
      %p34 = scmp.eq.s32.totalorder %s14, 0
      %p35 = por %p33, %p34
      %p36 = scmp.ne.s32.totalorder %s22, %s23
      %p37 = scmp.eq.s32.totalorder %s15, 3
      %p38 = por %p36, %p37
      %p40 = scmp.ne.s32.totalorder %s23, %s39
      %p41 = scmp.eq.s32.totalorder %s15, 0
      %p42 = por %p40, %p41
      %s44 = sadd.s32 %s43, 1
      %p47 = scmp.eq.s32.totalorder %s9, 3
      %p48 = scmp.ne.s32.totalorder %s43, %s45
      %p49 = scmp.eq.s32.totalorder %s9, 0
      %p50 = por %p48, %p49
      %p51 = scmp.ne.s32.totalorder %s43, %s45
      %p52 = scmp.eq.s32.totalorder %s14, 3
      %p53 = por %p51, %p52
      %p54 = scmp.ne.s32.totalorder %s45, %s46
      %p55 = scmp.eq.s32.totalorder %s14, 0
      %p56 = por %p54, %p55
      %p57 = scmp.ne.s32.totalorder %s45, %s46
      %p58 = scmp.eq.s32.totalorder %s15, 3
      %p59 = por %p57, %p58
      %p61 = scmp.ne.s32.totalorder %s46, %s60
      %p62 = scmp.eq.s32.totalorder %s15, 0
      %p63 = por %p61, %p62
      %s65 = sadd.s32 %s64, 1
      %p68 = scmp.eq.s32.totalorder %s9, 3
      %p69 = scmp.ne.s32.totalorder %s64, %s66
      %p70 = scmp.eq.s32.totalorder %s9, 0
      %p71 = por %p69, %p70
      %p72 = scmp.ne.s32.totalorder %s64, %s66
      %p73 = scmp.eq.s32.totalorder %s14, 3
      %p74 = por %p72, %p73
      %p75 = scmp.ne.s32.totalorder %s66, %s67
      %p76 = scmp.eq.s32.totalorder %s14, 0
      %p77 = por %p75, %p76
      %p78 = scmp.ne.s32.totalorder %s66, %s67
      %p79 = scmp.eq.s32.totalorder %s15, 3
      %p80 = por %p78, %p79
      %p82 = scmp.ne.s32.totalorder %s67, %s81
      %p83 = scmp.eq.s32.totalorder %s15, 0
      %p84 = por %p82, %p83
      %s85 = ssub.s32 %s9, %s16
      %p86 = scmp.eq.s32.totalorder %s85, 0
      %s88 = sadd.s32 %s87, 1
      %s89 = scalar_select %p86, %s87, %s88
      %p92 = pneg %p86
      %p93 = scmp.eq.s32.totalorder %s9, 3
      %p94 = por %p92, %p93
      %p95 = scmp.ne.s32.totalorder %s87, %s90
      %p96 = scmp.eq.s32.totalorder %s9, 0
      %p97 = por %p95, %p96
      %p98 = scmp.ne.s32.totalorder %s87, %s90
      %p99 = scmp.eq.s32.totalorder %s14, 3
      %p100 = por %p98, %p99
      %p101 = scmp.ne.s32.totalorder %s90, %s91
      %p102 = scmp.eq.s32.totalorder %s14, 0
      %p103 = por %p101, %p102
      %p104 = scmp.ne.s32.totalorder %s90, %s91
      %p105 = scmp.eq.s32.totalorder %s15, 3
      %p106 = por %p104, %p105
      %p108 = scmp.ne.s32.totalorder %s91, %s107
      %p109 = scmp.eq.s32.totalorder %s15, 0
      %p110 = por %p108, %p109
      %p111 = scmp.le.s32.totalorder 1, %s9
      %p112 = scmp.lt.s32.totalorder %s9, 5
      %p113 = pnand %p111, %p112
      %p114 = pneg %p113
      // Predicated region
      $region9: #{dqn_forward.4} parent=5 // pred_check
        _
      $region10: #{dqn_forward.4} parent=5 // pred_check_branch
        %116 = sbr.rel (%p113) target = $region12
      $region11: #{dqn_forward.4} parent=5 // pred_region
        %s117 = ssub.s32 %s9, 1
        // Predicated region
        $region13: #{dqn_forward.4} parent=11 // pred_check
          %p118 = pneg %p56
        $region14: #{dqn_forward.4} parent=11 // pred_check_branch
          %120 = sbr.rel (%p118) target = $region16
        $region15: #{dqn_forward.4} parent=11 // pred_region
          _
        $region16: #{dqn_forward.4} parent=11 // pred_fallthru
          _
        // Predicated region
        $region17: #{dqn_forward.4} parent=11 // pred_check
          %p121 = pneg %p77
        $region18: #{dqn_forward.4} parent=11 // pred_check_branch
          %123 = sbr.rel (%p121) target = $region20
        $region19: #{dqn_forward.4} parent=11 // pred_region
          _
        $region20: #{dqn_forward.4} parent=11 // pred_fallthru
          _
      $region12: #{dqn_forward.4} parent=5 // pred_fallthru
        _
      %p124 = scmp.lt.s32.totalorder %s9, 4
      // Predicated region
      $region21: #{dqn_forward.4} parent=5 // pred_check
        %p125 = pneg %p124
      $region22: #{dqn_forward.4} parent=5 // pred_check_branch
        %127 = sbr.rel (%p125) target = $region24
      $region23: #{dqn_forward.4} parent=5 // pred_region
        // Predicated region
        $region25: #{dqn_forward.4} parent=23 // pred_check
          %p128 = pneg %p29
        $region26: #{dqn_forward.4} parent=23 // pred_check_branch
          %130 = sbr.rel (%p128) target = $region28
        $region27: #{dqn_forward.4} parent=23 // pred_region
          %s131 = smul.u32 34, %s9
          %s132 = ssub.s32 133, %s131
          %p133 = scmp.lt.s32.totalorder %s132, 34
          %s134 = scalar_select %p133, %s132, 34
          %s135 = smul.u32 64, %s134
          %s136 = smul.u32 %s135, 7
          %p137 = scmp.lt.s32.totalorder %s131, 132
          %s138 = scalar_select %p137, %s131, 132
          %s139 = smul.addr %s138, 7
          %s140 = smul.addr %s139, 4
          %s141 = scalar_lea.vmem %s0, %s140
          %s142 = smul.u32 34, %s9
          %s143 = ssub.s32 133, %s142
          %p144 = scmp.lt.s32.totalorder %s143, 34
          %s145 = scalar_select %p144, %s143, 34
          %s146 = smul.u32 64, %s145
          %s147 = smul.u32 %s146, 7
        $region28: #{dqn_forward.4} parent=23 // pred_fallthru
          _
      $region24: #{dqn_forward.4} parent=5 // pred_fallthru
        _
      %p148 = scmp.le.s32.totalorder 1, %s9
      %p149 = scmp.lt.s32.totalorder %s9, 5
      %p150 = pnand %p148, %p149
      %p151 = pneg %p150
      // Predicated region
      $region29: #{dqn_forward.4} parent=5 // pred_check
        _
      $region30: #{dqn_forward.4} parent=5 // pred_check_branch
        %153 = sbr.rel (%p150) target = $region32
      $region31: #{dqn_forward.4} parent=5 // pred_region
        %s154 = ssub.s32 %s9, 1
        %s155 = smul.u32 34, %s14
        %s156 = ssub.s32 133, %s155
        %p157 = scmp.lt.s32.totalorder %s156, 34
        %s158 = scalar_select %p157, %s156, 34
        %s159 = smul.u32 64, %s158
        %s160 = smul.u32 %s159, 7
        %p161 = scmp.lt.s32.totalorder %s155, 132
        %s162 = scalar_select %p161, %s155, 132
        %s163 = smul.addr %s162, 7
        %s164 = smul.addr %s163, 4
        %s165 = scalar_lea.vmem %s0, %s164
        %p166 = pneg %p35
        %p167 = pneg %p32
        %p168 = pneg %p56
        %p169 = pneg %p53
        %p170 = pneg %p77
        %p171 = pneg %p74
        %p172 = pneg %p103
        %p173 = pneg %p100
        %s174 = sand.u32 %s90, 1
        %s175 = sand.u32 %s90, 1
        %s176 = smul.addr %s175, 136
        %s177 = scalar_lea.vmem [#allocation2], %s176
        %s178 = smul.u32 34, %s14
        %s179 = ssub.s32 133, %s178
        %p180 = scmp.lt.s32.totalorder %s179, 34
        %s181 = scalar_select %p180, %s179, 34
        %s182 = smul.u32 64, %s181
        %s183 = smul.u32 %s182, 7
        %p184 = scmp.lt.s32.totalorder %s178, 132
        %s185 = scalar_select %p184, %s178, 132
        %s186 = smul.addr %s185, 7
        %s187 = smul.addr %s186, 4
        %s188 = scalar_lea.vmem %s0, %s187
        %s189 = smul.u32 34, %s14
        %s190 = ssub.s32 133, %s189
        %p191 = scmp.lt.s32.totalorder %s190, 34
        %s192 = scalar_select %p191, %s190, 34
        %s193 = smul.u32 64, %s192
        %s194 = smul.u32 %s193, 7
        %s195 = smul.u32 34, %s14
        %s196 = ssub.s32 133, %s195
        %p197 = scmp.lt.s32.totalorder %s196, 34
        %s198 = scalar_select %p197, %s196, 34
        %s199 = smul.u32 64, %s198
        %v201 = vld [vmem:[%s188] sm:$0xff]
        %v202 = vld [vmem:[%s188 + $0x8] sm:$0xff]
        %v203 = vld [vmem:[%s188 + $0x10] sm:$0xff]
        %v204 = vld [vmem:[%s188 + $0x18] sm:$0xf]
        %v205 = vld [vmem:[%s188 + $0x1c] sm:$0xff]
        %v206 = vld [vmem:[%s188 + $0x24] sm:$0xff]
        %v207 = vld [vmem:[%s188 + $0x2c] sm:$0xff]
        %v208 = vld [vmem:[%s188 + $0x34] sm:$0xf]
        %v209 = vld [vmem:[%s188 + $0x38] sm:$0xff]
        %v210 = vld [vmem:[%s188 + $0x40] sm:$0xff]
        %v211 = vld [vmem:[%s188 + $0x48] sm:$0xff]
        %v212 = vld [vmem:[%s188 + $0x50] sm:$0xf]
        %v213 = vld [vmem:[%s188 + $0x54] sm:$0xff]
        %v214 = vld [vmem:[%s188 + $0x5c] sm:$0xff]
        %v215 = vld [vmem:[%s188 + $0x64] sm:$0xff]
        %v216 = vld [vmem:[%s188 + $0x6c] sm:$0xf]
        %v217 = vld [vmem:[%s188 + $0x70] sm:$0xff]
        %v218 = vld [vmem:[%s188 + $0x78] sm:$0xff]
        %v219 = vld [vmem:[%s188 + $0x80] sm:$0xff]
        %v220 = vld [vmem:[%s188 + $0x88] sm:$0xf]
        %v221 = vld [vmem:[%s188 + $0x8c] sm:$0xff]
        %v222 = vld [vmem:[%s188 + $0x94] sm:$0xff]
        %v223 = vld [vmem:[%s188 + $0x9c] sm:$0xff]
        %v224 = vld [vmem:[%s188 + $0xa4] sm:$0xf]
        %v225 = vld [vmem:[%s188 + $0xa8] sm:$0xff]
        %v226 = vld [vmem:[%s188 + $0xb0] sm:$0xff]
        %v227 = vld [vmem:[%s188 + $0xb8] sm:$0xff]
        %v228 = vld [vmem:[%s188 + $0xc0] sm:$0xf]
        %v229 = vld [vmem:[%s188 + $0xc4] sm:$0xff]
        %v230 = vld [vmem:[%s188 + $0xcc] sm:$0xff]
        %v231 = vld [vmem:[%s188 + $0xd4] sm:$0xff]
        %v232 = vld [vmem:[%s188 + $0xdc] sm:$0xf]
        %v233 = vld [vmem:[%s188 + $0xe0] sm:$0xff]
        %v234 = vld [vmem:[%s188 + $0xe8] sm:$0xff]
        %v235 = vld [vmem:[%s188 + $0xf0] sm:$0xff]
        %v236 = vld [vmem:[%s188 + $0xf8] sm:$0xf]
        %v237 = vld [vmem:[%s188 + $0xfc] sm:$0xff]
        %v238 = vld [vmem:[%s188 + $0x104] sm:$0xff]
        %v239 = vld [vmem:[%s188 + $0x10c] sm:$0xff]
        %v240 = vld [vmem:[%s188 + $0x114] sm:$0xf]
        %v241 = vld [vmem:[%s188 + $0x118] sm:$0xff]
        %v242 = vld [vmem:[%s188 + $0x120] sm:$0xff]
        %v243 = vld [vmem:[%s188 + $0x128] sm:$0xff]
        %v244 = vld [vmem:[%s188 + $0x130] sm:$0xf]
        %v245 = vld [vmem:[%s188 + $0x134] sm:$0xff]
        %v246 = vld [vmem:[%s188 + $0x13c] sm:$0xff]
        %v247 = vld [vmem:[%s188 + $0x144] sm:$0xff]
        %v248 = vld [vmem:[%s188 + $0x14c] sm:$0xf]
        %v249 = vld [vmem:[%s188 + $0x150] sm:$0xff]
        %v250 = vld [vmem:[%s188 + $0x158] sm:$0xff]
        %v251 = vld [vmem:[%s188 + $0x160] sm:$0xff]
        %v252 = vld [vmem:[%s188 + $0x168] sm:$0xf]
        %v253 = vld [vmem:[%s188 + $0x16c] sm:$0xff]
        %v254 = vld [vmem:[%s188 + $0x174] sm:$0xff]
        %v255 = vld [vmem:[%s188 + $0x17c] sm:$0xff]
        %v256 = vld [vmem:[%s188 + $0x184] sm:$0xf]
        %v257 = vld [vmem:[%s188 + $0x188] sm:$0xff]
        %v258 = vld [vmem:[%s188 + $0x190] sm:$0xff]
        %v259 = vld [vmem:[%s188 + $0x198] sm:$0xff]
        %v260 = vld [vmem:[%s188 + $0x1a0] sm:$0xf]
        %v261 = vld [vmem:[%s188 + $0x1a4] sm:$0xff]
        %v262 = vld [vmem:[%s188 + $0x1ac] sm:$0xff]
        %v263 = vld [vmem:[%s188 + $0x1b4] sm:$0xff]
        %v264 = vld [vmem:[%s188 + $0x1bc] sm:$0xf]
        %v265 = vld [vmem:[%s188 + $0x1c0] sm:$0xff]
        %v266 = vld [vmem:[%s188 + $0x1c8] sm:$0xff]
        %v267 = vld [vmem:[%s188 + $0x1d0] sm:$0xff]
        %v268 = vld [vmem:[%s188 + $0x1d8] sm:$0xf]
        %v269 = vld [vmem:[%s188 + $0x1dc] sm:$0xff]
        %v270 = vld [vmem:[%s188 + $0x1e4] sm:$0xff]
        %v271 = vld [vmem:[%s188 + $0x1ec] sm:$0xff]
        %v272 = vld [vmem:[%s188 + $0x1f4] sm:$0xf]
        %v273 = vld [vmem:[%s188 + $0x1f8] sm:$0xff]
        %v274 = vld [vmem:[%s188 + $0x200] sm:$0xff]
        %v275 = vld [vmem:[%s188 + $0x208] sm:$0xff]
        %v276 = vld [vmem:[%s188 + $0x210] sm:$0xf]
        %v277 = vld [vmem:[%s188 + $0x214] sm:$0xff]
        %v278 = vld [vmem:[%s188 + $0x21c] sm:$0xff]
        %v279 = vld [vmem:[%s188 + $0x224] sm:$0xff]
        %v280 = vld [vmem:[%s188 + $0x22c] sm:$0xf]
        %v281 = vld [vmem:[%s188 + $0x230] sm:$0xff]
        %v282 = vld [vmem:[%s188 + $0x238] sm:$0xff]
        %v283 = vld [vmem:[%s188 + $0x240] sm:$0xff]
        %v284 = vld [vmem:[%s188 + $0x248] sm:$0xf]
        %v285 = vld [vmem:[%s188 + $0x24c] sm:$0xff]
        %v286 = vld [vmem:[%s188 + $0x254] sm:$0xff]
        %v287 = vld [vmem:[%s188 + $0x25c] sm:$0xff]
        %v288 = vld [vmem:[%s188 + $0x264] sm:$0xf]
        %v289 = vld [vmem:[%s188 + $0x268] sm:$0xff]
        %v290 = vld [vmem:[%s188 + $0x270] sm:$0xff]
        %v291 = vld [vmem:[%s188 + $0x278] sm:$0xff]
        %v292 = vld [vmem:[%s188 + $0x280] sm:$0xf]
        %v293 = vld [vmem:[%s188 + $0x284] sm:$0xff]
        %v294 = vld [vmem:[%s188 + $0x28c] sm:$0xff]
        %v295 = vld [vmem:[%s188 + $0x294] sm:$0xff]
        %v296 = vld [vmem:[%s188 + $0x29c] sm:$0xf]
        %v297 = vld [vmem:[%s188 + $0x2a0] sm:$0xff]
        %v298 = vld [vmem:[%s188 + $0x2a8] sm:$0xff]
        %v299 = vld [vmem:[%s188 + $0x2b0] sm:$0xff]
        %v300 = vld [vmem:[%s188 + $0x2b8] sm:$0xf]
        %v301 = vld [vmem:[%s188 + $0x2bc] sm:$0xff]
        %v302 = vld [vmem:[%s188 + $0x2c4] sm:$0xff]
        %v303 = vld [vmem:[%s188 + $0x2cc] sm:$0xff]
        %v304 = vld [vmem:[%s188 + $0x2d4] sm:$0xf]
        %v305 = vld [vmem:[%s188 + $0x2d8] sm:$0xff]
        %v306 = vld [vmem:[%s188 + $0x2e0] sm:$0xff]
        %v307 = vld [vmem:[%s188 + $0x2e8] sm:$0xff]
        %v308 = vld [vmem:[%s188 + $0x2f0] sm:$0xf]
        %v309 = vld [vmem:[%s188 + $0x2f4] sm:$0xff]
        %v310 = vld [vmem:[%s188 + $0x2fc] sm:$0xff]
        %v311 = vld [vmem:[%s188 + $0x304] sm:$0xff]
        %v312 = vld [vmem:[%s188 + $0x30c] sm:$0xf]
        %v313 = vld [vmem:[%s188 + $0x310] sm:$0xff]
        %v314 = vld [vmem:[%s188 + $0x318] sm:$0xff]
        %v315 = vld [vmem:[%s188 + $0x320] sm:$0xff]
        %v316 = vld [vmem:[%s188 + $0x328] sm:$0xf]
        %v317 = vld [vmem:[%s188 + $0x32c] sm:$0xff]
        %v318 = vld [vmem:[%s188 + $0x334] sm:$0xff]
        %v319 = vld [vmem:[%s188 + $0x33c] sm:$0xff]
        %v320 = vld [vmem:[%s188 + $0x344] sm:$0xf]
        %v321 = vld [vmem:[%s188 + $0x348] sm:$0xff]
        %v322 = vld [vmem:[%s188 + $0x350] sm:$0xff]
        %v323 = vld [vmem:[%s188 + $0x358] sm:$0xff]
        %v324 = vld [vmem:[%s188 + $0x360] sm:$0xf]
        %v325 = vld [vmem:[%s188 + $0x364] sm:$0xff]
        %v326 = vld [vmem:[%s188 + $0x36c] sm:$0xff]
        %v327 = vld [vmem:[%s188 + $0x374] sm:$0xff]
        %v328 = vld [vmem:[%s188 + $0x37c] sm:$0xf]
        %v329 = vld [vmem:[%s188 + $0x380] sm:$0xff]
        %v330 = vld [vmem:[%s188 + $0x388] sm:$0xff]
        %v331 = vld [vmem:[%s188 + $0x390] sm:$0xff]
        %v332 = vld [vmem:[%s188 + $0x398] sm:$0xf]
        %v333 = vld [vmem:[%s188 + $0x39c] sm:$0xff]
        %v334 = vld [vmem:[%s188 + $0x3a4] sm:$0xff]
        %v335 = vld [vmem:[%s188 + $0x3ac] sm:$0xff]
        %v336 = vld [vmem:[%s188 + $0x3b4] sm:$0xf]
        %v337 = vld [vmem:[%s1] sm:$0xf]
        %v338 = vld [vmem:[%s1 + $0x4] sm:$0xf]
        %v339 = vld [vmem:[%s1 + $0x8] sm:$0xf]
        %v340 = vld [vmem:[%s1 + $0xc] sm:$0xf]
        %v341 = vld [vmem:[%s1 + $0x10] sm:$0xf]
        %v342 = vld [vmem:[%s1 + $0x14] sm:$0xf]
        %v343 = vld [vmem:[%s1 + $0x18] sm:$0xf]
        %v344 = vld [vmem:[%s1 + $0x1c] sm:$0xf]
        %v345 = vld [vmem:[%s1 + $0x20] sm:$0xf]
        %v346 = vld [vmem:[%s1 + $0x24] sm:$0xf]
        %v347 = vld [vmem:[%s1 + $0x28] sm:$0xf]
        %v348 = vld [vmem:[%s1 + $0x2c] sm:$0xf]
        %v349 = vld [vmem:[%s1 + $0x30] sm:$0xf]
        %v350 = vld [vmem:[%s1 + $0x34] sm:$0xf]
        %v351 = vld [vmem:[%s1 + $0x38] sm:$0xf]
        %v352 = vld [vmem:[%s1 + $0x3c] sm:$0xf]
        %v353 = vld [vmem:[%s1 + $0x40] sm:$0xf]
        %v354 = vld [vmem:[%s1 + $0x44] sm:$0xf]
        %v355 = vld [vmem:[%s1 + $0x48] sm:$0xf]
        %v356 = vld [vmem:[%s1 + $0x4c] sm:$0xf]
        %v357 = vld [vmem:[%s1 + $0x50] sm:$0xf]
        %v358 = vld [vmem:[%s1 + $0x54] sm:$0xf]
        %v359 = vld [vmem:[%s1 + $0x58] sm:$0xf]
        %v360 = vld [vmem:[%s1 + $0x5c] sm:$0xf]
        %v361 = vld [vmem:[%s1 + $0x60] sm:$0xf]
        %v362 = vld [vmem:[%s1 + $0x64] sm:$0xf]
        %v363 = vld [vmem:[%s1 + $0x68] sm:$0xf]
        %v364 = vld [vmem:[%s1 + $0x6c] sm:$0xf]
        %v365 = vld [vmem:[%s1 + $0x70] sm:$0xf]
        %v366 = vld [vmem:[%s1 + $0x74] sm:$0xf]
        %v367 = vld [vmem:[%s1 + $0x78] sm:$0xf]
        %v368 = vld [vmem:[%s1 + $0x7c] sm:$0xf]
        %v369 = vld [vmem:[%s1 + $0x80] sm:$0xf]
        %v370 = vld [vmem:[%s1 + $0x84] sm:$0xf]
        %v371 = vld [vmem:[%s1 + $0x88] sm:$0xf]
        %v372 = vld [vmem:[%s1 + $0x8c] sm:$0xf]
        %v373 = vld [vmem:[%s1 + $0x90] sm:$0xf]
        %v374 = vld [vmem:[%s1 + $0x94] sm:$0xf]
        %v375 = vld [vmem:[%s1 + $0x98] sm:$0xf]
        %v376 = vld [vmem:[%s1 + $0x9c] sm:$0xf]
        %v377 = vld [vmem:[%s1 + $0xa0] sm:$0xf]
        %v378 = vld [vmem:[%s1 + $0xa4] sm:$0xf]
        %v379 = vld [vmem:[%s1 + $0xa8] sm:$0xf]
        %v380 = vld [vmem:[%s1 + $0xac] sm:$0xf]
        %v381 = vld [vmem:[%s1 + $0xb0] sm:$0xf]
        %v382 = vld [vmem:[%s1 + $0xb4] sm:$0xf]
        %v383 = vld [vmem:[%s1 + $0xb8] sm:$0xf]
        %v384 = vld [vmem:[%s1 + $0xbc] sm:$0xf]
        %v385 = vld [vmem:[%s1 + $0xc0] sm:$0xf]
        %v386 = vld [vmem:[%s1 + $0xc4] sm:$0xf]
        %v387 = vld [vmem:[%s1 + $0xc8] sm:$0xf]
        %v388 = vld [vmem:[%s1 + $0xcc] sm:$0xf]
        %v389 = vld [vmem:[%s1 + $0xd0] sm:$0xf]
        %v390 = vld [vmem:[%s1 + $0xd4] sm:$0xf]
        %v391 = vld [vmem:[%s1 + $0xd8] sm:$0xf]
        %v392 = vld [vmem:[%s1 + $0xdc] sm:$0xf]
        %v393 = vld [vmem:[%s1 + $0xe0] sm:$0xf]
        %v394 = vld [vmem:[%s1 + $0xe4] sm:$0xf]
        %v395 = vld [vmem:[%s1 + $0xe8] sm:$0xf]
        %v396 = vld [vmem:[%s1 + $0xec] sm:$0xf]
        %v397 = vld [vmem:[%s1 + $0xf0] sm:$0xf]
        %v398 = vld [vmem:[%s1 + $0xf4] sm:$0xf]
        %v399 = vld [vmem:[%s1 + $0xf8] sm:$0xf]
        %v400 = vld [vmem:[%s1 + $0xfc] sm:$0xf]
        %v401 = vld [vmem:[%s1 + $0x100] sm:$0xf]
        %v402 = vld [vmem:[%s1 + $0x104] sm:$0xf]
        %v403 = vld [vmem:[%s1 + $0x108] sm:$0xf]
        %v404 = vld [vmem:[%s1 + $0x10c] sm:$0xf]
        %v405 = vld [vmem:[%s1 + $0x110] sm:$0xf]
        %v406 = vld [vmem:[%s1 + $0x114] sm:$0xf]
        %v407 = vld [vmem:[%s1 + $0x118] sm:$0xf]
        %v408 = vld [vmem:[%s1 + $0x11c] sm:$0xf]
        %v409 = vld [vmem:[%s1 + $0x120] sm:$0xf]
        %v410 = vld [vmem:[%s1 + $0x124] sm:$0xf]
        %v411 = vld [vmem:[%s1 + $0x128] sm:$0xf]
        %v412 = vld [vmem:[%s1 + $0x12c] sm:$0xf]
        %v413 = vld [vmem:[%s1 + $0x130] sm:$0xf]
        %v414 = vld [vmem:[%s1 + $0x134] sm:$0xf]
        %v415 = vld [vmem:[%s1 + $0x138] sm:$0xf]
        %v416 = vld [vmem:[%s1 + $0x13c] sm:$0xf]
        %v417 = vld [vmem:[%s1 + $0x140] sm:$0xf]
        %v418 = vld [vmem:[%s1 + $0x144] sm:$0xf]
        %v419 = vld [vmem:[%s1 + $0x148] sm:$0xf]
        %v420 = vld [vmem:[%s1 + $0x14c] sm:$0xf]
        %v421 = vld [vmem:[%s1 + $0x150] sm:$0xf]
        %v422 = vld [vmem:[%s1 + $0x154] sm:$0xf]
        %v423 = vld [vmem:[%s1 + $0x158] sm:$0xf]
        %v424 = vld [vmem:[%s1 + $0x15c] sm:$0xf]
        %v425 = vld [vmem:[%s1 + $0x160] sm:$0xf]
        %v426 = vld [vmem:[%s1 + $0x164] sm:$0xf]
        %v427 = vld [vmem:[%s1 + $0x168] sm:$0xf]
        %v428 = vld [vmem:[%s1 + $0x16c] sm:$0xf]
        %v429 = vld [vmem:[%s1 + $0x170] sm:$0xf]
        %v430 = vld [vmem:[%s1 + $0x174] sm:$0xf]
        %v431 = vld [vmem:[%s1 + $0x178] sm:$0xf]
        %v432 = vld [vmem:[%s1 + $0x17c] sm:$0xf]
        %v433 = vld [vmem:[%s1 + $0x180] sm:$0xf]
        %v434 = vld [vmem:[%s1 + $0x184] sm:$0xf]
        %v435 = vld [vmem:[%s1 + $0x188] sm:$0xf]
        %v436 = vld [vmem:[%s1 + $0x18c] sm:$0xf]
        %v437 = vld [vmem:[%s2] sm:$0x1]
        %v439 = vlaneseq
        %v440 = vshrl.u32 %v439, 7
        %v441 = vsub.s32 0, %v440
        %v442 = vrot.slane %v437, %v441
        %v580 = vunpack.c.l.b16 %v201
        %v581 = vunpack.c.h.b16 %v201
        %v582 = vunpack.c.l.b16 %v202
        %v583 = vunpack.c.h.b16 %v202
        %v584 = vunpack.c.l.b16 %v203
        %v585 = vunpack.c.h.b16 %v203
        %v586 = vunpack.c.l.b16 %v204
        %v587 = vunpack.c.l.b16 %v205
        %v588 = vunpack.c.h.b16 %v205
        %v589 = vunpack.c.l.b16 %v206
        %v590 = vunpack.c.h.b16 %v206
        %v591 = vunpack.c.l.b16 %v207
        %v592 = vunpack.c.h.b16 %v207
        %v593 = vunpack.c.l.b16 %v208
        %v594 = vunpack.c.l.b16 %v209
        %v595 = vunpack.c.h.b16 %v209
        %v596 = vunpack.c.l.b16 %v210
        %v597 = vunpack.c.h.b16 %v210
        %v598 = vunpack.c.l.b16 %v211
        %v599 = vunpack.c.h.b16 %v211
        %v600 = vunpack.c.l.b16 %v212
        %v601 = vunpack.c.l.b16 %v213
        %v602 = vunpack.c.h.b16 %v213
        %v603 = vunpack.c.l.b16 %v214
        %v604 = vunpack.c.h.b16 %v214
        %v605 = vunpack.c.l.b16 %v215
        %v606 = vunpack.c.h.b16 %v215
        %v607 = vunpack.c.l.b16 %v216
        %v608 = vunpack.c.l.b16 %v217
        %v609 = vunpack.c.h.b16 %v217
        %v610 = vunpack.c.l.b16 %v218
        %v611 = vunpack.c.h.b16 %v218
        %v612 = vunpack.c.l.b16 %v219
        %v613 = vunpack.c.h.b16 %v219
        %v614 = vunpack.c.l.b16 %v220
        %v615 = vunpack.c.l.b16 %v221
        %v616 = vunpack.c.h.b16 %v221
        %v617 = vunpack.c.l.b16 %v222
        %v618 = vunpack.c.h.b16 %v222
        %v619 = vunpack.c.l.b16 %v223
        %v620 = vunpack.c.h.b16 %v223
        %v621 = vunpack.c.l.b16 %v224
        %v622 = vunpack.c.l.b16 %v225
        %v623 = vunpack.c.h.b16 %v225
        %v624 = vunpack.c.l.b16 %v226
        %v625 = vunpack.c.h.b16 %v226
        %v626 = vunpack.c.l.b16 %v227
        %v627 = vunpack.c.h.b16 %v227
        %v628 = vunpack.c.l.b16 %v228
        %v629 = vunpack.c.l.b16 %v229
        %v630 = vunpack.c.h.b16 %v229
        %v631 = vunpack.c.l.b16 %v230
        %v632 = vunpack.c.h.b16 %v230
        %v633 = vunpack.c.l.b16 %v231
        %v634 = vunpack.c.h.b16 %v231
        %v635 = vunpack.c.l.b16 %v232
        %v636 = vunpack.c.l.b16 %v233
        %v637 = vunpack.c.h.b16 %v233
        %v638 = vunpack.c.l.b16 %v234
        %v639 = vunpack.c.h.b16 %v234
        %v640 = vunpack.c.l.b16 %v235
        %v641 = vunpack.c.h.b16 %v235
        %v642 = vunpack.c.l.b16 %v236
        %v643 = vunpack.c.l.b16 %v237
        %v644 = vunpack.c.h.b16 %v237
        %v645 = vunpack.c.l.b16 %v238
        %v646 = vunpack.c.h.b16 %v238
        %v647 = vunpack.c.l.b16 %v239
        %v648 = vunpack.c.h.b16 %v239
        %v649 = vunpack.c.l.b16 %v240
        %v650 = vunpack.c.l.b16 %v241
        %v651 = vunpack.c.h.b16 %v241
        %v652 = vunpack.c.l.b16 %v242
        %v653 = vunpack.c.h.b16 %v242
        %v654 = vunpack.c.l.b16 %v243
        %v655 = vunpack.c.h.b16 %v243
        %v656 = vunpack.c.l.b16 %v244
        %v657 = vunpack.c.l.b16 %v245
        %v658 = vunpack.c.h.b16 %v245
        %v659 = vunpack.c.l.b16 %v246
        %v660 = vunpack.c.h.b16 %v246
        %v661 = vunpack.c.l.b16 %v247
        %v662 = vunpack.c.h.b16 %v247
        %v663 = vunpack.c.l.b16 %v248
        %v664 = vunpack.c.l.b16 %v249
        %v665 = vunpack.c.h.b16 %v249
        %v666 = vunpack.c.l.b16 %v250
        %v667 = vunpack.c.h.b16 %v250
        %v668 = vunpack.c.l.b16 %v251
        %v669 = vunpack.c.h.b16 %v251
        %v670 = vunpack.c.l.b16 %v252
        %v671 = vunpack.c.l.b16 %v253
        %v672 = vunpack.c.h.b16 %v253
        %v673 = vunpack.c.l.b16 %v254
        %v674 = vunpack.c.h.b16 %v254
        %v675 = vunpack.c.l.b16 %v255
        %v676 = vunpack.c.h.b16 %v255
        %v677 = vunpack.c.l.b16 %v256
        %v678 = vunpack.c.l.b16 %v257
        %v679 = vunpack.c.h.b16 %v257
        %v680 = vunpack.c.l.b16 %v258
        %v681 = vunpack.c.h.b16 %v258
        %v682 = vunpack.c.l.b16 %v259
        %v683 = vunpack.c.h.b16 %v259
        %v684 = vunpack.c.l.b16 %v260
        %v685 = vunpack.c.l.b16 %v261
        %v686 = vunpack.c.h.b16 %v261
        %v687 = vunpack.c.l.b16 %v262
        %v688 = vunpack.c.h.b16 %v262
        %v689 = vunpack.c.l.b16 %v263
        %v690 = vunpack.c.h.b16 %v263
        %v691 = vunpack.c.l.b16 %v264
        %v692 = vunpack.c.l.b16 %v265
        %v693 = vunpack.c.h.b16 %v265
        %v694 = vunpack.c.l.b16 %v266
        %v695 = vunpack.c.h.b16 %v266
        %v696 = vunpack.c.l.b16 %v267
        %v697 = vunpack.c.h.b16 %v267
        %v698 = vunpack.c.l.b16 %v268
        %v699 = vunpack.c.l.b16 %v269
        %v700 = vunpack.c.h.b16 %v269
        %v701 = vunpack.c.l.b16 %v270
        %v702 = vunpack.c.h.b16 %v270
        %v703 = vunpack.c.l.b16 %v271
        %v704 = vunpack.c.h.b16 %v271
        %v705 = vunpack.c.l.b16 %v272
        %v706 = vunpack.c.l.b16 %v273
        %v707 = vunpack.c.h.b16 %v273
        %v708 = vunpack.c.l.b16 %v274
        %v709 = vunpack.c.h.b16 %v274
        %v710 = vunpack.c.l.b16 %v275
        %v711 = vunpack.c.h.b16 %v275
        %v712 = vunpack.c.l.b16 %v276
        %v713 = vunpack.c.l.b16 %v277
        %v714 = vunpack.c.h.b16 %v277
        %v715 = vunpack.c.l.b16 %v278
        %v716 = vunpack.c.h.b16 %v278
        %v717 = vunpack.c.l.b16 %v279
        %v718 = vunpack.c.h.b16 %v279
        %v719 = vunpack.c.l.b16 %v280
        %v720 = vunpack.c.l.b16 %v281
        %v721 = vunpack.c.h.b16 %v281
        %v722 = vunpack.c.l.b16 %v282
        %v723 = vunpack.c.h.b16 %v282
        %v724 = vunpack.c.l.b16 %v283
        %v725 = vunpack.c.h.b16 %v283
        %v726 = vunpack.c.l.b16 %v284
        %v727 = vunpack.c.l.b16 %v285
        %v728 = vunpack.c.h.b16 %v285
        %v729 = vunpack.c.l.b16 %v286
        %v730 = vunpack.c.h.b16 %v286
        %v731 = vunpack.c.l.b16 %v287
        %v732 = vunpack.c.h.b16 %v287
        %v733 = vunpack.c.l.b16 %v288
        %v734 = vunpack.c.l.b16 %v289
        %v735 = vunpack.c.h.b16 %v289
        %v736 = vunpack.c.l.b16 %v290
        %v737 = vunpack.c.h.b16 %v290
        %v738 = vunpack.c.l.b16 %v291
        %v739 = vunpack.c.h.b16 %v291
        %v740 = vunpack.c.l.b16 %v292
        %v741 = vunpack.c.l.b16 %v293
        %v742 = vunpack.c.h.b16 %v293
        %v743 = vunpack.c.l.b16 %v294
        %v744 = vunpack.c.h.b16 %v294
        %v745 = vunpack.c.l.b16 %v295
        %v746 = vunpack.c.h.b16 %v295
        %v747 = vunpack.c.l.b16 %v296
        %v748 = vunpack.c.l.b16 %v297
        %v749 = vunpack.c.h.b16 %v297
        %v750 = vunpack.c.l.b16 %v298
        %v751 = vunpack.c.h.b16 %v298
        %v752 = vunpack.c.l.b16 %v299
        %v753 = vunpack.c.h.b16 %v299
        %v754 = vunpack.c.l.b16 %v300
        %v755 = vunpack.c.l.b16 %v301
        %v756 = vunpack.c.h.b16 %v301
        %v757 = vunpack.c.l.b16 %v302
        %v758 = vunpack.c.h.b16 %v302
        %v759 = vunpack.c.l.b16 %v303
        %v760 = vunpack.c.h.b16 %v303
        %v761 = vunpack.c.l.b16 %v304
        %v762 = vunpack.c.l.b16 %v305
        %v763 = vunpack.c.h.b16 %v305
        %v764 = vunpack.c.l.b16 %v306
        %v765 = vunpack.c.h.b16 %v306
        %v766 = vunpack.c.l.b16 %v307
        %v767 = vunpack.c.h.b16 %v307
        %v768 = vunpack.c.l.b16 %v308
        %v769 = vunpack.c.l.b16 %v309
        %v770 = vunpack.c.h.b16 %v309
        %v771 = vunpack.c.l.b16 %v310
        %v772 = vunpack.c.h.b16 %v310
        %v773 = vunpack.c.l.b16 %v311
        %v774 = vunpack.c.h.b16 %v311
        %v775 = vunpack.c.l.b16 %v312
        %v776 = vunpack.c.l.b16 %v313
        %v777 = vunpack.c.h.b16 %v313
        %v778 = vunpack.c.l.b16 %v314
        %v779 = vunpack.c.h.b16 %v314
        %v780 = vunpack.c.l.b16 %v315
        %v781 = vunpack.c.h.b16 %v315
        %v782 = vunpack.c.l.b16 %v316
        %v783 = vunpack.c.l.b16 %v317
        %v784 = vunpack.c.h.b16 %v317
        %v785 = vunpack.c.l.b16 %v318
        %v786 = vunpack.c.h.b16 %v318
        %v787 = vunpack.c.l.b16 %v319
        %v788 = vunpack.c.h.b16 %v319
        %v789 = vunpack.c.l.b16 %v320
        %v790 = vunpack.c.l.b16 %v321
        %v791 = vunpack.c.h.b16 %v321
        %v792 = vunpack.c.l.b16 %v322
        %v793 = vunpack.c.h.b16 %v322
        %v794 = vunpack.c.l.b16 %v323
        %v795 = vunpack.c.h.b16 %v323
        %v796 = vunpack.c.l.b16 %v324
        %v797 = vunpack.c.l.b16 %v325
        %v798 = vunpack.c.h.b16 %v325
        %v799 = vunpack.c.l.b16 %v326
        %v800 = vunpack.c.h.b16 %v326
        %v801 = vunpack.c.l.b16 %v327
        %v802 = vunpack.c.h.b16 %v327
        %v803 = vunpack.c.l.b16 %v328
        %v804 = vunpack.c.l.b16 %v329
        %v805 = vunpack.c.h.b16 %v329
        %v806 = vunpack.c.l.b16 %v330
        %v807 = vunpack.c.h.b16 %v330
        %v808 = vunpack.c.l.b16 %v331
        %v809 = vunpack.c.h.b16 %v331
        %v810 = vunpack.c.l.b16 %v332
        %v811 = vunpack.c.l.b16 %v333
        %v812 = vunpack.c.h.b16 %v333
        %v813 = vunpack.c.l.b16 %v334
        %v814 = vunpack.c.h.b16 %v334
        %v815 = vunpack.c.l.b16 %v335
        %v816 = vunpack.c.h.b16 %v335
        %v817 = vunpack.c.l.b16 %v336
        %v818 = vpack.c.b16 %v587, %v580
        %v819 = vpack.c.b16 %v588, %v581
        %v820 = vpack.c.b16 %v589, %v582
        %v821 = vpack.c.b16 %v590, %v583
        %v822 = vpack.c.b16 %v591, %v584
        %v823 = vpack.c.b16 %v592, %v585
        %v824 = vpack.c.b16 %v593, %v586
        %v825 = vpack.c.b16 %v601, %v594
        %v826 = vpack.c.b16 %v602, %v595
        %v827 = vpack.c.b16 %v603, %v596
        %v828 = vpack.c.b16 %v604, %v597
        %v829 = vpack.c.b16 %v605, %v598
        %v830 = vpack.c.b16 %v606, %v599
        %v831 = vpack.c.b16 %v607, %v600
        %v832 = vpack.c.b16 %v615, %v608
        %v833 = vpack.c.b16 %v616, %v609
        %v834 = vpack.c.b16 %v617, %v610
        %v835 = vpack.c.b16 %v618, %v611
        %v836 = vpack.c.b16 %v619, %v612
        %v837 = vpack.c.b16 %v620, %v613
        %v838 = vpack.c.b16 %v621, %v614
        %v839 = vpack.c.b16 %v629, %v622
        %v840 = vpack.c.b16 %v630, %v623
        %v841 = vpack.c.b16 %v631, %v624
        %v842 = vpack.c.b16 %v632, %v625
        %v843 = vpack.c.b16 %v633, %v626
        %v844 = vpack.c.b16 %v634, %v627
        %v845 = vpack.c.b16 %v635, %v628
        %v846 = vpack.c.b16 %v643, %v636
        %v847 = vpack.c.b16 %v644, %v637
        %v848 = vpack.c.b16 %v645, %v638
        %v849 = vpack.c.b16 %v646, %v639
        %v850 = vpack.c.b16 %v647, %v640
        %v851 = vpack.c.b16 %v648, %v641
        %v852 = vpack.c.b16 %v649, %v642
        %v853 = vpack.c.b16 %v657, %v650
        %v854 = vpack.c.b16 %v658, %v651
        %v855 = vpack.c.b16 %v659, %v652
        %v856 = vpack.c.b16 %v660, %v653
        %v857 = vpack.c.b16 %v661, %v654
        %v858 = vpack.c.b16 %v662, %v655
        %v859 = vpack.c.b16 %v663, %v656
        %v860 = vpack.c.b16 %v671, %v664
        %v861 = vpack.c.b16 %v672, %v665
        %v862 = vpack.c.b16 %v673, %v666
        %v863 = vpack.c.b16 %v674, %v667
        %v864 = vpack.c.b16 %v675, %v668
        %v865 = vpack.c.b16 %v676, %v669
        %v866 = vpack.c.b16 %v677, %v670
        %v867 = vpack.c.b16 %v685, %v678
        %v868 = vpack.c.b16 %v686, %v679
        %v869 = vpack.c.b16 %v687, %v680
        %v870 = vpack.c.b16 %v688, %v681
        %v871 = vpack.c.b16 %v689, %v682
        %v872 = vpack.c.b16 %v690, %v683
        %v873 = vpack.c.b16 %v691, %v684
        %v874 = vpack.c.b16 %v699, %v692
        %v875 = vpack.c.b16 %v700, %v693
        %v876 = vpack.c.b16 %v701, %v694
        %v877 = vpack.c.b16 %v702, %v695
        %v878 = vpack.c.b16 %v703, %v696
        %v879 = vpack.c.b16 %v704, %v697
        %v880 = vpack.c.b16 %v705, %v698
        %v881 = vpack.c.b16 %v713, %v706
        %v882 = vpack.c.b16 %v714, %v707
        %v883 = vpack.c.b16 %v715, %v708
        %v884 = vpack.c.b16 %v716, %v709
        %v885 = vpack.c.b16 %v717, %v710
        %v886 = vpack.c.b16 %v718, %v711
        %v887 = vpack.c.b16 %v719, %v712
        %v888 = vpack.c.b16 %v727, %v720
        %v889 = vpack.c.b16 %v728, %v721
        %v890 = vpack.c.b16 %v729, %v722
        %v891 = vpack.c.b16 %v730, %v723
        %v892 = vpack.c.b16 %v731, %v724
        %v893 = vpack.c.b16 %v732, %v725
        %v894 = vpack.c.b16 %v733, %v726
        %v895 = vpack.c.b16 %v741, %v734
        %v896 = vpack.c.b16 %v742, %v735
        %v897 = vpack.c.b16 %v743, %v736
        %v898 = vpack.c.b16 %v744, %v737
        %v899 = vpack.c.b16 %v745, %v738
        %v900 = vpack.c.b16 %v746, %v739
        %v901 = vpack.c.b16 %v747, %v740
        %v902 = vpack.c.b16 %v755, %v748
        %v903 = vpack.c.b16 %v756, %v749
        %v904 = vpack.c.b16 %v757, %v750
        %v905 = vpack.c.b16 %v758, %v751
        %v906 = vpack.c.b16 %v759, %v752
        %v907 = vpack.c.b16 %v760, %v753
        %v908 = vpack.c.b16 %v761, %v754
        %v909 = vpack.c.b16 %v769, %v762
        %v910 = vpack.c.b16 %v770, %v763
        %v911 = vpack.c.b16 %v771, %v764
        %v912 = vpack.c.b16 %v772, %v765
        %v913 = vpack.c.b16 %v773, %v766
        %v914 = vpack.c.b16 %v774, %v767
        %v915 = vpack.c.b16 %v775, %v768
        %v916 = vpack.c.b16 %v783, %v776
        %v917 = vpack.c.b16 %v784, %v777
        %v918 = vpack.c.b16 %v785, %v778
        %v919 = vpack.c.b16 %v786, %v779
        %v920 = vpack.c.b16 %v787, %v780
        %v921 = vpack.c.b16 %v788, %v781
        %v922 = vpack.c.b16 %v789, %v782
        %v923 = vpack.c.b16 %v797, %v790
        %v924 = vpack.c.b16 %v798, %v791
        %v925 = vpack.c.b16 %v799, %v792
        %v926 = vpack.c.b16 %v800, %v793
        %v927 = vpack.c.b16 %v801, %v794
        %v928 = vpack.c.b16 %v802, %v795
        %v929 = vpack.c.b16 %v803, %v796
        %v930 = vpack.c.b16 %v811, %v804
        %v931 = vpack.c.b16 %v812, %v805
        %v932 = vpack.c.b16 %v813, %v806
        %v933 = vpack.c.b16 %v814, %v807
        %v934 = vpack.c.b16 %v815, %v808
        %v935 = vpack.c.b16 %v816, %v809
        %v936 = vpack.c.b16 %v817, %v810
        %v1139 = vunpack.c.l.b16 %v337
        %v1140 = vunpack.c.l.b16 %v338
        %v1141 = vunpack.c.l.b16 %v339
        %v1142 = vunpack.c.l.b16 %v340
        %v1143 = vunpack.c.l.b16 %v341
        %v1144 = vunpack.c.l.b16 %v342
        %v1145 = vunpack.c.l.b16 %v343
        %v1146 = vunpack.c.l.b16 %v344
        %v1147 = vunpack.c.l.b16 %v345
        %v1148 = vunpack.c.l.b16 %v346
        %v1149 = vunpack.c.l.b16 %v347
        %v1150 = vunpack.c.l.b16 %v348
        %v1151 = vunpack.c.l.b16 %v349
        %v1152 = vunpack.c.l.b16 %v350
        %v1153 = vunpack.c.l.b16 %v351
        %v1154 = vunpack.c.l.b16 %v352
        %v1155 = vunpack.c.l.b16 %v353
        %v1156 = vunpack.c.l.b16 %v354
        %v1157 = vunpack.c.l.b16 %v355
        %v1158 = vunpack.c.l.b16 %v356
        %v1159 = vunpack.c.l.b16 %v357
        %v1160 = vunpack.c.l.b16 %v358
        %v1161 = vunpack.c.l.b16 %v359
        %v1162 = vunpack.c.l.b16 %v360
        %v1163 = vunpack.c.l.b16 %v361
        %v1164 = vunpack.c.l.b16 %v362
        %v1165 = vunpack.c.l.b16 %v363
        %v1166 = vunpack.c.l.b16 %v364
        %v1167 = vunpack.c.l.b16 %v365
        %v1168 = vunpack.c.l.b16 %v366
        %v1169 = vunpack.c.l.b16 %v367
        %v1170 = vunpack.c.l.b16 %v368
        %v1171 = vunpack.c.l.b16 %v369
        %v1172 = vunpack.c.l.b16 %v370
        %v1173 = vunpack.c.l.b16 %v371
        %v1174 = vunpack.c.l.b16 %v372
        %v1175 = vunpack.c.l.b16 %v373
        %v1176 = vunpack.c.l.b16 %v374
        %v1177 = vunpack.c.l.b16 %v375
        %v1178 = vunpack.c.l.b16 %v376
        %v1179 = vunpack.c.l.b16 %v377
        %v1180 = vunpack.c.l.b16 %v378
        %v1181 = vunpack.c.l.b16 %v379
        %v1182 = vunpack.c.l.b16 %v380
        %v1183 = vunpack.c.l.b16 %v381
        %v1184 = vunpack.c.l.b16 %v382
        %v1185 = vunpack.c.l.b16 %v383
        %v1186 = vunpack.c.l.b16 %v384
        %v1187 = vunpack.c.l.b16 %v385
        %v1188 = vunpack.c.l.b16 %v386
        %v1189 = vunpack.c.l.b16 %v387
        %v1190 = vunpack.c.l.b16 %v388
        %v1191 = vunpack.c.l.b16 %v389
        %v1192 = vunpack.c.l.b16 %v390
        %v1193 = vunpack.c.l.b16 %v391
        %v1194 = vunpack.c.l.b16 %v392
        %v1195 = vunpack.c.l.b16 %v393
        %v1196 = vunpack.c.l.b16 %v394
        %v1197 = vunpack.c.l.b16 %v395
        %v1198 = vunpack.c.l.b16 %v396
        %v1199 = vunpack.c.l.b16 %v397
        %v1200 = vunpack.c.l.b16 %v398
        %v1201 = vunpack.c.l.b16 %v399
        %v1202 = vunpack.c.l.b16 %v400
        %v1203 = vunpack.c.l.b16 %v401
        %v1204 = vunpack.c.l.b16 %v402
        %v1205 = vunpack.c.l.b16 %v403
        %v1206 = vunpack.c.l.b16 %v404
        %v1207 = vunpack.c.l.b16 %v405
        %v1208 = vunpack.c.l.b16 %v406
        %v1209 = vunpack.c.l.b16 %v407
        %v1210 = vunpack.c.l.b16 %v408
        %v1211 = vunpack.c.l.b16 %v409
        %v1212 = vunpack.c.l.b16 %v410
        %v1213 = vunpack.c.l.b16 %v411
        %v1214 = vunpack.c.l.b16 %v412
        %v1215 = vunpack.c.l.b16 %v413
        %v1216 = vunpack.c.l.b16 %v414
        %v1217 = vunpack.c.l.b16 %v415
        %v1218 = vunpack.c.l.b16 %v416
        %v1219 = vunpack.c.l.b16 %v417
        %v1220 = vunpack.c.l.b16 %v418
        %v1221 = vunpack.c.l.b16 %v419
        %v1222 = vunpack.c.l.b16 %v420
        %v1223 = vunpack.c.l.b16 %v421
        %v1224 = vunpack.c.l.b16 %v422
        %v1225 = vunpack.c.l.b16 %v423
        %v1226 = vunpack.c.l.b16 %v424
        %v1227 = vunpack.c.l.b16 %v425
        %v1228 = vunpack.c.l.b16 %v426
        %v1229 = vunpack.c.l.b16 %v427
        %v1230 = vunpack.c.l.b16 %v428
        %v1231 = vunpack.c.l.b16 %v429
        %v1232 = vunpack.c.l.b16 %v430
        %v1233 = vunpack.c.l.b16 %v431
        %v1234 = vunpack.c.l.b16 %v432
        %v1235 = vunpack.c.l.b16 %v433
        %v1236 = vunpack.c.l.b16 %v434
        %v1237 = vunpack.c.l.b16 %v435
        %v1238 = vunpack.c.l.b16 %v436
        %v1239 = vpack.c.b16 %v1140, %v1139
        %v1240 = vpack.c.b16 %v1142, %v1141
        %v1241 = vpack.c.b16 %v1144, %v1143
        %v1242 = vpack.c.b16 %v1146, %v1145
        %v1243 = vpack.c.b16 %v1148, %v1147
        %v1244 = vpack.c.b16 %v1150, %v1149
        %v1245 = vpack.c.b16 %v1152, %v1151
        %v1246 = vpack.c.b16 %v1154, %v1153
        %v1247 = vpack.c.b16 %v1156, %v1155
        %v1248 = vpack.c.b16 %v1158, %v1157
        %v1249 = vpack.c.b16 %v1160, %v1159
        %v1250 = vpack.c.b16 %v1162, %v1161
        %v1251 = vpack.c.b16 %v1164, %v1163
        %v1252 = vpack.c.b16 %v1166, %v1165
        %v1253 = vpack.c.b16 %v1168, %v1167
        %v1254 = vpack.c.b16 %v1170, %v1169
        %v1255 = vpack.c.b16 %v1172, %v1171
        %v1256 = vpack.c.b16 %v1174, %v1173
        %v1257 = vpack.c.b16 %v1176, %v1175
        %v1258 = vpack.c.b16 %v1178, %v1177
        %v1259 = vpack.c.b16 %v1180, %v1179
        %v1260 = vpack.c.b16 %v1182, %v1181
        %v1261 = vpack.c.b16 %v1184, %v1183
        %v1262 = vpack.c.b16 %v1186, %v1185
        %v1263 = vpack.c.b16 %v1188, %v1187
        %v1264 = vpack.c.b16 %v1190, %v1189
        %v1265 = vpack.c.b16 %v1192, %v1191
        %v1266 = vpack.c.b16 %v1194, %v1193
        %v1267 = vpack.c.b16 %v1196, %v1195
        %v1268 = vpack.c.b16 %v1198, %v1197
        %v1269 = vpack.c.b16 %v1200, %v1199
        %v1270 = vpack.c.b16 %v1202, %v1201
        %v1271 = vpack.c.b16 %v1204, %v1203
        %v1272 = vpack.c.b16 %v1206, %v1205
        %v1273 = vpack.c.b16 %v1208, %v1207
        %v1274 = vpack.c.b16 %v1210, %v1209
        %v1275 = vpack.c.b16 %v1212, %v1211
        %v1276 = vpack.c.b16 %v1214, %v1213
        %v1277 = vpack.c.b16 %v1216, %v1215
        %v1278 = vpack.c.b16 %v1218, %v1217
        %v1279 = vpack.c.b16 %v1220, %v1219
        %v1280 = vpack.c.b16 %v1222, %v1221
        %v1281 = vpack.c.b16 %v1224, %v1223
        %v1282 = vpack.c.b16 %v1226, %v1225
        %v1283 = vpack.c.b16 %v1228, %v1227
        %v1284 = vpack.c.b16 %v1230, %v1229
        %v1285 = vpack.c.b16 %v1232, %v1231
        %v1286 = vpack.c.b16 %v1234, %v1233
        %v1287 = vpack.c.b16 %v1236, %v1235
        %v1288 = vpack.c.b16 %v1238, %v1237
        %vm1339 = vcmask 261120
        %v1341 = vsel %vm1339, %v824, 0
        %v1344 = vsel %vm1339, %v831, 0
        %v1347 = vsel %vm1339, %v838, 0
        %v1350 = vsel %vm1339, %v845, 0
        %v1353 = vsel %vm1339, %v852, 0
        %v1356 = vsel %vm1339, %v859, 0
        %v1359 = vsel %vm1339, %v866, 0
        %v1362 = vsel %vm1339, %v873, 0
        %v1365 = vsel %vm1339, %v880, 0
        %v1368 = vsel %vm1339, %v887, 0
        %v1371 = vsel %vm1339, %v894, 0
        %v1374 = vsel %vm1339, %v901, 0
        %v1377 = vsel %vm1339, %v908, 0
        %v1380 = vsel %vm1339, %v915, 0
        %v1383 = vsel %vm1339, %v922, 0
        %v1386 = vsel %vm1339, %v929, 0
        %v1389 = vsel %vm1339, %v936, 0
        %1391 = vmatprep.subr.bf16.mxu0 0
        %1392 = vmatpush1.bf16.msra.mxu0 %v1239
        %1393 = vmatprep.subr.bf16.mxu0 0
        %1394 = vmatpush1.bf16.msra.mxu0 %v1240
        %1395 = vmatprep.subr.bf16.mxu0 0
        %1396 = vmatpush1.bf16.msra.mxu0 %v1241
        %1397 = vmatprep.subr.bf16.mxu0 0
        %1398 = vmatpush1.bf16.msra.mxu0 %v1242
        %1399 = vmatprep.subr.bf16.mxu0 0
        %1400 = vmatpush1.bf16.msra.mxu0 %v1243
        %1401 = vmatprep.subr.bf16.mxu0 0
        %1402 = vmatpush1.bf16.msra.mxu0 %v1244
        %1403 = vmatprep.subr.bf16.mxu0 0
        %1404 = vmatpush1.bf16.msra.mxu0 %v1245
        %1405 = vmatprep.subr.bf16.mxu0 0
        %1406 = vmatpush1.bf16.msra.mxu0 %v1246
        %1407 = vmatprep.subr.bf16.mxu0 0
        %1408 = vmatpush1.bf16.msra.mxu0 %v1247
        %1409 = vmatprep.subr.bf16.mxu0 0
        %1410 = vmatpush1.bf16.msra.mxu0 %v1248
        %1411 = vmatprep.subr.bf16.mxu0 0
        %1412 = vmatpush1.bf16.msra.mxu0 %v1249
        %1413 = vmatprep.subr.bf16.mxu0 0
        %1414 = vmatpush1.bf16.msra.mxu0 %v1250
        %1415 = vmatprep.subr.bf16.mxu0 0
        %1416 = vmatpush1.bf16.msra.mxu0 %v1251
        %1417 = vmatprep.subr.bf16.mxu0 0
        %1418 = vmatpush1.bf16.msra.mxu0 %v1252
        %1419 = vmatprep.subr.bf16.mxu0 0
        %1420 = vmatpush1.bf16.msra.mxu0 %v1253
        %1421 = vmatprep.subr.bf16.mxu0 0
        %1422 = vmatpush1.bf16.msra.mxu0 %v1254
        %1423 = vmatprep.mubr.bf16.mxu0 %v819
        %1424 = vmatmul.mubr.bf16.gmra.mrb[0].mxu0 %v818
        %v1425 = vpop.f32.mrb[0].mxu0
        %v1426 = vadd.f32 %v442, %v1425
        %v1427 = vpop.f32.mrb[0].mxu0
        %v1428 = vpop.f32.mrb[0].mxu0
        %v1429 = vadd.f32 %v442, %v1428
        %v1430 = vpop.f32.mrb[0].mxu0
        %1431 = vmatprep.mubr.bf16.mxu0 %v826
        %1432 = vmatmul.mubr.bf16.gmra.mrb[0].mxu0 %v825
        %v1433 = vpop.f32.mrb[0].mxu0
        %v1434 = vadd.f32 %v442, %v1433
        %v1435 = vpop.f32.mrb[0].mxu0
        %v1436 = vpop.f32.mrb[0].mxu0
        %v1437 = vadd.f32 %v442, %v1436
        %v1438 = vpop.f32.mrb[0].mxu0
        %1439 = vmatprep.mubr.bf16.mxu0 %v833
        %1440 = vmatmul.mubr.bf16.gmra.mrb[0].mxu0 %v832
        %v1441 = vpop.f32.mrb[0].mxu0
        %v1442 = vadd.f32 %v442, %v1441
        %v1443 = vpop.f32.mrb[0].mxu0
        %v1444 = vpop.f32.mrb[0].mxu0
        %v1445 = vadd.f32 %v442, %v1444
        %v1446 = vpop.f32.mrb[0].mxu0
        %1447 = vmatprep.mubr.bf16.mxu0 %v840
        %1448 = vmatmul.mubr.bf16.gmra.mrb[0].mxu0 %v839
        %v1449 = vpop.f32.mrb[0].mxu0
        %v1450 = vadd.f32 %v442, %v1449
        %v1451 = vpop.f32.mrb[0].mxu0
        %v1452 = vpop.f32.mrb[0].mxu0
        %v1453 = vadd.f32 %v442, %v1452
        %v1454 = vpop.f32.mrb[0].mxu0
        %1455 = vmatprep.mubr.bf16.mxu0 %v847
        %1456 = vmatmul.mubr.bf16.gmra.mrb[0].mxu0 %v846
        %v1457 = vpop.f32.mrb[0].mxu0
        %v1458 = vadd.f32 %v442, %v1457
        %v1459 = vpop.f32.mrb[0].mxu0
        %v1460 = vpop.f32.mrb[0].mxu0
        %v1461 = vadd.f32 %v442, %v1460
        %v1462 = vpop.f32.mrb[0].mxu0
        %1463 = vmatprep.mubr.bf16.mxu0 %v854
        %1464 = vmatmul.mubr.bf16.gmra.mrb[0].mxu0 %v853
        %v1465 = vpop.f32.mrb[0].mxu0
        %v1466 = vadd.f32 %v442, %v1465
        %v1467 = vpop.f32.mrb[0].mxu0
        %v1468 = vpop.f32.mrb[0].mxu0
        %v1469 = vadd.f32 %v442, %v1468
        %v1470 = vpop.f32.mrb[0].mxu0
        %1471 = vmatprep.mubr.bf16.mxu0 %v861
        %1472 = vmatmul.mubr.bf16.gmra.mrb[0].mxu0 %v860
        %v1473 = vpop.f32.mrb[0].mxu0
        %v1474 = vadd.f32 %v442, %v1473
        %v1475 = vpop.f32.mrb[0].mxu0
        %v1476 = vpop.f32.mrb[0].mxu0
        %v1477 = vadd.f32 %v442, %v1476
        %v1478 = vpop.f32.mrb[0].mxu0
        %1479 = vmatprep.mubr.bf16.mxu0 %v868
        %1480 = vmatmul.mubr.bf16.gmra.mrb[0].mxu0 %v867
        %v1481 = vpop.f32.mrb[0].mxu0
        %v1482 = vadd.f32 %v442, %v1481
        %v1483 = vpop.f32.mrb[0].mxu0
        %v1484 = vpop.f32.mrb[0].mxu0
        %v1485 = vadd.f32 %v442, %v1484
        %v1486 = vpop.f32.mrb[0].mxu0
        %1487 = vmatprep.mubr.bf16.mxu0 %v875
        %1488 = vmatmul.mubr.bf16.gmra.mrb[0].mxu0 %v874
        %v1489 = vpop.f32.mrb[0].mxu0
        %v1490 = vadd.f32 %v442, %v1489
        %v1491 = vpop.f32.mrb[0].mxu0
        %v1492 = vpop.f32.mrb[0].mxu0
        %v1493 = vadd.f32 %v442, %v1492
        %v1494 = vpop.f32.mrb[0].mxu0
        %1495 = vmatprep.mubr.bf16.mxu0 %v882
        %1496 = vmatmul.mubr.bf16.gmra.mrb[0].mxu0 %v881
        %v1497 = vpop.f32.mrb[0].mxu0
        %v1498 = vadd.f32 %v442, %v1497
        %v1499 = vpop.f32.mrb[0].mxu0
        %v1500 = vpop.f32.mrb[0].mxu0
        %v1501 = vadd.f32 %v442, %v1500
        %v1502 = vpop.f32.mrb[0].mxu0
        %1503 = vmatprep.mubr.bf16.mxu0 %v889
        %1504 = vmatmul.mubr.bf16.gmra.mrb[0].mxu0 %v888
        %v1505 = vpop.f32.mrb[0].mxu0
        %v1506 = vadd.f32 %v442, %v1505
        %v1507 = vpop.f32.mrb[0].mxu0
        %v1508 = vpop.f32.mrb[0].mxu0
        %v1509 = vadd.f32 %v442, %v1508
        %v1510 = vpop.f32.mrb[0].mxu0
        %1511 = vmatprep.mubr.bf16.mxu0 %v896
        %1512 = vmatmul.mubr.bf16.gmra.mrb[0].mxu0 %v895
        %v1513 = vpop.f32.mrb[0].mxu0
        %v1514 = vadd.f32 %v442, %v1513
        %v1515 = vpop.f32.mrb[0].mxu0
        %v1516 = vpop.f32.mrb[0].mxu0
        %v1517 = vadd.f32 %v442, %v1516
        %v1518 = vpop.f32.mrb[0].mxu0
        %1519 = vmatprep.mubr.bf16.mxu0 %v903
        %1520 = vmatmul.mubr.bf16.gmra.mrb[0].mxu0 %v902
        %v1521 = vpop.f32.mrb[0].mxu0
        %v1522 = vadd.f32 %v442, %v1521
        %v1523 = vpop.f32.mrb[0].mxu0
        %v1524 = vpop.f32.mrb[0].mxu0
        %v1525 = vadd.f32 %v442, %v1524
        %v1526 = vpop.f32.mrb[0].mxu0
        %1527 = vmatprep.mubr.bf16.mxu0 %v910
        %1528 = vmatmul.mubr.bf16.gmra.mrb[0].mxu0 %v909
        %v1529 = vpop.f32.mrb[0].mxu0
        %v1530 = vadd.f32 %v442, %v1529
        %v1531 = vpop.f32.mrb[0].mxu0
        %v1532 = vpop.f32.mrb[0].mxu0
        %v1533 = vadd.f32 %v442, %v1532
        %v1534 = vpop.f32.mrb[0].mxu0
        %1535 = vmatprep.mubr.bf16.mxu0 %v917
        %1536 = vmatmul.mubr.bf16.gmra.mrb[0].mxu0 %v916
        %v1537 = vpop.f32.mrb[0].mxu0
        %v1538 = vadd.f32 %v442, %v1537
        %v1539 = vpop.f32.mrb[0].mxu0
        %v1540 = vpop.f32.mrb[0].mxu0
        %v1541 = vadd.f32 %v442, %v1540
        %v1542 = vpop.f32.mrb[0].mxu0
        %1543 = vmatprep.mubr.bf16.mxu0 %v924
        %1544 = vmatmul.mubr.bf16.gmra.mrb[0].mxu0 %v923
        %v1545 = vpop.f32.mrb[0].mxu0
        %v1546 = vadd.f32 %v442, %v1545
        %v1547 = vpop.f32.mrb[0].mxu0
        %v1548 = vpop.f32.mrb[0].mxu0
        %v1549 = vadd.f32 %v442, %v1548
        %v1550 = vpop.f32.mrb[0].mxu0
        %1551 = vmatprep.mubr.bf16.mxu0 %v931
        %1552 = vmatmul.mubr.bf16.gmra.mrb[0].mxu0 %v930
        %v1553 = vpop.f32.mrb[0].mxu0
        %v1554 = vadd.f32 %v442, %v1553
        %v1555 = vpop.f32.mrb[0].mxu0
        %v1556 = vpop.f32.mrb[0].mxu0
        %v1557 = vadd.f32 %v442, %v1556
        %v1558 = vpop.f32.mrb[0].mxu0
        %1559 = vdwg.mxu0
        %1560 = vmatprep.subr.bf16.mxu0 0
        %1561 = vmatpush1.bf16.msra.mxu0 %v1255
        %1562 = vmatprep.subr.bf16.mxu0 0
        %1563 = vmatpush1.bf16.msra.mxu0 %v1256
        %1564 = vmatprep.subr.bf16.mxu0 0
        %1565 = vmatpush1.bf16.msra.mxu0 %v1257
        %1566 = vmatprep.subr.bf16.mxu0 0
        %1567 = vmatpush1.bf16.msra.mxu0 %v1258
        %1568 = vmatprep.subr.bf16.mxu0 0
        %1569 = vmatpush1.bf16.msra.mxu0 %v1259
        %1570 = vmatprep.subr.bf16.mxu0 0
        %1571 = vmatpush1.bf16.msra.mxu0 %v1260
        %1572 = vmatprep.subr.bf16.mxu0 0
        %1573 = vmatpush1.bf16.msra.mxu0 %v1261
        %1574 = vmatprep.subr.bf16.mxu0 0
        %1575 = vmatpush1.bf16.msra.mxu0 %v1262
        %1576 = vmatprep.subr.bf16.mxu0 0
        %1577 = vmatpush1.bf16.msra.mxu0 %v1263
        %1578 = vmatprep.subr.bf16.mxu0 0
        %1579 = vmatpush1.bf16.msra.mxu0 %v1264
        %1580 = vmatprep.subr.bf16.mxu0 0
        %1581 = vmatpush1.bf16.msra.mxu0 %v1265
        %1582 = vmatprep.subr.bf16.mxu0 0
        %1583 = vmatpush1.bf16.msra.mxu0 %v1266
        %1584 = vmatprep.subr.bf16.mxu0 0
        %1585 = vmatpush1.bf16.msra.mxu0 %v1267
        %1586 = vmatprep.subr.bf16.mxu0 0
        %1587 = vmatpush1.bf16.msra.mxu0 %v1268
        %1588 = vmatprep.subr.bf16.mxu0 0
        %1589 = vmatpush1.bf16.msra.mxu0 %v1269
        %1590 = vmatprep.subr.bf16.mxu0 0
        %1591 = vmatpush1.bf16.msra.mxu0 %v1270
        %1592 = vmatprep.mubr.bf16.mxu0 %v821
        %1593 = vmatmul.mubr.bf16.gmra.mrb[0].mxu0 %v820
        %v1594 = vpop.f32.mrb[0].mxu0
        %v1595 = vadd.f32 %v1426, %v1594
        %v1596 = vpop.f32.mrb[0].mxu0
        %v1597 = vpop.f32.mrb[0].mxu0
        %v1598 = vadd.f32 %v1429, %v1597
        %v1599 = vpop.f32.mrb[0].mxu0
        %1600 = vmatprep.mubr.bf16.mxu0 %v828
        %1601 = vmatmul.mubr.bf16.gmra.mrb[0].mxu0 %v827
        %v1602 = vpop.f32.mrb[0].mxu0
        %v1603 = vadd.f32 %v1434, %v1602
        %v1604 = vpop.f32.mrb[0].mxu0
        %v1605 = vpop.f32.mrb[0].mxu0
        %v1606 = vadd.f32 %v1437, %v1605
        %v1607 = vpop.f32.mrb[0].mxu0
        %1608 = vmatprep.mubr.bf16.mxu0 %v835
        %1609 = vmatmul.mubr.bf16.gmra.mrb[0].mxu0 %v834
        %v1610 = vpop.f32.mrb[0].mxu0
        %v1611 = vadd.f32 %v1442, %v1610
        %v1612 = vpop.f32.mrb[0].mxu0
        %v1613 = vpop.f32.mrb[0].mxu0
        %v1614 = vadd.f32 %v1445, %v1613
        %v1615 = vpop.f32.mrb[0].mxu0
        %1616 = vmatprep.mubr.bf16.mxu0 %v842
        %1617 = vmatmul.mubr.bf16.gmra.mrb[0].mxu0 %v841
        %v1618 = vpop.f32.mrb[0].mxu0
        %v1619 = vadd.f32 %v1450, %v1618
        %v1620 = vpop.f32.mrb[0].mxu0
        %v1621 = vpop.f32.mrb[0].mxu0
        %v1622 = vadd.f32 %v1453, %v1621
        %v1623 = vpop.f32.mrb[0].mxu0
        %1624 = vmatprep.mubr.bf16.mxu0 %v849
        %1625 = vmatmul.mubr.bf16.gmra.mrb[0].mxu0 %v848
        %v1626 = vpop.f32.mrb[0].mxu0
        %v1627 = vadd.f32 %v1458, %v1626
        %v1628 = vpop.f32.mrb[0].mxu0
        %v1629 = vpop.f32.mrb[0].mxu0
        %v1630 = vadd.f32 %v1461, %v1629
        %v1631 = vpop.f32.mrb[0].mxu0
        %1632 = vmatprep.mubr.bf16.mxu0 %v856
        %1633 = vmatmul.mubr.bf16.gmra.mrb[0].mxu0 %v855
        %v1634 = vpop.f32.mrb[0].mxu0
        %v1635 = vadd.f32 %v1466, %v1634
        %v1636 = vpop.f32.mrb[0].mxu0
        %v1637 = vpop.f32.mrb[0].mxu0
        %v1638 = vadd.f32 %v1469, %v1637
        %v1639 = vpop.f32.mrb[0].mxu0
        %1640 = vmatprep.mubr.bf16.mxu0 %v863
        %1641 = vmatmul.mubr.bf16.gmra.mrb[0].mxu0 %v862
        %v1642 = vpop.f32.mrb[0].mxu0
        %v1643 = vadd.f32 %v1474, %v1642
        %v1644 = vpop.f32.mrb[0].mxu0
        %v1645 = vpop.f32.mrb[0].mxu0
        %v1646 = vadd.f32 %v1477, %v1645
        %v1647 = vpop.f32.mrb[0].mxu0
        %1648 = vmatprep.mubr.bf16.mxu0 %v870
        %1649 = vmatmul.mubr.bf16.gmra.mrb[0].mxu0 %v869
        %v1650 = vpop.f32.mrb[0].mxu0
        %v1651 = vadd.f32 %v1482, %v1650
        %v1652 = vpop.f32.mrb[0].mxu0
        %v1653 = vpop.f32.mrb[0].mxu0
        %v1654 = vadd.f32 %v1485, %v1653
        %v1655 = vpop.f32.mrb[0].mxu0
        %1656 = vmatprep.mubr.bf16.mxu0 %v877
        %1657 = vmatmul.mubr.bf16.gmra.mrb[0].mxu0 %v876
        %v1658 = vpop.f32.mrb[0].mxu0
        %v1659 = vadd.f32 %v1490, %v1658
        %v1660 = vpop.f32.mrb[0].mxu0
        %v1661 = vpop.f32.mrb[0].mxu0
        %v1662 = vadd.f32 %v1493, %v1661
        %v1663 = vpop.f32.mrb[0].mxu0
        %1664 = vmatprep.mubr.bf16.mxu0 %v884
        %1665 = vmatmul.mubr.bf16.gmra.mrb[0].mxu0 %v883
        %v1666 = vpop.f32.mrb[0].mxu0
        %v1667 = vadd.f32 %v1498, %v1666
        %v1668 = vpop.f32.mrb[0].mxu0
        %v1669 = vpop.f32.mrb[0].mxu0
        %v1670 = vadd.f32 %v1501, %v1669
        %v1671 = vpop.f32.mrb[0].mxu0
        %1672 = vmatprep.mubr.bf16.mxu0 %v891
        %1673 = vmatmul.mubr.bf16.gmra.mrb[0].mxu0 %v890
        %v1674 = vpop.f32.mrb[0].mxu0
        %v1675 = vadd.f32 %v1506, %v1674
        %v1676 = vpop.f32.mrb[0].mxu0
        %v1677 = vpop.f32.mrb[0].mxu0
        %v1678 = vadd.f32 %v1509, %v1677
        %v1679 = vpop.f32.mrb[0].mxu0
        %1680 = vmatprep.mubr.bf16.mxu0 %v898
        %1681 = vmatmul.mubr.bf16.gmra.mrb[0].mxu0 %v897
        %v1682 = vpop.f32.mrb[0].mxu0
        %v1683 = vadd.f32 %v1514, %v1682
        %v1684 = vpop.f32.mrb[0].mxu0
        %v1685 = vpop.f32.mrb[0].mxu0
        %v1686 = vadd.f32 %v1517, %v1685
        %v1687 = vpop.f32.mrb[0].mxu0
        %1688 = vmatprep.mubr.bf16.mxu0 %v905
        %1689 = vmatmul.mubr.bf16.gmra.mrb[0].mxu0 %v904
        %v1690 = vpop.f32.mrb[0].mxu0
        %v1691 = vadd.f32 %v1522, %v1690
        %v1692 = vpop.f32.mrb[0].mxu0
        %v1693 = vpop.f32.mrb[0].mxu0
        %v1694 = vadd.f32 %v1525, %v1693
        %v1695 = vpop.f32.mrb[0].mxu0
        %1696 = vmatprep.mubr.bf16.mxu0 %v912
        %1697 = vmatmul.mubr.bf16.gmra.mrb[0].mxu0 %v911
        %v1698 = vpop.f32.mrb[0].mxu0
        %v1699 = vadd.f32 %v1530, %v1698
        %v1700 = vpop.f32.mrb[0].mxu0
        %v1701 = vpop.f32.mrb[0].mxu0
        %v1702 = vadd.f32 %v1533, %v1701
        %v1703 = vpop.f32.mrb[0].mxu0
        %1704 = vmatprep.mubr.bf16.mxu0 %v919
        %1705 = vmatmul.mubr.bf16.gmra.mrb[0].mxu0 %v918
        %v1706 = vpop.f32.mrb[0].mxu0
        %v1707 = vadd.f32 %v1538, %v1706
        %v1708 = vpop.f32.mrb[0].mxu0
        %v1709 = vpop.f32.mrb[0].mxu0
        %v1710 = vadd.f32 %v1541, %v1709
        %v1711 = vpop.f32.mrb[0].mxu0
        %1712 = vmatprep.mubr.bf16.mxu0 %v926
        %1713 = vmatmul.mubr.bf16.gmra.mrb[0].mxu0 %v925
        %v1714 = vpop.f32.mrb[0].mxu0
        %v1715 = vadd.f32 %v1546, %v1714
        %v1716 = vpop.f32.mrb[0].mxu0
        %v1717 = vpop.f32.mrb[0].mxu0
        %v1718 = vadd.f32 %v1549, %v1717
        %v1719 = vpop.f32.mrb[0].mxu0
        %1720 = vmatprep.mubr.bf16.mxu0 %v933
        %1721 = vmatmul.mubr.bf16.gmra.mrb[0].mxu0 %v932
        %v1722 = vpop.f32.mrb[0].mxu0
        %v1723 = vadd.f32 %v1554, %v1722
        %v1724 = vpop.f32.mrb[0].mxu0
        %v1725 = vpop.f32.mrb[0].mxu0
        %v1726 = vadd.f32 %v1557, %v1725
        %v1727 = vpop.f32.mrb[0].mxu0
        %1728 = vdwg.mxu0
        %1729 = vmatprep.subr.bf16.mxu0 0
        %1730 = vmatpush1.bf16.msra.mxu0 %v1271
        %1731 = vmatprep.subr.bf16.mxu0 0
        %1732 = vmatpush1.bf16.msra.mxu0 %v1272
        %1733 = vmatprep.subr.bf16.mxu0 0
        %1734 = vmatpush1.bf16.msra.mxu0 %v1273
        %1735 = vmatprep.subr.bf16.mxu0 0
        %1736 = vmatpush1.bf16.msra.mxu0 %v1274
        %1737 = vmatprep.subr.bf16.mxu0 0
        %1738 = vmatpush1.bf16.msra.mxu0 %v1275
        %1739 = vmatprep.subr.bf16.mxu0 0
        %1740 = vmatpush1.bf16.msra.mxu0 %v1276
        %1741 = vmatprep.subr.bf16.mxu0 0
        %1742 = vmatpush1.bf16.msra.mxu0 %v1277
        %1743 = vmatprep.subr.bf16.mxu0 0
        %1744 = vmatpush1.bf16.msra.mxu0 %v1278
        %1745 = vmatprep.subr.bf16.mxu0 0
        %1746 = vmatpush1.bf16.msra.mxu0 %v1279
        %1747 = vmatprep.subr.bf16.mxu0 0
        %1748 = vmatpush1.bf16.msra.mxu0 %v1280
        %1749 = vmatprep.subr.bf16.mxu0 0
        %1750 = vmatpush1.bf16.msra.mxu0 %v1281
        %1751 = vmatprep.subr.bf16.mxu0 0
        %1752 = vmatpush1.bf16.msra.mxu0 %v1282
        %1753 = vmatprep.subr.bf16.mxu0 0
        %1754 = vmatpush1.bf16.msra.mxu0 %v1283
        %1755 = vmatprep.subr.bf16.mxu0 0
        %1756 = vmatpush1.bf16.msra.mxu0 %v1284
        %1757 = vmatprep.subr.bf16.mxu0 0
        %1758 = vmatpush1.bf16.msra.mxu0 %v1285
        %1759 = vmatprep.subr.bf16.mxu0 0
        %1760 = vmatpush1.bf16.msra.mxu0 %v1286
        %1761 = vmatprep.mubr.bf16.mxu0 %v823
        %1762 = vmatmul.mubr.bf16.gmra.mrb[0].mxu0 %v822
        %v1763 = vpop.f32.mrb[0].mxu0
        %v1764 = vadd.f32 %v1595, %v1763
        %v1765 = vpop.f32.mrb[0].mxu0
        %v1766 = vpop.f32.mrb[0].mxu0
        %v1767 = vadd.f32 %v1598, %v1766
        %v1768 = vpop.f32.mrb[0].mxu0
        %1769 = vmatprep.mubr.bf16.mxu0 %v830
        %1770 = vmatmul.mubr.bf16.gmra.mrb[0].mxu0 %v829
        %v1771 = vpop.f32.mrb[0].mxu0
        %v1772 = vadd.f32 %v1603, %v1771
        %v1773 = vpop.f32.mrb[0].mxu0
        %v1774 = vpop.f32.mrb[0].mxu0
        %v1775 = vadd.f32 %v1606, %v1774
        %v1776 = vpop.f32.mrb[0].mxu0
        %1777 = vmatprep.mubr.bf16.mxu0 %v837
        %1778 = vmatmul.mubr.bf16.gmra.mrb[0].mxu0 %v836
        %v1779 = vpop.f32.mrb[0].mxu0
        %v1780 = vadd.f32 %v1611, %v1779
        %v1781 = vpop.f32.mrb[0].mxu0
        %v1782 = vpop.f32.mrb[0].mxu0
        %v1783 = vadd.f32 %v1614, %v1782
        %v1784 = vpop.f32.mrb[0].mxu0
        %1785 = vmatprep.mubr.bf16.mxu0 %v844
        %1786 = vmatmul.mubr.bf16.gmra.mrb[0].mxu0 %v843
        %v1787 = vpop.f32.mrb[0].mxu0
        %v1788 = vadd.f32 %v1619, %v1787
        %v1789 = vpop.f32.mrb[0].mxu0
        %v1790 = vpop.f32.mrb[0].mxu0
        %v1791 = vadd.f32 %v1622, %v1790
        %v1792 = vpop.f32.mrb[0].mxu0
        %1793 = vmatprep.mubr.bf16.mxu0 %v851
        %1794 = vmatmul.mubr.bf16.gmra.mrb[0].mxu0 %v850
        %v1795 = vpop.f32.mrb[0].mxu0
        %v1796 = vadd.f32 %v1627, %v1795
        %v1797 = vpop.f32.mrb[0].mxu0
        %v1798 = vpop.f32.mrb[0].mxu0
        %v1799 = vadd.f32 %v1630, %v1798
        %v1800 = vpop.f32.mrb[0].mxu0
        %1801 = vmatprep.mubr.bf16.mxu0 %v858
        %1802 = vmatmul.mubr.bf16.gmra.mrb[0].mxu0 %v857
        %v1803 = vpop.f32.mrb[0].mxu0
        %v1804 = vadd.f32 %v1635, %v1803
        %v1805 = vpop.f32.mrb[0].mxu0
        %v1806 = vpop.f32.mrb[0].mxu0
        %v1807 = vadd.f32 %v1638, %v1806
        %v1808 = vpop.f32.mrb[0].mxu0
        %1809 = vmatprep.mubr.bf16.mxu0 %v865
        %1810 = vmatmul.mubr.bf16.gmra.mrb[0].mxu0 %v864
        %v1811 = vpop.f32.mrb[0].mxu0
        %v1812 = vadd.f32 %v1643, %v1811
        %v1813 = vpop.f32.mrb[0].mxu0
        %v1814 = vpop.f32.mrb[0].mxu0
        %v1815 = vadd.f32 %v1646, %v1814
        %v1816 = vpop.f32.mrb[0].mxu0
        %1817 = vmatprep.mubr.bf16.mxu0 %v872
        %1818 = vmatmul.mubr.bf16.gmra.mrb[0].mxu0 %v871
        %v1819 = vpop.f32.mrb[0].mxu0
        %v1820 = vadd.f32 %v1651, %v1819
        %v1821 = vpop.f32.mrb[0].mxu0
        %v1822 = vpop.f32.mrb[0].mxu0
        %v1823 = vadd.f32 %v1654, %v1822
        %v1824 = vpop.f32.mrb[0].mxu0
        %1825 = vmatprep.mubr.bf16.mxu0 %v879
        %1826 = vmatmul.mubr.bf16.gmra.mrb[0].mxu0 %v878
        %v1827 = vpop.f32.mrb[0].mxu0
        %v1828 = vadd.f32 %v1659, %v1827
        %v1829 = vpop.f32.mrb[0].mxu0
        %v1830 = vpop.f32.mrb[0].mxu0
        %v1831 = vadd.f32 %v1662, %v1830
        %v1832 = vpop.f32.mrb[0].mxu0
        %1833 = vmatprep.mubr.bf16.mxu0 %v886
        %1834 = vmatmul.mubr.bf16.gmra.mrb[0].mxu0 %v885
        %v1835 = vpop.f32.mrb[0].mxu0
        %v1836 = vadd.f32 %v1667, %v1835
        %v1837 = vpop.f32.mrb[0].mxu0
        %v1838 = vpop.f32.mrb[0].mxu0
        %v1839 = vadd.f32 %v1670, %v1838
        %v1840 = vpop.f32.mrb[0].mxu0
        %1841 = vmatprep.mubr.bf16.mxu0 %v893
        %1842 = vmatmul.mubr.bf16.gmra.mrb[0].mxu0 %v892
        %v1843 = vpop.f32.mrb[0].mxu0
        %v1844 = vadd.f32 %v1675, %v1843
        %v1845 = vpop.f32.mrb[0].mxu0
        %v1846 = vpop.f32.mrb[0].mxu0
        %v1847 = vadd.f32 %v1678, %v1846
        %v1848 = vpop.f32.mrb[0].mxu0
        %1849 = vmatprep.mubr.bf16.mxu0 %v900
        %1850 = vmatmul.mubr.bf16.gmra.mrb[0].mxu0 %v899
        %v1851 = vpop.f32.mrb[0].mxu0
        %v1852 = vadd.f32 %v1683, %v1851
        %v1853 = vpop.f32.mrb[0].mxu0
        %v1854 = vpop.f32.mrb[0].mxu0
        %v1855 = vadd.f32 %v1686, %v1854
        %v1856 = vpop.f32.mrb[0].mxu0
        %1857 = vmatprep.mubr.bf16.mxu0 %v907
        %1858 = vmatmul.mubr.bf16.gmra.mrb[0].mxu0 %v906
        %v1859 = vpop.f32.mrb[0].mxu0
        %v1860 = vadd.f32 %v1691, %v1859
        %v1861 = vpop.f32.mrb[0].mxu0
        %v1862 = vpop.f32.mrb[0].mxu0
        %v1863 = vadd.f32 %v1694, %v1862
        %v1864 = vpop.f32.mrb[0].mxu0
        %1865 = vmatprep.mubr.bf16.mxu0 %v914
        %1866 = vmatmul.mubr.bf16.gmra.mrb[0].mxu0 %v913
        %v1867 = vpop.f32.mrb[0].mxu0
        %v1868 = vadd.f32 %v1699, %v1867
        %v1869 = vpop.f32.mrb[0].mxu0
        %v1870 = vpop.f32.mrb[0].mxu0
        %v1871 = vadd.f32 %v1702, %v1870
        %v1872 = vpop.f32.mrb[0].mxu0
        %1873 = vmatprep.mubr.bf16.mxu0 %v921
        %1874 = vmatmul.mubr.bf16.gmra.mrb[0].mxu0 %v920
        %v1875 = vpop.f32.mrb[0].mxu0
        %v1876 = vadd.f32 %v1707, %v1875
        %v1877 = vpop.f32.mrb[0].mxu0
        %v1878 = vpop.f32.mrb[0].mxu0
        %v1879 = vadd.f32 %v1710, %v1878
        %v1880 = vpop.f32.mrb[0].mxu0
        %1881 = vmatprep.mubr.bf16.mxu0 %v928
        %1882 = vmatmul.mubr.bf16.gmra.mrb[0].mxu0 %v927
        %v1883 = vpop.f32.mrb[0].mxu0
        %v1884 = vadd.f32 %v1715, %v1883
        %v1885 = vpop.f32.mrb[0].mxu0
        %v1886 = vpop.f32.mrb[0].mxu0
        %v1887 = vadd.f32 %v1718, %v1886
        %v1888 = vpop.f32.mrb[0].mxu0
        %1889 = vmatprep.mubr.bf16.mxu0 %v935
        %1890 = vmatmul.mubr.bf16.gmra.mrb[0].mxu0 %v934
        %v1891 = vpop.f32.mrb[0].mxu0
        %v1892 = vadd.f32 %v1723, %v1891
        %v1893 = vpop.f32.mrb[0].mxu0
        %v1894 = vpop.f32.mrb[0].mxu0
        %v1895 = vadd.f32 %v1726, %v1894
        %v1896 = vpop.f32.mrb[0].mxu0
        %1897 = vdwg.mxu0
        %1898 = vmatprep.subr.bf16.mxu0 0
        %1899 = vmatpush1.bf16.msra.mxu0 %v1287
        %1900 = vmatprep.subr.bf16.mxu0 0
        %1901 = vmatpush1.bf16.msra.mxu0 %v1288
        %1902 = vmatprep.subr.bf16.mxu0 0
        %1903 = vmatpush1.bf16.msra.mxu0 0
        %1904 = vmatprep.subr.bf16.mxu0 0
        %1905 = vmatpush1.bf16.msra.mxu0 0
        %1906 = vmatprep.subr.bf16.mxu0 0
        %1907 = vmatpush1.bf16.msra.mxu0 0
        %1908 = vmatprep.subr.bf16.mxu0 0
        %1909 = vmatpush1.bf16.msra.mxu0 0
        %1910 = vmatprep.subr.bf16.mxu0 0
        %1911 = vmatpush1.bf16.msra.mxu0 0
        %1912 = vmatprep.subr.bf16.mxu0 0
        %1913 = vmatpush1.bf16.msra.mxu0 0
        %1914 = vmatprep.subr.bf16.mxu0 0
        %1915 = vmatpush1.bf16.msra.mxu0 0
        %1916 = vmatprep.subr.bf16.mxu0 0
        %1917 = vmatpush1.bf16.msra.mxu0 0
        %1918 = vmatprep.subr.bf16.mxu0 0
        %1919 = vmatpush1.bf16.msra.mxu0 0
        %1920 = vmatprep.subr.bf16.mxu0 0
        %1921 = vmatpush1.bf16.msra.mxu0 0
        %1922 = vmatprep.subr.bf16.mxu0 0
        %1923 = vmatpush1.bf16.msra.mxu0 0
        %1924 = vmatprep.subr.bf16.mxu0 0
        %1925 = vmatpush1.bf16.msra.mxu0 0
        %1926 = vmatprep.subr.bf16.mxu0 0
        %1927 = vmatpush1.bf16.msra.mxu0 0
        %1928 = vmatprep.subr.bf16.mxu0 0
        %1929 = vmatpush1.bf16.msra.mxu0 0
        %1930 = vmatprep.mubr.bf16.mxu0 0
        %1931 = vmatmul.mubr.bf16.gmra.mrb[0].mxu0 %v1341
        %v1932 = vpop.f32.mrb[0].mxu0
        %v1933 = vadd.f32 %v1764, %v1932
        %v1934 = vpop.f32.mrb[0].mxu0
        %v1935 = vpop.f32.mrb[0].mxu0
        %v1936 = vadd.f32 %v1767, %v1935
        %v1937 = vpop.f32.mrb[0].mxu0
        %1938 = vmatprep.mubr.bf16.mxu0 0
        %1939 = vmatmul.mubr.bf16.gmra.mrb[0].mxu0 %v1344
        %v1940 = vpop.f32.mrb[0].mxu0
        %v1941 = vadd.f32 %v1772, %v1940
        %v1942 = vpop.f32.mrb[0].mxu0
        %v1943 = vpop.f32.mrb[0].mxu0
        %v1944 = vadd.f32 %v1775, %v1943
        %v1945 = vpop.f32.mrb[0].mxu0
        %1946 = vmatprep.mubr.bf16.mxu0 0
        %1947 = vmatmul.mubr.bf16.gmra.mrb[0].mxu0 %v1347
        %v1948 = vpop.f32.mrb[0].mxu0
        %v1949 = vadd.f32 %v1780, %v1948
        %v1950 = vpop.f32.mrb[0].mxu0
        %v1951 = vpop.f32.mrb[0].mxu0
        %v1952 = vadd.f32 %v1783, %v1951
        %v1953 = vpop.f32.mrb[0].mxu0
        %1954 = vmatprep.mubr.bf16.mxu0 0
        %1955 = vmatmul.mubr.bf16.gmra.mrb[0].mxu0 %v1350
        %v1956 = vpop.f32.mrb[0].mxu0
        %v1957 = vadd.f32 %v1788, %v1956
        %v1958 = vpop.f32.mrb[0].mxu0
        %v1959 = vpop.f32.mrb[0].mxu0
        %v1960 = vadd.f32 %v1791, %v1959
        %v1961 = vpop.f32.mrb[0].mxu0
        %1962 = vmatprep.mubr.bf16.mxu0 0
        %1963 = vmatmul.mubr.bf16.gmra.mrb[0].mxu0 %v1353
        %v1964 = vpop.f32.mrb[0].mxu0
        %v1965 = vadd.f32 %v1796, %v1964
        %v1966 = vpop.f32.mrb[0].mxu0
        %v1967 = vpop.f32.mrb[0].mxu0
        %v1968 = vadd.f32 %v1799, %v1967
        %v1969 = vpop.f32.mrb[0].mxu0
        %1970 = vmatprep.mubr.bf16.mxu0 0
        %1971 = vmatmul.mubr.bf16.gmra.mrb[0].mxu0 %v1356
        %v1972 = vpop.f32.mrb[0].mxu0
        %v1973 = vadd.f32 %v1804, %v1972
        %v1974 = vpop.f32.mrb[0].mxu0
        %v1975 = vpop.f32.mrb[0].mxu0
        %v1976 = vadd.f32 %v1807, %v1975
        %v1977 = vpop.f32.mrb[0].mxu0
        %1978 = vmatprep.mubr.bf16.mxu0 0
        %1979 = vmatmul.mubr.bf16.gmra.mrb[0].mxu0 %v1359
        %v1980 = vpop.f32.mrb[0].mxu0
        %v1981 = vadd.f32 %v1812, %v1980
        %v1982 = vpop.f32.mrb[0].mxu0
        %v1983 = vpop.f32.mrb[0].mxu0
        %v1984 = vadd.f32 %v1815, %v1983
        %v1985 = vpop.f32.mrb[0].mxu0
        %1986 = vmatprep.mubr.bf16.mxu0 0
        %1987 = vmatmul.mubr.bf16.gmra.mrb[0].mxu0 %v1362
        %v1988 = vpop.f32.mrb[0].mxu0
        %v1989 = vadd.f32 %v1820, %v1988
        %v1990 = vpop.f32.mrb[0].mxu0
        %v1991 = vpop.f32.mrb[0].mxu0
        %v1992 = vadd.f32 %v1823, %v1991
        %v1993 = vpop.f32.mrb[0].mxu0
        %1994 = vmatprep.mubr.bf16.mxu0 0
        %1995 = vmatmul.mubr.bf16.gmra.mrb[0].mxu0 %v1365
        %v1996 = vpop.f32.mrb[0].mxu0
        %v1997 = vadd.f32 %v1828, %v1996
        %v1998 = vpop.f32.mrb[0].mxu0
        %v1999 = vpop.f32.mrb[0].mxu0
        %v2000 = vadd.f32 %v1831, %v1999
        %v2001 = vpop.f32.mrb[0].mxu0
        %2002 = vmatprep.mubr.bf16.mxu0 0
        %2003 = vmatmul.mubr.bf16.gmra.mrb[0].mxu0 %v1368
        %v2004 = vpop.f32.mrb[0].mxu0
        %v2005 = vadd.f32 %v1836, %v2004
        %v2006 = vpop.f32.mrb[0].mxu0
        %v2007 = vpop.f32.mrb[0].mxu0
        %v2008 = vadd.f32 %v1839, %v2007
        %v2009 = vpop.f32.mrb[0].mxu0
        %2010 = vmatprep.mubr.bf16.mxu0 0
        %2011 = vmatmul.mubr.bf16.gmra.mrb[0].mxu0 %v1371
        %v2012 = vpop.f32.mrb[0].mxu0
        %v2013 = vadd.f32 %v1844, %v2012
        %v2014 = vpop.f32.mrb[0].mxu0
        %v2015 = vpop.f32.mrb[0].mxu0
        %v2016 = vadd.f32 %v1847, %v2015
        %v2017 = vpop.f32.mrb[0].mxu0
        %2018 = vmatprep.mubr.bf16.mxu0 0
        %2019 = vmatmul.mubr.bf16.gmra.mrb[0].mxu0 %v1374
        %v2020 = vpop.f32.mrb[0].mxu0
        %v2021 = vadd.f32 %v1852, %v2020
        %v2022 = vpop.f32.mrb[0].mxu0
        %v2023 = vpop.f32.mrb[0].mxu0
        %v2024 = vadd.f32 %v1855, %v2023
        %v2025 = vpop.f32.mrb[0].mxu0
        %2026 = vmatprep.mubr.bf16.mxu0 0
        %2027 = vmatmul.mubr.bf16.gmra.mrb[0].mxu0 %v1377
        %v2028 = vpop.f32.mrb[0].mxu0
        %v2029 = vadd.f32 %v1860, %v2028
        %v2030 = vpop.f32.mrb[0].mxu0
        %v2031 = vpop.f32.mrb[0].mxu0
        %v2032 = vadd.f32 %v1863, %v2031
        %v2033 = vpop.f32.mrb[0].mxu0
        %2034 = vmatprep.mubr.bf16.mxu0 0
        %2035 = vmatmul.mubr.bf16.gmra.mrb[0].mxu0 %v1380
        %v2036 = vpop.f32.mrb[0].mxu0
        %v2037 = vadd.f32 %v1868, %v2036
        %v2038 = vpop.f32.mrb[0].mxu0
        %v2039 = vpop.f32.mrb[0].mxu0
        %v2040 = vadd.f32 %v1871, %v2039
        %v2041 = vpop.f32.mrb[0].mxu0
        %2042 = vmatprep.mubr.bf16.mxu0 0
        %2043 = vmatmul.mubr.bf16.gmra.mrb[0].mxu0 %v1383
        %v2044 = vpop.f32.mrb[0].mxu0
        %v2045 = vadd.f32 %v1876, %v2044
        %v2046 = vpop.f32.mrb[0].mxu0
        %v2047 = vpop.f32.mrb[0].mxu0
        %v2048 = vadd.f32 %v1879, %v2047
        %v2049 = vpop.f32.mrb[0].mxu0
        %2050 = vmatprep.mubr.bf16.mxu0 0
        %2051 = vmatmul.mubr.bf16.gmra.mrb[0].mxu0 %v1386
        %v2052 = vpop.f32.mrb[0].mxu0
        %v2053 = vadd.f32 %v1884, %v2052
        %v2054 = vpop.f32.mrb[0].mxu0
        %v2055 = vpop.f32.mrb[0].mxu0
        %v2056 = vadd.f32 %v1887, %v2055
        %v2057 = vpop.f32.mrb[0].mxu0
        %2058 = vmatprep.mubr.bf16.mxu0 0
        %2059 = vmatmul.mubr.bf16.gmra.mrb[0].mxu0 %v1389
        %v2060 = vpop.f32.mrb[0].mxu0
        %v2061 = vadd.f32 %v1892, %v2060
        %v2062 = vpop.f32.mrb[0].mxu0
        %v2063 = vpop.f32.mrb[0].mxu0
        %v2064 = vadd.f32 %v1895, %v2063
        %v2065 = vpop.f32.mrb[0].mxu0
        %2066 = vdwg.mxu0
        %v2067 = vmax.f32 %v1933, 0.0
        %v2068 = vmax.f32 %v1936, 0.0
        %v2069 = vmax.f32 %v1941, 0.0
        %v2070 = vmax.f32 %v1944, 0.0
        %v2071 = vmax.f32 %v1949, 0.0
        %v2072 = vmax.f32 %v1952, 0.0
        %v2073 = vmax.f32 %v1957, 0.0
        %v2074 = vmax.f32 %v1960, 0.0
        %v2075 = vmax.f32 %v1965, 0.0
        %v2076 = vmax.f32 %v1968, 0.0
        %v2077 = vmax.f32 %v1973, 0.0
        %v2078 = vmax.f32 %v1976, 0.0
        %v2079 = vmax.f32 %v1981, 0.0
        %v2080 = vmax.f32 %v1984, 0.0
        %v2081 = vmax.f32 %v1989, 0.0
        %v2082 = vmax.f32 %v1992, 0.0
        %v2083 = vmax.f32 %v1997, 0.0
        %v2084 = vmax.f32 %v2000, 0.0
        %v2085 = vmax.f32 %v2005, 0.0
        %v2086 = vmax.f32 %v2008, 0.0
        %v2087 = vmax.f32 %v2013, 0.0
        %v2088 = vmax.f32 %v2016, 0.0
        %v2089 = vmax.f32 %v2021, 0.0
        %v2090 = vmax.f32 %v2024, 0.0
        %v2091 = vmax.f32 %v2029, 0.0
        %v2092 = vmax.f32 %v2032, 0.0
        %v2093 = vmax.f32 %v2037, 0.0
        %v2094 = vmax.f32 %v2040, 0.0
        %v2095 = vmax.f32 %v2045, 0.0
        %v2096 = vmax.f32 %v2048, 0.0
        %v2097 = vmax.f32 %v2053, 0.0
        %v2098 = vmax.f32 %v2056, 0.0
        %v2099 = vmax.f32 %v2061, 0.0
        %v2100 = vmax.f32 %v2064, 0.0
        %v2101 = vpack.c.bf16 %v2068, %v2067
        %v2102 = vpack.c.bf16 %v2070, %v2069
        %v2103 = vpack.c.bf16 %v2072, %v2071
        %v2104 = vpack.c.bf16 %v2074, %v2073
        %v2105 = vpack.c.bf16 %v2076, %v2075
        %v2106 = vpack.c.bf16 %v2078, %v2077
        %v2107 = vpack.c.bf16 %v2080, %v2079
        %v2108 = vpack.c.bf16 %v2082, %v2081
        %v2109 = vpack.c.bf16 %v2084, %v2083
        %v2110 = vpack.c.bf16 %v2086, %v2085
        %v2111 = vpack.c.bf16 %v2088, %v2087
        %v2112 = vpack.c.bf16 %v2090, %v2089
        %v2113 = vpack.c.bf16 %v2092, %v2091
        %v2114 = vpack.c.bf16 %v2094, %v2093
        %v2115 = vpack.c.bf16 %v2096, %v2095
        %v2116 = vpack.c.bf16 %v2098, %v2097
        %v2117 = vpack.c.bf16 %v2100, %v2099
        %v2135 = vunpack.c.l.b16 %v2101
        %v2136 = vunpack.c.h.b16 %v2101
        %v2137 = vunpack.c.l.b16 %v2102
        %v2138 = vunpack.c.h.b16 %v2102
        %v2139 = vunpack.c.l.b16 %v2103
        %v2140 = vunpack.c.h.b16 %v2103
        %v2141 = vunpack.c.l.b16 %v2104
        %v2142 = vunpack.c.h.b16 %v2104
        %v2143 = vunpack.c.l.b16 %v2105
        %v2144 = vunpack.c.h.b16 %v2105
        %v2145 = vunpack.c.l.b16 %v2106
        %v2146 = vunpack.c.h.b16 %v2106
        %v2147 = vunpack.c.l.b16 %v2107
        %v2148 = vunpack.c.h.b16 %v2107
        %v2149 = vunpack.c.l.b16 %v2108
        %v2150 = vunpack.c.h.b16 %v2108
        %v2151 = vunpack.c.l.b16 %v2109
        %v2152 = vunpack.c.h.b16 %v2109
        %v2153 = vunpack.c.l.b16 %v2110
        %v2154 = vunpack.c.h.b16 %v2110
        %v2155 = vunpack.c.l.b16 %v2111
        %v2156 = vunpack.c.h.b16 %v2111
        %v2157 = vunpack.c.l.b16 %v2112
        %v2158 = vunpack.c.h.b16 %v2112
        %v2159 = vunpack.c.l.b16 %v2113
        %v2160 = vunpack.c.h.b16 %v2113
        %v2161 = vunpack.c.l.b16 %v2114
        %v2162 = vunpack.c.h.b16 %v2114
        %v2163 = vunpack.c.l.b16 %v2115
        %v2164 = vunpack.c.h.b16 %v2115
        %v2165 = vunpack.c.l.b16 %v2116
        %v2166 = vunpack.c.h.b16 %v2116
        %v2167 = vunpack.c.l.b16 %v2117
        %v2168 = vunpack.c.h.b16 %v2117
        %v2169 = vpack.c.b16 %v2135, %v2135
        %v2170 = vpack.c.b16 %v2136, %v2136
        %v2171 = vpack.c.b16 %v2137, %v2137
        %v2172 = vpack.c.b16 %v2138, %v2138
        %v2173 = vpack.c.b16 %v2139, %v2139
        %v2174 = vpack.c.b16 %v2140, %v2140
        %v2175 = vpack.c.b16 %v2141, %v2141
        %v2176 = vpack.c.b16 %v2142, %v2142
        %v2177 = vpack.c.b16 %v2143, %v2143
        %v2178 = vpack.c.b16 %v2144, %v2144
        %v2179 = vpack.c.b16 %v2145, %v2145
        %v2180 = vpack.c.b16 %v2146, %v2146
        %v2181 = vpack.c.b16 %v2147, %v2147
        %v2182 = vpack.c.b16 %v2148, %v2148
        %v2183 = vpack.c.b16 %v2149, %v2149
        %v2184 = vpack.c.b16 %v2150, %v2150
        %v2185 = vpack.c.b16 %v2151, %v2151
        %v2186 = vpack.c.b16 %v2152, %v2152
        %v2187 = vpack.c.b16 %v2153, %v2153
        %v2188 = vpack.c.b16 %v2154, %v2154
        %v2189 = vpack.c.b16 %v2155, %v2155
        %v2190 = vpack.c.b16 %v2156, %v2156
        %v2191 = vpack.c.b16 %v2157, %v2157
        %v2192 = vpack.c.b16 %v2158, %v2158
        %v2193 = vpack.c.b16 %v2159, %v2159
        %v2194 = vpack.c.b16 %v2160, %v2160
        %v2195 = vpack.c.b16 %v2161, %v2161
        %v2196 = vpack.c.b16 %v2162, %v2162
        %v2197 = vpack.c.b16 %v2163, %v2163
        %v2198 = vpack.c.b16 %v2164, %v2164
        %v2199 = vpack.c.b16 %v2165, %v2165
        %v2200 = vpack.c.b16 %v2166, %v2166
        %v2201 = vpack.c.b16 %v2167, %v2167
        %v2202 = vpack.c.b16 %v2168, %v2168
        %vm2237 = vcmask 519168
        %2238 = vst.msk [vmem:[%s177] sm:$0xf] %vm2237, %v2169
        %2239 = vst.msk [vmem:[%s177 + $0x4] sm:$0xf] %vm2237, %v2170
        %2240 = vst.msk [vmem:[%s177 + $0x8] sm:$0xf] %vm2237, %v2171
        %2241 = vst.msk [vmem:[%s177 + $0xc] sm:$0xf] %vm2237, %v2172
        %2242 = vst.msk [vmem:[%s177 + $0x10] sm:$0xf] %vm2237, %v2173
        %2243 = vst.msk [vmem:[%s177 + $0x14] sm:$0xf] %vm2237, %v2174
        %2244 = vst.msk [vmem:[%s177 + $0x18] sm:$0xf] %vm2237, %v2175
        %2245 = vst.msk [vmem:[%s177 + $0x1c] sm:$0xf] %vm2237, %v2176
        %2246 = vst.msk [vmem:[%s177 + $0x20] sm:$0xf] %vm2237, %v2177
        %2247 = vst.msk [vmem:[%s177 + $0x24] sm:$0xf] %vm2237, %v2178
        %2248 = vst.msk [vmem:[%s177 + $0x28] sm:$0xf] %vm2237, %v2179
        %2249 = vst.msk [vmem:[%s177 + $0x2c] sm:$0xf] %vm2237, %v2180
        %2250 = vst.msk [vmem:[%s177 + $0x30] sm:$0xf] %vm2237, %v2181
        %2251 = vst.msk [vmem:[%s177 + $0x34] sm:$0xf] %vm2237, %v2182
        %2252 = vst.msk [vmem:[%s177 + $0x38] sm:$0xf] %vm2237, %v2183
        %2253 = vst.msk [vmem:[%s177 + $0x3c] sm:$0xf] %vm2237, %v2184
        %2254 = vst.msk [vmem:[%s177 + $0x40] sm:$0xf] %vm2237, %v2185
        %2255 = vst.msk [vmem:[%s177 + $0x44] sm:$0xf] %vm2237, %v2186
        %2256 = vst.msk [vmem:[%s177 + $0x48] sm:$0xf] %vm2237, %v2187
        %2257 = vst.msk [vmem:[%s177 + $0x4c] sm:$0xf] %vm2237, %v2188
        %2258 = vst.msk [vmem:[%s177 + $0x50] sm:$0xf] %vm2237, %v2189
        %2259 = vst.msk [vmem:[%s177 + $0x54] sm:$0xf] %vm2237, %v2190
        %2260 = vst.msk [vmem:[%s177 + $0x58] sm:$0xf] %vm2237, %v2191
        %2261 = vst.msk [vmem:[%s177 + $0x5c] sm:$0xf] %vm2237, %v2192
        %2262 = vst.msk [vmem:[%s177 + $0x60] sm:$0xf] %vm2237, %v2193
        %2263 = vst.msk [vmem:[%s177 + $0x64] sm:$0xf] %vm2237, %v2194
        %2264 = vst.msk [vmem:[%s177 + $0x68] sm:$0xf] %vm2237, %v2195
        %2265 = vst.msk [vmem:[%s177 + $0x6c] sm:$0xf] %vm2237, %v2196
        %2266 = vst.msk [vmem:[%s177 + $0x70] sm:$0xf] %vm2237, %v2197
        %2267 = vst.msk [vmem:[%s177 + $0x74] sm:$0xf] %vm2237, %v2198
        %2268 = vst.msk [vmem:[%s177 + $0x78] sm:$0xf] %vm2237, %v2199
        %2269 = vst.msk [vmem:[%s177 + $0x7c] sm:$0xf] %vm2237, %v2200
        %2270 = vst.msk [vmem:[%s177 + $0x80] sm:$0xf] %vm2237, %v2201
        %2271 = vst.msk [vmem:[%s177 + $0x84] sm:$0xf] %vm2237, %v2202
        %s2272 = sand.u32 %s90, 1
        %s2273 = sand.u32 %s90, 1
        %s2274 = smul.addr %s2273, 136
        %s2275 = scalar_lea.vmem [#allocation2], %s2274
        // Predicated region
        $region33: #{dqn_forward.4} parent=31 // pred_check
          %p2276 = pneg %p100
        $region34: #{dqn_forward.4} parent=31 // pred_check_branch
          %2278 = sbr.rel (%p2276) target = $region36
        $region35: #{dqn_forward.4} parent=31 // pred_region
          %s2279 = smul.u32 34, %s14
          %s2280 = ssub.s32 133, %s2279
          %p2281 = scmp.lt.s32.totalorder %s2280, 34
          %s2282 = scalar_select %p2281, %s2280, 34
          %s2283 = smul.u32 64, %s2282
          %p2284 = scmp.ne.s32.totalorder 0, %s2283
          %s2285 = smul.addr %s2279, 4
          %s2286 = scalar_lea.vmem %s3, %s2285
          // Predicated region
          $region37: #{dqn_forward.4} parent=35 // pred_check
            %p2287 = pneg %p2284
          $region38: #{dqn_forward.4} parent=35 // pred_check_branch
            %2289 = sbr.rel (%p2287) target = $region40
          $region39: #{dqn_forward.4} parent=35 // pred_region
            // Predicated region
            $region41: #{dqn_forward.4} parent=39 // pred_check
              _
            $region42: #{dqn_forward.4} parent=39 // pred_check_branch
              %2291 = sbr.rel target = $region44
            $region43: #{dqn_forward.4} parent=39 // pred_region
              // Predicated region
              $region63: #{dqn_forward.4} parent=43 // pred_check
                _
              $region64: #{dqn_forward.4} parent=43 // pred_check_branch
                %2407 = sbr.rel (0) target = $region66
              $region65: #{dqn_forward.4} parent=43 // pred_region
                %s2409 = sdiv.u32.pop %s2282, 34
                %s2410 = srem.u32.pop %s2282, 34
                // While loop
                $region67: #{dqn_forward.4} parent=65 // loop_pre_header
                  _
                $region68: #{dqn_forward.4} parent=65 // loop_header
                  %s2412 = sphi 0, %s2414
                  %p2413 = scmp.ge.s32.totalorder %s2412, %s2409
                  %s2417 = sphi 0, %s2490
                  %s2418 = sphi %s2275, %s2493
                  %s2419 = sphi %s2286, %s2494
                $region69: #{dqn_forward.4} parent=65 // loop_header_branch
                  %2416 = sbr.rel (%p2413) target = $region73
                $region70: #{dqn_forward.4} parent=65 // loop_body
                  %v2420 = vld [vmem:[%s2418] sm:$0xf]
                  %2421 = vst [vmem:[%s2419] sm:$0xf] %v2420
                  %v2422 = vld [vmem:[%s2418 + $0x4] sm:$0xf]
                  %2423 = vst [vmem:[%s2419 + $0x4] sm:$0xf] %v2422
                  %v2424 = vld [vmem:[%s2418 + $0x8] sm:$0xf]
                  %2425 = vst [vmem:[%s2419 + $0x8] sm:$0xf] %v2424
                  %v2426 = vld [vmem:[%s2418 + $0xc] sm:$0xf]
                  %2427 = vst [vmem:[%s2419 + $0xc] sm:$0xf] %v2426
                  %v2428 = vld [vmem:[%s2418 + $0x10] sm:$0xf]
                  %2429 = vst [vmem:[%s2419 + $0x10] sm:$0xf] %v2428
                  %v2430 = vld [vmem:[%s2418 + $0x14] sm:$0xf]
                  %2431 = vst [vmem:[%s2419 + $0x14] sm:$0xf] %v2430
                  %v2432 = vld [vmem:[%s2418 + $0x18] sm:$0xf]
                  %2433 = vst [vmem:[%s2419 + $0x18] sm:$0xf] %v2432
                  %v2434 = vld [vmem:[%s2418 + $0x1c] sm:$0xf]
                  %2435 = vst [vmem:[%s2419 + $0x1c] sm:$0xf] %v2434
                  %v2436 = vld [vmem:[%s2418 + $0x20] sm:$0xf]
                  %2437 = vst [vmem:[%s2419 + $0x20] sm:$0xf] %v2436
                  %v2438 = vld [vmem:[%s2418 + $0x24] sm:$0xf]
                  %2439 = vst [vmem:[%s2419 + $0x24] sm:$0xf] %v2438
                  %v2440 = vld [vmem:[%s2418 + $0x28] sm:$0xf]
                  %2441 = vst [vmem:[%s2419 + $0x28] sm:$0xf] %v2440
                  %v2442 = vld [vmem:[%s2418 + $0x2c] sm:$0xf]
                  %2443 = vst [vmem:[%s2419 + $0x2c] sm:$0xf] %v2442
                  %v2444 = vld [vmem:[%s2418 + $0x30] sm:$0xf]
                  %2445 = vst [vmem:[%s2419 + $0x30] sm:$0xf] %v2444
                  %v2446 = vld [vmem:[%s2418 + $0x34] sm:$0xf]
                  %2447 = vst [vmem:[%s2419 + $0x34] sm:$0xf] %v2446
                  %v2448 = vld [vmem:[%s2418 + $0x38] sm:$0xf]
                  %2449 = vst [vmem:[%s2419 + $0x38] sm:$0xf] %v2448
                  %v2450 = vld [vmem:[%s2418 + $0x3c] sm:$0xf]
                  %2451 = vst [vmem:[%s2419 + $0x3c] sm:$0xf] %v2450
                  %v2452 = vld [vmem:[%s2418 + $0x40] sm:$0xf]
                  %2453 = vst [vmem:[%s2419 + $0x40] sm:$0xf] %v2452
                  %v2454 = vld [vmem:[%s2418 + $0x44] sm:$0xf]
                  %2455 = vst [vmem:[%s2419 + $0x44] sm:$0xf] %v2454
                  %v2456 = vld [vmem:[%s2418 + $0x48] sm:$0xf]
                  %2457 = vst [vmem:[%s2419 + $0x48] sm:$0xf] %v2456
                  %v2458 = vld [vmem:[%s2418 + $0x4c] sm:$0xf]
                  %2459 = vst [vmem:[%s2419 + $0x4c] sm:$0xf] %v2458
                  %v2460 = vld [vmem:[%s2418 + $0x50] sm:$0xf]
                  %2461 = vst [vmem:[%s2419 + $0x50] sm:$0xf] %v2460
                  %v2462 = vld [vmem:[%s2418 + $0x54] sm:$0xf]
                  %2463 = vst [vmem:[%s2419 + $0x54] sm:$0xf] %v2462
                  %v2464 = vld [vmem:[%s2418 + $0x58] sm:$0xf]
                  %2465 = vst [vmem:[%s2419 + $0x58] sm:$0xf] %v2464
                  %v2466 = vld [vmem:[%s2418 + $0x5c] sm:$0xf]
                  %2467 = vst [vmem:[%s2419 + $0x5c] sm:$0xf] %v2466
                  %v2468 = vld [vmem:[%s2418 + $0x60] sm:$0xf]
                  %2469 = vst [vmem:[%s2419 + $0x60] sm:$0xf] %v2468
                  %v2470 = vld [vmem:[%s2418 + $0x64] sm:$0xf]
                  %2471 = vst [vmem:[%s2419 + $0x64] sm:$0xf] %v2470
                  %v2472 = vld [vmem:[%s2418 + $0x68] sm:$0xf]
                  %2473 = vst [vmem:[%s2419 + $0x68] sm:$0xf] %v2472
                  %v2474 = vld [vmem:[%s2418 + $0x6c] sm:$0xf]
                  %2475 = vst [vmem:[%s2419 + $0x6c] sm:$0xf] %v2474
                  %v2476 = vld [vmem:[%s2418 + $0x70] sm:$0xf]
                  %2477 = vst [vmem:[%s2419 + $0x70] sm:$0xf] %v2476
                  %v2478 = vld [vmem:[%s2418 + $0x74] sm:$0xf]
                  %2479 = vst [vmem:[%s2419 + $0x74] sm:$0xf] %v2478
                  %v2480 = vld [vmem:[%s2418 + $0x78] sm:$0xf]
                  %2481 = vst [vmem:[%s2419 + $0x78] sm:$0xf] %v2480
                  %v2482 = vld [vmem:[%s2418 + $0x7c] sm:$0xf]
                  %2483 = vst [vmem:[%s2419 + $0x7c] sm:$0xf] %v2482
                  %v2484 = vld [vmem:[%s2418 + $0x80] sm:$0xf]
                  %2485 = vst [vmem:[%s2419 + $0x80] sm:$0xf] %v2484
                  %v2486 = vld [vmem:[%s2418 + $0x84] sm:$0xf]
                  %2487 = vst [vmem:[%s2419 + $0x84] sm:$0xf] %v2486
                  %s2488 = sadd.s32 1, %s2417
                  %p2489 = scmp.ge.s32.totalorder %s2488, %s2409
                  %s2490 = scalar_select %p2489, 0, %s2488
                  %s2491 = smul.u32 %s2490, 136
                  %s2492 = smul.u32 %s2490, 136
                  %s2493 = scalar_lea.vmem %s2275, %s2491 [#allocation2]
                  %s2494 = scalar_lea.vmem %s2286, %s2492
                $region71: #{dqn_forward.4} parent=65 // loop_footer
                  %s2414 = sadd.s32 %s2412, 1
                $region72: #{dqn_forward.4} parent=65 // loop_footer_branch
                  %2411 = sbr.rel target = $region68
                $region73: #{dqn_forward.4} parent=65 // loop_exit
                  _
                %s2495 = sdiv.u32.pop %s2282, 34
                %s2496 = srem.u32.pop %s2282, 34
                %s2497 = smul.u32 %s2495, 34
                %s2498 = smul.u32 4, %s2497
                %s2499 = scalar_lea.vmem %s2275, %s2498 [#allocation2]
                %s2500 = smul.u32 4, %s2497
                %s2501 = scalar_lea.vmem %s2286, %s2500
                // While loop
                $region74: #{dqn_forward.4} parent=65 // loop_pre_header
                  _
                $region75: #{dqn_forward.4} parent=65 // loop_header
                  %s2503 = sphi 0, %s2505
                  %p2504 = scmp.ge.s32.totalorder %s2503, %s2496
                  %s2508 = sphi 0, %s2515
                  %s2509 = sphi %s2499, %s2518
                  %s2510 = sphi %s2501, %s2519
                $region76: #{dqn_forward.4} parent=65 // loop_header_branch
                  %2507 = sbr.rel (%p2504) target = $region80
                $region77: #{dqn_forward.4} parent=65 // loop_body
                  %v2511 = vld [vmem:[%s2509] sm:$0xf]
                  %2512 = vst [vmem:[%s2510] sm:$0xf] %v2511
                  %s2513 = sadd.s32 1, %s2508
                  %p2514 = scmp.ge.s32.totalorder %s2513, %s2496
                  %s2515 = scalar_select %p2514, 0, %s2513
                  %s2516 = smul.u32 %s2515, 4
                  %s2517 = smul.u32 %s2515, 4
                  %s2518 = scalar_lea.vmem %s2499, %s2516 [#allocation2]
                  %s2519 = scalar_lea.vmem %s2501, %s2517
                $region78: #{dqn_forward.4} parent=65 // loop_footer
                  %s2505 = sadd.s32 %s2503, 1
                $region79: #{dqn_forward.4} parent=65 // loop_footer_branch
                  %2502 = sbr.rel target = $region75
                $region80: #{dqn_forward.4} parent=65 // loop_exit
                  _
              $region66: #{dqn_forward.4} parent=43 // pred_fallthru
                _
            $region44: #{dqn_forward.4} parent=39 // pred_fallthru
              _
            // Predicated region
            $region45: #{dqn_forward.4} parent=39 // pred_check
              _
            $region46: #{dqn_forward.4} parent=39 // pred_check_branch
              %2293 = sbr.rel (0) target = $region48
            $region47: #{dqn_forward.4} parent=39 // pred_region
              %s2295 = sdiv.u32.pop %s2282, 34
              %s2296 = srem.u32.pop %s2282, 34
              // While loop
              $region49: #{dqn_forward.4} parent=47 // loop_pre_header
                _
              $region50: #{dqn_forward.4} parent=47 // loop_header
                %s2298 = sphi 0, %s2300
                %p2299 = scmp.ge.s32.totalorder %s2298, %s2295
                %s2303 = sphi 0, %s2376
                %s2304 = sphi %s2275, %s2379
                %s2305 = sphi %s2286, %s2380
              $region51: #{dqn_forward.4} parent=47 // loop_header_branch
                %2302 = sbr.rel (%p2299) target = $region55
              $region52: #{dqn_forward.4} parent=47 // loop_body
                %v2306 = vld [vmem:[%s2304] sm:$0xf]
                %2307 = vst [vmem:[%s2305] sm:$0xf] %v2306
                %v2308 = vld [vmem:[%s2304 + $0x4] sm:$0xf]
                %2309 = vst [vmem:[%s2305 + $0x4] sm:$0xf] %v2308
                %v2310 = vld [vmem:[%s2304 + $0x8] sm:$0xf]
                %2311 = vst [vmem:[%s2305 + $0x8] sm:$0xf] %v2310
                %v2312 = vld [vmem:[%s2304 + $0xc] sm:$0xf]
                %2313 = vst [vmem:[%s2305 + $0xc] sm:$0xf] %v2312
                %v2314 = vld [vmem:[%s2304 + $0x10] sm:$0xf]
                %2315 = vst [vmem:[%s2305 + $0x10] sm:$0xf] %v2314
                %v2316 = vld [vmem:[%s2304 + $0x14] sm:$0xf]
                %2317 = vst [vmem:[%s2305 + $0x14] sm:$0xf] %v2316
                %v2318 = vld [vmem:[%s2304 + $0x18] sm:$0xf]
                %2319 = vst [vmem:[%s2305 + $0x18] sm:$0xf] %v2318
                %v2320 = vld [vmem:[%s2304 + $0x1c] sm:$0xf]
                %2321 = vst [vmem:[%s2305 + $0x1c] sm:$0xf] %v2320
                %v2322 = vld [vmem:[%s2304 + $0x20] sm:$0xf]
                %2323 = vst [vmem:[%s2305 + $0x20] sm:$0xf] %v2322
                %v2324 = vld [vmem:[%s2304 + $0x24] sm:$0xf]
                %2325 = vst [vmem:[%s2305 + $0x24] sm:$0xf] %v2324
                %v2326 = vld [vmem:[%s2304 + $0x28] sm:$0xf]
                %2327 = vst [vmem:[%s2305 + $0x28] sm:$0xf] %v2326
                %v2328 = vld [vmem:[%s2304 + $0x2c] sm:$0xf]
                %2329 = vst [vmem:[%s2305 + $0x2c] sm:$0xf] %v2328
                %v2330 = vld [vmem:[%s2304 + $0x30] sm:$0xf]
                %2331 = vst [vmem:[%s2305 + $0x30] sm:$0xf] %v2330
                %v2332 = vld [vmem:[%s2304 + $0x34] sm:$0xf]
                %2333 = vst [vmem:[%s2305 + $0x34] sm:$0xf] %v2332
                %v2334 = vld [vmem:[%s2304 + $0x38] sm:$0xf]
                %2335 = vst [vmem:[%s2305 + $0x38] sm:$0xf] %v2334
                %v2336 = vld [vmem:[%s2304 + $0x3c] sm:$0xf]
                %2337 = vst [vmem:[%s2305 + $0x3c] sm:$0xf] %v2336
                %v2338 = vld [vmem:[%s2304 + $0x40] sm:$0xf]
                %2339 = vst [vmem:[%s2305 + $0x40] sm:$0xf] %v2338
                %v2340 = vld [vmem:[%s2304 + $0x44] sm:$0xf]
                %2341 = vst [vmem:[%s2305 + $0x44] sm:$0xf] %v2340
                %v2342 = vld [vmem:[%s2304 + $0x48] sm:$0xf]
                %2343 = vst [vmem:[%s2305 + $0x48] sm:$0xf] %v2342
                %v2344 = vld [vmem:[%s2304 + $0x4c] sm:$0xf]
                %2345 = vst [vmem:[%s2305 + $0x4c] sm:$0xf] %v2344
                %v2346 = vld [vmem:[%s2304 + $0x50] sm:$0xf]
                %2347 = vst [vmem:[%s2305 + $0x50] sm:$0xf] %v2346
                %v2348 = vld [vmem:[%s2304 + $0x54] sm:$0xf]
                %2349 = vst [vmem:[%s2305 + $0x54] sm:$0xf] %v2348
                %v2350 = vld [vmem:[%s2304 + $0x58] sm:$0xf]
                %2351 = vst [vmem:[%s2305 + $0x58] sm:$0xf] %v2350
                %v2352 = vld [vmem:[%s2304 + $0x5c] sm:$0xf]
                %2353 = vst [vmem:[%s2305 + $0x5c] sm:$0xf] %v2352
                %v2354 = vld [vmem:[%s2304 + $0x60] sm:$0xf]
                %2355 = vst [vmem:[%s2305 + $0x60] sm:$0xf] %v2354
                %v2356 = vld [vmem:[%s2304 + $0x64] sm:$0xf]
                %2357 = vst [vmem:[%s2305 + $0x64] sm:$0xf] %v2356
                %v2358 = vld [vmem:[%s2304 + $0x68] sm:$0xf]
                %2359 = vst [vmem:[%s2305 + $0x68] sm:$0xf] %v2358
                %v2360 = vld [vmem:[%s2304 + $0x6c] sm:$0xf]
                %2361 = vst [vmem:[%s2305 + $0x6c] sm:$0xf] %v2360
                %v2362 = vld [vmem:[%s2304 + $0x70] sm:$0xf]
                %2363 = vst [vmem:[%s2305 + $0x70] sm:$0xf] %v2362
                %v2364 = vld [vmem:[%s2304 + $0x74] sm:$0xf]
                %2365 = vst [vmem:[%s2305 + $0x74] sm:$0xf] %v2364
                %v2366 = vld [vmem:[%s2304 + $0x78] sm:$0xf]
                %2367 = vst [vmem:[%s2305 + $0x78] sm:$0xf] %v2366
                %v2368 = vld [vmem:[%s2304 + $0x7c] sm:$0xf]
                %2369 = vst [vmem:[%s2305 + $0x7c] sm:$0xf] %v2368
                %v2370 = vld [vmem:[%s2304 + $0x80] sm:$0xf]
                %2371 = vst [vmem:[%s2305 + $0x80] sm:$0xf] %v2370
                %v2372 = vld [vmem:[%s2304 + $0x84] sm:$0xf]
                %2373 = vst [vmem:[%s2305 + $0x84] sm:$0xf] %v2372
                %s2374 = sadd.s32 1, %s2303
                %p2375 = scmp.ge.s32.totalorder %s2374, %s2295
                %s2376 = scalar_select %p2375, 0, %s2374
                %s2377 = smul.u32 %s2376, 136
                %s2378 = smul.u32 %s2376, 136
                %s2379 = scalar_lea.vmem %s2275, %s2377 [#allocation2]
                %s2380 = scalar_lea.vmem %s2286, %s2378
              $region53: #{dqn_forward.4} parent=47 // loop_footer
                %s2300 = sadd.s32 %s2298, 1
              $region54: #{dqn_forward.4} parent=47 // loop_footer_branch
                %2297 = sbr.rel target = $region50
              $region55: #{dqn_forward.4} parent=47 // loop_exit
                _
              %s2381 = sdiv.u32.pop %s2282, 34
              %s2382 = srem.u32.pop %s2282, 34
              %s2383 = smul.u32 %s2381, 34
              %s2384 = smul.u32 4, %s2383
              %s2385 = scalar_lea.vmem %s2275, %s2384 [#allocation2]
              %s2386 = smul.u32 4, %s2383
              %s2387 = scalar_lea.vmem %s2286, %s2386
              // While loop
              $region56: #{dqn_forward.4} parent=47 // loop_pre_header
                _
              $region57: #{dqn_forward.4} parent=47 // loop_header
                %s2389 = sphi 0, %s2391
                %p2390 = scmp.ge.s32.totalorder %s2389, %s2382
                %s2394 = sphi 0, %s2401
                %s2395 = sphi %s2385, %s2404
                %s2396 = sphi %s2387, %s2405
              $region58: #{dqn_forward.4} parent=47 // loop_header_branch
                %2393 = sbr.rel (%p2390) target = $region62
              $region59: #{dqn_forward.4} parent=47 // loop_body
                %v2397 = vld [vmem:[%s2395] sm:$0xf]
                %2398 = vst [vmem:[%s2396] sm:$0xf] %v2397
                %s2399 = sadd.s32 1, %s2394
                %p2400 = scmp.ge.s32.totalorder %s2399, %s2382
                %s2401 = scalar_select %p2400, 0, %s2399
                %s2402 = smul.u32 %s2401, 4
                %s2403 = smul.u32 %s2401, 4
                %s2404 = scalar_lea.vmem %s2385, %s2402 [#allocation2]
                %s2405 = scalar_lea.vmem %s2387, %s2403
              $region60: #{dqn_forward.4} parent=47 // loop_footer
                %s2391 = sadd.s32 %s2389, 1
              $region61: #{dqn_forward.4} parent=47 // loop_footer_branch
                %2388 = sbr.rel target = $region57
              $region62: #{dqn_forward.4} parent=47 // loop_exit
                _
            $region48: #{dqn_forward.4} parent=39 // pred_fallthru
              _
          $region40: #{dqn_forward.4} parent=35 // pred_fallthru
            _
          %2520 = vnop
        $region36: #{dqn_forward.4} parent=31 // pred_fallthru
          _
      $region32: #{dqn_forward.4} parent=5 // pred_fallthru
        _
      %p2521 = scmp.le.s32.totalorder 2, %s9
      // Predicated region
      $region81: #{dqn_forward.4} parent=5 // pred_check
        %p2522 = pneg %p2521
      $region82: #{dqn_forward.4} parent=5 // pred_check_branch
        %2524 = sbr.rel (%p2522) target = $region84
      $region83: #{dqn_forward.4} parent=5 // pred_region
        %s2525 = ssub.s32 %s9, 2
        // Predicated region
        $region85: #{dqn_forward.4} parent=83 // pred_check
          %p2526 = pneg %p106
        $region86: #{dqn_forward.4} parent=83 // pred_check_branch
          %2528 = sbr.rel (%p2526) target = $region88
        $region87: #{dqn_forward.4} parent=83 // pred_region
          %s2529 = sand.u32 %s91, 1
          %s2530 = sand.u32 %s91, 1
          %s2531 = smul.addr %s2530, 136
          %s2532 = scalar_lea.vmem [#allocation2], %s2531
        $region88: #{dqn_forward.4} parent=83 // pred_fallthru
          _
      $region84: #{dqn_forward.4} parent=5 // pred_fallthru
        _
    $region6: #{dqn_forward.4} parent=1 // loop_footer
      %s13 = sadd.s32 1, %s9
    $region7: #{dqn_forward.4} parent=1 // loop_footer_branch
      %8 = sbr.rel target = $region3
    $region8: #{dqn_forward.4} parent=1 // loop_exit
      _

// kernel: dqn_forward.5
$region0: #{dqn_forward.5}
  #allocation0 [shape = 'u32[]', space=smem, size = 0x4, offset = 0x4, fixed_abs, tag = 'smem constant byte address 0x4 - core index']
  #allocation1 [shape = 'u32[144,128]{1,0:T(1,128)}', space=vmem, size = 0x12000, scoped, tag = 'internal scratch']
  %s0 = inlined_call_operand.vmem [shape: bf16[200,1600], index: 0, kind: input, shape index: {}]
  %s1 = inlined_call_operand.vmem [shape: bf16[1600,32], index: 1, kind: input, shape index: {}]
  %s2 = inlined_call_operand.vmem [shape: f32[1,32], index: 2, kind: input, shape index: {}]
  %s3 = inlined_call_operand.vmem [shape: f32[200,32], index: 3, kind: output, shape index: {}]
  %s4 = sld [smem:[#allocation0]]
  $region22: #{dqn_forward.5} parent=0
    _
  %s6 = ssub.s32 1, %s4
  %s7 = scalar_select 0, %s6, %s4
  // Predicated region
  $region2: #{dqn_forward.5} parent=0 // pred_check
    _
  $region3: #{dqn_forward.5} parent=0 // pred_check_branch
    %9 = sbr.rel (0) target = $region5
  $region4: #{dqn_forward.5} parent=0 // pred_region
    _
  $region5: #{dqn_forward.5} parent=0 // pred_fallthru
    _
  // Predicated region
  $region6: #{dqn_forward.5} parent=0 // pred_check
    _
  $region7: #{dqn_forward.5} parent=0 // pred_check_branch
    %11 = sbr.rel (0) target = $region9
  $region8: #{dqn_forward.5} parent=0 // pred_region
    _
  $region9: #{dqn_forward.5} parent=0 // pred_fallthru
    _
  // Predicated region
  $region10: #{dqn_forward.5} parent=0 // pred_check
    _
  $region11: #{dqn_forward.5} parent=0 // pred_check_branch
    %13 = sbr.rel (0) target = $region13
  $region12: #{dqn_forward.5} parent=0 // pred_region
    _
  $region13: #{dqn_forward.5} parent=0 // pred_fallthru
    _
  %v15 = vld [vmem:[%s0] sm:$0xff]
  %v16 = vld [vmem:[%s0 + $0x8] sm:$0xff]
  %v17 = vld [vmem:[%s0 + $0x10] sm:$0xff]
  %v18 = vld [vmem:[%s0 + $0x18] sm:$0xff]
  %v19 = vld [vmem:[%s0 + $0x20] sm:$0xff]
  %v20 = vld [vmem:[%s0 + $0x28] sm:$0xff]
  %v21 = vld [vmem:[%s0 + $0x30] sm:$0xf]
  %v22 = vld [vmem:[%s0 + $0x34] sm:$0xff]
  %v23 = vld [vmem:[%s0 + $0x3c] sm:$0xff]
  %v24 = vld [vmem:[%s0 + $0x44] sm:$0xff]
  %v25 = vld [vmem:[%s0 + $0x4c] sm:$0xff]
  %v26 = vld [vmem:[%s0 + $0x54] sm:$0xff]
  %v27 = vld [vmem:[%s0 + $0x5c] sm:$0xff]
  %v28 = vld [vmem:[%s0 + $0x64] sm:$0xf]
  %v29 = vld [vmem:[%s0 + $0x68] sm:$0xff]
  %v30 = vld [vmem:[%s0 + $0x70] sm:$0xff]
  %v31 = vld [vmem:[%s0 + $0x78] sm:$0xff]
  %v32 = vld [vmem:[%s0 + $0x80] sm:$0xff]
  %v33 = vld [vmem:[%s0 + $0x88] sm:$0xff]
  %v34 = vld [vmem:[%s0 + $0x90] sm:$0xff]
  %v35 = vld [vmem:[%s0 + $0x98] sm:$0xf]
  %v36 = vld [vmem:[%s0 + $0x9c] sm:$0xff]
  %v37 = vld [vmem:[%s0 + $0xa4] sm:$0xff]
  %v38 = vld [vmem:[%s0 + $0xac] sm:$0xff]
  %v39 = vld [vmem:[%s0 + $0xb4] sm:$0xff]
  %v40 = vld [vmem:[%s0 + $0xbc] sm:$0xff]
  %v41 = vld [vmem:[%s0 + $0xc4] sm:$0xff]
  %v42 = vld [vmem:[%s0 + $0xcc] sm:$0xf]
  %v43 = vld [vmem:[%s0 + $0xd0] sm:$0xff]
  %v44 = vld [vmem:[%s0 + $0xd8] sm:$0xff]
  %v45 = vld [vmem:[%s0 + $0xe0] sm:$0xff]
  %v46 = vld [vmem:[%s0 + $0xe8] sm:$0xff]
  %v47 = vld [vmem:[%s0 + $0xf0] sm:$0xff]
  %v48 = vld [vmem:[%s0 + $0xf8] sm:$0xff]
  %v49 = vld [vmem:[%s0 + $0x100] sm:$0xf]
  %v50 = vld [vmem:[%s0 + $0x104] sm:$0xff]
  %v51 = vld [vmem:[%s0 + $0x10c] sm:$0xff]
  %v52 = vld [vmem:[%s0 + $0x114] sm:$0xff]
  %v53 = vld [vmem:[%s0 + $0x11c] sm:$0xff]
  %v54 = vld [vmem:[%s0 + $0x124] sm:$0xff]
  %v55 = vld [vmem:[%s0 + $0x12c] sm:$0xff]
  %v56 = vld [vmem:[%s0 + $0x134] sm:$0xf]
  %v57 = vld [vmem:[%s0 + $0x138] sm:$0xff]
  %v58 = vld [vmem:[%s0 + $0x140] sm:$0xff]
  %v59 = vld [vmem:[%s0 + $0x148] sm:$0xff]
  %v60 = vld [vmem:[%s0 + $0x150] sm:$0xff]
  %v61 = vld [vmem:[%s0 + $0x158] sm:$0xff]
  %v62 = vld [vmem:[%s0 + $0x160] sm:$0xff]
  %v63 = vld [vmem:[%s0 + $0x168] sm:$0xf]
  %v64 = vld [vmem:[%s0 + $0x16c] sm:$0xff]
  %v65 = vld [vmem:[%s0 + $0x174] sm:$0xff]
  %v66 = vld [vmem:[%s0 + $0x17c] sm:$0xff]
  %v67 = vld [vmem:[%s0 + $0x184] sm:$0xff]
  %v68 = vld [vmem:[%s0 + $0x18c] sm:$0xff]
  %v69 = vld [vmem:[%s0 + $0x194] sm:$0xff]
  %v70 = vld [vmem:[%s0 + $0x19c] sm:$0xf]
  %v71 = vld [vmem:[%s0 + $0x1a0] sm:$0xff]
  %v72 = vld [vmem:[%s0 + $0x1a8] sm:$0xff]
  %v73 = vld [vmem:[%s0 + $0x1b0] sm:$0xff]
  %v74 = vld [vmem:[%s0 + $0x1b8] sm:$0xff]
  %v75 = vld [vmem:[%s0 + $0x1c0] sm:$0xff]
  %v76 = vld [vmem:[%s0 + $0x1c8] sm:$0xff]
  %v77 = vld [vmem:[%s0 + $0x1d0] sm:$0xf]
  %v78 = vld [vmem:[%s0 + $0x1d4] sm:$0xff]
  %v79 = vld [vmem:[%s0 + $0x1dc] sm:$0xff]
  %v80 = vld [vmem:[%s0 + $0x1e4] sm:$0xff]
  %v81 = vld [vmem:[%s0 + $0x1ec] sm:$0xff]
  %v82 = vld [vmem:[%s0 + $0x1f4] sm:$0xff]
  %v83 = vld [vmem:[%s0 + $0x1fc] sm:$0xff]
  %v84 = vld [vmem:[%s0 + $0x204] sm:$0xf]
  %v85 = vld [vmem:[%s0 + $0x208] sm:$0xff]
  %v86 = vld [vmem:[%s0 + $0x210] sm:$0xff]
  %v87 = vld [vmem:[%s0 + $0x218] sm:$0xff]
  %v88 = vld [vmem:[%s0 + $0x220] sm:$0xff]
  %v89 = vld [vmem:[%s0 + $0x228] sm:$0xff]
  %v90 = vld [vmem:[%s0 + $0x230] sm:$0xff]
  %v91 = vld [vmem:[%s0 + $0x238] sm:$0xf]
  %v92 = vld [vmem:[%s0 + $0x23c] sm:$0xff]
  %v93 = vld [vmem:[%s0 + $0x244] sm:$0xff]
  %v94 = vld [vmem:[%s0 + $0x24c] sm:$0xff]
  %v95 = vld [vmem:[%s0 + $0x254] sm:$0xff]
  %v96 = vld [vmem:[%s0 + $0x25c] sm:$0xff]
  %v97 = vld [vmem:[%s0 + $0x264] sm:$0xff]
  %v98 = vld [vmem:[%s0 + $0x26c] sm:$0xf]
  %v99 = vld [vmem:[%s0 + $0x270] sm:$0xff]
  %v100 = vld [vmem:[%s0 + $0x278] sm:$0xff]
  %v101 = vld [vmem:[%s0 + $0x280] sm:$0xff]
  %v102 = vld [vmem:[%s0 + $0x288] sm:$0xff]
  %v103 = vld [vmem:[%s0 + $0x290] sm:$0xff]
  %v104 = vld [vmem:[%s0 + $0x298] sm:$0xff]
  %v105 = vld [vmem:[%s0 + $0x2a0] sm:$0xf]
  %v106 = vld [vmem:[%s0 + $0x2a4] sm:$0xff]
  %v107 = vld [vmem:[%s0 + $0x2ac] sm:$0xff]
  %v108 = vld [vmem:[%s0 + $0x2b4] sm:$0xff]
  %v109 = vld [vmem:[%s0 + $0x2bc] sm:$0xff]
  %v110 = vld [vmem:[%s0 + $0x2c4] sm:$0xff]
  %v111 = vld [vmem:[%s0 + $0x2cc] sm:$0xff]
  %v112 = vld [vmem:[%s0 + $0x2d4] sm:$0xf]
  %v113 = vld [vmem:[%s0 + $0x2d8] sm:$0xff]
  %v114 = vld [vmem:[%s0 + $0x2e0] sm:$0xff]
  %v115 = vld [vmem:[%s0 + $0x2e8] sm:$0xff]
  %v116 = vld [vmem:[%s0 + $0x2f0] sm:$0xff]
  %v117 = vld [vmem:[%s0 + $0x2f8] sm:$0xff]
  %v118 = vld [vmem:[%s0 + $0x300] sm:$0xff]
  %v119 = vld [vmem:[%s0 + $0x308] sm:$0xf]
  %v120 = vld [vmem:[%s0 + $0x30c] sm:$0xff]
  %v121 = vld [vmem:[%s0 + $0x314] sm:$0xff]
  %v122 = vld [vmem:[%s0 + $0x31c] sm:$0xff]
  %v123 = vld [vmem:[%s0 + $0x324] sm:$0xff]
  %v124 = vld [vmem:[%s0 + $0x32c] sm:$0xff]
  %v125 = vld [vmem:[%s0 + $0x334] sm:$0xff]
  %v126 = vld [vmem:[%s0 + $0x33c] sm:$0xf]
  %v127 = vld [vmem:[%s0 + $0x340] sm:$0xff]
  %v128 = vld [vmem:[%s0 + $0x348] sm:$0xff]
  %v129 = vld [vmem:[%s0 + $0x350] sm:$0xff]
  %v130 = vld [vmem:[%s0 + $0x358] sm:$0xff]
  %v131 = vld [vmem:[%s0 + $0x360] sm:$0xff]
  %v132 = vld [vmem:[%s0 + $0x368] sm:$0xff]
  %v133 = vld [vmem:[%s0 + $0x370] sm:$0xf]
  %v134 = vld [vmem:[%s0 + $0x374] sm:$0xff]
  %v135 = vld [vmem:[%s0 + $0x37c] sm:$0xff]
  %v136 = vld [vmem:[%s0 + $0x384] sm:$0xff]
  %v137 = vld [vmem:[%s0 + $0x38c] sm:$0xff]
  %v138 = vld [vmem:[%s0 + $0x394] sm:$0xff]
  %v139 = vld [vmem:[%s0 + $0x39c] sm:$0xff]
  %v140 = vld [vmem:[%s0 + $0x3a4] sm:$0xf]
  %v141 = vld [vmem:[%s0 + $0x3a8] sm:$0xff]
  %v142 = vld [vmem:[%s0 + $0x3b0] sm:$0xff]
  %v143 = vld [vmem:[%s0 + $0x3b8] sm:$0xff]
  %v144 = vld [vmem:[%s0 + $0x3c0] sm:$0xff]
  %v145 = vld [vmem:[%s0 + $0x3c8] sm:$0xff]
  %v146 = vld [vmem:[%s0 + $0x3d0] sm:$0xff]
  %v147 = vld [vmem:[%s0 + $0x3d8] sm:$0xf]
  %v148 = vld [vmem:[%s0 + $0x3dc] sm:$0xff]
  %v149 = vld [vmem:[%s0 + $0x3e4] sm:$0xff]
  %v150 = vld [vmem:[%s0 + $0x3ec] sm:$0xff]
  %v151 = vld [vmem:[%s0 + $0x3f4] sm:$0xff]
  %v152 = vld [vmem:[%s0 + $0x3fc] sm:$0xff]
  %v153 = vld [vmem:[%s0 + $0x404] sm:$0xff]
  %v154 = vld [vmem:[%s0 + $0x40c] sm:$0xf]
  %v155 = vld [vmem:[%s0 + $0x410] sm:$0xff]
  %v156 = vld [vmem:[%s0 + $0x418] sm:$0xff]
  %v157 = vld [vmem:[%s0 + $0x420] sm:$0xff]
  %v158 = vld [vmem:[%s0 + $0x428] sm:$0xff]
  %v159 = vld [vmem:[%s0 + $0x430] sm:$0xff]
  %v160 = vld [vmem:[%s0 + $0x438] sm:$0xff]
  %v161 = vld [vmem:[%s0 + $0x440] sm:$0xf]
  %v162 = vld [vmem:[%s0 + $0x444] sm:$0xff]
  %v163 = vld [vmem:[%s0 + $0x44c] sm:$0xff]
  %v164 = vld [vmem:[%s0 + $0x454] sm:$0xff]
  %v165 = vld [vmem:[%s0 + $0x45c] sm:$0xff]
  %v166 = vld [vmem:[%s0 + $0x464] sm:$0xff]
  %v167 = vld [vmem:[%s0 + $0x46c] sm:$0xff]
  %v168 = vld [vmem:[%s0 + $0x474] sm:$0xf]
  %v169 = vld [vmem:[%s0 + $0x478] sm:$0xff]
  %v170 = vld [vmem:[%s0 + $0x480] sm:$0xff]
  %v171 = vld [vmem:[%s0 + $0x488] sm:$0xff]
  %v172 = vld [vmem:[%s0 + $0x490] sm:$0xff]
  %v173 = vld [vmem:[%s0 + $0x498] sm:$0xff]
  %v174 = vld [vmem:[%s0 + $0x4a0] sm:$0xff]
  %v175 = vld [vmem:[%s0 + $0x4a8] sm:$0xf]
  %v176 = vld [vmem:[%s0 + $0x4ac] sm:$0xff]
  %v177 = vld [vmem:[%s0 + $0x4b4] sm:$0xff]
  %v178 = vld [vmem:[%s0 + $0x4bc] sm:$0xff]
  %v179 = vld [vmem:[%s0 + $0x4c4] sm:$0xff]
  %v180 = vld [vmem:[%s0 + $0x4cc] sm:$0xff]
  %v181 = vld [vmem:[%s0 + $0x4d4] sm:$0xff]
  %v182 = vld [vmem:[%s0 + $0x4dc] sm:$0xf]
  %v183 = vld [vmem:[%s0 + $0x4e0] sm:$0xff]
  %v184 = vld [vmem:[%s0 + $0x4e8] sm:$0xff]
  %v185 = vld [vmem:[%s0 + $0x4f0] sm:$0xff]
  %v186 = vld [vmem:[%s0 + $0x4f8] sm:$0xff]
  %v187 = vld [vmem:[%s0 + $0x500] sm:$0xff]
  %v188 = vld [vmem:[%s0 + $0x508] sm:$0xff]
  %v189 = vld [vmem:[%s0 + $0x510] sm:$0xf]
  %v190 = vld [vmem:[%s1] sm:$0xf]
  %v191 = vld [vmem:[%s1 + $0x4] sm:$0xf]
  %v192 = vld [vmem:[%s1 + $0x8] sm:$0xf]
  %v193 = vld [vmem:[%s1 + $0xc] sm:$0xf]
  %v194 = vld [vmem:[%s1 + $0x10] sm:$0xf]
  %v195 = vld [vmem:[%s1 + $0x14] sm:$0xf]
  %v196 = vld [vmem:[%s1 + $0x18] sm:$0xf]
  %v197 = vld [vmem:[%s1 + $0x1c] sm:$0xf]
  %v198 = vld [vmem:[%s1 + $0x20] sm:$0xf]
  %v199 = vld [vmem:[%s1 + $0x24] sm:$0xf]
  %v200 = vld [vmem:[%s1 + $0x28] sm:$0xf]
  %v201 = vld [vmem:[%s1 + $0x2c] sm:$0xf]
  %v202 = vld [vmem:[%s1 + $0x30] sm:$0xf]
  %v203 = vld [vmem:[%s1 + $0x34] sm:$0xf]
  %v204 = vld [vmem:[%s1 + $0x38] sm:$0xf]
  %v205 = vld [vmem:[%s1 + $0x3c] sm:$0xf]
  %v206 = vld [vmem:[%s1 + $0x40] sm:$0xf]
  %v207 = vld [vmem:[%s1 + $0x44] sm:$0xf]
  %v208 = vld [vmem:[%s1 + $0x48] sm:$0xf]
  %v209 = vld [vmem:[%s1 + $0x4c] sm:$0xf]
  %v210 = vld [vmem:[%s1 + $0x50] sm:$0xf]
  %v211 = vld [vmem:[%s1 + $0x54] sm:$0xf]
  %v212 = vld [vmem:[%s1 + $0x58] sm:$0xf]
  %v213 = vld [vmem:[%s1 + $0x5c] sm:$0xf]
  %v214 = vld [vmem:[%s1 + $0x60] sm:$0xf]
  %v215 = vld [vmem:[%s1 + $0x64] sm:$0xf]
  %v216 = vld [vmem:[%s1 + $0x68] sm:$0xf]
  %v217 = vld [vmem:[%s1 + $0x6c] sm:$0xf]
  %v218 = vld [vmem:[%s1 + $0x70] sm:$0xf]
  %v219 = vld [vmem:[%s1 + $0x74] sm:$0xf]
  %v220 = vld [vmem:[%s1 + $0x78] sm:$0xf]
  %v221 = vld [vmem:[%s1 + $0x7c] sm:$0xf]
  %v222 = vld [vmem:[%s1 + $0x80] sm:$0xf]
  %v223 = vld [vmem:[%s1 + $0x84] sm:$0xf]
  %v224 = vld [vmem:[%s1 + $0x88] sm:$0xf]
  %v225 = vld [vmem:[%s1 + $0x8c] sm:$0xf]
  %v226 = vld [vmem:[%s1 + $0x90] sm:$0xf]
  %v227 = vld [vmem:[%s1 + $0x94] sm:$0xf]
  %v228 = vld [vmem:[%s1 + $0x98] sm:$0xf]
  %v229 = vld [vmem:[%s1 + $0x9c] sm:$0xf]
  %v230 = vld [vmem:[%s1 + $0xa0] sm:$0xf]
  %v231 = vld [vmem:[%s1 + $0xa4] sm:$0xf]
  %v232 = vld [vmem:[%s1 + $0xa8] sm:$0xf]
  %v233 = vld [vmem:[%s1 + $0xac] sm:$0xf]
  %v234 = vld [vmem:[%s1 + $0xb0] sm:$0xf]
  %v235 = vld [vmem:[%s1 + $0xb4] sm:$0xf]
  %v236 = vld [vmem:[%s1 + $0xb8] sm:$0xf]
  %v237 = vld [vmem:[%s1 + $0xbc] sm:$0xf]
  %v238 = vld [vmem:[%s1 + $0xc0] sm:$0xf]
  %v239 = vld [vmem:[%s1 + $0xc4] sm:$0xf]
  %v240 = vld [vmem:[%s1 + $0xc8] sm:$0xf]
  %v241 = vld [vmem:[%s1 + $0xcc] sm:$0xf]
  %v242 = vld [vmem:[%s1 + $0xd0] sm:$0xf]
  %v243 = vld [vmem:[%s1 + $0xd4] sm:$0xf]
  %v244 = vld [vmem:[%s1 + $0xd8] sm:$0xf]
  %v245 = vld [vmem:[%s1 + $0xdc] sm:$0xf]
  %v246 = vld [vmem:[%s1 + $0xe0] sm:$0xf]
  %v247 = vld [vmem:[%s1 + $0xe4] sm:$0xf]
  %v248 = vld [vmem:[%s1 + $0xe8] sm:$0xf]
  %v249 = vld [vmem:[%s1 + $0xec] sm:$0xf]
  %v250 = vld [vmem:[%s1 + $0xf0] sm:$0xf]
  %v251 = vld [vmem:[%s1 + $0xf4] sm:$0xf]
  %v252 = vld [vmem:[%s1 + $0xf8] sm:$0xf]
  %v253 = vld [vmem:[%s1 + $0xfc] sm:$0xf]
  %v254 = vld [vmem:[%s1 + $0x100] sm:$0xf]
  %v255 = vld [vmem:[%s1 + $0x104] sm:$0xf]
  %v256 = vld [vmem:[%s1 + $0x108] sm:$0xf]
  %v257 = vld [vmem:[%s1 + $0x10c] sm:$0xf]
  %v258 = vld [vmem:[%s1 + $0x110] sm:$0xf]
  %v259 = vld [vmem:[%s1 + $0x114] sm:$0xf]
  %v260 = vld [vmem:[%s1 + $0x118] sm:$0xf]
  %v261 = vld [vmem:[%s1 + $0x11c] sm:$0xf]
  %v262 = vld [vmem:[%s1 + $0x120] sm:$0xf]
  %v263 = vld [vmem:[%s1 + $0x124] sm:$0xf]
  %v264 = vld [vmem:[%s1 + $0x128] sm:$0xf]
  %v265 = vld [vmem:[%s1 + $0x12c] sm:$0xf]
  %v266 = vld [vmem:[%s1 + $0x130] sm:$0xf]
  %v267 = vld [vmem:[%s1 + $0x134] sm:$0xf]
  %v268 = vld [vmem:[%s1 + $0x138] sm:$0xf]
  %v269 = vld [vmem:[%s1 + $0x13c] sm:$0xf]
  %v270 = vld [vmem:[%s1 + $0x140] sm:$0xf]
  %v271 = vld [vmem:[%s1 + $0x144] sm:$0xf]
  %v272 = vld [vmem:[%s1 + $0x148] sm:$0xf]
  %v273 = vld [vmem:[%s1 + $0x14c] sm:$0xf]
  %v274 = vld [vmem:[%s1 + $0x150] sm:$0xf]
  %v275 = vld [vmem:[%s1 + $0x154] sm:$0xf]
  %v276 = vld [vmem:[%s1 + $0x158] sm:$0xf]
  %v277 = vld [vmem:[%s1 + $0x15c] sm:$0xf]
  %v278 = vld [vmem:[%s1 + $0x160] sm:$0xf]
  %v279 = vld [vmem:[%s1 + $0x164] sm:$0xf]
  %v280 = vld [vmem:[%s1 + $0x168] sm:$0xf]
  %v281 = vld [vmem:[%s1 + $0x16c] sm:$0xf]
  %v282 = vld [vmem:[%s1 + $0x170] sm:$0xf]
  %v283 = vld [vmem:[%s1 + $0x174] sm:$0xf]
  %v284 = vld [vmem:[%s1 + $0x178] sm:$0xf]
  %v285 = vld [vmem:[%s1 + $0x17c] sm:$0xf]
  %v286 = vld [vmem:[%s1 + $0x180] sm:$0xf]
  %v287 = vld [vmem:[%s1 + $0x184] sm:$0xf]
  %v288 = vld [vmem:[%s1 + $0x188] sm:$0xf]
  %v289 = vld [vmem:[%s1 + $0x18c] sm:$0xf]
  %v290 = vld [vmem:[%s1 + $0x190] sm:$0xf]
  %v291 = vld [vmem:[%s1 + $0x194] sm:$0xf]
  %v292 = vld [vmem:[%s1 + $0x198] sm:$0xf]
  %v293 = vld [vmem:[%s1 + $0x19c] sm:$0xf]
  %v294 = vld [vmem:[%s1 + $0x1a0] sm:$0xf]
  %v295 = vld [vmem:[%s1 + $0x1a4] sm:$0xf]
  %v296 = vld [vmem:[%s1 + $0x1a8] sm:$0xf]
  %v297 = vld [vmem:[%s1 + $0x1ac] sm:$0xf]
  %v298 = vld [vmem:[%s1 + $0x1b0] sm:$0xf]
  %v299 = vld [vmem:[%s1 + $0x1b4] sm:$0xf]
  %v300 = vld [vmem:[%s1 + $0x1b8] sm:$0xf]
  %v301 = vld [vmem:[%s1 + $0x1bc] sm:$0xf]
  %v302 = vld [vmem:[%s1 + $0x1c0] sm:$0xf]
  %v303 = vld [vmem:[%s1 + $0x1c4] sm:$0xf]
  %v304 = vld [vmem:[%s1 + $0x1c8] sm:$0xf]
  %v305 = vld [vmem:[%s1 + $0x1cc] sm:$0xf]
  %v306 = vld [vmem:[%s1 + $0x1d0] sm:$0xf]
  %v307 = vld [vmem:[%s1 + $0x1d4] sm:$0xf]
  %v308 = vld [vmem:[%s1 + $0x1d8] sm:$0xf]
  %v309 = vld [vmem:[%s1 + $0x1dc] sm:$0xf]
  %v310 = vld [vmem:[%s1 + $0x1e0] sm:$0xf]
  %v311 = vld [vmem:[%s1 + $0x1e4] sm:$0xf]
  %v312 = vld [vmem:[%s1 + $0x1e8] sm:$0xf]
  %v313 = vld [vmem:[%s1 + $0x1ec] sm:$0xf]
  %v314 = vld [vmem:[%s1 + $0x1f0] sm:$0xf]
  %v315 = vld [vmem:[%s1 + $0x1f4] sm:$0xf]
  %v316 = vld [vmem:[%s1 + $0x1f8] sm:$0xf]
  %v317 = vld [vmem:[%s1 + $0x1fc] sm:$0xf]
  %v318 = vld [vmem:[%s1 + $0x200] sm:$0xf]
  %v319 = vld [vmem:[%s1 + $0x204] sm:$0xf]
  %v320 = vld [vmem:[%s1 + $0x208] sm:$0xf]
  %v321 = vld [vmem:[%s1 + $0x20c] sm:$0xf]
  %v322 = vld [vmem:[%s1 + $0x210] sm:$0xf]
  %v323 = vld [vmem:[%s1 + $0x214] sm:$0xf]
  %v324 = vld [vmem:[%s1 + $0x218] sm:$0xf]
  %v325 = vld [vmem:[%s1 + $0x21c] sm:$0xf]
  %v326 = vld [vmem:[%s1 + $0x220] sm:$0xf]
  %v327 = vld [vmem:[%s1 + $0x224] sm:$0xf]
  %v328 = vld [vmem:[%s1 + $0x228] sm:$0xf]
  %v329 = vld [vmem:[%s1 + $0x22c] sm:$0xf]
  %v330 = vld [vmem:[%s1 + $0x230] sm:$0xf]
  %v331 = vld [vmem:[%s1 + $0x234] sm:$0xf]
  %v332 = vld [vmem:[%s1 + $0x238] sm:$0xf]
  %v333 = vld [vmem:[%s1 + $0x23c] sm:$0xf]
  %v334 = vld [vmem:[%s1 + $0x240] sm:$0xf]
  %v335 = vld [vmem:[%s1 + $0x244] sm:$0xf]
  %v336 = vld [vmem:[%s1 + $0x248] sm:$0xf]
  %v337 = vld [vmem:[%s1 + $0x24c] sm:$0xf]
  %v338 = vld [vmem:[%s1 + $0x250] sm:$0xf]
  %v339 = vld [vmem:[%s1 + $0x254] sm:$0xf]
  %v340 = vld [vmem:[%s1 + $0x258] sm:$0xf]
  %v341 = vld [vmem:[%s1 + $0x25c] sm:$0xf]
  %v342 = vld [vmem:[%s1 + $0x260] sm:$0xf]
  %v343 = vld [vmem:[%s1 + $0x264] sm:$0xf]
  %v344 = vld [vmem:[%s1 + $0x268] sm:$0xf]
  %v345 = vld [vmem:[%s1 + $0x26c] sm:$0xf]
  %v346 = vld [vmem:[%s1 + $0x270] sm:$0xf]
  %v347 = vld [vmem:[%s1 + $0x274] sm:$0xf]
  %v348 = vld [vmem:[%s1 + $0x278] sm:$0xf]
  %v349 = vld [vmem:[%s1 + $0x27c] sm:$0xf]
  %v350 = vld [vmem:[%s1 + $0x280] sm:$0xf]
  %v351 = vld [vmem:[%s1 + $0x284] sm:$0xf]
  %v352 = vld [vmem:[%s1 + $0x288] sm:$0xf]
  %v353 = vld [vmem:[%s1 + $0x28c] sm:$0xf]
  %v354 = vld [vmem:[%s1 + $0x290] sm:$0xf]
  %v355 = vld [vmem:[%s1 + $0x294] sm:$0xf]
  %v356 = vld [vmem:[%s1 + $0x298] sm:$0xf]
  %v357 = vld [vmem:[%s1 + $0x29c] sm:$0xf]
  %v358 = vld [vmem:[%s1 + $0x2a0] sm:$0xf]
  %v359 = vld [vmem:[%s1 + $0x2a4] sm:$0xf]
  %v360 = vld [vmem:[%s1 + $0x2a8] sm:$0xf]
  %v361 = vld [vmem:[%s1 + $0x2ac] sm:$0xf]
  %v362 = vld [vmem:[%s1 + $0x2b0] sm:$0xf]
  %v363 = vld [vmem:[%s1 + $0x2b4] sm:$0xf]
  %v364 = vld [vmem:[%s1 + $0x2b8] sm:$0xf]
  %v365 = vld [vmem:[%s1 + $0x2bc] sm:$0xf]
  %v366 = vld [vmem:[%s1 + $0x2c0] sm:$0xf]
  %v367 = vld [vmem:[%s1 + $0x2c4] sm:$0xf]
  %v368 = vld [vmem:[%s1 + $0x2c8] sm:$0xf]
  %v369 = vld [vmem:[%s1 + $0x2cc] sm:$0xf]
  %v370 = vld [vmem:[%s1 + $0x2d0] sm:$0xf]
  %v371 = vld [vmem:[%s1 + $0x2d4] sm:$0xf]
  %v372 = vld [vmem:[%s1 + $0x2d8] sm:$0xf]
  %v373 = vld [vmem:[%s1 + $0x2dc] sm:$0xf]
  %v374 = vld [vmem:[%s1 + $0x2e0] sm:$0xf]
  %v375 = vld [vmem:[%s1 + $0x2e4] sm:$0xf]
  %v376 = vld [vmem:[%s1 + $0x2e8] sm:$0xf]
  %v377 = vld [vmem:[%s1 + $0x2ec] sm:$0xf]
  %v378 = vld [vmem:[%s1 + $0x2f0] sm:$0xf]
  %v379 = vld [vmem:[%s1 + $0x2f4] sm:$0xf]
  %v380 = vld [vmem:[%s1 + $0x2f8] sm:$0xf]
  %v381 = vld [vmem:[%s1 + $0x2fc] sm:$0xf]
  %v382 = vld [vmem:[%s1 + $0x300] sm:$0xf]
  %v383 = vld [vmem:[%s1 + $0x304] sm:$0xf]
  %v384 = vld [vmem:[%s1 + $0x308] sm:$0xf]
  %v385 = vld [vmem:[%s1 + $0x30c] sm:$0xf]
  %v386 = vld [vmem:[%s1 + $0x310] sm:$0xf]
  %v387 = vld [vmem:[%s1 + $0x314] sm:$0xf]
  %v388 = vld [vmem:[%s1 + $0x318] sm:$0xf]
  %v389 = vld [vmem:[%s1 + $0x31c] sm:$0xf]
  %v390 = vld [vmem:[%s2] sm:$0x1]
  %v392 = vlaneseq
  %v393 = vshrl.u32 %v392, 7
  %v394 = vsub.s32 0, %v393
  %v395 = vrot.slane %v390, %v394
  %v572 = vunpack.c.l.b16 %v15
  %v573 = vunpack.c.h.b16 %v15
  %v574 = vunpack.c.l.b16 %v16
  %v575 = vunpack.c.h.b16 %v16
  %v576 = vunpack.c.l.b16 %v17
  %v577 = vunpack.c.h.b16 %v17
  %v578 = vunpack.c.l.b16 %v18
  %v579 = vunpack.c.h.b16 %v18
  %v580 = vunpack.c.l.b16 %v19
  %v581 = vunpack.c.h.b16 %v19
  %v582 = vunpack.c.l.b16 %v20
  %v583 = vunpack.c.h.b16 %v20
  %v584 = vunpack.c.l.b16 %v21
  %v585 = vunpack.c.l.b16 %v22
  %v586 = vunpack.c.h.b16 %v22
  %v587 = vunpack.c.l.b16 %v23
  %v588 = vunpack.c.h.b16 %v23
  %v589 = vunpack.c.l.b16 %v24
  %v590 = vunpack.c.h.b16 %v24
  %v591 = vunpack.c.l.b16 %v25
  %v592 = vunpack.c.h.b16 %v25
  %v593 = vunpack.c.l.b16 %v26
  %v594 = vunpack.c.h.b16 %v26
  %v595 = vunpack.c.l.b16 %v27
  %v596 = vunpack.c.h.b16 %v27
  %v597 = vunpack.c.l.b16 %v28
  %v598 = vunpack.c.l.b16 %v29
  %v599 = vunpack.c.h.b16 %v29
  %v600 = vunpack.c.l.b16 %v30
  %v601 = vunpack.c.h.b16 %v30
  %v602 = vunpack.c.l.b16 %v31
  %v603 = vunpack.c.h.b16 %v31
  %v604 = vunpack.c.l.b16 %v32
  %v605 = vunpack.c.h.b16 %v32
  %v606 = vunpack.c.l.b16 %v33
  %v607 = vunpack.c.h.b16 %v33
  %v608 = vunpack.c.l.b16 %v34
  %v609 = vunpack.c.h.b16 %v34
  %v610 = vunpack.c.l.b16 %v35
  %v611 = vunpack.c.l.b16 %v36
  %v612 = vunpack.c.h.b16 %v36
  %v613 = vunpack.c.l.b16 %v37
  %v614 = vunpack.c.h.b16 %v37
  %v615 = vunpack.c.l.b16 %v38
  %v616 = vunpack.c.h.b16 %v38
  %v617 = vunpack.c.l.b16 %v39
  %v618 = vunpack.c.h.b16 %v39
  %v619 = vunpack.c.l.b16 %v40
  %v620 = vunpack.c.h.b16 %v40
  %v621 = vunpack.c.l.b16 %v41
  %v622 = vunpack.c.h.b16 %v41
  %v623 = vunpack.c.l.b16 %v42
  %v624 = vunpack.c.l.b16 %v43
  %v625 = vunpack.c.h.b16 %v43
  %v626 = vunpack.c.l.b16 %v44
  %v627 = vunpack.c.h.b16 %v44
  %v628 = vunpack.c.l.b16 %v45
  %v629 = vunpack.c.h.b16 %v45
  %v630 = vunpack.c.l.b16 %v46
  %v631 = vunpack.c.h.b16 %v46
  %v632 = vunpack.c.l.b16 %v47
  %v633 = vunpack.c.h.b16 %v47
  %v634 = vunpack.c.l.b16 %v48
  %v635 = vunpack.c.h.b16 %v48
  %v636 = vunpack.c.l.b16 %v49
  %v637 = vunpack.c.l.b16 %v50
  %v638 = vunpack.c.h.b16 %v50
  %v639 = vunpack.c.l.b16 %v51
  %v640 = vunpack.c.h.b16 %v51
  %v641 = vunpack.c.l.b16 %v52
  %v642 = vunpack.c.h.b16 %v52
  %v643 = vunpack.c.l.b16 %v53
  %v644 = vunpack.c.h.b16 %v53
  %v645 = vunpack.c.l.b16 %v54
  %v646 = vunpack.c.h.b16 %v54
  %v647 = vunpack.c.l.b16 %v55
  %v648 = vunpack.c.h.b16 %v55
  %v649 = vunpack.c.l.b16 %v56
  %v650 = vunpack.c.l.b16 %v57
  %v651 = vunpack.c.h.b16 %v57
  %v652 = vunpack.c.l.b16 %v58
  %v653 = vunpack.c.h.b16 %v58
  %v654 = vunpack.c.l.b16 %v59
  %v655 = vunpack.c.h.b16 %v59
  %v656 = vunpack.c.l.b16 %v60
  %v657 = vunpack.c.h.b16 %v60
  %v658 = vunpack.c.l.b16 %v61
  %v659 = vunpack.c.h.b16 %v61
  %v660 = vunpack.c.l.b16 %v62
  %v661 = vunpack.c.h.b16 %v62
  %v662 = vunpack.c.l.b16 %v63
  %v663 = vunpack.c.l.b16 %v64
  %v664 = vunpack.c.h.b16 %v64
  %v665 = vunpack.c.l.b16 %v65
  %v666 = vunpack.c.h.b16 %v65
  %v667 = vunpack.c.l.b16 %v66
  %v668 = vunpack.c.h.b16 %v66
  %v669 = vunpack.c.l.b16 %v67
  %v670 = vunpack.c.h.b16 %v67
  %v671 = vunpack.c.l.b16 %v68
  %v672 = vunpack.c.h.b16 %v68
  %v673 = vunpack.c.l.b16 %v69
  %v674 = vunpack.c.h.b16 %v69
  %v675 = vunpack.c.l.b16 %v70
  %v676 = vunpack.c.l.b16 %v71
  %v677 = vunpack.c.h.b16 %v71
  %v678 = vunpack.c.l.b16 %v72
  %v679 = vunpack.c.h.b16 %v72
  %v680 = vunpack.c.l.b16 %v73
  %v681 = vunpack.c.h.b16 %v73
  %v682 = vunpack.c.l.b16 %v74
  %v683 = vunpack.c.h.b16 %v74
  %v684 = vunpack.c.l.b16 %v75
  %v685 = vunpack.c.h.b16 %v75
  %v686 = vunpack.c.l.b16 %v76
  %v687 = vunpack.c.h.b16 %v76
  %v688 = vunpack.c.l.b16 %v77
  %v689 = vunpack.c.l.b16 %v78
  %v690 = vunpack.c.h.b16 %v78
  %v691 = vunpack.c.l.b16 %v79
  %v692 = vunpack.c.h.b16 %v79
  %v693 = vunpack.c.l.b16 %v80
  %v694 = vunpack.c.h.b16 %v80
  %v695 = vunpack.c.l.b16 %v81
  %v696 = vunpack.c.h.b16 %v81
  %v697 = vunpack.c.l.b16 %v82
  %v698 = vunpack.c.h.b16 %v82
  %v699 = vunpack.c.l.b16 %v83
  %v700 = vunpack.c.h.b16 %v83
  %v701 = vunpack.c.l.b16 %v84
  %v702 = vunpack.c.l.b16 %v85
  %v703 = vunpack.c.h.b16 %v85
  %v704 = vunpack.c.l.b16 %v86
  %v705 = vunpack.c.h.b16 %v86
  %v706 = vunpack.c.l.b16 %v87
  %v707 = vunpack.c.h.b16 %v87
  %v708 = vunpack.c.l.b16 %v88
  %v709 = vunpack.c.h.b16 %v88
  %v710 = vunpack.c.l.b16 %v89
  %v711 = vunpack.c.h.b16 %v89
  %v712 = vunpack.c.l.b16 %v90
  %v713 = vunpack.c.h.b16 %v90
  %v714 = vunpack.c.l.b16 %v91
  %v715 = vunpack.c.l.b16 %v92
  %v716 = vunpack.c.h.b16 %v92
  %v717 = vunpack.c.l.b16 %v93
  %v718 = vunpack.c.h.b16 %v93
  %v719 = vunpack.c.l.b16 %v94
  %v720 = vunpack.c.h.b16 %v94
  %v721 = vunpack.c.l.b16 %v95
  %v722 = vunpack.c.h.b16 %v95
  %v723 = vunpack.c.l.b16 %v96
  %v724 = vunpack.c.h.b16 %v96
  %v725 = vunpack.c.l.b16 %v97
  %v726 = vunpack.c.h.b16 %v97
  %v727 = vunpack.c.l.b16 %v98
  %v728 = vunpack.c.l.b16 %v99
  %v729 = vunpack.c.h.b16 %v99
  %v730 = vunpack.c.l.b16 %v100
  %v731 = vunpack.c.h.b16 %v100
  %v732 = vunpack.c.l.b16 %v101
  %v733 = vunpack.c.h.b16 %v101
  %v734 = vunpack.c.l.b16 %v102
  %v735 = vunpack.c.h.b16 %v102
  %v736 = vunpack.c.l.b16 %v103
  %v737 = vunpack.c.h.b16 %v103
  %v738 = vunpack.c.l.b16 %v104
  %v739 = vunpack.c.h.b16 %v104
  %v740 = vunpack.c.l.b16 %v105
  %v741 = vunpack.c.l.b16 %v106
  %v742 = vunpack.c.h.b16 %v106
  %v743 = vunpack.c.l.b16 %v107
  %v744 = vunpack.c.h.b16 %v107
  %v745 = vunpack.c.l.b16 %v108
  %v746 = vunpack.c.h.b16 %v108
  %v747 = vunpack.c.l.b16 %v109
  %v748 = vunpack.c.h.b16 %v109
  %v749 = vunpack.c.l.b16 %v110
  %v750 = vunpack.c.h.b16 %v110
  %v751 = vunpack.c.l.b16 %v111
  %v752 = vunpack.c.h.b16 %v111
  %v753 = vunpack.c.l.b16 %v112
  %v754 = vunpack.c.l.b16 %v113
  %v755 = vunpack.c.h.b16 %v113
  %v756 = vunpack.c.l.b16 %v114
  %v757 = vunpack.c.h.b16 %v114
  %v758 = vunpack.c.l.b16 %v115
  %v759 = vunpack.c.h.b16 %v115
  %v760 = vunpack.c.l.b16 %v116
  %v761 = vunpack.c.h.b16 %v116
  %v762 = vunpack.c.l.b16 %v117
  %v763 = vunpack.c.h.b16 %v117
  %v764 = vunpack.c.l.b16 %v118
  %v765 = vunpack.c.h.b16 %v118
  %v766 = vunpack.c.l.b16 %v119
  %v767 = vunpack.c.l.b16 %v120
  %v768 = vunpack.c.h.b16 %v120
  %v769 = vunpack.c.l.b16 %v121
  %v770 = vunpack.c.h.b16 %v121
  %v771 = vunpack.c.l.b16 %v122
  %v772 = vunpack.c.h.b16 %v122
  %v773 = vunpack.c.l.b16 %v123
  %v774 = vunpack.c.h.b16 %v123
  %v775 = vunpack.c.l.b16 %v124
  %v776 = vunpack.c.h.b16 %v124
  %v777 = vunpack.c.l.b16 %v125
  %v778 = vunpack.c.h.b16 %v125
  %v779 = vunpack.c.l.b16 %v126
  %v780 = vunpack.c.l.b16 %v127
  %v781 = vunpack.c.h.b16 %v127
  %v782 = vunpack.c.l.b16 %v128
  %v783 = vunpack.c.h.b16 %v128
  %v784 = vunpack.c.l.b16 %v129
  %v785 = vunpack.c.h.b16 %v129
  %v786 = vunpack.c.l.b16 %v130
  %v787 = vunpack.c.h.b16 %v130
  %v788 = vunpack.c.l.b16 %v131
  %v789 = vunpack.c.h.b16 %v131
  %v790 = vunpack.c.l.b16 %v132
  %v791 = vunpack.c.h.b16 %v132
  %v792 = vunpack.c.l.b16 %v133
  %v793 = vunpack.c.l.b16 %v134
  %v794 = vunpack.c.h.b16 %v134
  %v795 = vunpack.c.l.b16 %v135
  %v796 = vunpack.c.h.b16 %v135
  %v797 = vunpack.c.l.b16 %v136
  %v798 = vunpack.c.h.b16 %v136
  %v799 = vunpack.c.l.b16 %v137
  %v800 = vunpack.c.h.b16 %v137
  %v801 = vunpack.c.l.b16 %v138
  %v802 = vunpack.c.h.b16 %v138
  %v803 = vunpack.c.l.b16 %v139
  %v804 = vunpack.c.h.b16 %v139
  %v805 = vunpack.c.l.b16 %v140
  %v806 = vunpack.c.l.b16 %v141
  %v807 = vunpack.c.h.b16 %v141
  %v808 = vunpack.c.l.b16 %v142
  %v809 = vunpack.c.h.b16 %v142
  %v810 = vunpack.c.l.b16 %v143
  %v811 = vunpack.c.h.b16 %v143
  %v812 = vunpack.c.l.b16 %v144
  %v813 = vunpack.c.h.b16 %v144
  %v814 = vunpack.c.l.b16 %v145
  %v815 = vunpack.c.h.b16 %v145
  %v816 = vunpack.c.l.b16 %v146
  %v817 = vunpack.c.h.b16 %v146
  %v818 = vunpack.c.l.b16 %v147
  %v819 = vunpack.c.l.b16 %v148
  %v820 = vunpack.c.h.b16 %v148
  %v821 = vunpack.c.l.b16 %v149
  %v822 = vunpack.c.h.b16 %v149
  %v823 = vunpack.c.l.b16 %v150
  %v824 = vunpack.c.h.b16 %v150
  %v825 = vunpack.c.l.b16 %v151
  %v826 = vunpack.c.h.b16 %v151
  %v827 = vunpack.c.l.b16 %v152
  %v828 = vunpack.c.h.b16 %v152
  %v829 = vunpack.c.l.b16 %v153
  %v830 = vunpack.c.h.b16 %v153
  %v831 = vunpack.c.l.b16 %v154
  %v832 = vunpack.c.l.b16 %v155
  %v833 = vunpack.c.h.b16 %v155
  %v834 = vunpack.c.l.b16 %v156
  %v835 = vunpack.c.h.b16 %v156
  %v836 = vunpack.c.l.b16 %v157
  %v837 = vunpack.c.h.b16 %v157
  %v838 = vunpack.c.l.b16 %v158
  %v839 = vunpack.c.h.b16 %v158
  %v840 = vunpack.c.l.b16 %v159
  %v841 = vunpack.c.h.b16 %v159
  %v842 = vunpack.c.l.b16 %v160
  %v843 = vunpack.c.h.b16 %v160
  %v844 = vunpack.c.l.b16 %v161
  %v845 = vunpack.c.l.b16 %v162
  %v846 = vunpack.c.h.b16 %v162
  %v847 = vunpack.c.l.b16 %v163
  %v848 = vunpack.c.h.b16 %v163
  %v849 = vunpack.c.l.b16 %v164
  %v850 = vunpack.c.h.b16 %v164
  %v851 = vunpack.c.l.b16 %v165
  %v852 = vunpack.c.h.b16 %v165
  %v853 = vunpack.c.l.b16 %v166
  %v854 = vunpack.c.h.b16 %v166
  %v855 = vunpack.c.l.b16 %v167
  %v856 = vunpack.c.h.b16 %v167
  %v857 = vunpack.c.l.b16 %v168
  %v858 = vunpack.c.l.b16 %v169
  %v859 = vunpack.c.h.b16 %v169
  %v860 = vunpack.c.l.b16 %v170
  %v861 = vunpack.c.h.b16 %v170
  %v862 = vunpack.c.l.b16 %v171
  %v863 = vunpack.c.h.b16 %v171
  %v864 = vunpack.c.l.b16 %v172
  %v865 = vunpack.c.h.b16 %v172
  %v866 = vunpack.c.l.b16 %v173
  %v867 = vunpack.c.h.b16 %v173
  %v868 = vunpack.c.l.b16 %v174
  %v869 = vunpack.c.h.b16 %v174
  %v870 = vunpack.c.l.b16 %v175
  %v871 = vunpack.c.l.b16 %v176
  %v872 = vunpack.c.h.b16 %v176
  %v873 = vunpack.c.l.b16 %v177
  %v874 = vunpack.c.h.b16 %v177
  %v875 = vunpack.c.l.b16 %v178
  %v876 = vunpack.c.h.b16 %v178
  %v877 = vunpack.c.l.b16 %v179
  %v878 = vunpack.c.h.b16 %v179
  %v879 = vunpack.c.l.b16 %v180
  %v880 = vunpack.c.h.b16 %v180
  %v881 = vunpack.c.l.b16 %v181
  %v882 = vunpack.c.h.b16 %v181
  %v883 = vunpack.c.l.b16 %v182
  %v884 = vunpack.c.l.b16 %v183
  %v885 = vunpack.c.h.b16 %v183
  %v886 = vunpack.c.l.b16 %v184
  %v887 = vunpack.c.h.b16 %v184
  %v888 = vunpack.c.l.b16 %v185
  %v889 = vunpack.c.h.b16 %v185
  %v890 = vunpack.c.l.b16 %v186
  %v891 = vunpack.c.h.b16 %v186
  %v892 = vunpack.c.l.b16 %v187
  %v893 = vunpack.c.h.b16 %v187
  %v894 = vunpack.c.l.b16 %v188
  %v895 = vunpack.c.h.b16 %v188
  %v896 = vunpack.c.l.b16 %v189
  %v897 = vpack.c.b16 %v585, %v572
  %v898 = vpack.c.b16 %v586, %v573
  %v899 = vpack.c.b16 %v587, %v574
  %v900 = vpack.c.b16 %v588, %v575
  %v901 = vpack.c.b16 %v589, %v576
  %v902 = vpack.c.b16 %v590, %v577
  %v903 = vpack.c.b16 %v591, %v578
  %v904 = vpack.c.b16 %v592, %v579
  %v905 = vpack.c.b16 %v593, %v580
  %v906 = vpack.c.b16 %v594, %v581
  %v907 = vpack.c.b16 %v595, %v582
  %v908 = vpack.c.b16 %v596, %v583
  %v909 = vpack.c.b16 %v597, %v584
  %v910 = vpack.c.b16 %v611, %v598
  %v911 = vpack.c.b16 %v612, %v599
  %v912 = vpack.c.b16 %v613, %v600
  %v913 = vpack.c.b16 %v614, %v601
  %v914 = vpack.c.b16 %v615, %v602
  %v915 = vpack.c.b16 %v616, %v603
  %v916 = vpack.c.b16 %v617, %v604
  %v917 = vpack.c.b16 %v618, %v605
  %v918 = vpack.c.b16 %v619, %v606
  %v919 = vpack.c.b16 %v620, %v607
  %v920 = vpack.c.b16 %v621, %v608
  %v921 = vpack.c.b16 %v622, %v609
  %v922 = vpack.c.b16 %v623, %v610
  %v923 = vpack.c.b16 %v637, %v624
  %v924 = vpack.c.b16 %v638, %v625
  %v925 = vpack.c.b16 %v639, %v626
  %v926 = vpack.c.b16 %v640, %v627
  %v927 = vpack.c.b16 %v641, %v628
  %v928 = vpack.c.b16 %v642, %v629
  %v929 = vpack.c.b16 %v643, %v630
  %v930 = vpack.c.b16 %v644, %v631
  %v931 = vpack.c.b16 %v645, %v632
  %v932 = vpack.c.b16 %v646, %v633
  %v933 = vpack.c.b16 %v647, %v634
  %v934 = vpack.c.b16 %v648, %v635
  %v935 = vpack.c.b16 %v649, %v636
  %v936 = vpack.c.b16 %v663, %v650
  %v937 = vpack.c.b16 %v664, %v651
  %v938 = vpack.c.b16 %v665, %v652
  %v939 = vpack.c.b16 %v666, %v653
  %v940 = vpack.c.b16 %v667, %v654
  %v941 = vpack.c.b16 %v668, %v655
  %v942 = vpack.c.b16 %v669, %v656
  %v943 = vpack.c.b16 %v670, %v657
  %v944 = vpack.c.b16 %v671, %v658
  %v945 = vpack.c.b16 %v672, %v659
  %v946 = vpack.c.b16 %v673, %v660
  %v947 = vpack.c.b16 %v674, %v661
  %v948 = vpack.c.b16 %v675, %v662
  %v949 = vpack.c.b16 %v689, %v676
  %v950 = vpack.c.b16 %v690, %v677
  %v951 = vpack.c.b16 %v691, %v678
  %v952 = vpack.c.b16 %v692, %v679
  %v953 = vpack.c.b16 %v693, %v680
  %v954 = vpack.c.b16 %v694, %v681
  %v955 = vpack.c.b16 %v695, %v682
  %v956 = vpack.c.b16 %v696, %v683
  %v957 = vpack.c.b16 %v697, %v684
  %v958 = vpack.c.b16 %v698, %v685
  %v959 = vpack.c.b16 %v699, %v686
  %v960 = vpack.c.b16 %v700, %v687
  %v961 = vpack.c.b16 %v701, %v688
  %v962 = vpack.c.b16 %v715, %v702
  %v963 = vpack.c.b16 %v716, %v703
  %v964 = vpack.c.b16 %v717, %v704
  %v965 = vpack.c.b16 %v718, %v705
  %v966 = vpack.c.b16 %v719, %v706
  %v967 = vpack.c.b16 %v720, %v707
  %v968 = vpack.c.b16 %v721, %v708
  %v969 = vpack.c.b16 %v722, %v709
  %v970 = vpack.c.b16 %v723, %v710
  %v971 = vpack.c.b16 %v724, %v711
  %v972 = vpack.c.b16 %v725, %v712
  %v973 = vpack.c.b16 %v726, %v713
  %v974 = vpack.c.b16 %v727, %v714
  %v975 = vpack.c.b16 %v741, %v728
  %v976 = vpack.c.b16 %v742, %v729
  %v977 = vpack.c.b16 %v743, %v730
  %v978 = vpack.c.b16 %v744, %v731
  %v979 = vpack.c.b16 %v745, %v732
  %v980 = vpack.c.b16 %v746, %v733
  %v981 = vpack.c.b16 %v747, %v734
  %v982 = vpack.c.b16 %v748, %v735
  %v983 = vpack.c.b16 %v749, %v736
  %v984 = vpack.c.b16 %v750, %v737
  %v985 = vpack.c.b16 %v751, %v738
  %v986 = vpack.c.b16 %v752, %v739
  %v987 = vpack.c.b16 %v753, %v740
  %v988 = vpack.c.b16 %v767, %v754
  %v989 = vpack.c.b16 %v768, %v755
  %v990 = vpack.c.b16 %v769, %v756
  %v991 = vpack.c.b16 %v770, %v757
  %v992 = vpack.c.b16 %v771, %v758
  %v993 = vpack.c.b16 %v772, %v759
  %v994 = vpack.c.b16 %v773, %v760
  %v995 = vpack.c.b16 %v774, %v761
  %v996 = vpack.c.b16 %v775, %v762
  %v997 = vpack.c.b16 %v776, %v763
  %v998 = vpack.c.b16 %v777, %v764
  %v999 = vpack.c.b16 %v778, %v765
  %v1000 = vpack.c.b16 %v779, %v766
  %v1001 = vpack.c.b16 %v793, %v780
  %v1002 = vpack.c.b16 %v794, %v781
  %v1003 = vpack.c.b16 %v795, %v782
  %v1004 = vpack.c.b16 %v796, %v783
  %v1005 = vpack.c.b16 %v797, %v784
  %v1006 = vpack.c.b16 %v798, %v785
  %v1007 = vpack.c.b16 %v799, %v786
  %v1008 = vpack.c.b16 %v800, %v787
  %v1009 = vpack.c.b16 %v801, %v788
  %v1010 = vpack.c.b16 %v802, %v789
  %v1011 = vpack.c.b16 %v803, %v790
  %v1012 = vpack.c.b16 %v804, %v791
  %v1013 = vpack.c.b16 %v805, %v792
  %v1014 = vpack.c.b16 %v819, %v806
  %v1015 = vpack.c.b16 %v820, %v807
  %v1016 = vpack.c.b16 %v821, %v808
  %v1017 = vpack.c.b16 %v822, %v809
  %v1018 = vpack.c.b16 %v823, %v810
  %v1019 = vpack.c.b16 %v824, %v811
  %v1020 = vpack.c.b16 %v825, %v812
  %v1021 = vpack.c.b16 %v826, %v813
  %v1022 = vpack.c.b16 %v827, %v814
  %v1023 = vpack.c.b16 %v828, %v815
  %v1024 = vpack.c.b16 %v829, %v816
  %v1025 = vpack.c.b16 %v830, %v817
  %v1026 = vpack.c.b16 %v831, %v818
  %v1027 = vpack.c.b16 %v845, %v832
  %v1028 = vpack.c.b16 %v846, %v833
  %v1029 = vpack.c.b16 %v847, %v834
  %v1030 = vpack.c.b16 %v848, %v835
  %v1031 = vpack.c.b16 %v849, %v836
  %v1032 = vpack.c.b16 %v850, %v837
  %v1033 = vpack.c.b16 %v851, %v838
  %v1034 = vpack.c.b16 %v852, %v839
  %v1035 = vpack.c.b16 %v853, %v840
  %v1036 = vpack.c.b16 %v854, %v841
  %v1037 = vpack.c.b16 %v855, %v842
  %v1038 = vpack.c.b16 %v856, %v843
  %v1039 = vpack.c.b16 %v857, %v844
  %v1040 = vpack.c.b16 %v871, %v858
  %v1041 = vpack.c.b16 %v872, %v859
  %v1042 = vpack.c.b16 %v873, %v860
  %v1043 = vpack.c.b16 %v874, %v861
  %v1044 = vpack.c.b16 %v875, %v862
  %v1045 = vpack.c.b16 %v876, %v863
  %v1046 = vpack.c.b16 %v877, %v864
  %v1047 = vpack.c.b16 %v878, %v865
  %v1048 = vpack.c.b16 %v879, %v866
  %v1049 = vpack.c.b16 %v880, %v867
  %v1050 = vpack.c.b16 %v881, %v868
  %v1051 = vpack.c.b16 %v882, %v869
  %v1052 = vpack.c.b16 %v883, %v870
  %v1053 = vpack.c.b16 %v884, %v884
  %v1054 = vpack.c.b16 %v885, %v885
  %v1055 = vpack.c.b16 %v886, %v886
  %v1056 = vpack.c.b16 %v887, %v887
  %v1057 = vpack.c.b16 %v888, %v888
  %v1058 = vpack.c.b16 %v889, %v889
  %v1059 = vpack.c.b16 %v890, %v890
  %v1060 = vpack.c.b16 %v891, %v891
  %v1061 = vpack.c.b16 %v892, %v892
  %v1062 = vpack.c.b16 %v893, %v893
  %v1063 = vpack.c.b16 %v894, %v894
  %v1064 = vpack.c.b16 %v895, %v895
  %v1065 = vpack.c.b16 %v896, %v896
  %v1422 = vunpack.c.l.b16 %v190
  %v1423 = vunpack.c.l.b16 %v191
  %v1424 = vunpack.c.l.b16 %v192
  %v1425 = vunpack.c.l.b16 %v193
  %v1426 = vunpack.c.l.b16 %v194
  %v1427 = vunpack.c.l.b16 %v195
  %v1428 = vunpack.c.l.b16 %v196
  %v1429 = vunpack.c.l.b16 %v197
  %v1430 = vunpack.c.l.b16 %v198
  %v1431 = vunpack.c.l.b16 %v199
  %v1432 = vunpack.c.l.b16 %v200
  %v1433 = vunpack.c.l.b16 %v201
  %v1434 = vunpack.c.l.b16 %v202
  %v1435 = vunpack.c.l.b16 %v203
  %v1436 = vunpack.c.l.b16 %v204
  %v1437 = vunpack.c.l.b16 %v205
  %v1438 = vunpack.c.l.b16 %v206
  %v1439 = vunpack.c.l.b16 %v207
  %v1440 = vunpack.c.l.b16 %v208
  %v1441 = vunpack.c.l.b16 %v209
  %v1442 = vunpack.c.l.b16 %v210
  %v1443 = vunpack.c.l.b16 %v211
  %v1444 = vunpack.c.l.b16 %v212
  %v1445 = vunpack.c.l.b16 %v213
  %v1446 = vunpack.c.l.b16 %v214
  %v1447 = vunpack.c.l.b16 %v215
  %v1448 = vunpack.c.l.b16 %v216
  %v1449 = vunpack.c.l.b16 %v217
  %v1450 = vunpack.c.l.b16 %v218
  %v1451 = vunpack.c.l.b16 %v219
  %v1452 = vunpack.c.l.b16 %v220
  %v1453 = vunpack.c.l.b16 %v221
  %v1454 = vunpack.c.l.b16 %v222
  %v1455 = vunpack.c.l.b16 %v223
  %v1456 = vunpack.c.l.b16 %v224
  %v1457 = vunpack.c.l.b16 %v225
  %v1458 = vunpack.c.l.b16 %v226
  %v1459 = vunpack.c.l.b16 %v227
  %v1460 = vunpack.c.l.b16 %v228
  %v1461 = vunpack.c.l.b16 %v229
  %v1462 = vunpack.c.l.b16 %v230
  %v1463 = vunpack.c.l.b16 %v231
  %v1464 = vunpack.c.l.b16 %v232
  %v1465 = vunpack.c.l.b16 %v233
  %v1466 = vunpack.c.l.b16 %v234
  %v1467 = vunpack.c.l.b16 %v235
  %v1468 = vunpack.c.l.b16 %v236
  %v1469 = vunpack.c.l.b16 %v237
  %v1470 = vunpack.c.l.b16 %v238
  %v1471 = vunpack.c.l.b16 %v239
  %v1472 = vunpack.c.l.b16 %v240
  %v1473 = vunpack.c.l.b16 %v241
  %v1474 = vunpack.c.l.b16 %v242
  %v1475 = vunpack.c.l.b16 %v243
  %v1476 = vunpack.c.l.b16 %v244
  %v1477 = vunpack.c.l.b16 %v245
  %v1478 = vunpack.c.l.b16 %v246
  %v1479 = vunpack.c.l.b16 %v247
  %v1480 = vunpack.c.l.b16 %v248
  %v1481 = vunpack.c.l.b16 %v249
  %v1482 = vunpack.c.l.b16 %v250
  %v1483 = vunpack.c.l.b16 %v251
  %v1484 = vunpack.c.l.b16 %v252
  %v1485 = vunpack.c.l.b16 %v253
  %v1486 = vunpack.c.l.b16 %v254
  %v1487 = vunpack.c.l.b16 %v255
  %v1488 = vunpack.c.l.b16 %v256
  %v1489 = vunpack.c.l.b16 %v257
  %v1490 = vunpack.c.l.b16 %v258
  %v1491 = vunpack.c.l.b16 %v259
  %v1492 = vunpack.c.l.b16 %v260
  %v1493 = vunpack.c.l.b16 %v261
  %v1494 = vunpack.c.l.b16 %v262
  %v1495 = vunpack.c.l.b16 %v263
  %v1496 = vunpack.c.l.b16 %v264
  %v1497 = vunpack.c.l.b16 %v265
  %v1498 = vunpack.c.l.b16 %v266
  %v1499 = vunpack.c.l.b16 %v267
  %v1500 = vunpack.c.l.b16 %v268
  %v1501 = vunpack.c.l.b16 %v269
  %v1502 = vunpack.c.l.b16 %v270
  %v1503 = vunpack.c.l.b16 %v271
  %v1504 = vunpack.c.l.b16 %v272
  %v1505 = vunpack.c.l.b16 %v273
  %v1506 = vunpack.c.l.b16 %v274
  %v1507 = vunpack.c.l.b16 %v275
  %v1508 = vunpack.c.l.b16 %v276
  %v1509 = vunpack.c.l.b16 %v277
  %v1510 = vunpack.c.l.b16 %v278
  %v1511 = vunpack.c.l.b16 %v279
  %v1512 = vunpack.c.l.b16 %v280
  %v1513 = vunpack.c.l.b16 %v281
  %v1514 = vunpack.c.l.b16 %v282
  %v1515 = vunpack.c.l.b16 %v283
  %v1516 = vunpack.c.l.b16 %v284
  %v1517 = vunpack.c.l.b16 %v285
  %v1518 = vunpack.c.l.b16 %v286
  %v1519 = vunpack.c.l.b16 %v287
  %v1520 = vunpack.c.l.b16 %v288
  %v1521 = vunpack.c.l.b16 %v289
  %v1522 = vunpack.c.l.b16 %v290
  %v1523 = vunpack.c.l.b16 %v291
  %v1524 = vunpack.c.l.b16 %v292
  %v1525 = vunpack.c.l.b16 %v293
  %v1526 = vunpack.c.l.b16 %v294
  %v1527 = vunpack.c.l.b16 %v295
  %v1528 = vunpack.c.l.b16 %v296
  %v1529 = vunpack.c.l.b16 %v297
  %v1530 = vunpack.c.l.b16 %v298
  %v1531 = vunpack.c.l.b16 %v299
  %v1532 = vunpack.c.l.b16 %v300
  %v1533 = vunpack.c.l.b16 %v301
  %v1534 = vunpack.c.l.b16 %v302
  %v1535 = vunpack.c.l.b16 %v303
  %v1536 = vunpack.c.l.b16 %v304
  %v1537 = vunpack.c.l.b16 %v305
  %v1538 = vunpack.c.l.b16 %v306
  %v1539 = vunpack.c.l.b16 %v307
  %v1540 = vunpack.c.l.b16 %v308
  %v1541 = vunpack.c.l.b16 %v309
  %v1542 = vunpack.c.l.b16 %v310
  %v1543 = vunpack.c.l.b16 %v311
  %v1544 = vunpack.c.l.b16 %v312
  %v1545 = vunpack.c.l.b16 %v313
  %v1546 = vunpack.c.l.b16 %v314
  %v1547 = vunpack.c.l.b16 %v315
  %v1548 = vunpack.c.l.b16 %v316
  %v1549 = vunpack.c.l.b16 %v317
  %v1550 = vunpack.c.l.b16 %v318
  %v1551 = vunpack.c.l.b16 %v319
  %v1552 = vunpack.c.l.b16 %v320
  %v1553 = vunpack.c.l.b16 %v321
  %v1554 = vunpack.c.l.b16 %v322
  %v1555 = vunpack.c.l.b16 %v323
  %v1556 = vunpack.c.l.b16 %v324
  %v1557 = vunpack.c.l.b16 %v325
  %v1558 = vunpack.c.l.b16 %v326
  %v1559 = vunpack.c.l.b16 %v327
  %v1560 = vunpack.c.l.b16 %v328
  %v1561 = vunpack.c.l.b16 %v329
  %v1562 = vunpack.c.l.b16 %v330
  %v1563 = vunpack.c.l.b16 %v331
  %v1564 = vunpack.c.l.b16 %v332
  %v1565 = vunpack.c.l.b16 %v333
  %v1566 = vunpack.c.l.b16 %v334
  %v1567 = vunpack.c.l.b16 %v335
  %v1568 = vunpack.c.l.b16 %v336
  %v1569 = vunpack.c.l.b16 %v337
  %v1570 = vunpack.c.l.b16 %v338
  %v1571 = vunpack.c.l.b16 %v339
  %v1572 = vunpack.c.l.b16 %v340
  %v1573 = vunpack.c.l.b16 %v341
  %v1574 = vunpack.c.l.b16 %v342
  %v1575 = vunpack.c.l.b16 %v343
  %v1576 = vunpack.c.l.b16 %v344
  %v1577 = vunpack.c.l.b16 %v345
  %v1578 = vunpack.c.l.b16 %v346
  %v1579 = vunpack.c.l.b16 %v347
  %v1580 = vunpack.c.l.b16 %v348
  %v1581 = vunpack.c.l.b16 %v349
  %v1582 = vunpack.c.l.b16 %v350
  %v1583 = vunpack.c.l.b16 %v351
  %v1584 = vunpack.c.l.b16 %v352
  %v1585 = vunpack.c.l.b16 %v353
  %v1586 = vunpack.c.l.b16 %v354
  %v1587 = vunpack.c.l.b16 %v355
  %v1588 = vunpack.c.l.b16 %v356
  %v1589 = vunpack.c.l.b16 %v357
  %v1590 = vunpack.c.l.b16 %v358
  %v1591 = vunpack.c.l.b16 %v359
  %v1592 = vunpack.c.l.b16 %v360
  %v1593 = vunpack.c.l.b16 %v361
  %v1594 = vunpack.c.l.b16 %v362
  %v1595 = vunpack.c.l.b16 %v363
  %v1596 = vunpack.c.l.b16 %v364
  %v1597 = vunpack.c.l.b16 %v365
  %v1598 = vunpack.c.l.b16 %v366
  %v1599 = vunpack.c.l.b16 %v367
  %v1600 = vunpack.c.l.b16 %v368
  %v1601 = vunpack.c.l.b16 %v369
  %v1602 = vunpack.c.l.b16 %v370
  %v1603 = vunpack.c.l.b16 %v371
  %v1604 = vunpack.c.l.b16 %v372
  %v1605 = vunpack.c.l.b16 %v373
  %v1606 = vunpack.c.l.b16 %v374
  %v1607 = vunpack.c.l.b16 %v375
  %v1608 = vunpack.c.l.b16 %v376
  %v1609 = vunpack.c.l.b16 %v377
  %v1610 = vunpack.c.l.b16 %v378
  %v1611 = vunpack.c.l.b16 %v379
  %v1612 = vunpack.c.l.b16 %v380
  %v1613 = vunpack.c.l.b16 %v381
  %v1614 = vunpack.c.l.b16 %v382
  %v1615 = vunpack.c.l.b16 %v383
  %v1616 = vunpack.c.l.b16 %v384
  %v1617 = vunpack.c.l.b16 %v385
  %v1618 = vunpack.c.l.b16 %v386
  %v1619 = vunpack.c.l.b16 %v387
  %v1620 = vunpack.c.l.b16 %v388
  %v1621 = vunpack.c.l.b16 %v389
  %v1622 = vpack.c.b16 %v1423, %v1422
  %v1623 = vpack.c.b16 %v1425, %v1424
  %v1624 = vpack.c.b16 %v1427, %v1426
  %v1625 = vpack.c.b16 %v1429, %v1428
  %v1626 = vpack.c.b16 %v1431, %v1430
  %v1627 = vpack.c.b16 %v1433, %v1432
  %v1628 = vpack.c.b16 %v1435, %v1434
  %v1629 = vpack.c.b16 %v1437, %v1436
  %v1630 = vpack.c.b16 %v1439, %v1438
  %v1631 = vpack.c.b16 %v1441, %v1440
  %v1632 = vpack.c.b16 %v1443, %v1442
  %v1633 = vpack.c.b16 %v1445, %v1444
  %v1634 = vpack.c.b16 %v1447, %v1446
  %v1635 = vpack.c.b16 %v1449, %v1448
  %v1636 = vpack.c.b16 %v1451, %v1450
  %v1637 = vpack.c.b16 %v1453, %v1452
  %v1638 = vpack.c.b16 %v1455, %v1454
  %v1639 = vpack.c.b16 %v1457, %v1456
  %v1640 = vpack.c.b16 %v1459, %v1458
  %v1641 = vpack.c.b16 %v1461, %v1460
  %v1642 = vpack.c.b16 %v1463, %v1462
  %v1643 = vpack.c.b16 %v1465, %v1464
  %v1644 = vpack.c.b16 %v1467, %v1466
  %v1645 = vpack.c.b16 %v1469, %v1468
  %v1646 = vpack.c.b16 %v1471, %v1470
  %v1647 = vpack.c.b16 %v1473, %v1472
  %v1648 = vpack.c.b16 %v1475, %v1474
  %v1649 = vpack.c.b16 %v1477, %v1476
  %v1650 = vpack.c.b16 %v1479, %v1478
  %v1651 = vpack.c.b16 %v1481, %v1480
  %v1652 = vpack.c.b16 %v1483, %v1482
  %v1653 = vpack.c.b16 %v1485, %v1484
  %v1654 = vpack.c.b16 %v1487, %v1486
  %v1655 = vpack.c.b16 %v1489, %v1488
  %v1656 = vpack.c.b16 %v1491, %v1490
  %v1657 = vpack.c.b16 %v1493, %v1492
  %v1658 = vpack.c.b16 %v1495, %v1494
  %v1659 = vpack.c.b16 %v1497, %v1496
  %v1660 = vpack.c.b16 %v1499, %v1498
  %v1661 = vpack.c.b16 %v1501, %v1500
  %v1662 = vpack.c.b16 %v1503, %v1502
  %v1663 = vpack.c.b16 %v1505, %v1504
  %v1664 = vpack.c.b16 %v1507, %v1506
  %v1665 = vpack.c.b16 %v1509, %v1508
  %v1666 = vpack.c.b16 %v1511, %v1510
  %v1667 = vpack.c.b16 %v1513, %v1512
  %v1668 = vpack.c.b16 %v1515, %v1514
  %v1669 = vpack.c.b16 %v1517, %v1516
  %v1670 = vpack.c.b16 %v1519, %v1518
  %v1671 = vpack.c.b16 %v1521, %v1520
  %v1672 = vpack.c.b16 %v1523, %v1522
  %v1673 = vpack.c.b16 %v1525, %v1524
  %v1674 = vpack.c.b16 %v1527, %v1526
  %v1675 = vpack.c.b16 %v1529, %v1528
  %v1676 = vpack.c.b16 %v1531, %v1530
  %v1677 = vpack.c.b16 %v1533, %v1532
  %v1678 = vpack.c.b16 %v1535, %v1534
  %v1679 = vpack.c.b16 %v1537, %v1536
  %v1680 = vpack.c.b16 %v1539, %v1538
  %v1681 = vpack.c.b16 %v1541, %v1540
  %v1682 = vpack.c.b16 %v1543, %v1542
  %v1683 = vpack.c.b16 %v1545, %v1544
  %v1684 = vpack.c.b16 %v1547, %v1546
  %v1685 = vpack.c.b16 %v1549, %v1548
  %v1686 = vpack.c.b16 %v1551, %v1550
  %v1687 = vpack.c.b16 %v1553, %v1552
  %v1688 = vpack.c.b16 %v1555, %v1554
  %v1689 = vpack.c.b16 %v1557, %v1556
  %v1690 = vpack.c.b16 %v1559, %v1558
  %v1691 = vpack.c.b16 %v1561, %v1560
  %v1692 = vpack.c.b16 %v1563, %v1562
  %v1693 = vpack.c.b16 %v1565, %v1564
  %v1694 = vpack.c.b16 %v1567, %v1566
  %v1695 = vpack.c.b16 %v1569, %v1568
  %v1696 = vpack.c.b16 %v1571, %v1570
  %v1697 = vpack.c.b16 %v1573, %v1572
  %v1698 = vpack.c.b16 %v1575, %v1574
  %v1699 = vpack.c.b16 %v1577, %v1576
  %v1700 = vpack.c.b16 %v1579, %v1578
  %v1701 = vpack.c.b16 %v1581, %v1580
  %v1702 = vpack.c.b16 %v1583, %v1582
  %v1703 = vpack.c.b16 %v1585, %v1584
  %v1704 = vpack.c.b16 %v1587, %v1586
  %v1705 = vpack.c.b16 %v1589, %v1588
  %v1706 = vpack.c.b16 %v1591, %v1590
  %v1707 = vpack.c.b16 %v1593, %v1592
  %v1708 = vpack.c.b16 %v1595, %v1594
  %v1709 = vpack.c.b16 %v1597, %v1596
  %v1710 = vpack.c.b16 %v1599, %v1598
  %v1711 = vpack.c.b16 %v1601, %v1600
  %v1712 = vpack.c.b16 %v1603, %v1602
  %v1713 = vpack.c.b16 %v1605, %v1604
  %v1714 = vpack.c.b16 %v1607, %v1606
  %v1715 = vpack.c.b16 %v1609, %v1608
  %v1716 = vpack.c.b16 %v1611, %v1610
  %v1717 = vpack.c.b16 %v1613, %v1612
  %v1718 = vpack.c.b16 %v1615, %v1614
  %v1719 = vpack.c.b16 %v1617, %v1616
  %v1720 = vpack.c.b16 %v1619, %v1618
  %v1721 = vpack.c.b16 %v1621, %v1620
  %vm1822 = vcmask 523264
  %v1824 = vsel %vm1822, %v909, 0
  %v1827 = vsel %vm1822, %v922, 0
  %v1830 = vsel %vm1822, %v935, 0
  %v1833 = vsel %vm1822, %v948, 0
  %v1836 = vsel %vm1822, %v961, 0
  %v1839 = vsel %vm1822, %v974, 0
  %v1842 = vsel %vm1822, %v987, 0
  %v1845 = vsel %vm1822, %v1000, 0
  %v1848 = vsel %vm1822, %v1013, 0
  %v1851 = vsel %vm1822, %v1026, 0
  %v1854 = vsel %vm1822, %v1039, 0
  %v1857 = vsel %vm1822, %v1052, 0
  %v1860 = vsel %vm1822, %v1065, 0
  %1862 = vmatprep.subr.bf16.mxu0 0
  %1863 = vmatpush1.bf16.msra.mxu0 %v1622
  %1864 = vmatprep.subr.bf16.mxu0 0
  %1865 = vmatpush1.bf16.msra.mxu0 %v1623
  %1866 = vmatprep.subr.bf16.mxu0 0
  %1867 = vmatpush1.bf16.msra.mxu0 %v1624
  %1868 = vmatprep.subr.bf16.mxu0 0
  %1869 = vmatpush1.bf16.msra.mxu0 %v1625
  %1870 = vmatprep.subr.bf16.mxu0 0
  %1871 = vmatpush1.bf16.msra.mxu0 %v1626
  %1872 = vmatprep.subr.bf16.mxu0 0
  %1873 = vmatpush1.bf16.msra.mxu0 %v1627
  %1874 = vmatprep.subr.bf16.mxu0 0
  %1875 = vmatpush1.bf16.msra.mxu0 %v1628
  %1876 = vmatprep.subr.bf16.mxu0 0
  %1877 = vmatpush1.bf16.msra.mxu0 %v1629
  %1878 = vmatprep.subr.bf16.mxu0 0
  %1879 = vmatpush1.bf16.msra.mxu0 %v1630
  %1880 = vmatprep.subr.bf16.mxu0 0
  %1881 = vmatpush1.bf16.msra.mxu0 %v1631
  %1882 = vmatprep.subr.bf16.mxu0 0
  %1883 = vmatpush1.bf16.msra.mxu0 %v1632
  %1884 = vmatprep.subr.bf16.mxu0 0
  %1885 = vmatpush1.bf16.msra.mxu0 %v1633
  %1886 = vmatprep.subr.bf16.mxu0 0
  %1887 = vmatpush1.bf16.msra.mxu0 %v1634
  %1888 = vmatprep.subr.bf16.mxu0 0
  %1889 = vmatpush1.bf16.msra.mxu0 %v1635
  %1890 = vmatprep.subr.bf16.mxu0 0
  %1891 = vmatpush1.bf16.msra.mxu0 %v1636
  %1892 = vmatprep.subr.bf16.mxu0 0
  %1893 = vmatpush1.bf16.msra.mxu0 %v1637
  %1894 = vmatprep.mubr.bf16.mxu0 %v898
  %1895 = vmatmul.mubr.bf16.gmra.mrb[0].mxu0 %v897
  %v1896 = vpop.f32.mrb[0].mxu0
  %v1897 = vadd.f32 %v395, %v1896
  %v1898 = vpop.f32.mrb[0].mxu0
  %v1899 = vpop.f32.mrb[0].mxu0
  %v1900 = vadd.f32 %v395, %v1899
  %v1901 = vpop.f32.mrb[0].mxu0
  %1902 = vmatprep.mubr.bf16.mxu0 %v911
  %1903 = vmatmul.mubr.bf16.gmra.mrb[0].mxu0 %v910
  %v1904 = vpop.f32.mrb[0].mxu0
  %v1905 = vadd.f32 %v395, %v1904
  %v1906 = vpop.f32.mrb[0].mxu0
  %v1907 = vpop.f32.mrb[0].mxu0
  %v1908 = vadd.f32 %v395, %v1907
  %v1909 = vpop.f32.mrb[0].mxu0
  %1910 = vmatprep.mubr.bf16.mxu0 %v924
  %1911 = vmatmul.mubr.bf16.gmra.mrb[0].mxu0 %v923
  %v1912 = vpop.f32.mrb[0].mxu0
  %v1913 = vadd.f32 %v395, %v1912
  %v1914 = vpop.f32.mrb[0].mxu0
  %v1915 = vpop.f32.mrb[0].mxu0
  %v1916 = vadd.f32 %v395, %v1915
  %v1917 = vpop.f32.mrb[0].mxu0
  %1918 = vmatprep.mubr.bf16.mxu0 %v937
  %1919 = vmatmul.mubr.bf16.gmra.mrb[0].mxu0 %v936
  %v1920 = vpop.f32.mrb[0].mxu0
  %v1921 = vadd.f32 %v395, %v1920
  %v1922 = vpop.f32.mrb[0].mxu0
  %v1923 = vpop.f32.mrb[0].mxu0
  %v1924 = vadd.f32 %v395, %v1923
  %v1925 = vpop.f32.mrb[0].mxu0
  %1926 = vmatprep.mubr.bf16.mxu0 %v950
  %1927 = vmatmul.mubr.bf16.gmra.mrb[0].mxu0 %v949
  %v1928 = vpop.f32.mrb[0].mxu0
  %v1929 = vadd.f32 %v395, %v1928
  %v1930 = vpop.f32.mrb[0].mxu0
  %v1931 = vpop.f32.mrb[0].mxu0
  %v1932 = vadd.f32 %v395, %v1931
  %v1933 = vpop.f32.mrb[0].mxu0
  %1934 = vmatprep.mubr.bf16.mxu0 %v963
  %1935 = vmatmul.mubr.bf16.gmra.mrb[0].mxu0 %v962
  %v1936 = vpop.f32.mrb[0].mxu0
  %v1937 = vadd.f32 %v395, %v1936
  %v1938 = vpop.f32.mrb[0].mxu0
  %v1939 = vpop.f32.mrb[0].mxu0
  %v1940 = vadd.f32 %v395, %v1939
  %v1941 = vpop.f32.mrb[0].mxu0
  %1942 = vmatprep.mubr.bf16.mxu0 %v976
  %1943 = vmatmul.mubr.bf16.gmra.mrb[0].mxu0 %v975
  %v1944 = vpop.f32.mrb[0].mxu0
  %v1945 = vadd.f32 %v395, %v1944
  %v1946 = vpop.f32.mrb[0].mxu0
  %v1947 = vpop.f32.mrb[0].mxu0
  %v1948 = vadd.f32 %v395, %v1947
  %v1949 = vpop.f32.mrb[0].mxu0
  %1950 = vmatprep.mubr.bf16.mxu0 %v989
  %1951 = vmatmul.mubr.bf16.gmra.mrb[0].mxu0 %v988
  %v1952 = vpop.f32.mrb[0].mxu0
  %v1953 = vadd.f32 %v395, %v1952
  %v1954 = vpop.f32.mrb[0].mxu0
  %v1955 = vpop.f32.mrb[0].mxu0
  %v1956 = vadd.f32 %v395, %v1955
  %v1957 = vpop.f32.mrb[0].mxu0
  %1958 = vmatprep.mubr.bf16.mxu0 %v1002
  %1959 = vmatmul.mubr.bf16.gmra.mrb[0].mxu0 %v1001
  %v1960 = vpop.f32.mrb[0].mxu0
  %v1961 = vadd.f32 %v395, %v1960
  %v1962 = vpop.f32.mrb[0].mxu0
  %v1963 = vpop.f32.mrb[0].mxu0
  %v1964 = vadd.f32 %v395, %v1963
  %v1965 = vpop.f32.mrb[0].mxu0
  %1966 = vmatprep.mubr.bf16.mxu0 %v1015
  %1967 = vmatmul.mubr.bf16.gmra.mrb[0].mxu0 %v1014
  %v1968 = vpop.f32.mrb[0].mxu0
  %v1969 = vadd.f32 %v395, %v1968
  %v1970 = vpop.f32.mrb[0].mxu0
  %v1971 = vpop.f32.mrb[0].mxu0
  %v1972 = vadd.f32 %v395, %v1971
  %v1973 = vpop.f32.mrb[0].mxu0
  %1974 = vmatprep.mubr.bf16.mxu0 %v1028
  %1975 = vmatmul.mubr.bf16.gmra.mrb[0].mxu0 %v1027
  %v1976 = vpop.f32.mrb[0].mxu0
  %v1977 = vadd.f32 %v395, %v1976
  %v1978 = vpop.f32.mrb[0].mxu0
  %v1979 = vpop.f32.mrb[0].mxu0
  %v1980 = vadd.f32 %v395, %v1979
  %v1981 = vpop.f32.mrb[0].mxu0
  %1982 = vmatprep.mubr.bf16.mxu0 %v1041
  %1983 = vmatmul.mubr.bf16.gmra.mrb[0].mxu0 %v1040
  %v1984 = vpop.f32.mrb[0].mxu0
  %v1985 = vadd.f32 %v395, %v1984
  %v1986 = vpop.f32.mrb[0].mxu0
  %v1987 = vpop.f32.mrb[0].mxu0
  %v1988 = vadd.f32 %v395, %v1987
  %v1989 = vpop.f32.mrb[0].mxu0
  %1990 = vmatprep.mubr.bf16.mxu0 %v1054
  %1991 = vmatmul.mubr.bf16.gmra.mrb[0].mxu0 %v1053
  %v1992 = vpop.f32.mrb[0].mxu0
  %v1993 = vadd.f32 %v395, %v1992
  %v1994 = vpop.f32.mrb[0].mxu0
  %v1995 = vpop.f32.mrb[0].mxu0
  %v1996 = vpop.f32.mrb[0].mxu0
  %1997 = vdwg.mxu0
  %1998 = vmatprep.subr.bf16.mxu0 0
  %1999 = vmatpush1.bf16.msra.mxu0 %v1638
  %2000 = vmatprep.subr.bf16.mxu0 0
  %2001 = vmatpush1.bf16.msra.mxu0 %v1639
  %2002 = vmatprep.subr.bf16.mxu0 0
  %2003 = vmatpush1.bf16.msra.mxu0 %v1640
  %2004 = vmatprep.subr.bf16.mxu0 0
  %2005 = vmatpush1.bf16.msra.mxu0 %v1641
  %2006 = vmatprep.subr.bf16.mxu0 0
  %2007 = vmatpush1.bf16.msra.mxu0 %v1642
  %2008 = vmatprep.subr.bf16.mxu0 0
  %2009 = vmatpush1.bf16.msra.mxu0 %v1643
  %2010 = vmatprep.subr.bf16.mxu0 0
  %2011 = vmatpush1.bf16.msra.mxu0 %v1644
  %2012 = vmatprep.subr.bf16.mxu0 0
  %2013 = vmatpush1.bf16.msra.mxu0 %v1645
  %2014 = vmatprep.subr.bf16.mxu0 0
  %2015 = vmatpush1.bf16.msra.mxu0 %v1646
  %2016 = vmatprep.subr.bf16.mxu0 0
  %2017 = vmatpush1.bf16.msra.mxu0 %v1647
  %2018 = vmatprep.subr.bf16.mxu0 0
  %2019 = vmatpush1.bf16.msra.mxu0 %v1648
  %2020 = vmatprep.subr.bf16.mxu0 0
  %2021 = vmatpush1.bf16.msra.mxu0 %v1649
  %2022 = vmatprep.subr.bf16.mxu0 0
  %2023 = vmatpush1.bf16.msra.mxu0 %v1650
  %2024 = vmatprep.subr.bf16.mxu0 0
  %2025 = vmatpush1.bf16.msra.mxu0 %v1651
  %2026 = vmatprep.subr.bf16.mxu0 0
  %2027 = vmatpush1.bf16.msra.mxu0 %v1652
  %2028 = vmatprep.subr.bf16.mxu0 0
  %2029 = vmatpush1.bf16.msra.mxu0 %v1653
  %2030 = vmatprep.mubr.bf16.mxu0 %v900
  %2031 = vmatmul.mubr.bf16.gmra.mrb[0].mxu0 %v899
  %v2032 = vpop.f32.mrb[0].mxu0
  %v2033 = vadd.f32 %v1897, %v2032
  %v2034 = vpop.f32.mrb[0].mxu0
  %v2035 = vpop.f32.mrb[0].mxu0
  %v2036 = vadd.f32 %v1900, %v2035
  %v2037 = vpop.f32.mrb[0].mxu0
  %2038 = vmatprep.mubr.bf16.mxu0 %v913
  %2039 = vmatmul.mubr.bf16.gmra.mrb[0].mxu0 %v912
  %v2040 = vpop.f32.mrb[0].mxu0
  %v2041 = vadd.f32 %v1905, %v2040
  %v2042 = vpop.f32.mrb[0].mxu0
  %v2043 = vpop.f32.mrb[0].mxu0
  %v2044 = vadd.f32 %v1908, %v2043
  %v2045 = vpop.f32.mrb[0].mxu0
  %2046 = vmatprep.mubr.bf16.mxu0 %v926
  %2047 = vmatmul.mubr.bf16.gmra.mrb[0].mxu0 %v925
  %v2048 = vpop.f32.mrb[0].mxu0
  %v2049 = vadd.f32 %v1913, %v2048
  %v2050 = vpop.f32.mrb[0].mxu0
  %v2051 = vpop.f32.mrb[0].mxu0
  %v2052 = vadd.f32 %v1916, %v2051
  %v2053 = vpop.f32.mrb[0].mxu0
  %2054 = vmatprep.mubr.bf16.mxu0 %v939
  %2055 = vmatmul.mubr.bf16.gmra.mrb[0].mxu0 %v938
  %v2056 = vpop.f32.mrb[0].mxu0
  %v2057 = vadd.f32 %v1921, %v2056
  %v2058 = vpop.f32.mrb[0].mxu0
  %v2059 = vpop.f32.mrb[0].mxu0
  %v2060 = vadd.f32 %v1924, %v2059
  %v2061 = vpop.f32.mrb[0].mxu0
  %2062 = vmatprep.mubr.bf16.mxu0 %v952
  %2063 = vmatmul.mubr.bf16.gmra.mrb[0].mxu0 %v951
  %v2064 = vpop.f32.mrb[0].mxu0
  %v2065 = vadd.f32 %v1929, %v2064
  %v2066 = vpop.f32.mrb[0].mxu0
  %v2067 = vpop.f32.mrb[0].mxu0
  %v2068 = vadd.f32 %v1932, %v2067
  %v2069 = vpop.f32.mrb[0].mxu0
  %2070 = vmatprep.mubr.bf16.mxu0 %v965
  %2071 = vmatmul.mubr.bf16.gmra.mrb[0].mxu0 %v964
  %v2072 = vpop.f32.mrb[0].mxu0
  %v2073 = vadd.f32 %v1937, %v2072
  %v2074 = vpop.f32.mrb[0].mxu0
  %v2075 = vpop.f32.mrb[0].mxu0
  %v2076 = vadd.f32 %v1940, %v2075
  %v2077 = vpop.f32.mrb[0].mxu0
  %2078 = vmatprep.mubr.bf16.mxu0 %v978
  %2079 = vmatmul.mubr.bf16.gmra.mrb[0].mxu0 %v977
  %v2080 = vpop.f32.mrb[0].mxu0
  %v2081 = vadd.f32 %v1945, %v2080
  %v2082 = vpop.f32.mrb[0].mxu0
  %v2083 = vpop.f32.mrb[0].mxu0
  %v2084 = vadd.f32 %v1948, %v2083
  %v2085 = vpop.f32.mrb[0].mxu0
  %2086 = vmatprep.mubr.bf16.mxu0 %v991
  %2087 = vmatmul.mubr.bf16.gmra.mrb[0].mxu0 %v990
  %v2088 = vpop.f32.mrb[0].mxu0
  %v2089 = vadd.f32 %v1953, %v2088
  %v2090 = vpop.f32.mrb[0].mxu0
  %v2091 = vpop.f32.mrb[0].mxu0
  %v2092 = vadd.f32 %v1956, %v2091
  %v2093 = vpop.f32.mrb[0].mxu0
  %2094 = vmatprep.mubr.bf16.mxu0 %v1004
  %2095 = vmatmul.mubr.bf16.gmra.mrb[0].mxu0 %v1003
  %v2096 = vpop.f32.mrb[0].mxu0
  %v2097 = vadd.f32 %v1961, %v2096
  %v2098 = vpop.f32.mrb[0].mxu0
  %v2099 = vpop.f32.mrb[0].mxu0
  %v2100 = vadd.f32 %v1964, %v2099
  %v2101 = vpop.f32.mrb[0].mxu0
  %2102 = vmatprep.mubr.bf16.mxu0 %v1017
  %2103 = vmatmul.mubr.bf16.gmra.mrb[0].mxu0 %v1016
  %v2104 = vpop.f32.mrb[0].mxu0
  %v2105 = vadd.f32 %v1969, %v2104
  %v2106 = vpop.f32.mrb[0].mxu0
  %v2107 = vpop.f32.mrb[0].mxu0
  %v2108 = vadd.f32 %v1972, %v2107
  %v2109 = vpop.f32.mrb[0].mxu0
  %2110 = vmatprep.mubr.bf16.mxu0 %v1030
  %2111 = vmatmul.mubr.bf16.gmra.mrb[0].mxu0 %v1029
  %v2112 = vpop.f32.mrb[0].mxu0
  %v2113 = vadd.f32 %v1977, %v2112
  %v2114 = vpop.f32.mrb[0].mxu0
  %v2115 = vpop.f32.mrb[0].mxu0
  %v2116 = vadd.f32 %v1980, %v2115
  %v2117 = vpop.f32.mrb[0].mxu0
  %2118 = vmatprep.mubr.bf16.mxu0 %v1043
  %2119 = vmatmul.mubr.bf16.gmra.mrb[0].mxu0 %v1042
  %v2120 = vpop.f32.mrb[0].mxu0
  %v2121 = vadd.f32 %v1985, %v2120
  %v2122 = vpop.f32.mrb[0].mxu0
  %v2123 = vpop.f32.mrb[0].mxu0
  %v2124 = vadd.f32 %v1988, %v2123
  %v2125 = vpop.f32.mrb[0].mxu0
  %2126 = vmatprep.mubr.bf16.mxu0 %v1056
  %2127 = vmatmul.mubr.bf16.gmra.mrb[0].mxu0 %v1055
  %v2128 = vpop.f32.mrb[0].mxu0
  %v2129 = vadd.f32 %v1993, %v2128
  %v2130 = vpop.f32.mrb[0].mxu0
  %v2131 = vpop.f32.mrb[0].mxu0
  %v2132 = vpop.f32.mrb[0].mxu0
  %2133 = vdwg.mxu0
  %2134 = vmatprep.subr.bf16.mxu0 0
  %2135 = vmatpush1.bf16.msra.mxu0 %v1654
  %2136 = vmatprep.subr.bf16.mxu0 0
  %2137 = vmatpush1.bf16.msra.mxu0 %v1655
  %2138 = vmatprep.subr.bf16.mxu0 0
  %2139 = vmatpush1.bf16.msra.mxu0 %v1656
  %2140 = vmatprep.subr.bf16.mxu0 0
  %2141 = vmatpush1.bf16.msra.mxu0 %v1657
  %2142 = vmatprep.subr.bf16.mxu0 0
  %2143 = vmatpush1.bf16.msra.mxu0 %v1658
  %2144 = vmatprep.subr.bf16.mxu0 0
  %2145 = vmatpush1.bf16.msra.mxu0 %v1659
  %2146 = vmatprep.subr.bf16.mxu0 0
  %2147 = vmatpush1.bf16.msra.mxu0 %v1660
  %2148 = vmatprep.subr.bf16.mxu0 0
  %2149 = vmatpush1.bf16.msra.mxu0 %v1661
  %2150 = vmatprep.subr.bf16.mxu0 0
  %2151 = vmatpush1.bf16.msra.mxu0 %v1662
  %2152 = vmatprep.subr.bf16.mxu0 0
  %2153 = vmatpush1.bf16.msra.mxu0 %v1663
  %2154 = vmatprep.subr.bf16.mxu0 0
  %2155 = vmatpush1.bf16.msra.mxu0 %v1664
  %2156 = vmatprep.subr.bf16.mxu0 0
  %2157 = vmatpush1.bf16.msra.mxu0 %v1665
  %2158 = vmatprep.subr.bf16.mxu0 0
  %2159 = vmatpush1.bf16.msra.mxu0 %v1666
  %2160 = vmatprep.subr.bf16.mxu0 0
  %2161 = vmatpush1.bf16.msra.mxu0 %v1667
  %2162 = vmatprep.subr.bf16.mxu0 0
  %2163 = vmatpush1.bf16.msra.mxu0 %v1668
  %2164 = vmatprep.subr.bf16.mxu0 0
  %2165 = vmatpush1.bf16.msra.mxu0 %v1669
  %2166 = vmatprep.mubr.bf16.mxu0 %v902
  %2167 = vmatmul.mubr.bf16.gmra.mrb[0].mxu0 %v901
  %v2168 = vpop.f32.mrb[0].mxu0
  %v2169 = vadd.f32 %v2033, %v2168
  %v2170 = vpop.f32.mrb[0].mxu0
  %v2171 = vpop.f32.mrb[0].mxu0
  %v2172 = vadd.f32 %v2036, %v2171
  %v2173 = vpop.f32.mrb[0].mxu0
  %2174 = vmatprep.mubr.bf16.mxu0 %v915
  %2175 = vmatmul.mubr.bf16.gmra.mrb[0].mxu0 %v914
  %v2176 = vpop.f32.mrb[0].mxu0
  %v2177 = vadd.f32 %v2041, %v2176
  %v2178 = vpop.f32.mrb[0].mxu0
  %v2179 = vpop.f32.mrb[0].mxu0
  %v2180 = vadd.f32 %v2044, %v2179
  %v2181 = vpop.f32.mrb[0].mxu0
  %2182 = vmatprep.mubr.bf16.mxu0 %v928
  %2183 = vmatmul.mubr.bf16.gmra.mrb[0].mxu0 %v927
  %v2184 = vpop.f32.mrb[0].mxu0
  %v2185 = vadd.f32 %v2049, %v2184
  %v2186 = vpop.f32.mrb[0].mxu0
  %v2187 = vpop.f32.mrb[0].mxu0
  %v2188 = vadd.f32 %v2052, %v2187
  %v2189 = vpop.f32.mrb[0].mxu0
  %2190 = vmatprep.mubr.bf16.mxu0 %v941
  %2191 = vmatmul.mubr.bf16.gmra.mrb[0].mxu0 %v940
  %v2192 = vpop.f32.mrb[0].mxu0
  %v2193 = vadd.f32 %v2057, %v2192
  %v2194 = vpop.f32.mrb[0].mxu0
  %v2195 = vpop.f32.mrb[0].mxu0
  %v2196 = vadd.f32 %v2060, %v2195
  %v2197 = vpop.f32.mrb[0].mxu0
  %2198 = vmatprep.mubr.bf16.mxu0 %v954
  %2199 = vmatmul.mubr.bf16.gmra.mrb[0].mxu0 %v953
  %v2200 = vpop.f32.mrb[0].mxu0
  %v2201 = vadd.f32 %v2065, %v2200
  %v2202 = vpop.f32.mrb[0].mxu0
  %v2203 = vpop.f32.mrb[0].mxu0
  %v2204 = vadd.f32 %v2068, %v2203
  %v2205 = vpop.f32.mrb[0].mxu0
  %2206 = vmatprep.mubr.bf16.mxu0 %v967
  %2207 = vmatmul.mubr.bf16.gmra.mrb[0].mxu0 %v966
  %v2208 = vpop.f32.mrb[0].mxu0
  %v2209 = vadd.f32 %v2073, %v2208
  %v2210 = vpop.f32.mrb[0].mxu0
  %v2211 = vpop.f32.mrb[0].mxu0
  %v2212 = vadd.f32 %v2076, %v2211
  %v2213 = vpop.f32.mrb[0].mxu0
  %2214 = vmatprep.mubr.bf16.mxu0 %v980
  %2215 = vmatmul.mubr.bf16.gmra.mrb[0].mxu0 %v979
  %v2216 = vpop.f32.mrb[0].mxu0
  %v2217 = vadd.f32 %v2081, %v2216
  %v2218 = vpop.f32.mrb[0].mxu0
  %v2219 = vpop.f32.mrb[0].mxu0
  %v2220 = vadd.f32 %v2084, %v2219
  %v2221 = vpop.f32.mrb[0].mxu0
  %2222 = vmatprep.mubr.bf16.mxu0 %v993
  %2223 = vmatmul.mubr.bf16.gmra.mrb[0].mxu0 %v992
  %v2224 = vpop.f32.mrb[0].mxu0
  %v2225 = vadd.f32 %v2089, %v2224
  %v2226 = vpop.f32.mrb[0].mxu0
  %v2227 = vpop.f32.mrb[0].mxu0
  %v2228 = vadd.f32 %v2092, %v2227
  %v2229 = vpop.f32.mrb[0].mxu0
  %2230 = vmatprep.mubr.bf16.mxu0 %v1006
  %2231 = vmatmul.mubr.bf16.gmra.mrb[0].mxu0 %v1005
  %v2232 = vpop.f32.mrb[0].mxu0
  %v2233 = vadd.f32 %v2097, %v2232
  %v2234 = vpop.f32.mrb[0].mxu0
  %v2235 = vpop.f32.mrb[0].mxu0
  %v2236 = vadd.f32 %v2100, %v2235
  %v2237 = vpop.f32.mrb[0].mxu0
  %2238 = vmatprep.mubr.bf16.mxu0 %v1019
  %2239 = vmatmul.mubr.bf16.gmra.mrb[0].mxu0 %v1018
  %v2240 = vpop.f32.mrb[0].mxu0
  %v2241 = vadd.f32 %v2105, %v2240
  %v2242 = vpop.f32.mrb[0].mxu0
  %v2243 = vpop.f32.mrb[0].mxu0
  %v2244 = vadd.f32 %v2108, %v2243
  %v2245 = vpop.f32.mrb[0].mxu0
  %2246 = vmatprep.mubr.bf16.mxu0 %v1032
  %2247 = vmatmul.mubr.bf16.gmra.mrb[0].mxu0 %v1031
  %v2248 = vpop.f32.mrb[0].mxu0
  %v2249 = vadd.f32 %v2113, %v2248
  %v2250 = vpop.f32.mrb[0].mxu0
  %v2251 = vpop.f32.mrb[0].mxu0
  %v2252 = vadd.f32 %v2116, %v2251
  %v2253 = vpop.f32.mrb[0].mxu0
  %2254 = vmatprep.mubr.bf16.mxu0 %v1045
  %2255 = vmatmul.mubr.bf16.gmra.mrb[0].mxu0 %v1044
  %v2256 = vpop.f32.mrb[0].mxu0
  %v2257 = vadd.f32 %v2121, %v2256
  %v2258 = vpop.f32.mrb[0].mxu0
  %v2259 = vpop.f32.mrb[0].mxu0
  %v2260 = vadd.f32 %v2124, %v2259
  %v2261 = vpop.f32.mrb[0].mxu0
  %2262 = vmatprep.mubr.bf16.mxu0 %v1058
  %2263 = vmatmul.mubr.bf16.gmra.mrb[0].mxu0 %v1057
  %v2264 = vpop.f32.mrb[0].mxu0
  %v2265 = vadd.f32 %v2129, %v2264
  %v2266 = vpop.f32.mrb[0].mxu0
  %v2267 = vpop.f32.mrb[0].mxu0
  %v2268 = vpop.f32.mrb[0].mxu0
  %2269 = vdwg.mxu0
  %2270 = vmatprep.subr.bf16.mxu0 0
  %2271 = vmatpush1.bf16.msra.mxu0 %v1670
  %2272 = vmatprep.subr.bf16.mxu0 0
  %2273 = vmatpush1.bf16.msra.mxu0 %v1671
  %2274 = vmatprep.subr.bf16.mxu0 0
  %2275 = vmatpush1.bf16.msra.mxu0 %v1672
  %2276 = vmatprep.subr.bf16.mxu0 0
  %2277 = vmatpush1.bf16.msra.mxu0 %v1673
  %2278 = vmatprep.subr.bf16.mxu0 0
  %2279 = vmatpush1.bf16.msra.mxu0 %v1674
  %2280 = vmatprep.subr.bf16.mxu0 0
  %2281 = vmatpush1.bf16.msra.mxu0 %v1675
  %2282 = vmatprep.subr.bf16.mxu0 0
  %2283 = vmatpush1.bf16.msra.mxu0 %v1676
  %2284 = vmatprep.subr.bf16.mxu0 0
  %2285 = vmatpush1.bf16.msra.mxu0 %v1677
  %2286 = vmatprep.subr.bf16.mxu0 0
  %2287 = vmatpush1.bf16.msra.mxu0 %v1678
  %2288 = vmatprep.subr.bf16.mxu0 0
  %2289 = vmatpush1.bf16.msra.mxu0 %v1679
  %2290 = vmatprep.subr.bf16.mxu0 0
  %2291 = vmatpush1.bf16.msra.mxu0 %v1680
  %2292 = vmatprep.subr.bf16.mxu0 0
  %2293 = vmatpush1.bf16.msra.mxu0 %v1681
  %2294 = vmatprep.subr.bf16.mxu0 0
  %2295 = vmatpush1.bf16.msra.mxu0 %v1682
  %2296 = vmatprep.subr.bf16.mxu0 0
  %2297 = vmatpush1.bf16.msra.mxu0 %v1683
  %2298 = vmatprep.subr.bf16.mxu0 0
  %2299 = vmatpush1.bf16.msra.mxu0 %v1684
  %2300 = vmatprep.subr.bf16.mxu0 0
  %2301 = vmatpush1.bf16.msra.mxu0 %v1685
  %2302 = vmatprep.mubr.bf16.mxu0 %v904
  %2303 = vmatmul.mubr.bf16.gmra.mrb[0].mxu0 %v903
  %v2304 = vpop.f32.mrb[0].mxu0
  %v2305 = vadd.f32 %v2169, %v2304
  %v2306 = vpop.f32.mrb[0].mxu0
  %v2307 = vpop.f32.mrb[0].mxu0
  %v2308 = vadd.f32 %v2172, %v2307
  %v2309 = vpop.f32.mrb[0].mxu0
  %2310 = vmatprep.mubr.bf16.mxu0 %v917
  %2311 = vmatmul.mubr.bf16.gmra.mrb[0].mxu0 %v916
  %v2312 = vpop.f32.mrb[0].mxu0
  %v2313 = vadd.f32 %v2177, %v2312
  %v2314 = vpop.f32.mrb[0].mxu0
  %v2315 = vpop.f32.mrb[0].mxu0
  %v2316 = vadd.f32 %v2180, %v2315
  %v2317 = vpop.f32.mrb[0].mxu0
  %2318 = vmatprep.mubr.bf16.mxu0 %v930
  %2319 = vmatmul.mubr.bf16.gmra.mrb[0].mxu0 %v929
  %v2320 = vpop.f32.mrb[0].mxu0
  %v2321 = vadd.f32 %v2185, %v2320
  %v2322 = vpop.f32.mrb[0].mxu0
  %v2323 = vpop.f32.mrb[0].mxu0
  %v2324 = vadd.f32 %v2188, %v2323
  %v2325 = vpop.f32.mrb[0].mxu0
  %2326 = vmatprep.mubr.bf16.mxu0 %v943
  %2327 = vmatmul.mubr.bf16.gmra.mrb[0].mxu0 %v942
  %v2328 = vpop.f32.mrb[0].mxu0
  %v2329 = vadd.f32 %v2193, %v2328
  %v2330 = vpop.f32.mrb[0].mxu0
  %v2331 = vpop.f32.mrb[0].mxu0
  %v2332 = vadd.f32 %v2196, %v2331
  %v2333 = vpop.f32.mrb[0].mxu0
  %2334 = vmatprep.mubr.bf16.mxu0 %v956
  %2335 = vmatmul.mubr.bf16.gmra.mrb[0].mxu0 %v955
  %v2336 = vpop.f32.mrb[0].mxu0
  %v2337 = vadd.f32 %v2201, %v2336
  %v2338 = vpop.f32.mrb[0].mxu0
  %v2339 = vpop.f32.mrb[0].mxu0
  %v2340 = vadd.f32 %v2204, %v2339
  %v2341 = vpop.f32.mrb[0].mxu0
  %2342 = vmatprep.mubr.bf16.mxu0 %v969
  %2343 = vmatmul.mubr.bf16.gmra.mrb[0].mxu0 %v968
  %v2344 = vpop.f32.mrb[0].mxu0
  %v2345 = vadd.f32 %v2209, %v2344
  %v2346 = vpop.f32.mrb[0].mxu0
  %v2347 = vpop.f32.mrb[0].mxu0
  %v2348 = vadd.f32 %v2212, %v2347
  %v2349 = vpop.f32.mrb[0].mxu0
  %2350 = vmatprep.mubr.bf16.mxu0 %v982
  %2351 = vmatmul.mubr.bf16.gmra.mrb[0].mxu0 %v981
  %v2352 = vpop.f32.mrb[0].mxu0
  %v2353 = vadd.f32 %v2217, %v2352
  %v2354 = vpop.f32.mrb[0].mxu0
  %v2355 = vpop.f32.mrb[0].mxu0
  %v2356 = vadd.f32 %v2220, %v2355
  %v2357 = vpop.f32.mrb[0].mxu0
  %2358 = vmatprep.mubr.bf16.mxu0 %v995
  %2359 = vmatmul.mubr.bf16.gmra.mrb[0].mxu0 %v994
  %v2360 = vpop.f32.mrb[0].mxu0
  %v2361 = vadd.f32 %v2225, %v2360
  %v2362 = vpop.f32.mrb[0].mxu0
  %v2363 = vpop.f32.mrb[0].mxu0
  %v2364 = vadd.f32 %v2228, %v2363
  %v2365 = vpop.f32.mrb[0].mxu0
  %2366 = vmatprep.mubr.bf16.mxu0 %v1008
  %2367 = vmatmul.mubr.bf16.gmra.mrb[0].mxu0 %v1007
  %v2368 = vpop.f32.mrb[0].mxu0
  %v2369 = vadd.f32 %v2233, %v2368
  %v2370 = vpop.f32.mrb[0].mxu0
  %v2371 = vpop.f32.mrb[0].mxu0
  %v2372 = vadd.f32 %v2236, %v2371
  %v2373 = vpop.f32.mrb[0].mxu0
  %2374 = vmatprep.mubr.bf16.mxu0 %v1021
  %2375 = vmatmul.mubr.bf16.gmra.mrb[0].mxu0 %v1020
  %v2376 = vpop.f32.mrb[0].mxu0
  %v2377 = vadd.f32 %v2241, %v2376
  %v2378 = vpop.f32.mrb[0].mxu0
  %v2379 = vpop.f32.mrb[0].mxu0
  %v2380 = vadd.f32 %v2244, %v2379
  %v2381 = vpop.f32.mrb[0].mxu0
  %2382 = vmatprep.mubr.bf16.mxu0 %v1034
  %2383 = vmatmul.mubr.bf16.gmra.mrb[0].mxu0 %v1033
  %v2384 = vpop.f32.mrb[0].mxu0
  %v2385 = vadd.f32 %v2249, %v2384
  %v2386 = vpop.f32.mrb[0].mxu0
  %v2387 = vpop.f32.mrb[0].mxu0
  %v2388 = vadd.f32 %v2252, %v2387
  %v2389 = vpop.f32.mrb[0].mxu0
  %2390 = vmatprep.mubr.bf16.mxu0 %v1047
  %2391 = vmatmul.mubr.bf16.gmra.mrb[0].mxu0 %v1046
  %v2392 = vpop.f32.mrb[0].mxu0
  %v2393 = vadd.f32 %v2257, %v2392
  %v2394 = vpop.f32.mrb[0].mxu0
  %v2395 = vpop.f32.mrb[0].mxu0
  %v2396 = vadd.f32 %v2260, %v2395
  %v2397 = vpop.f32.mrb[0].mxu0
  %2398 = vmatprep.mubr.bf16.mxu0 %v1060
  %2399 = vmatmul.mubr.bf16.gmra.mrb[0].mxu0 %v1059
  %v2400 = vpop.f32.mrb[0].mxu0
  %v2401 = vadd.f32 %v2265, %v2400
  %v2402 = vpop.f32.mrb[0].mxu0
  %v2403 = vpop.f32.mrb[0].mxu0
  %v2404 = vpop.f32.mrb[0].mxu0
  %2405 = vdwg.mxu0
  %2406 = vmatprep.subr.bf16.mxu0 0
  %2407 = vmatpush1.bf16.msra.mxu0 %v1686
  %2408 = vmatprep.subr.bf16.mxu0 0
  %2409 = vmatpush1.bf16.msra.mxu0 %v1687
  %2410 = vmatprep.subr.bf16.mxu0 0
  %2411 = vmatpush1.bf16.msra.mxu0 %v1688
  %2412 = vmatprep.subr.bf16.mxu0 0
  %2413 = vmatpush1.bf16.msra.mxu0 %v1689
  %2414 = vmatprep.subr.bf16.mxu0 0
  %2415 = vmatpush1.bf16.msra.mxu0 %v1690
  %2416 = vmatprep.subr.bf16.mxu0 0
  %2417 = vmatpush1.bf16.msra.mxu0 %v1691
  %2418 = vmatprep.subr.bf16.mxu0 0
  %2419 = vmatpush1.bf16.msra.mxu0 %v1692
  %2420 = vmatprep.subr.bf16.mxu0 0
  %2421 = vmatpush1.bf16.msra.mxu0 %v1693
  %2422 = vmatprep.subr.bf16.mxu0 0
  %2423 = vmatpush1.bf16.msra.mxu0 %v1694
  %2424 = vmatprep.subr.bf16.mxu0 0
  %2425 = vmatpush1.bf16.msra.mxu0 %v1695
  %2426 = vmatprep.subr.bf16.mxu0 0
  %2427 = vmatpush1.bf16.msra.mxu0 %v1696
  %2428 = vmatprep.subr.bf16.mxu0 0
  %2429 = vmatpush1.bf16.msra.mxu0 %v1697
  %2430 = vmatprep.subr.bf16.mxu0 0
  %2431 = vmatpush1.bf16.msra.mxu0 %v1698
  %2432 = vmatprep.subr.bf16.mxu0 0
  %2433 = vmatpush1.bf16.msra.mxu0 %v1699
  %2434 = vmatprep.subr.bf16.mxu0 0
  %2435 = vmatpush1.bf16.msra.mxu0 %v1700
  %2436 = vmatprep.subr.bf16.mxu0 0
  %2437 = vmatpush1.bf16.msra.mxu0 %v1701
  %2438 = vmatprep.mubr.bf16.mxu0 %v906
  %2439 = vmatmul.mubr.bf16.gmra.mrb[0].mxu0 %v905
  %v2440 = vpop.f32.mrb[0].mxu0
  %v2441 = vadd.f32 %v2305, %v2440
  %v2442 = vpop.f32.mrb[0].mxu0
  %v2443 = vpop.f32.mrb[0].mxu0
  %v2444 = vadd.f32 %v2308, %v2443
  %v2445 = vpop.f32.mrb[0].mxu0
  %2446 = vmatprep.mubr.bf16.mxu0 %v919
  %2447 = vmatmul.mubr.bf16.gmra.mrb[0].mxu0 %v918
  %v2448 = vpop.f32.mrb[0].mxu0
  %v2449 = vadd.f32 %v2313, %v2448
  %v2450 = vpop.f32.mrb[0].mxu0
  %v2451 = vpop.f32.mrb[0].mxu0
  %v2452 = vadd.f32 %v2316, %v2451
  %v2453 = vpop.f32.mrb[0].mxu0
  %2454 = vmatprep.mubr.bf16.mxu0 %v932
  %2455 = vmatmul.mubr.bf16.gmra.mrb[0].mxu0 %v931
  %v2456 = vpop.f32.mrb[0].mxu0
  %v2457 = vadd.f32 %v2321, %v2456
  %v2458 = vpop.f32.mrb[0].mxu0
  %v2459 = vpop.f32.mrb[0].mxu0
  %v2460 = vadd.f32 %v2324, %v2459
  %v2461 = vpop.f32.mrb[0].mxu0
  %2462 = vmatprep.mubr.bf16.mxu0 %v945
  %2463 = vmatmul.mubr.bf16.gmra.mrb[0].mxu0 %v944
  %v2464 = vpop.f32.mrb[0].mxu0
  %v2465 = vadd.f32 %v2329, %v2464
  %v2466 = vpop.f32.mrb[0].mxu0
  %v2467 = vpop.f32.mrb[0].mxu0
  %v2468 = vadd.f32 %v2332, %v2467
  %v2469 = vpop.f32.mrb[0].mxu0
  %2470 = vmatprep.mubr.bf16.mxu0 %v958
  %2471 = vmatmul.mubr.bf16.gmra.mrb[0].mxu0 %v957
  %v2472 = vpop.f32.mrb[0].mxu0
  %v2473 = vadd.f32 %v2337, %v2472
  %v2474 = vpop.f32.mrb[0].mxu0
  %v2475 = vpop.f32.mrb[0].mxu0
  %v2476 = vadd.f32 %v2340, %v2475
  %v2477 = vpop.f32.mrb[0].mxu0
  %2478 = vmatprep.mubr.bf16.mxu0 %v971
  %2479 = vmatmul.mubr.bf16.gmra.mrb[0].mxu0 %v970
  %v2480 = vpop.f32.mrb[0].mxu0
  %v2481 = vadd.f32 %v2345, %v2480
  %v2482 = vpop.f32.mrb[0].mxu0
  %v2483 = vpop.f32.mrb[0].mxu0
  %v2484 = vadd.f32 %v2348, %v2483
  %v2485 = vpop.f32.mrb[0].mxu0
  %2486 = vmatprep.mubr.bf16.mxu0 %v984
  %2487 = vmatmul.mubr.bf16.gmra.mrb[0].mxu0 %v983
  %v2488 = vpop.f32.mrb[0].mxu0
  %v2489 = vadd.f32 %v2353, %v2488
  %v2490 = vpop.f32.mrb[0].mxu0
  %v2491 = vpop.f32.mrb[0].mxu0
  %v2492 = vadd.f32 %v2356, %v2491
  %v2493 = vpop.f32.mrb[0].mxu0
  %2494 = vmatprep.mubr.bf16.mxu0 %v997
  %2495 = vmatmul.mubr.bf16.gmra.mrb[0].mxu0 %v996
  %v2496 = vpop.f32.mrb[0].mxu0
  %v2497 = vadd.f32 %v2361, %v2496
  %v2498 = vpop.f32.mrb[0].mxu0
  %v2499 = vpop.f32.mrb[0].mxu0
  %v2500 = vadd.f32 %v2364, %v2499
  %v2501 = vpop.f32.mrb[0].mxu0
  %2502 = vmatprep.mubr.bf16.mxu0 %v1010
  %2503 = vmatmul.mubr.bf16.gmra.mrb[0].mxu0 %v1009
  %v2504 = vpop.f32.mrb[0].mxu0
  %v2505 = vadd.f32 %v2369, %v2504
  %v2506 = vpop.f32.mrb[0].mxu0
  %v2507 = vpop.f32.mrb[0].mxu0
  %v2508 = vadd.f32 %v2372, %v2507
  %v2509 = vpop.f32.mrb[0].mxu0
  %2510 = vmatprep.mubr.bf16.mxu0 %v1023
  %2511 = vmatmul.mubr.bf16.gmra.mrb[0].mxu0 %v1022
  %v2512 = vpop.f32.mrb[0].mxu0
  %v2513 = vadd.f32 %v2377, %v2512
  %v2514 = vpop.f32.mrb[0].mxu0
  %v2515 = vpop.f32.mrb[0].mxu0
  %v2516 = vadd.f32 %v2380, %v2515
  %v2517 = vpop.f32.mrb[0].mxu0
  %2518 = vmatprep.mubr.bf16.mxu0 %v1036
  %2519 = vmatmul.mubr.bf16.gmra.mrb[0].mxu0 %v1035
  %v2520 = vpop.f32.mrb[0].mxu0
  %v2521 = vadd.f32 %v2385, %v2520
  %v2522 = vpop.f32.mrb[0].mxu0
  %v2523 = vpop.f32.mrb[0].mxu0
  %v2524 = vadd.f32 %v2388, %v2523
  %v2525 = vpop.f32.mrb[0].mxu0
  %2526 = vmatprep.mubr.bf16.mxu0 %v1049
  %2527 = vmatmul.mubr.bf16.gmra.mrb[0].mxu0 %v1048
  %v2528 = vpop.f32.mrb[0].mxu0
  %v2529 = vadd.f32 %v2393, %v2528
  %v2530 = vpop.f32.mrb[0].mxu0
  %v2531 = vpop.f32.mrb[0].mxu0
  %v2532 = vadd.f32 %v2396, %v2531
  %v2533 = vpop.f32.mrb[0].mxu0
  %2534 = vmatprep.mubr.bf16.mxu0 %v1062
  %2535 = vmatmul.mubr.bf16.gmra.mrb[0].mxu0 %v1061
  %v2536 = vpop.f32.mrb[0].mxu0
  %v2537 = vadd.f32 %v2401, %v2536
  %v2538 = vpop.f32.mrb[0].mxu0
  %v2539 = vpop.f32.mrb[0].mxu0
  %v2540 = vpop.f32.mrb[0].mxu0
  %2541 = vdwg.mxu0
  %2542 = vmatprep.subr.bf16.mxu0 0
  %2543 = vmatpush1.bf16.msra.mxu0 %v1702
  %2544 = vmatprep.subr.bf16.mxu0 0
  %2545 = vmatpush1.bf16.msra.mxu0 %v1703
  %2546 = vmatprep.subr.bf16.mxu0 0
  %2547 = vmatpush1.bf16.msra.mxu0 %v1704
  %2548 = vmatprep.subr.bf16.mxu0 0
  %2549 = vmatpush1.bf16.msra.mxu0 %v1705
  %2550 = vmatprep.subr.bf16.mxu0 0
  %2551 = vmatpush1.bf16.msra.mxu0 %v1706
  %2552 = vmatprep.subr.bf16.mxu0 0
  %2553 = vmatpush1.bf16.msra.mxu0 %v1707
  %2554 = vmatprep.subr.bf16.mxu0 0
  %2555 = vmatpush1.bf16.msra.mxu0 %v1708
  %2556 = vmatprep.subr.bf16.mxu0 0
  %2557 = vmatpush1.bf16.msra.mxu0 %v1709
  %2558 = vmatprep.subr.bf16.mxu0 0
  %2559 = vmatpush1.bf16.msra.mxu0 %v1710
  %2560 = vmatprep.subr.bf16.mxu0 0
  %2561 = vmatpush1.bf16.msra.mxu0 %v1711
  %2562 = vmatprep.subr.bf16.mxu0 0
  %2563 = vmatpush1.bf16.msra.mxu0 %v1712
  %2564 = vmatprep.subr.bf16.mxu0 0
  %2565 = vmatpush1.bf16.msra.mxu0 %v1713
  %2566 = vmatprep.subr.bf16.mxu0 0
  %2567 = vmatpush1.bf16.msra.mxu0 %v1714
  %2568 = vmatprep.subr.bf16.mxu0 0
  %2569 = vmatpush1.bf16.msra.mxu0 %v1715
  %2570 = vmatprep.subr.bf16.mxu0 0
  %2571 = vmatpush1.bf16.msra.mxu0 %v1716
  %2572 = vmatprep.subr.bf16.mxu0 0
  %2573 = vmatpush1.bf16.msra.mxu0 %v1717
  %2574 = vmatprep.mubr.bf16.mxu0 %v908
  %2575 = vmatmul.mubr.bf16.gmra.mrb[0].mxu0 %v907
  %v2576 = vpop.f32.mrb[0].mxu0
  %v2577 = vadd.f32 %v2441, %v2576
  %v2578 = vpop.f32.mrb[0].mxu0
  %v2579 = vpop.f32.mrb[0].mxu0
  %v2580 = vadd.f32 %v2444, %v2579
  %v2581 = vpop.f32.mrb[0].mxu0
  %2582 = vmatprep.mubr.bf16.mxu0 %v921
  %2583 = vmatmul.mubr.bf16.gmra.mrb[0].mxu0 %v920
  %v2584 = vpop.f32.mrb[0].mxu0
  %v2585 = vadd.f32 %v2449, %v2584
  %v2586 = vpop.f32.mrb[0].mxu0
  %v2587 = vpop.f32.mrb[0].mxu0
  %v2588 = vadd.f32 %v2452, %v2587
  %v2589 = vpop.f32.mrb[0].mxu0
  %2590 = vmatprep.mubr.bf16.mxu0 %v934
  %2591 = vmatmul.mubr.bf16.gmra.mrb[0].mxu0 %v933
  %v2592 = vpop.f32.mrb[0].mxu0
  %v2593 = vadd.f32 %v2457, %v2592
  %v2594 = vpop.f32.mrb[0].mxu0
  %v2595 = vpop.f32.mrb[0].mxu0
  %v2596 = vadd.f32 %v2460, %v2595
  %v2597 = vpop.f32.mrb[0].mxu0
  %2598 = vmatprep.mubr.bf16.mxu0 %v947
  %2599 = vmatmul.mubr.bf16.gmra.mrb[0].mxu0 %v946
  %v2600 = vpop.f32.mrb[0].mxu0
  %v2601 = vadd.f32 %v2465, %v2600
  %v2602 = vpop.f32.mrb[0].mxu0
  %v2603 = vpop.f32.mrb[0].mxu0
  %v2604 = vadd.f32 %v2468, %v2603
  %v2605 = vpop.f32.mrb[0].mxu0
  %2606 = vmatprep.mubr.bf16.mxu0 %v960
  %2607 = vmatmul.mubr.bf16.gmra.mrb[0].mxu0 %v959
  %v2608 = vpop.f32.mrb[0].mxu0
  %v2609 = vadd.f32 %v2473, %v2608
  %v2610 = vpop.f32.mrb[0].mxu0
  %v2611 = vpop.f32.mrb[0].mxu0
  %v2612 = vadd.f32 %v2476, %v2611
  %v2613 = vpop.f32.mrb[0].mxu0
  %2614 = vmatprep.mubr.bf16.mxu0 %v973
  %2615 = vmatmul.mubr.bf16.gmra.mrb[0].mxu0 %v972
  %v2616 = vpop.f32.mrb[0].mxu0
  %v2617 = vadd.f32 %v2481, %v2616
  %v2618 = vpop.f32.mrb[0].mxu0
  %v2619 = vpop.f32.mrb[0].mxu0
  %v2620 = vadd.f32 %v2484, %v2619
  %v2621 = vpop.f32.mrb[0].mxu0
  %2622 = vmatprep.mubr.bf16.mxu0 %v986
  %2623 = vmatmul.mubr.bf16.gmra.mrb[0].mxu0 %v985
  %v2624 = vpop.f32.mrb[0].mxu0
  %v2625 = vadd.f32 %v2489, %v2624
  %v2626 = vpop.f32.mrb[0].mxu0
  %v2627 = vpop.f32.mrb[0].mxu0
  %v2628 = vadd.f32 %v2492, %v2627
  %v2629 = vpop.f32.mrb[0].mxu0
  %2630 = vmatprep.mubr.bf16.mxu0 %v999
  %2631 = vmatmul.mubr.bf16.gmra.mrb[0].mxu0 %v998
  %v2632 = vpop.f32.mrb[0].mxu0
  %v2633 = vadd.f32 %v2497, %v2632
  %v2634 = vpop.f32.mrb[0].mxu0
  %v2635 = vpop.f32.mrb[0].mxu0
  %v2636 = vadd.f32 %v2500, %v2635
  %v2637 = vpop.f32.mrb[0].mxu0
  %2638 = vmatprep.mubr.bf16.mxu0 %v1012
  %2639 = vmatmul.mubr.bf16.gmra.mrb[0].mxu0 %v1011
  %v2640 = vpop.f32.mrb[0].mxu0
  %v2641 = vadd.f32 %v2505, %v2640
  %v2642 = vpop.f32.mrb[0].mxu0
  %v2643 = vpop.f32.mrb[0].mxu0
  %v2644 = vadd.f32 %v2508, %v2643
  %v2645 = vpop.f32.mrb[0].mxu0
  %2646 = vmatprep.mubr.bf16.mxu0 %v1025
  %2647 = vmatmul.mubr.bf16.gmra.mrb[0].mxu0 %v1024
  %v2648 = vpop.f32.mrb[0].mxu0
  %v2649 = vadd.f32 %v2513, %v2648
  %v2650 = vpop.f32.mrb[0].mxu0
  %v2651 = vpop.f32.mrb[0].mxu0
  %v2652 = vadd.f32 %v2516, %v2651
  %v2653 = vpop.f32.mrb[0].mxu0
  %2654 = vmatprep.mubr.bf16.mxu0 %v1038
  %2655 = vmatmul.mubr.bf16.gmra.mrb[0].mxu0 %v1037
  %v2656 = vpop.f32.mrb[0].mxu0
  %v2657 = vadd.f32 %v2521, %v2656
  %v2658 = vpop.f32.mrb[0].mxu0
  %v2659 = vpop.f32.mrb[0].mxu0
  %v2660 = vadd.f32 %v2524, %v2659
  %v2661 = vpop.f32.mrb[0].mxu0
  %2662 = vmatprep.mubr.bf16.mxu0 %v1051
  %2663 = vmatmul.mubr.bf16.gmra.mrb[0].mxu0 %v1050
  %v2664 = vpop.f32.mrb[0].mxu0
  %v2665 = vadd.f32 %v2529, %v2664
  %v2666 = vpop.f32.mrb[0].mxu0
  %v2667 = vpop.f32.mrb[0].mxu0
  %v2668 = vadd.f32 %v2532, %v2667
  %v2669 = vpop.f32.mrb[0].mxu0
  %2670 = vmatprep.mubr.bf16.mxu0 %v1064
  %2671 = vmatmul.mubr.bf16.gmra.mrb[0].mxu0 %v1063
  %v2672 = vpop.f32.mrb[0].mxu0
  %v2673 = vadd.f32 %v2537, %v2672
  %v2674 = vpop.f32.mrb[0].mxu0
  %v2675 = vpop.f32.mrb[0].mxu0
  %v2676 = vpop.f32.mrb[0].mxu0
  %2677 = vdwg.mxu0
  %2678 = vmatprep.subr.bf16.mxu0 0
  %2679 = vmatpush1.bf16.msra.mxu0 %v1718
  %2680 = vmatprep.subr.bf16.mxu0 0
  %2681 = vmatpush1.bf16.msra.mxu0 %v1719
  %2682 = vmatprep.subr.bf16.mxu0 0
  %2683 = vmatpush1.bf16.msra.mxu0 %v1720
  %2684 = vmatprep.subr.bf16.mxu0 0
  %2685 = vmatpush1.bf16.msra.mxu0 %v1721
  %2686 = vmatprep.subr.bf16.mxu0 0
  %2687 = vmatpush1.bf16.msra.mxu0 0
  %2688 = vmatprep.subr.bf16.mxu0 0
  %2689 = vmatpush1.bf16.msra.mxu0 0
  %2690 = vmatprep.subr.bf16.mxu0 0
  %2691 = vmatpush1.bf16.msra.mxu0 0
  %2692 = vmatprep.subr.bf16.mxu0 0
  %2693 = vmatpush1.bf16.msra.mxu0 0
  %2694 = vmatprep.subr.bf16.mxu0 0
  %2695 = vmatpush1.bf16.msra.mxu0 0
  %2696 = vmatprep.subr.bf16.mxu0 0
  %2697 = vmatpush1.bf16.msra.mxu0 0
  %2698 = vmatprep.subr.bf16.mxu0 0
  %2699 = vmatpush1.bf16.msra.mxu0 0
  %2700 = vmatprep.subr.bf16.mxu0 0
  %2701 = vmatpush1.bf16.msra.mxu0 0
  %2702 = vmatprep.subr.bf16.mxu0 0
  %2703 = vmatpush1.bf16.msra.mxu0 0
  %2704 = vmatprep.subr.bf16.mxu0 0
  %2705 = vmatpush1.bf16.msra.mxu0 0
  %2706 = vmatprep.subr.bf16.mxu0 0
  %2707 = vmatpush1.bf16.msra.mxu0 0
  %2708 = vmatprep.subr.bf16.mxu0 0
  %2709 = vmatpush1.bf16.msra.mxu0 0
  %2710 = vmatprep.mubr.bf16.mxu0 0
  %2711 = vmatmul.mubr.bf16.gmra.mrb[0].mxu0 %v1824
  %v2712 = vpop.f32.mrb[0].mxu0
  %v2713 = vadd.f32 %v2577, %v2712
  %v2714 = vpop.f32.mrb[0].mxu0
  %v2715 = vpop.f32.mrb[0].mxu0
  %v2716 = vadd.f32 %v2580, %v2715
  %v2717 = vpop.f32.mrb[0].mxu0
  %2718 = vmatprep.mubr.bf16.mxu0 0
  %2719 = vmatmul.mubr.bf16.gmra.mrb[0].mxu0 %v1827
  %v2720 = vpop.f32.mrb[0].mxu0
  %v2721 = vadd.f32 %v2585, %v2720
  %v2722 = vpop.f32.mrb[0].mxu0
  %v2723 = vpop.f32.mrb[0].mxu0
  %v2724 = vadd.f32 %v2588, %v2723
  %v2725 = vpop.f32.mrb[0].mxu0
  %2726 = vmatprep.mubr.bf16.mxu0 0
  %2727 = vmatmul.mubr.bf16.gmra.mrb[0].mxu0 %v1830
  %v2728 = vpop.f32.mrb[0].mxu0
  %v2729 = vadd.f32 %v2593, %v2728
  %v2730 = vpop.f32.mrb[0].mxu0
  %v2731 = vpop.f32.mrb[0].mxu0
  %v2732 = vadd.f32 %v2596, %v2731
  %v2733 = vpop.f32.mrb[0].mxu0
  %2734 = vmatprep.mubr.bf16.mxu0 0
  %2735 = vmatmul.mubr.bf16.gmra.mrb[0].mxu0 %v1833
  %v2736 = vpop.f32.mrb[0].mxu0
  %v2737 = vadd.f32 %v2601, %v2736
  %v2738 = vpop.f32.mrb[0].mxu0
  %v2739 = vpop.f32.mrb[0].mxu0
  %v2740 = vadd.f32 %v2604, %v2739
  %v2741 = vpop.f32.mrb[0].mxu0
  %2742 = vmatprep.mubr.bf16.mxu0 0
  %2743 = vmatmul.mubr.bf16.gmra.mrb[0].mxu0 %v1836
  %v2744 = vpop.f32.mrb[0].mxu0
  %v2745 = vadd.f32 %v2609, %v2744
  %v2746 = vpop.f32.mrb[0].mxu0
  %v2747 = vpop.f32.mrb[0].mxu0
  %v2748 = vadd.f32 %v2612, %v2747
  %v2749 = vpop.f32.mrb[0].mxu0
  %2750 = vmatprep.mubr.bf16.mxu0 0
  %2751 = vmatmul.mubr.bf16.gmra.mrb[0].mxu0 %v1839
  %v2752 = vpop.f32.mrb[0].mxu0
  %v2753 = vadd.f32 %v2617, %v2752
  %v2754 = vpop.f32.mrb[0].mxu0
  %v2755 = vpop.f32.mrb[0].mxu0
  %v2756 = vadd.f32 %v2620, %v2755
  %v2757 = vpop.f32.mrb[0].mxu0
  %2758 = vmatprep.mubr.bf16.mxu0 0
  %2759 = vmatmul.mubr.bf16.gmra.mrb[0].mxu0 %v1842
  %v2760 = vpop.f32.mrb[0].mxu0
  %v2761 = vadd.f32 %v2625, %v2760
  %v2762 = vpop.f32.mrb[0].mxu0
  %v2763 = vpop.f32.mrb[0].mxu0
  %v2764 = vadd.f32 %v2628, %v2763
  %v2765 = vpop.f32.mrb[0].mxu0
  %2766 = vmatprep.mubr.bf16.mxu0 0
  %2767 = vmatmul.mubr.bf16.gmra.mrb[0].mxu0 %v1845
  %v2768 = vpop.f32.mrb[0].mxu0
  %v2769 = vadd.f32 %v2633, %v2768
  %v2770 = vpop.f32.mrb[0].mxu0
  %v2771 = vpop.f32.mrb[0].mxu0
  %v2772 = vadd.f32 %v2636, %v2771
  %v2773 = vpop.f32.mrb[0].mxu0
  %2774 = vmatprep.mubr.bf16.mxu0 0
  %2775 = vmatmul.mubr.bf16.gmra.mrb[0].mxu0 %v1848
  %v2776 = vpop.f32.mrb[0].mxu0
  %v2777 = vadd.f32 %v2641, %v2776
  %v2778 = vpop.f32.mrb[0].mxu0
  %v2779 = vpop.f32.mrb[0].mxu0
  %v2780 = vadd.f32 %v2644, %v2779
  %v2781 = vpop.f32.mrb[0].mxu0
  %2782 = vmatprep.mubr.bf16.mxu0 0
  %2783 = vmatmul.mubr.bf16.gmra.mrb[0].mxu0 %v1851
  %v2784 = vpop.f32.mrb[0].mxu0
  %v2785 = vadd.f32 %v2649, %v2784
  %v2786 = vpop.f32.mrb[0].mxu0
  %v2787 = vpop.f32.mrb[0].mxu0
  %v2788 = vadd.f32 %v2652, %v2787
  %v2789 = vpop.f32.mrb[0].mxu0
  %2790 = vmatprep.mubr.bf16.mxu0 0
  %2791 = vmatmul.mubr.bf16.gmra.mrb[0].mxu0 %v1854
  %v2792 = vpop.f32.mrb[0].mxu0
  %v2793 = vadd.f32 %v2657, %v2792
  %v2794 = vpop.f32.mrb[0].mxu0
  %v2795 = vpop.f32.mrb[0].mxu0
  %v2796 = vadd.f32 %v2660, %v2795
  %v2797 = vpop.f32.mrb[0].mxu0
  %2798 = vmatprep.mubr.bf16.mxu0 0
  %2799 = vmatmul.mubr.bf16.gmra.mrb[0].mxu0 %v1857
  %v2800 = vpop.f32.mrb[0].mxu0
  %v2801 = vadd.f32 %v2665, %v2800
  %v2802 = vpop.f32.mrb[0].mxu0
  %v2803 = vpop.f32.mrb[0].mxu0
  %v2804 = vadd.f32 %v2668, %v2803
  %v2805 = vpop.f32.mrb[0].mxu0
  %2806 = vmatprep.mubr.bf16.mxu0 0
  %2807 = vmatmul.mubr.bf16.gmra.mrb[0].mxu0 %v1860
  %v2808 = vpop.f32.mrb[0].mxu0
  %v2809 = vadd.f32 %v2673, %v2808
  %v2810 = vpop.f32.mrb[0].mxu0
  %v2811 = vpop.f32.mrb[0].mxu0
  %v2812 = vpop.f32.mrb[0].mxu0
  %2813 = vdwg.mxu0
  %v2814 = vmax.f32 %v2713, 0.0
  %v2815 = vmax.f32 %v2716, 0.0
  %v2816 = vmax.f32 %v2721, 0.0
  %v2817 = vmax.f32 %v2724, 0.0
  %v2818 = vmax.f32 %v2729, 0.0
  %v2819 = vmax.f32 %v2732, 0.0
  %v2820 = vmax.f32 %v2737, 0.0
  %v2821 = vmax.f32 %v2740, 0.0
  %v2822 = vmax.f32 %v2745, 0.0
  %v2823 = vmax.f32 %v2748, 0.0
  %v2824 = vmax.f32 %v2753, 0.0
  %v2825 = vmax.f32 %v2756, 0.0
  %v2826 = vmax.f32 %v2761, 0.0
  %v2827 = vmax.f32 %v2764, 0.0
  %v2828 = vmax.f32 %v2769, 0.0
  %v2829 = vmax.f32 %v2772, 0.0
  %v2830 = vmax.f32 %v2777, 0.0
  %v2831 = vmax.f32 %v2780, 0.0
  %v2832 = vmax.f32 %v2785, 0.0
  %v2833 = vmax.f32 %v2788, 0.0
  %v2834 = vmax.f32 %v2793, 0.0
  %v2835 = vmax.f32 %v2796, 0.0
  %v2836 = vmax.f32 %v2801, 0.0
  %v2837 = vmax.f32 %v2804, 0.0
  %v2838 = vmax.f32 %v2809, 0.0
  %vm2839 = vcmask 261120
  %2840 = vst.msk [vmem:[%s3] sm:$0xff] %vm2839, %v2814
  %2841 = vst.msk [vmem:[%s3 + $0x8] sm:$0xff] %vm2839, %v2815
  %2842 = vst.msk [vmem:[%s3 + $0x10] sm:$0xff] %vm2839, %v2816
  %2843 = vst.msk [vmem:[%s3 + $0x18] sm:$0xff] %vm2839, %v2817
  %2844 = vst.msk [vmem:[%s3 + $0x20] sm:$0xff] %vm2839, %v2818
  %2845 = vst.msk [vmem:[%s3 + $0x28] sm:$0xff] %vm2839, %v2819
  %2846 = vst.msk [vmem:[%s3 + $0x30] sm:$0xff] %vm2839, %v2820
  %2847 = vst.msk [vmem:[%s3 + $0x38] sm:$0xff] %vm2839, %v2821
  %2848 = vst.msk [vmem:[%s3 + $0x40] sm:$0xff] %vm2839, %v2822
  %2849 = vst.msk [vmem:[%s3 + $0x48] sm:$0xff] %vm2839, %v2823
  %2850 = vst.msk [vmem:[%s3 + $0x50] sm:$0xff] %vm2839, %v2824
  %2851 = vst.msk [vmem:[%s3 + $0x58] sm:$0xff] %vm2839, %v2825
  %2852 = vst.msk [vmem:[%s3 + $0x60] sm:$0xff] %vm2839, %v2826
  %2853 = vst.msk [vmem:[%s3 + $0x68] sm:$0xff] %vm2839, %v2827
  %2854 = vst.msk [vmem:[%s3 + $0x70] sm:$0xff] %vm2839, %v2828
  %2855 = vst.msk [vmem:[%s3 + $0x78] sm:$0xff] %vm2839, %v2829
  %2856 = vst.msk [vmem:[%s3 + $0x80] sm:$0xff] %vm2839, %v2830
  %2857 = vst.msk [vmem:[%s3 + $0x88] sm:$0xff] %vm2839, %v2831
  %2858 = vst.msk [vmem:[%s3 + $0x90] sm:$0xff] %vm2839, %v2832
  %2859 = vst.msk [vmem:[%s3 + $0x98] sm:$0xff] %vm2839, %v2833
  %2860 = vst.msk [vmem:[%s3 + $0xa0] sm:$0xff] %vm2839, %v2834
  %2861 = vst.msk [vmem:[%s3 + $0xa8] sm:$0xff] %vm2839, %v2835
  %2862 = vst.msk [vmem:[%s3 + $0xb0] sm:$0xff] %vm2839, %v2836
  %2863 = vst.msk [vmem:[%s3 + $0xb8] sm:$0xff] %vm2839, %v2837
  %2864 = vst.msk [vmem:[%s3 + $0xc0] sm:$0xff] %vm2839, %v2838
  // Predicated region
  $region14: #{dqn_forward.5} parent=0 // pred_check
    _
  $region15: #{dqn_forward.5} parent=0 // pred_check_branch
    %2866 = sbr.rel (0) target = $region17
  $region16: #{dqn_forward.5} parent=0 // pred_region
    _
  $region17: #{dqn_forward.5} parent=0 // pred_fallthru
    _
  // Predicated region
  $region18: #{dqn_forward.5} parent=0 // pred_check
    _
  $region19: #{dqn_forward.5} parent=0 // pred_check_branch
    %2868 = sbr.rel (0) target = $region21
  $region20: #{dqn_forward.5} parent=0 // pred_region
    _
  $region21: #{dqn_forward.5} parent=0 // pred_fallthru
    _

</llo_original>
